<compile_context>
chip_gen: v7x
topology: tpu7x:2x2x1
jax: 0.10.0
libtpu: 0.0.40
codegen_flags: <defaults>
</compile_context>

<pallas_src>
import functools
import math

import jax
import jax.numpy as jnp
from jax import lax
from jax.experimental import pallas as pl
from jax.experimental.pallas import tpu as pltpu

# ---- small, shape-consistent hyperparameters -------------------------------
D_MODEL = 32
NUM_HEADS = 4
HEAD_DIM = D_MODEL // NUM_HEADS          # 8
FFN_HIDDEN = 64
MAX_SEQ = 8                              # nn.Embedding(max_sequence_length, d_model)
NUM_LAYERS = 1
KN_VOCAB = 16
BATCH = 2
EPS = 1e-5

M_TOTAL = BATCH * MAX_SEQ                # 16 (batch folded into the row axis)
LANES = 128                              # lane width of the packed parameter slabs
NEG_INF = -1e9
ATTN_SCALE = 1.0 / math.sqrt(HEAD_DIM)


# ============================ host-side packing ===============================

class _SlabPacker:
    """Packs 2-D blocks into one (rows, 128) slab; returns static (off, rows, cols)."""

    def __init__(self, align):
        self.align = align
        self.blocks = []
        self.row = 0

    def add(self, a):
        a = jnp.asarray(a, jnp.float32)
        if a.ndim == 1:
            a = a.reshape(1, -1)
        r, c = a.shape
        rp = -(-r // self.align) * self.align           # pad so next block is aligned
        blk = jnp.zeros((rp, LANES), jnp.float32).at[:r, :c].set(a)
        off = self.row
        self.blocks.append(blk)
        self.row += rp
        return (off, r, c)

    def finalize(self, dtype):
        slab = jnp.concatenate(self.blocks, axis=0)
        pad = (-slab.shape[0]) % 8
        if pad:
            slab = jnp.concatenate(
                [slab, jnp.zeros((pad, LANES), jnp.float32)], axis=0)
        return slab.astype(dtype)


def _attention_mask(causal):
    """Additive bias over the folded (B*S, B*S) score slab (host precomputed)."""
    rows = lax.broadcasted_iota(jnp.int32, (M_TOTAL, M_TOTAL), 0)
    cols = lax.broadcasted_iota(jnp.int32, (M_TOTAL, M_TOTAL), 1)
    allowed = (rows // MAX_SEQ) == (cols // MAX_SEQ)    # block-diagonal over batch
    if causal:
        allowed = jnp.logical_and(allowed, (cols % MAX_SEQ) <= (rows % MAX_SEQ))
    return jnp.where(allowed, 0.0, NEG_INF).astype(jnp.float32)


def _split_fused_qkv(qkv_w, qkv_b):
    """Fused [q|k|v]-per-head projection -> per-head scaled q blocks + fused [k|v]."""
    q_ws, q_bs, kvw, kvb = [], [], [], []
    for h in range(NUM_HEADS):
        b0 = h * 3 * HEAD_DIM
        q_ws.append(qkv_w[:, b0:b0 + HEAD_DIM] * ATTN_SCALE)
        q_bs.append(qkv_b[b0:b0 + HEAD_DIM] * ATTN_SCALE)
        kvw.append(qkv_w[:, b0 + HEAD_DIM:b0 + 3 * HEAD_DIM])
        kvb.append(qkv_b[b0 + HEAD_DIM:b0 + 3 * HEAD_DIM])
    return q_ws, q_bs, jnp.concatenate(kvw, axis=1), jnp.concatenate(kvb, axis=0)


def _split_cross_q(q_w, q_b):
    q_ws = [q_w[:, h * HEAD_DIM:(h + 1) * HEAD_DIM] * ATTN_SCALE
            for h in range(NUM_HEADS)]
    q_bs = [q_b[h * HEAD_DIM:(h + 1) * HEAD_DIM] * ATTN_SCALE
            for h in range(NUM_HEADS)]
    return q_ws, q_bs


def _pack_attention(mats, vecs, q_ws, q_bs, kv_w, kv_b, out_w, out_b):
    return dict(
        q_w=[mats.add(w) for w in q_ws],                 # 4 x (D, hd), scale folded
        q_b=[vecs.add(b) for b in q_bs],                 # 4 x (1, hd)
        kv_wT=mats.add(kv_w.T),                          # (2D, D)  transposed
        kv_bT=vecs.add(kv_b.reshape(-1, 1)),             # (2D, 1)  bias column
        out_w=mats.add(out_w),                           # (D, D)
        out_b=vecs.add(out_b),                           # (1, D)
    )


def _pack_params(params):
    mats = _SlabPacker(align=16)    # bf16 weight matrices (bf16 sublane-tile aligned)
    vecs = _SlabPacker(align=8)     # f32 masks / bias columns / bias & LN rows
    layout = {"enc": [], "dec": []}

    layout["mask_plain"] = vecs.add(_attention_mask(causal=False))
    layout["mask_causal"] = vecs.add(_attention_mask(causal=True))

    for lp in params["enc_layers"]:
        a, f = lp["attn"], lp["ffn"]
        q_ws, q_bs, kv_w, kv_b = _split_fused_qkv(a["qkv_w"], a["qkv_b"])
        layout["enc"].append(dict(
            attn=_pack_attention(mats, vecs, q_ws, q_bs, kv_w, kv_b,
                                 a["out_w"], a["out_b"]),
            ln1_g=vecs.add(lp["ln1_g"]), ln1_b=vecs.add(lp["ln1_b"]),
            w1=mats.add(f["w1"]), b1=vecs.add(f["b1"]),
            w2=mats.add(f["w2"]), b2=vecs.add(f["b2"]),
            ln2_g=vecs.add(lp["ln2_g"]), ln2_b=vecs.add(lp["ln2_b"])))

    for lp in params["dec_layers"]:
        sa, ca, f = lp["self_attn"], lp["cross_attn"], lp["ffn"]
        q_ws, q_bs, kv_w, kv_b = _split_fused_qkv(sa["qkv_w"], sa["qkv_b"])
        cq_ws, cq_bs = _split_cross_q(ca["q_w"], ca["q_b"])
        layout["dec"].append(dict(
            self_attn=_pack_attention(mats, vecs, q_ws, q_bs, kv_w, kv_b,
                                      sa["out_w"], sa["out_b"]),
            ln1_g=vecs.add(lp["ln1_g"]), ln1_b=vecs.add(lp["ln1_b"]),
            cross_attn=_pack_attention(mats, vecs, cq_ws, cq_bs, ca["kv_w"],
                                       ca["kv_b"], ca["out_w"], ca["out_b"]),
            ln2_g=vecs.add(lp["ln2_g"]), ln2_b=vecs.add(lp["ln2_b"]),
            w1=mats.add(f["w1"]), b1=vecs.add(f["b1"]),
            w2=mats.add(f["w2"]), b2=vecs.add(f["b2"]),
            ln3_g=vecs.add(lp["ln3_g"]), ln3_b=vecs.add(lp["ln3_b"])))

    # final vocab projection padded to 128 lanes -> lane-dense output store
    fw = jnp.zeros((D_MODEL, LANES), jnp.float32).at[:, :KN_VOCAB].set(params["final_w"])
    fb = jnp.zeros((LANES,), jnp.float32).at[:KN_VOCAB].set(params["final_b"])
    layout["final_w"] = mats.add(fw)
    layout["final_b"] = vecs.add(fb)

    return mats.finalize(jnp.bfloat16), vecs.finalize(jnp.float32), layout


# =============================== fused kernel =================================

def _fused_transformer_kernel(acts_ref, mats_ref, vecs_ref, out_ref, *, layout):
    f32 = jnp.float32

    def mat(spec):                              # bf16 weight block -> f32 value
        off, r, c = spec
        return mats_ref[off:off + r, :c].astype(f32)

    def vec(spec):                              # f32 mask / bias column / bias row
        off, r, c = spec
        return vecs_ref[off:off + r, :c]

    def add_layernorm(new, res, g_spec, b_spec):
        h = new + res
        mean = jnp.mean(h, axis=-1, keepdims=True)
        var = jnp.mean((h - mean) ** 2, axis=-1, keepdims=True)
        return vec(g_spec) * ((h - mean) * lax.rsqrt(var + EPS)) + vec(b_spec)

    def attention(x_kv, x_q, A, mask):
        # K/V for all heads via ONE transposed matmul; per-head k/v are sublane
        # slices at multiples of 8 (no lane shuffles, no concat anywhere).
        kvT = lax.dot_general(mat(A["kv_wT"]), x_kv, (((1,), (1,)), ((), ())),
                              preferred_element_type=f32) + vec(A["kv_bT"])  # (2D, M)
        out_w = mat(A["out_w"])                                              # (D, D)
        acc = None
        for h in range(NUM_HEADS):
            # per-head query from its own compile-time weight block (scale folded in)
            q_h = jnp.dot(x_q, mat(A["q_w"][h]),
                          preferred_element_type=f32) + vec(A["q_b"][h])     # (M, hd)
            b0 = h * 2 * HEAD_DIM
            kT_h = kvT[b0:b0 + HEAD_DIM, :]                                  # (hd, M)
            vT_h = kvT[b0 + HEAD_DIM:b0 + 2 * HEAD_DIM, :]                   # (hd, M)
            s = jnp.dot(q_h, kT_h, preferred_element_type=f32) + mask        # (M, M)
            s = s - jnp.max(s, axis=-1, keepdims=True)
            e = jnp.exp(s)
            p = e * pl.reciprocal(jnp.sum(e, axis=-1, keepdims=True), approx=True)
            o = lax.dot_general(p, vT_h, (((1,), (1,)), ((), ())),
                                preferred_element_type=f32)                  # (M, hd)
            # accumulate straight into the output projection (replaces the concat)
            c = jnp.dot(o, out_w[h * HEAD_DIM:(h + 1) * HEAD_DIM, :],
                        preferred_element_type=f32)                          # (M, D)
            acc = c if acc is None else acc + c
        return acc + vec(A["out_b"])

    def ffn(h_in, L):
        h = jnp.dot(h_in, mat(L["w1"]), preferred_element_type=f32) + vec(L["b1"])
        h = jnp.maximum(h, 0.0)
        return jnp.dot(h, mat(L["w2"]), preferred_element_type=f32) + vec(L["b2"])

    x = acts_ref[0:M_TOTAL, :]                  # encoder stream (B*S, D)
    y = acts_ref[M_TOTAL:2 * M_TOTAL, :]        # decoder stream (B*S, D)
    mask_plain = vec(layout["mask_plain"])
    mask_causal = vec(layout["mask_causal"])

    # ------------------------------ encoder ---------------------------------
    for L in layout["enc"]:
        a = attention(x, x, L["attn"], mask_plain)
        x = add_layernorm(a, x, L["ln1_g"], L["ln1_b"])
        x = add_layernorm(ffn(x, L), x, L["ln2_g"], L["ln2_b"])

    # ------------------------------ decoder ---------------------------------
    for L in layout["dec"]:
        a = attention(y, y, L["self_attn"], mask_causal)
        y = add_layernorm(a, y, L["ln1_g"], L["ln1_b"])
        a = attention(x, y, L["cross_attn"], mask_plain)      # kv from encoder, q from decoder
        y = add_layernorm(a, y, L["ln2_g"], L["ln2_b"])
        y = add_layernorm(ffn(y, L), y, L["ln3_g"], L["ln3_b"])

    # ------------------ final (lane-padded, lane-dense) projection ----------
    logits = jnp.dot(y, mat(layout["final_w"]),
                     preferred_element_type=f32) + vec(layout["final_b"])
    out_ref[...] = logits.astype(out_ref.dtype)


# =========================== model glue (plain JAX) ===========================

def positional_encoding(max_seq, d_model):
    even_i = jnp.arange(0, d_model, 2, dtype=jnp.float32)
    denom = jnp.power(10000.0, even_i / d_model)
    position = jnp.arange(max_seq, dtype=jnp.float32)[:, None]
    even_pe = jnp.sin(position / denom)
    odd_pe = jnp.cos(position / denom)
    return jnp.stack([even_pe, odd_pe], axis=2).reshape(max_seq, d_model)


def transformer_forward(params, x_tokens, y_tokens):
    pe = positional_encoding(MAX_SEQ, D_MODEL)
    # embedding lookup + positional encoding (dropout = identity in eval mode)
    x = jnp.take(params["enc_emb"], x_tokens, axis=0) + pe[None]
    y = jnp.take(params["dec_emb"], y_tokens, axis=0) + pe[None]
    acts = jnp.concatenate([x.reshape(M_TOTAL, D_MODEL),
                            y.reshape(M_TOTAL, D_MODEL)],
                           axis=0).astype(jnp.float32)

    mats, vecs, layout = _pack_params(params)
    vmem = pl.BlockSpec(memory_space=pltpu.MemorySpace.VMEM)

    out2d = pl.pallas_call(
        functools.partial(_fused_transformer_kernel, layout=layout),
        out_shape=jax.ShapeDtypeStruct((M_TOTAL, LANES), jnp.float32),
        in_specs=[vmem, vmem, vmem],
        out_specs=vmem,
    )(acts, mats, vecs)

    return out2d[:, :KN_VOCAB].reshape(BATCH, MAX_SEQ, KN_VOCAB)


# ============================ deterministic init ==============================

def _init_linear(key, fan_in, fan_out):
    w = jax.random.normal(key, (fan_in, fan_out), jnp.float32) * 0.02
    b = jnp.zeros((fan_out,), jnp.float32)
    return w, b


def init_params(key):
    keys = iter(jax.random.split(key, 64))
    p = {}
    p["enc_emb"] = jax.random.normal(next(keys), (MAX_SEQ, D_MODEL), jnp.float32) * 0.02
    p["dec_emb"] = jax.random.normal(next(keys), (MAX_SEQ, D_MODEL), jnp.float32) * 0.02

    enc_layers = []
    for _ in range(NUM_LAYERS):
        qkv_w, qkv_b = _init_linear(next(keys), D_MODEL, 3 * D_MODEL)
        out_w, out_b = _init_linear(next(keys), D_MODEL, D_MODEL)
        w1, b1 = _init_linear(next(keys), D_MODEL, FFN_HIDDEN)
        w2, b2 = _init_linear(next(keys), FFN_HIDDEN, D_MODEL)
        enc_layers.append(dict(
            attn=dict(qkv_w=qkv_w, qkv_b=qkv_b, out_w=out_w, out_b=out_b),
            ln1_g=jnp.ones(D_MODEL), ln1_b=jnp.zeros(D_MODEL),
            ffn=dict(w1=w1, b1=b1, w2=w2, b2=b2),
            ln2_g=jnp.ones(D_MODEL), ln2_b=jnp.zeros(D_MODEL),
        ))
    p["enc_layers"] = enc_layers

    dec_layers = []
    for _ in range(NUM_LAYERS):
        qkv_w, qkv_b = _init_linear(next(keys), D_MODEL, 3 * D_MODEL)
        sout_w, sout_b = _init_linear(next(keys), D_MODEL, D_MODEL)
        kv_w, kv_b = _init_linear(next(keys), D_MODEL, 2 * D_MODEL)
        q_w, q_b = _init_linear(next(keys), D_MODEL, D_MODEL)
        cout_w, cout_b = _init_linear(next(keys), D_MODEL, D_MODEL)
        w1, b1 = _init_linear(next(keys), D_MODEL, FFN_HIDDEN)
        w2, b2 = _init_linear(next(keys), FFN_HIDDEN, D_MODEL)
        dec_layers.append(dict(
            self_attn=dict(qkv_w=qkv_w, qkv_b=qkv_b, out_w=sout_w, out_b=sout_b),
            ln1_g=jnp.ones(D_MODEL), ln1_b=jnp.zeros(D_MODEL),
            cross_attn=dict(kv_w=kv_w, kv_b=kv_b, q_w=q_w, q_b=q_b,
                            out_w=cout_w, out_b=cout_b),
            ln2_g=jnp.ones(D_MODEL), ln2_b=jnp.zeros(D_MODEL),
            ffn=dict(w1=w1, b1=b1, w2=w2, b2=b2),
            ln3_g=jnp.ones(D_MODEL), ln3_b=jnp.zeros(D_MODEL),
        ))
    p["dec_layers"] = dec_layers

    p["final_w"], p["final_b"] = _init_linear(next(keys), D_MODEL, KN_VOCAB)
    return p


# ==================================== main ====================================

if __name__ == "__main__":
    root = jax.random.PRNGKey(0)
    k_params, k_x, k_y = jax.random.split(root, 3)

    params = init_params(k_params)

    # token ids (embedding table has MAX_SEQ rows, mirroring the PyTorch module)
    x_tokens = jax.random.randint(k_x, (BATCH, MAX_SEQ), 0, MAX_SEQ, dtype=jnp.int32)
    y_tokens = jax.random.randint(k_y, (BATCH, MAX_SEQ), 0, MAX_SEQ, dtype=jnp.int32)

    fwd = jax.jit(transformer_forward)
    out = fwd(params, x_tokens, y_tokens)
    out = jax.block_until_ready(out)

    assert out.shape == (BATCH, MAX_SEQ, KN_VOCAB)
    assert bool(jnp.all(jnp.isfinite(out)))
    print("KERNEL_OK")
</pallas_src>

<mosaic_0001>
module attributes {stable_mosaic.version = 11 : i64} {
  func.func @_fused_transformer_kernel(%arg0: memref<32x32xf32, #tpu.memory_space<vmem>>, %arg1: memref<896x128xbf16, #tpu.memory_space<vmem>>, %arg2: memref<464x128xf32, #tpu.memory_space<vmem>>, %arg3: memref<16x128xf32, #tpu.memory_space<vmem>>) attributes {dimension_semantics = [], scalar_prefetch = 0 : i64, scratch_operands = 0 : i64, tpu.core_type = #tpu.core_type<tc>} {
    %c0 = arith.constant 0 : index
    %c0_0 = arith.constant 0 : index
    %0 = vector.load %arg0[%c0, %c0_0] : memref<32x32xf32, #tpu.memory_space<vmem>>, vector<16x32xf32>
    %c16 = arith.constant 16 : index
    %c0_1 = arith.constant 0 : index
    %1 = vector.load %arg0[%c16, %c0_1] : memref<32x32xf32, #tpu.memory_space<vmem>>, vector<16x32xf32>
    %c0_2 = arith.constant 0 : index
    %c0_3 = arith.constant 0 : index
    %2 = vector.load %arg2[%c0_2, %c0_3] : memref<464x128xf32, #tpu.memory_space<vmem>>, vector<16x16xf32>
    %c16_4 = arith.constant 16 : index
    %c0_5 = arith.constant 0 : index
    %3 = vector.load %arg2[%c16_4, %c0_5] : memref<464x128xf32, #tpu.memory_space<vmem>>, vector<16x16xf32>
    %c128 = arith.constant 128 : index
    %c0_6 = arith.constant 0 : index
    %4 = vector.load %arg1[%c128, %c0_6] : memref<896x128xbf16, #tpu.memory_space<vmem>>, vector<64x32xbf16>
    %5 = arith.extf %4 : vector<64x32xbf16> to vector<64x32xf32>
    %cst = arith.constant dense<0.000000e+00> : vector<64x16xf32>
    %6 = tpu.matmul %5, %0, %cst {dimension_numbers = #tpu.dot_dimension_numbers<[1], [1], [0], [0], [0, 0, 1, 0], [], []>} : vector<64x32xf32>, vector<16x32xf32>, vector<64x16xf32> -> vector<64x16xf32>
    %c64 = arith.constant 64 : index
    %c0_7 = arith.constant 0 : index
    %7 = vector.load %arg2[%c64, %c0_7] : memref<464x128xf32, #tpu.memory_space<vmem>>, vector<64x1xf32>
    %8 = vector.broadcast %7 : vector<64x1xf32> to vector<64x16xf32>
    %9 = arith.addf %6, %8 : vector<64x16xf32>
    %c192 = arith.constant 192 : index
    %c0_8 = arith.constant 0 : index
    %10 = vector.load %arg1[%c192, %c0_8] : memref<896x128xbf16, #tpu.memory_space<vmem>>, vector<32x32xbf16>
    %11 = arith.extf %10 : vector<32x32xbf16> to vector<32x32xf32>
    %c0_9 = arith.constant 0 : index
    %c0_10 = arith.constant 0 : index
    %12 = vector.load %arg1[%c0_9, %c0_10] : memref<896x128xbf16, #tpu.memory_space<vmem>>, vector<32x8xbf16>
    %13 = arith.extf %12 : vector<32x8xbf16> to vector<32x8xf32>
    %cst_11 = arith.constant dense<0.000000e+00> : vector<16x8xf32>
    %14 = tpu.matmul %0, %13, %cst_11 {dimension_numbers = #tpu.dot_dimension_numbers<[1], [0], [0], [1], [0, 0, 1, 1], [], []>} : vector<16x32xf32>, vector<32x8xf32>, vector<16x8xf32> -> vector<16x8xf32>
    %c32 = arith.constant 32 : index
    %c0_12 = arith.constant 0 : index
    %15 = vector.load %arg2[%c32, %c0_12] : memref<464x128xf32, #tpu.memory_space<vmem>>, vector<1x8xf32>
    %16 = vector.broadcast %15 : vector<1x8xf32> to vector<16x8xf32>
    %17 = arith.addf %14, %16 : vector<16x8xf32>
    %18 = vector.extract_strided_slice %9 {offsets = [0, 0], sizes = [8, 16], strides = [1, 1]} : vector<64x16xf32> to vector<8x16xf32>
    %19 = vector.extract_strided_slice %9 {offsets = [8, 0], sizes = [8, 16], strides = [1, 1]} : vector<64x16xf32> to vector<8x16xf32>
    %cst_13 = arith.constant dense<0.000000e+00> : vector<16x16xf32>
    %20 = tpu.matmul %17, %18, %cst_13 {dimension_numbers = #tpu.dot_dimension_numbers<[1], [0], [0], [1], [0, 0, 1, 1], [], []>} : vector<16x8xf32>, vector<8x16xf32>, vector<16x16xf32> -> vector<16x16xf32>
    %21 = arith.addf %20, %2 : vector<16x16xf32>
    %cst_14 = arith.constant dense<0xFF800000> : vector<16xf32>
    %22 = vector.multi_reduction <maximumf>, %21, %cst_14 [1] : vector<16x16xf32> to vector<16xf32>
    %23 = vector.shape_cast %22 : vector<16xf32> to vector<16x1xf32>
    %24 = vector.broadcast %23 : vector<16x1xf32> to vector<16x16xf32>
    %25 = arith.subf %21, %24 : vector<16x16xf32>
    %26 = math.exp %25 : vector<16x16xf32>
    %cst_15 = arith.constant dense<0.000000e+00> : vector<16xf32>
    %27 = vector.multi_reduction <add>, %26, %cst_15 [1] : vector<16x16xf32> to vector<16xf32>
    %28 = vector.shape_cast %27 : vector<16xf32> to vector<16x1xf32>
    %29 = tpu.reciprocal %28 {approx = true} : vector<16x1xf32> -> vector<16x1xf32>
    %30 = vector.broadcast %29 : vector<16x1xf32> to vector<16x16xf32>
    %31 = arith.mulf %26, %30 : vector<16x16xf32>
    %cst_16 = arith.constant dense<0.000000e+00> : vector<16x8xf32>
    %32 = tpu.matmul %31, %19, %cst_16 {dimension_numbers = #tpu.dot_dimension_numbers<[1], [1], [0], [0], [0, 0, 1, 0], [], []>} : vector<16x16xf32>, vector<8x16xf32>, vector<16x8xf32> -> vector<16x8xf32>
    %33 = vector.extract_strided_slice %11 {offsets = [0, 0], sizes = [8, 32], strides = [1, 1]} : vector<32x32xf32> to vector<8x32xf32>
    %cst_17 = arith.constant dense<0.000000e+00> : vector<16x32xf32>
    %34 = tpu.matmul %32, %33, %cst_17 {dimension_numbers = #tpu.dot_dimension_numbers<[1], [0], [0], [1], [0, 0, 1, 1], [], []>} : vector<16x8xf32>, vector<8x32xf32>, vector<16x32xf32> -> vector<16x32xf32>
    %c32_18 = arith.constant 32 : index
    %c0_19 = arith.constant 0 : index
    %35 = vector.load %arg1[%c32_18, %c0_19] : memref<896x128xbf16, #tpu.memory_space<vmem>>, vector<32x8xbf16>
    %36 = arith.extf %35 : vector<32x8xbf16> to vector<32x8xf32>
    %cst_20 = arith.constant dense<0.000000e+00> : vector<16x8xf32>
    %37 = tpu.matmul %0, %36, %cst_20 {dimension_numbers = #tpu.dot_dimension_numbers<[1], [0], [0], [1], [0, 0, 1, 1], [], []>} : vector<16x32xf32>, vector<32x8xf32>, vector<16x8xf32> -> vector<16x8xf32>
    %c40 = arith.constant 40 : index
    %c0_21 = arith.constant 0 : index
    %38 = vector.load %arg2[%c40, %c0_21] : memref<464x128xf32, #tpu.memory_space<vmem>>, vector<1x8xf32>
    %39 = vector.broadcast %38 : vector<1x8xf32> to vector<16x8xf32>
    %40 = arith.addf %37, %39 : vector<16x8xf32>
    %41 = vector.extract_strided_slice %9 {offsets = [16, 0], sizes = [8, 16], strides = [1, 1]} : vector<64x16xf32> to vector<8x16xf32>
    %42 = vector.extract_strided_slice %9 {offsets = [24, 0], sizes = [8, 16], strides = [1, 1]} : vector<64x16xf32> to vector<8x16xf32>
    %cst_22 = arith.constant dense<0.000000e+00> : vector<16x16xf32>
    %43 = tpu.matmul %40, %41, %cst_22 {dimension_numbers = #tpu.dot_dimension_numbers<[1], [0], [0], [1], [0, 0, 1, 1], [], []>} : vector<16x8xf32>, vector<8x16xf32>, vector<16x16xf32> -> vector<16x16xf32>
    %44 = arith.addf %43, %2 : vector<16x16xf32>
    %cst_23 = arith.constant dense<0xFF800000> : vector<16xf32>
    %45 = vector.multi_reduction <maximumf>, %44, %cst_23 [1] : vector<16x16xf32> to vector<16xf32>
    %46 = vector.shape_cast %45 : vector<16xf32> to vector<16x1xf32>
    %47 = vector.broadcast %46 : vector<16x1xf32> to vector<16x16xf32>
    %48 = arith.subf %44, %47 : vector<16x16xf32>
    %49 = math.exp %48 : vector<16x16xf32>
    %cst_24 = arith.constant dense<0.000000e+00> : vector<16xf32>
    %50 = vector.multi_reduction <add>, %49, %cst_24 [1] : vector<16x16xf32> to vector<16xf32>
    %51 = vector.shape_cast %50 : vector<16xf32> to vector<16x1xf32>
    %52 = tpu.reciprocal %51 {approx = true} : vector<16x1xf32> -> vector<16x1xf32>
    %53 = vector.broadcast %52 : vector<16x1xf32> to vector<16x16xf32>
    %54 = arith.mulf %49, %53 : vector<16x16xf32>
    %cst_25 = arith.constant dense<0.000000e+00> : vector<16x8xf32>
    %55 = tpu.matmul %54, %42, %cst_25 {dimension_numbers = #tpu.dot_dimension_numbers<[1], [1], [0], [0], [0, 0, 1, 0], [], []>} : vector<16x16xf32>, vector<8x16xf32>, vector<16x8xf32> -> vector<16x8xf32>
    %56 = vector.extract_strided_slice %11 {offsets = [8, 0], sizes = [8, 32], strides = [1, 1]} : vector<32x32xf32> to vector<8x32xf32>
    %cst_26 = arith.constant dense<0.000000e+00> : vector<16x32xf32>
    %57 = tpu.matmul %55, %56, %cst_26 {dimension_numbers = #tpu.dot_dimension_numbers<[1], [0], [0], [1], [0, 0, 1, 1], [], []>} : vector<16x8xf32>, vector<8x32xf32>, vector<16x32xf32> -> vector<16x32xf32>
    %58 = arith.addf %34, %57 : vector<16x32xf32>
    %c64_27 = arith.constant 64 : index
    %c0_28 = arith.constant 0 : index
    %59 = vector.load %arg1[%c64_27, %c0_28] : memref<896x128xbf16, #tpu.memory_space<vmem>>, vector<32x8xbf16>
    %60 = arith.extf %59 : vector<32x8xbf16> to vector<32x8xf32>
    %cst_29 = arith.constant dense<0.000000e+00> : vector<16x8xf32>
    %61 = tpu.matmul %0, %60, %cst_29 {dimension_numbers = #tpu.dot_dimension_numbers<[1], [0], [0], [1], [0, 0, 1, 1], [], []>} : vector<16x32xf32>, vector<32x8xf32>, vector<16x8xf32> -> vector<16x8xf32>
    %c48 = arith.constant 48 : index
    %c0_30 = arith.constant 0 : index
    %62 = vector.load %arg2[%c48, %c0_30] : memref<464x128xf32, #tpu.memory_space<vmem>>, vector<1x8xf32>
    %63 = vector.broadcast %62 : vector<1x8xf32> to vector<16x8xf32>
    %64 = arith.addf %61, %63 : vector<16x8xf32>
    %65 = vector.extract_strided_slice %9 {offsets = [32, 0], sizes = [8, 16], strides = [1, 1]} : vector<64x16xf32> to vector<8x16xf32>
    %66 = vector.extract_strided_slice %9 {offsets = [40, 0], sizes = [8, 16], strides = [1, 1]} : vector<64x16xf32> to vector<8x16xf32>
    %cst_31 = arith.constant dense<0.000000e+00> : vector<16x16xf32>
    %67 = tpu.matmul %64, %65, %cst_31 {dimension_numbers = #tpu.dot_dimension_numbers<[1], [0], [0], [1], [0, 0, 1, 1], [], []>} : vector<16x8xf32>, vector<8x16xf32>, vector<16x16xf32> -> vector<16x16xf32>
    %68 = arith.addf %67, %2 : vector<16x16xf32>
    %cst_32 = arith.constant dense<0xFF800000> : vector<16xf32>
    %69 = vector.multi_reduction <maximumf>, %68, %cst_32 [1] : vector<16x16xf32> to vector<16xf32>
    %70 = vector.shape_cast %69 : vector<16xf32> to vector<16x1xf32>
    %71 = vector.broadcast %70 : vector<16x1xf32> to vector<16x16xf32>
    %72 = arith.subf %68, %71 : vector<16x16xf32>
    %73 = math.exp %72 : vector<16x16xf32>
    %cst_33 = arith.constant dense<0.000000e+00> : vector<16xf32>
    %74 = vector.multi_reduction <add>, %73, %cst_33 [1] : vector<16x16xf32> to vector<16xf32>
    %75 = vector.shape_cast %74 : vector<16xf32> to vector<16x1xf32>
    %76 = tpu.reciprocal %75 {approx = true} : vector<16x1xf32> -> vector<16x1xf32>
    %77 = vector.broadcast %76 : vector<16x1xf32> to vector<16x16xf32>
    %78 = arith.mulf %73, %77 : vector<16x16xf32>
    %cst_34 = arith.constant dense<0.000000e+00> : vector<16x8xf32>
    %79 = tpu.matmul %78, %66, %cst_34 {dimension_numbers = #tpu.dot_dimension_numbers<[1], [1], [0], [0], [0, 0, 1, 0], [], []>} : vector<16x16xf32>, vector<8x16xf32>, vector<16x8xf32> -> vector<16x8xf32>
    %80 = vector.extract_strided_slice %11 {offsets = [16, 0], sizes = [8, 32], strides = [1, 1]} : vector<32x32xf32> to vector<8x32xf32>
    %cst_35 = arith.constant dense<0.000000e+00> : vector<16x32xf32>
    %81 = tpu.matmul %79, %80, %cst_35 {dimension_numbers = #tpu.dot_dimension_numbers<[1], [0], [0], [1], [0, 0, 1, 1], [], []>} : vector<16x8xf32>, vector<8x32xf32>, vector<16x32xf32> -> vector<16x32xf32>
    %82 = arith.addf %58, %81 : vector<16x32xf32>
    %c96 = arith.constant 96 : index
    %c0_36 = arith.constant 0 : index
    %83 = vector.load %arg1[%c96, %c0_36] : memref<896x128xbf16, #tpu.memory_space<vmem>>, vector<32x8xbf16>
    %84 = arith.extf %83 : vector<32x8xbf16> to vector<32x8xf32>
    %cst_37 = arith.constant dense<0.000000e+00> : vector<16x8xf32>
    %85 = tpu.matmul %0, %84, %cst_37 {dimension_numbers = #tpu.dot_dimension_numbers<[1], [0], [0], [1], [0, 0, 1, 1], [], []>} : vector<16x32xf32>, vector<32x8xf32>, vector<16x8xf32> -> vector<16x8xf32>
    %c56 = arith.constant 56 : index
    %c0_38 = arith.constant 0 : index
    %86 = vector.load %arg2[%c56, %c0_38] : memref<464x128xf32, #tpu.memory_space<vmem>>, vector<1x8xf32>
    %87 = vector.broadcast %86 : vector<1x8xf32> to vector<16x8xf32>
    %88 = arith.addf %85, %87 : vector<16x8xf32>
    %89 = vector.extract_strided_slice %9 {offsets = [48, 0], sizes = [8, 16], strides = [1, 1]} : vector<64x16xf32> to vector<8x16xf32>
    %90 = vector.extract_strided_slice %9 {offsets = [56, 0], sizes = [8, 16], strides = [1, 1]} : vector<64x16xf32> to vector<8x16xf32>
    %cst_39 = arith.constant dense<0.000000e+00> : vector<16x16xf32>
    %91 = tpu.matmul %88, %89, %cst_39 {dimension_numbers = #tpu.dot_dimension_numbers<[1], [0], [0], [1], [0, 0, 1, 1], [], []>} : vector<16x8xf32>, vector<8x16xf32>, vector<16x16xf32> -> vector<16x16xf32>
    %92 = arith.addf %91, %2 : vector<16x16xf32>
    %cst_40 = arith.constant dense<0xFF800000> : vector<16xf32>
    %93 = vector.multi_reduction <maximumf>, %92, %cst_40 [1] : vector<16x16xf32> to vector<16xf32>
    %94 = vector.shape_cast %93 : vector<16xf32> to vector<16x1xf32>
    %95 = vector.broadcast %94 : vector<16x1xf32> to vector<16x16xf32>
    %96 = arith.subf %92, %95 : vector<16x16xf32>
    %97 = math.exp %96 : vector<16x16xf32>
    %cst_41 = arith.constant dense<0.000000e+00> : vector<16xf32>
    %98 = vector.multi_reduction <add>, %97, %cst_41 [1] : vector<16x16xf32> to vector<16xf32>
    %99 = vector.shape_cast %98 : vector<16xf32> to vector<16x1xf32>
    %100 = tpu.reciprocal %99 {approx = true} : vector<16x1xf32> -> vector<16x1xf32>
    %101 = vector.broadcast %100 : vector<16x1xf32> to vector<16x16xf32>
    %102 = arith.mulf %97, %101 : vector<16x16xf32>
    %cst_42 = arith.constant dense<0.000000e+00> : vector<16x8xf32>
    %103 = tpu.matmul %102, %90, %cst_42 {dimension_numbers = #tpu.dot_dimension_numbers<[1], [1], [0], [0], [0, 0, 1, 0], [], []>} : vector<16x16xf32>, vector<8x16xf32>, vector<16x8xf32> -> vector<16x8xf32>
    %104 = vector.extract_strided_slice %11 {offsets = [24, 0], sizes = [8, 32], strides = [1, 1]} : vector<32x32xf32> to vector<8x32xf32>
    %cst_43 = arith.constant dense<0.000000e+00> : vector<16x32xf32>
    %105 = tpu.matmul %103, %104, %cst_43 {dimension_numbers = #tpu.dot_dimension_numbers<[1], [0], [0], [1], [0, 0, 1, 1], [], []>} : vector<16x8xf32>, vector<8x32xf32>, vector<16x32xf32> -> vector<16x32xf32>
    %106 = arith.addf %82, %105 : vector<16x32xf32>
    %c128_44 = arith.constant 128 : index
    %c0_45 = arith.constant 0 : index
    %107 = vector.load %arg2[%c128_44, %c0_45] : memref<464x128xf32, #tpu.memory_space<vmem>>, vector<1x32xf32>
    %108 = vector.broadcast %107 : vector<1x32xf32> to vector<16x32xf32>
    %109 = arith.addf %106, %108 : vector<16x32xf32>
    %110 = arith.addf %109, %0 : vector<16x32xf32>
    %cst_46 = arith.constant dense<0.000000e+00> : vector<16xf32>
    %111 = vector.multi_reduction <add>, %110, %cst_46 [1] : vector<16x32xf32> to vector<16xf32>
    %112 = vector.shape_cast %111 : vector<16xf32> to vector<16x1xf32>
    %cst_47 = arith.constant 3.200000e+01 : f32
    %113 = vector.broadcast %cst_47 : f32 to vector<16x1xf32>
    %114 = arith.divf %112, %113 : vector<16x1xf32>
    %115 = vector.broadcast %114 : vector<16x1xf32> to vector<16x32xf32>
    %116 = arith.subf %110, %115 : vector<16x32xf32>
    %117 = arith.mulf %116, %116 : vector<16x32xf32>
    %cst_48 = arith.constant dense<0.000000e+00> : vector<16xf32>
    %118 = vector.multi_reduction <add>, %117, %cst_48 [1] : vector<16x32xf32> to vector<16xf32>
    %119 = vector.shape_cast %118 : vector<16xf32> to vector<16x1xf32>
    %cst_49 = arith.constant 3.200000e+01 : f32
    %120 = vector.broadcast %cst_49 : f32 to vector<16x1xf32>
    %121 = arith.divf %119, %120 : vector<16x1xf32>
    %c136 = arith.constant 136 : index
    %c0_50 = arith.constant 0 : index
    %122 = vector.load %arg2[%c136, %c0_50] : memref<464x128xf32, #tpu.memory_space<vmem>>, vector<1x32xf32>
    %123 = vector.broadcast %114 : vector<16x1xf32> to vector<16x32xf32>
    %124 = arith.subf %110, %123 : vector<16x32xf32>
    %cst_51 = arith.constant 9.99999974E-6 : f32
    %125 = vector.broadcast %cst_51 : f32 to vector<16x1xf32>
    %126 = arith.addf %121, %125 : vector<16x1xf32>
    %127 = math.rsqrt %126 : vector<16x1xf32>
    %128 = vector.broadcast %127 : vector<16x1xf32> to vector<16x32xf32>
    %129 = arith.mulf %124, %128 : vector<16x32xf32>
    %130 = vector.broadcast %122 : vector<1x32xf32> to vector<16x32xf32>
    %131 = arith.mulf %130, %129 : vector<16x32xf32>
    %c144 = arith.constant 144 : index
    %c0_52 = arith.constant 0 : index
    %132 = vector.load %arg2[%c144, %c0_52] : memref<464x128xf32, #tpu.memory_space<vmem>>, vector<1x32xf32>
    %133 = vector.broadcast %132 : vector<1x32xf32> to vector<16x32xf32>
    %134 = arith.addf %131, %133 : vector<16x32xf32>
    %c224 = arith.constant 224 : index
    %c0_53 = arith.constant 0 : index
    %135 = vector.load %arg1[%c224, %c0_53] : memref<896x128xbf16, #tpu.memory_space<vmem>>, vector<32x64xbf16>
    %136 = arith.extf %135 : vector<32x64xbf16> to vector<32x64xf32>
    %cst_54 = arith.constant dense<0.000000e+00> : vector<16x64xf32>
    %137 = tpu.matmul %134, %136, %cst_54 {dimension_numbers = #tpu.dot_dimension_numbers<[1], [0], [0], [1], [0, 0, 1, 1], [], []>} : vector<16x32xf32>, vector<32x64xf32>, vector<16x64xf32> -> vector<16x64xf32>
    %c152 = arith.constant 152 : index
    %c0_55 = arith.constant 0 : index
    %138 = vector.load %arg2[%c152, %c0_55] : memref<464x128xf32, #tpu.memory_space<vmem>>, vector<1x64xf32>
    %139 = vector.broadcast %138 : vector<1x64xf32> to vector<16x64xf32>
    %140 = arith.addf %137, %139 : vector<16x64xf32>
    %cst_56 = arith.constant 0.000000e+00 : f32
    %141 = vector.broadcast %cst_56 : f32 to vector<16x64xf32>
    %142 = arith.maximumf %140, %141 : vector<16x64xf32>
    %c256 = arith.constant 256 : index
    %c0_57 = arith.constant 0 : index
    %143 = vector.load %arg1[%c256, %c0_57] : memref<896x128xbf16, #tpu.memory_space<vmem>>, vector<64x32xbf16>
    %144 = arith.extf %143 : vector<64x32xbf16> to vector<64x32xf32>
    %cst_58 = arith.constant dense<0.000000e+00> : vector<16x32xf32>
    %145 = tpu.matmul %142, %144, %cst_58 {dimension_numbers = #tpu.dot_dimension_numbers<[1], [0], [0], [1], [0, 0, 1, 1], [], []>} : vector<16x64xf32>, vector<64x32xf32>, vector<16x32xf32> -> vector<16x32xf32>
    %c160 = arith.constant 160 : index
    %c0_59 = arith.constant 0 : index
    %146 = vector.load %arg2[%c160, %c0_59] : memref<464x128xf32, #tpu.memory_space<vmem>>, vector<1x32xf32>
    %147 = vector.broadcast %146 : vector<1x32xf32> to vector<16x32xf32>
    %148 = arith.addf %145, %147 : vector<16x32xf32>
    %149 = arith.addf %148, %134 : vector<16x32xf32>
    %cst_60 = arith.constant dense<0.000000e+00> : vector<16xf32>
    %150 = vector.multi_reduction <add>, %149, %cst_60 [1] : vector<16x32xf32> to vector<16xf32>
    %151 = vector.shape_cast %150 : vector<16xf32> to vector<16x1xf32>
    %cst_61 = arith.constant 3.200000e+01 : f32
    %152 = vector.broadcast %cst_61 : f32 to vector<16x1xf32>
    %153 = arith.divf %151, %152 : vector<16x1xf32>
    %154 = vector.broadcast %153 : vector<16x1xf32> to vector<16x32xf32>
    %155 = arith.subf %149, %154 : vector<16x32xf32>
    %156 = arith.mulf %155, %155 : vector<16x32xf32>
    %cst_62 = arith.constant dense<0.000000e+00> : vector<16xf32>
    %157 = vector.multi_reduction <add>, %156, %cst_62 [1] : vector<16x32xf32> to vector<16xf32>
    %158 = vector.shape_cast %157 : vector<16xf32> to vector<16x1xf32>
    %cst_63 = arith.constant 3.200000e+01 : f32
    %159 = vector.broadcast %cst_63 : f32 to vector<16x1xf32>
    %160 = arith.divf %158, %159 : vector<16x1xf32>
    %c168 = arith.constant 168 : index
    %c0_64 = arith.constant 0 : index
    %161 = vector.load %arg2[%c168, %c0_64] : memref<464x128xf32, #tpu.memory_space<vmem>>, vector<1x32xf32>
    %162 = vector.broadcast %153 : vector<16x1xf32> to vector<16x32xf32>
    %163 = arith.subf %149, %162 : vector<16x32xf32>
    %cst_65 = arith.constant 9.99999974E-6 : f32
    %164 = vector.broadcast %cst_65 : f32 to vector<16x1xf32>
    %165 = arith.addf %160, %164 : vector<16x1xf32>
    %166 = math.rsqrt %165 : vector<16x1xf32>
    %167 = vector.broadcast %166 : vector<16x1xf32> to vector<16x32xf32>
    %168 = arith.mulf %163, %167 : vector<16x32xf32>
    %169 = vector.broadcast %161 : vector<1x32xf32> to vector<16x32xf32>
    %170 = arith.mulf %169, %168 : vector<16x32xf32>
    %c176 = arith.constant 176 : index
    %c0_66 = arith.constant 0 : index
    %171 = vector.load %arg2[%c176, %c0_66] : memref<464x128xf32, #tpu.memory_space<vmem>>, vector<1x32xf32>
    %172 = vector.broadcast %171 : vector<1x32xf32> to vector<16x32xf32>
    %173 = arith.addf %170, %172 : vector<16x32xf32>
    %c448 = arith.constant 448 : index
    %c0_67 = arith.constant 0 : index
    %174 = vector.load %arg1[%c448, %c0_67] : memref<896x128xbf16, #tpu.memory_space<vmem>>, vector<64x32xbf16>
    %175 = arith.extf %174 : vector<64x32xbf16> to vector<64x32xf32>
    %cst_68 = arith.constant dense<0.000000e+00> : vector<64x16xf32>
    %176 = tpu.matmul %175, %1, %cst_68 {dimension_numbers = #tpu.dot_dimension_numbers<[1], [1], [0], [0], [0, 0, 1, 0], [], []>} : vector<64x32xf32>, vector<16x32xf32>, vector<64x16xf32> -> vector<64x16xf32>
    %c216 = arith.constant 216 : index
    %c0_69 = arith.constant 0 : index
    %177 = vector.load %arg2[%c216, %c0_69] : memref<464x128xf32, #tpu.memory_space<vmem>>, vector<64x1xf32>
    %178 = vector.broadcast %177 : vector<64x1xf32> to vector<64x16xf32>
    %179 = arith.addf %176, %178 : vector<64x16xf32>
    %c512 = arith.constant 512 : index
    %c0_70 = arith.constant 0 : index
    %180 = vector.load %arg1[%c512, %c0_70] : memref<896x128xbf16, #tpu.memory_space<vmem>>, vector<32x32xbf16>
    %181 = arith.extf %180 : vector<32x32xbf16> to vector<32x32xf32>
    %c320 = arith.constant 320 : index
    %c0_71 = arith.constant 0 : index
    %182 = vector.load %arg1[%c320, %c0_71] : memref<896x128xbf16, #tpu.memory_space<vmem>>, vector<32x8xbf16>
    %183 = arith.extf %182 : vector<32x8xbf16> to vector<32x8xf32>
    %cst_72 = arith.constant dense<0.000000e+00> : vector<16x8xf32>
    %184 = tpu.matmul %1, %183, %cst_72 {dimension_numbers = #tpu.dot_dimension_numbers<[1], [0], [0], [1], [0, 0, 1, 1], [], []>} : vector<16x32xf32>, vector<32x8xf32>, vector<16x8xf32> -> vector<16x8xf32>
    %c184 = arith.constant 184 : index
    %c0_73 = arith.constant 0 : index
    %185 = vector.load %arg2[%c184, %c0_73] : memref<464x128xf32, #tpu.memory_space<vmem>>, vector<1x8xf32>
    %186 = vector.broadcast %185 : vector<1x8xf32> to vector<16x8xf32>
    %187 = arith.addf %184, %186 : vector<16x8xf32>
    %188 = vector.extract_strided_slice %179 {offsets = [0, 0], sizes = [8, 16], strides = [1, 1]} : vector<64x16xf32> to vector<8x16xf32>
    %189 = vector.extract_strided_slice %179 {offsets = [8, 0], sizes = [8, 16], strides = [1, 1]} : vector<64x16xf32> to vector<8x16xf32>
    %cst_74 = arith.constant dense<0.000000e+00> : vector<16x16xf32>
    %190 = tpu.matmul %187, %188, %cst_74 {dimension_numbers = #tpu.dot_dimension_numbers<[1], [0], [0], [1], [0, 0, 1, 1], [], []>} : vector<16x8xf32>, vector<8x16xf32>, vector<16x16xf32> -> vector<16x16xf32>
    %191 = arith.addf %190, %3 : vector<16x16xf32>
    %cst_75 = arith.constant dense<0xFF800000> : vector<16xf32>
    %192 = vector.multi_reduction <maximumf>, %191, %cst_75 [1] : vector<16x16xf32> to vector<16xf32>
    %193 = vector.shape_cast %192 : vector<16xf32> to vector<16x1xf32>
    %194 = vector.broadcast %193 : vector<16x1xf32> to vector<16x16xf32>
    %195 = arith.subf %191, %194 : vector<16x16xf32>
    %196 = math.exp %195 : vector<16x16xf32>
    %cst_76 = arith.constant dense<0.000000e+00> : vector<16xf32>
    %197 = vector.multi_reduction <add>, %196, %cst_76 [1] : vector<16x16xf32> to vector<16xf32>
    %198 = vector.shape_cast %197 : vector<16xf32> to vector<16x1xf32>
    %199 = tpu.reciprocal %198 {approx = true} : vector<16x1xf32> -> vector<16x1xf32>
    %200 = vector.broadcast %199 : vector<16x1xf32> to vector<16x16xf32>
    %201 = arith.mulf %196, %200 : vector<16x16xf32>
    %cst_77 = arith.constant dense<0.000000e+00> : vector<16x8xf32>
    %202 = tpu.matmul %201, %189, %cst_77 {dimension_numbers = #tpu.dot_dimension_numbers<[1], [1], [0], [0], [0, 0, 1, 0], [], []>} : vector<16x16xf32>, vector<8x16xf32>, vector<16x8xf32> -> vector<16x8xf32>
    %203 = vector.extract_strided_slice %181 {offsets = [0, 0], sizes = [8, 32], strides = [1, 1]} : vector<32x32xf32> to vector<8x32xf32>
    %cst_78 = arith.constant dense<0.000000e+00> : vector<16x32xf32>
    %204 = tpu.matmul %202, %203, %cst_78 {dimension_numbers = #tpu.dot_dimension_numbers<[1], [0], [0], [1], [0, 0, 1, 1], [], []>} : vector<16x8xf32>, vector<8x32xf32>, vector<16x32xf32> -> vector<16x32xf32>
    %c352 = arith.constant 352 : index
    %c0_79 = arith.constant 0 : index
    %205 = vector.load %arg1[%c352, %c0_79] : memref<896x128xbf16, #tpu.memory_space<vmem>>, vector<32x8xbf16>
    %206 = arith.extf %205 : vector<32x8xbf16> to vector<32x8xf32>
    %cst_80 = arith.constant dense<0.000000e+00> : vector<16x8xf32>
    %207 = tpu.matmul %1, %206, %cst_80 {dimension_numbers = #tpu.dot_dimension_numbers<[1], [0], [0], [1], [0, 0, 1, 1], [], []>} : vector<16x32xf32>, vector<32x8xf32>, vector<16x8xf32> -> vector<16x8xf32>
    %c192_81 = arith.constant 192 : index
    %c0_82 = arith.constant 0 : index
    %208 = vector.load %arg2[%c192_81, %c0_82] : memref<464x128xf32, #tpu.memory_space<vmem>>, vector<1x8xf32>
    %209 = vector.broadcast %208 : vector<1x8xf32> to vector<16x8xf32>
    %210 = arith.addf %207, %209 : vector<16x8xf32>
    %211 = vector.extract_strided_slice %179 {offsets = [16, 0], sizes = [8, 16], strides = [1, 1]} : vector<64x16xf32> to vector<8x16xf32>
    %212 = vector.extract_strided_slice %179 {offsets = [24, 0], sizes = [8, 16], strides = [1, 1]} : vector<64x16xf32> to vector<8x16xf32>
    %cst_83 = arith.constant dense<0.000000e+00> : vector<16x16xf32>
    %213 = tpu.matmul %210, %211, %cst_83 {dimension_numbers = #tpu.dot_dimension_numbers<[1], [0], [0], [1], [0, 0, 1, 1], [], []>} : vector<16x8xf32>, vector<8x16xf32>, vector<16x16xf32> -> vector<16x16xf32>
    %214 = arith.addf %213, %3 : vector<16x16xf32>
    %cst_84 = arith.constant dense<0xFF800000> : vector<16xf32>
    %215 = vector.multi_reduction <maximumf>, %214, %cst_84 [1] : vector<16x16xf32> to vector<16xf32>
    %216 = vector.shape_cast %215 : vector<16xf32> to vector<16x1xf32>
    %217 = vector.broadcast %216 : vector<16x1xf32> to vector<16x16xf32>
    %218 = arith.subf %214, %217 : vector<16x16xf32>
    %219 = math.exp %218 : vector<16x16xf32>
    %cst_85 = arith.constant dense<0.000000e+00> : vector<16xf32>
    %220 = vector.multi_reduction <add>, %219, %cst_85 [1] : vector<16x16xf32> to vector<16xf32>
    %221 = vector.shape_cast %220 : vector<16xf32> to vector<16x1xf32>
    %222 = tpu.reciprocal %221 {approx = true} : vector<16x1xf32> -> vector<16x1xf32>
    %223 = vector.broadcast %222 : vector<16x1xf32> to vector<16x16xf32>
    %224 = arith.mulf %219, %223 : vector<16x16xf32>
    %cst_86 = arith.constant dense<0.000000e+00> : vector<16x8xf32>
    %225 = tpu.matmul %224, %212, %cst_86 {dimension_numbers = #tpu.dot_dimension_numbers<[1], [1], [0], [0], [0, 0, 1, 0], [], []>} : vector<16x16xf32>, vector<8x16xf32>, vector<16x8xf32> -> vector<16x8xf32>
    %226 = vector.extract_strided_slice %181 {offsets = [8, 0], sizes = [8, 32], strides = [1, 1]} : vector<32x32xf32> to vector<8x32xf32>
    %cst_87 = arith.constant dense<0.000000e+00> : vector<16x32xf32>
    %227 = tpu.matmul %225, %226, %cst_87 {dimension_numbers = #tpu.dot_dimension_numbers<[1], [0], [0], [1], [0, 0, 1, 1], [], []>} : vector<16x8xf32>, vector<8x32xf32>, vector<16x32xf32> -> vector<16x32xf32>
    %228 = arith.addf %204, %227 : vector<16x32xf32>
    %c384 = arith.constant 384 : index
    %c0_88 = arith.constant 0 : index
    %229 = vector.load %arg1[%c384, %c0_88] : memref<896x128xbf16, #tpu.memory_space<vmem>>, vector<32x8xbf16>
    %230 = arith.extf %229 : vector<32x8xbf16> to vector<32x8xf32>
    %cst_89 = arith.constant dense<0.000000e+00> : vector<16x8xf32>
    %231 = tpu.matmul %1, %230, %cst_89 {dimension_numbers = #tpu.dot_dimension_numbers<[1], [0], [0], [1], [0, 0, 1, 1], [], []>} : vector<16x32xf32>, vector<32x8xf32>, vector<16x8xf32> -> vector<16x8xf32>
    %c200 = arith.constant 200 : index
    %c0_90 = arith.constant 0 : index
    %232 = vector.load %arg2[%c200, %c0_90] : memref<464x128xf32, #tpu.memory_space<vmem>>, vector<1x8xf32>
    %233 = vector.broadcast %232 : vector<1x8xf32> to vector<16x8xf32>
    %234 = arith.addf %231, %233 : vector<16x8xf32>
    %235 = vector.extract_strided_slice %179 {offsets = [32, 0], sizes = [8, 16], strides = [1, 1]} : vector<64x16xf32> to vector<8x16xf32>
    %236 = vector.extract_strided_slice %179 {offsets = [40, 0], sizes = [8, 16], strides = [1, 1]} : vector<64x16xf32> to vector<8x16xf32>
    %cst_91 = arith.constant dense<0.000000e+00> : vector<16x16xf32>
    %237 = tpu.matmul %234, %235, %cst_91 {dimension_numbers = #tpu.dot_dimension_numbers<[1], [0], [0], [1], [0, 0, 1, 1], [], []>} : vector<16x8xf32>, vector<8x16xf32>, vector<16x16xf32> -> vector<16x16xf32>
    %238 = arith.addf %237, %3 : vector<16x16xf32>
    %cst_92 = arith.constant dense<0xFF800000> : vector<16xf32>
    %239 = vector.multi_reduction <maximumf>, %238, %cst_92 [1] : vector<16x16xf32> to vector<16xf32>
    %240 = vector.shape_cast %239 : vector<16xf32> to vector<16x1xf32>
    %241 = vector.broadcast %240 : vector<16x1xf32> to vector<16x16xf32>
    %242 = arith.subf %238, %241 : vector<16x16xf32>
    %243 = math.exp %242 : vector<16x16xf32>
    %cst_93 = arith.constant dense<0.000000e+00> : vector<16xf32>
    %244 = vector.multi_reduction <add>, %243, %cst_93 [1] : vector<16x16xf32> to vector<16xf32>
    %245 = vector.shape_cast %244 : vector<16xf32> to vector<16x1xf32>
    %246 = tpu.reciprocal %245 {approx = true} : vector<16x1xf32> -> vector<16x1xf32>
    %247 = vector.broadcast %246 : vector<16x1xf32> to vector<16x16xf32>
    %248 = arith.mulf %243, %247 : vector<16x16xf32>
    %cst_94 = arith.constant dense<0.000000e+00> : vector<16x8xf32>
    %249 = tpu.matmul %248, %236, %cst_94 {dimension_numbers = #tpu.dot_dimension_numbers<[1], [1], [0], [0], [0, 0, 1, 0], [], []>} : vector<16x16xf32>, vector<8x16xf32>, vector<16x8xf32> -> vector<16x8xf32>
    %250 = vector.extract_strided_slice %181 {offsets = [16, 0], sizes = [8, 32], strides = [1, 1]} : vector<32x32xf32> to vector<8x32xf32>
    %cst_95 = arith.constant dense<0.000000e+00> : vector<16x32xf32>
    %251 = tpu.matmul %249, %250, %cst_95 {dimension_numbers = #tpu.dot_dimension_numbers<[1], [0], [0], [1], [0, 0, 1, 1], [], []>} : vector<16x8xf32>, vector<8x32xf32>, vector<16x32xf32> -> vector<16x32xf32>
    %252 = arith.addf %228, %251 : vector<16x32xf32>
    %c416 = arith.constant 416 : index
    %c0_96 = arith.constant 0 : index
    %253 = vector.load %arg1[%c416, %c0_96] : memref<896x128xbf16, #tpu.memory_space<vmem>>, vector<32x8xbf16>
    %254 = arith.extf %253 : vector<32x8xbf16> to vector<32x8xf32>
    %cst_97 = arith.constant dense<0.000000e+00> : vector<16x8xf32>
    %255 = tpu.matmul %1, %254, %cst_97 {dimension_numbers = #tpu.dot_dimension_numbers<[1], [0], [0], [1], [0, 0, 1, 1], [], []>} : vector<16x32xf32>, vector<32x8xf32>, vector<16x8xf32> -> vector<16x8xf32>
    %c208 = arith.constant 208 : index
    %c0_98 = arith.constant 0 : index
    %256 = vector.load %arg2[%c208, %c0_98] : memref<464x128xf32, #tpu.memory_space<vmem>>, vector<1x8xf32>
    %257 = vector.broadcast %256 : vector<1x8xf32> to vector<16x8xf32>
    %258 = arith.addf %255, %257 : vector<16x8xf32>
    %259 = vector.extract_strided_slice %179 {offsets = [48, 0], sizes = [8, 16], strides = [1, 1]} : vector<64x16xf32> to vector<8x16xf32>
    %260 = vector.extract_strided_slice %179 {offsets = [56, 0], sizes = [8, 16], strides = [1, 1]} : vector<64x16xf32> to vector<8x16xf32>
    %cst_99 = arith.constant dense<0.000000e+00> : vector<16x16xf32>
    %261 = tpu.matmul %258, %259, %cst_99 {dimension_numbers = #tpu.dot_dimension_numbers<[1], [0], [0], [1], [0, 0, 1, 1], [], []>} : vector<16x8xf32>, vector<8x16xf32>, vector<16x16xf32> -> vector<16x16xf32>
    %262 = arith.addf %261, %3 : vector<16x16xf32>
    %cst_100 = arith.constant dense<0xFF800000> : vector<16xf32>
    %263 = vector.multi_reduction <maximumf>, %262, %cst_100 [1] : vector<16x16xf32> to vector<16xf32>
    %264 = vector.shape_cast %263 : vector<16xf32> to vector<16x1xf32>
    %265 = vector.broadcast %264 : vector<16x1xf32> to vector<16x16xf32>
    %266 = arith.subf %262, %265 : vector<16x16xf32>
    %267 = math.exp %266 : vector<16x16xf32>
    %cst_101 = arith.constant dense<0.000000e+00> : vector<16xf32>
    %268 = vector.multi_reduction <add>, %267, %cst_101 [1] : vector<16x16xf32> to vector<16xf32>
    %269 = vector.shape_cast %268 : vector<16xf32> to vector<16x1xf32>
    %270 = tpu.reciprocal %269 {approx = true} : vector<16x1xf32> -> vector<16x1xf32>
    %271 = vector.broadcast %270 : vector<16x1xf32> to vector<16x16xf32>
    %272 = arith.mulf %267, %271 : vector<16x16xf32>
    %cst_102 = arith.constant dense<0.000000e+00> : vector<16x8xf32>
    %273 = tpu.matmul %272, %260, %cst_102 {dimension_numbers = #tpu.dot_dimension_numbers<[1], [1], [0], [0], [0, 0, 1, 0], [], []>} : vector<16x16xf32>, vector<8x16xf32>, vector<16x8xf32> -> vector<16x8xf32>
    %274 = vector.extract_strided_slice %181 {offsets = [24, 0], sizes = [8, 32], strides = [1, 1]} : vector<32x32xf32> to vector<8x32xf32>
    %cst_103 = arith.constant dense<0.000000e+00> : vector<16x32xf32>
    %275 = tpu.matmul %273, %274, %cst_103 {dimension_numbers = #tpu.dot_dimension_numbers<[1], [0], [0], [1], [0, 0, 1, 1], [], []>} : vector<16x8xf32>, vector<8x32xf32>, vector<16x32xf32> -> vector<16x32xf32>
    %276 = arith.addf %252, %275 : vector<16x32xf32>
    %c280 = arith.constant 280 : index
    %c0_104 = arith.constant 0 : index
    %277 = vector.load %arg2[%c280, %c0_104] : memref<464x128xf32, #tpu.memory_space<vmem>>, vector<1x32xf32>
    %278 = vector.broadcast %277 : vector<1x32xf32> to vector<16x32xf32>
    %279 = arith.addf %276, %278 : vector<16x32xf32>
    %280 = arith.addf %279, %1 : vector<16x32xf32>
    %cst_105 = arith.constant dense<0.000000e+00> : vector<16xf32>
    %281 = vector.multi_reduction <add>, %280, %cst_105 [1] : vector<16x32xf32> to vector<16xf32>
    %282 = vector.shape_cast %281 : vector<16xf32> to vector<16x1xf32>
    %cst_106 = arith.constant 3.200000e+01 : f32
    %283 = vector.broadcast %cst_106 : f32 to vector<16x1xf32>
    %284 = arith.divf %282, %283 : vector<16x1xf32>
    %285 = vector.broadcast %284 : vector<16x1xf32> to vector<16x32xf32>
    %286 = arith.subf %280, %285 : vector<16x32xf32>
    %287 = arith.mulf %286, %286 : vector<16x32xf32>
    %cst_107 = arith.constant dense<0.000000e+00> : vector<16xf32>
    %288 = vector.multi_reduction <add>, %287, %cst_107 [1] : vector<16x32xf32> to vector<16xf32>
    %289 = vector.shape_cast %288 : vector<16xf32> to vector<16x1xf32>
    %cst_108 = arith.constant 3.200000e+01 : f32
    %290 = vector.broadcast %cst_108 : f32 to vector<16x1xf32>
    %291 = arith.divf %289, %290 : vector<16x1xf32>
    %c288 = arith.constant 288 : index
    %c0_109 = arith.constant 0 : index
    %292 = vector.load %arg2[%c288, %c0_109] : memref<464x128xf32, #tpu.memory_space<vmem>>, vector<1x32xf32>
    %293 = vector.broadcast %284 : vector<16x1xf32> to vector<16x32xf32>
    %294 = arith.subf %280, %293 : vector<16x32xf32>
    %cst_110 = arith.constant 9.99999974E-6 : f32
    %295 = vector.broadcast %cst_110 : f32 to vector<16x1xf32>
    %296 = arith.addf %291, %295 : vector<16x1xf32>
    %297 = math.rsqrt %296 : vector<16x1xf32>
    %298 = vector.broadcast %297 : vector<16x1xf32> to vector<16x32xf32>
    %299 = arith.mulf %294, %298 : vector<16x32xf32>
    %300 = vector.broadcast %292 : vector<1x32xf32> to vector<16x32xf32>
    %301 = arith.mulf %300, %299 : vector<16x32xf32>
    %c296 = arith.constant 296 : index
    %c0_111 = arith.constant 0 : index
    %302 = vector.load %arg2[%c296, %c0_111] : memref<464x128xf32, #tpu.memory_space<vmem>>, vector<1x32xf32>
    %303 = vector.broadcast %302 : vector<1x32xf32> to vector<16x32xf32>
    %304 = arith.addf %301, %303 : vector<16x32xf32>
    %c672 = arith.constant 672 : index
    %c0_112 = arith.constant 0 : index
    %305 = vector.load %arg1[%c672, %c0_112] : memref<896x128xbf16, #tpu.memory_space<vmem>>, vector<64x32xbf16>
    %306 = arith.extf %305 : vector<64x32xbf16> to vector<64x32xf32>
    %cst_113 = arith.constant dense<0.000000e+00> : vector<64x16xf32>
    %307 = tpu.matmul %306, %173, %cst_113 {dimension_numbers = #tpu.dot_dimension_numbers<[1], [1], [0], [0], [0, 0, 1, 0], [], []>} : vector<64x32xf32>, vector<16x32xf32>, vector<64x16xf32> -> vector<64x16xf32>
    %c336 = arith.constant 336 : index
    %c0_114 = arith.constant 0 : index
    %308 = vector.load %arg2[%c336, %c0_114] : memref<464x128xf32, #tpu.memory_space<vmem>>, vector<64x1xf32>
    %309 = vector.broadcast %308 : vector<64x1xf32> to vector<64x16xf32>
    %310 = arith.addf %307, %309 : vector<64x16xf32>
    %c736 = arith.constant 736 : index
    %c0_115 = arith.constant 0 : index
    %311 = vector.load %arg1[%c736, %c0_115] : memref<896x128xbf16, #tpu.memory_space<vmem>>, vector<32x32xbf16>
    %312 = arith.extf %311 : vector<32x32xbf16> to vector<32x32xf32>
    %c544 = arith.constant 544 : index
    %c0_116 = arith.constant 0 : index
    %313 = vector.load %arg1[%c544, %c0_116] : memref<896x128xbf16, #tpu.memory_space<vmem>>, vector<32x8xbf16>
    %314 = arith.extf %313 : vector<32x8xbf16> to vector<32x8xf32>
    %cst_117 = arith.constant dense<0.000000e+00> : vector<16x8xf32>
    %315 = tpu.matmul %304, %314, %cst_117 {dimension_numbers = #tpu.dot_dimension_numbers<[1], [0], [0], [1], [0, 0, 1, 1], [], []>} : vector<16x32xf32>, vector<32x8xf32>, vector<16x8xf32> -> vector<16x8xf32>
    %c304 = arith.constant 304 : index
    %c0_118 = arith.constant 0 : index
    %316 = vector.load %arg2[%c304, %c0_118] : memref<464x128xf32, #tpu.memory_space<vmem>>, vector<1x8xf32>
    %317 = vector.broadcast %316 : vector<1x8xf32> to vector<16x8xf32>
    %318 = arith.addf %315, %317 : vector<16x8xf32>
    %319 = vector.extract_strided_slice %310 {offsets = [0, 0], sizes = [8, 16], strides = [1, 1]} : vector<64x16xf32> to vector<8x16xf32>
    %320 = vector.extract_strided_slice %310 {offsets = [8, 0], sizes = [8, 16], strides = [1, 1]} : vector<64x16xf32> to vector<8x16xf32>
    %cst_119 = arith.constant dense<0.000000e+00> : vector<16x16xf32>
    %321 = tpu.matmul %318, %319, %cst_119 {dimension_numbers = #tpu.dot_dimension_numbers<[1], [0], [0], [1], [0, 0, 1, 1], [], []>} : vector<16x8xf32>, vector<8x16xf32>, vector<16x16xf32> -> vector<16x16xf32>
    %322 = arith.addf %321, %2 : vector<16x16xf32>
    %cst_120 = arith.constant dense<0xFF800000> : vector<16xf32>
    %323 = vector.multi_reduction <maximumf>, %322, %cst_120 [1] : vector<16x16xf32> to vector<16xf32>
    %324 = vector.shape_cast %323 : vector<16xf32> to vector<16x1xf32>
    %325 = vector.broadcast %324 : vector<16x1xf32> to vector<16x16xf32>
    %326 = arith.subf %322, %325 : vector<16x16xf32>
    %327 = math.exp %326 : vector<16x16xf32>
    %cst_121 = arith.constant dense<0.000000e+00> : vector<16xf32>
    %328 = vector.multi_reduction <add>, %327, %cst_121 [1] : vector<16x16xf32> to vector<16xf32>
    %329 = vector.shape_cast %328 : vector<16xf32> to vector<16x1xf32>
    %330 = tpu.reciprocal %329 {approx = true} : vector<16x1xf32> -> vector<16x1xf32>
    %331 = vector.broadcast %330 : vector<16x1xf32> to vector<16x16xf32>
    %332 = arith.mulf %327, %331 : vector<16x16xf32>
    %cst_122 = arith.constant dense<0.000000e+00> : vector<16x8xf32>
    %333 = tpu.matmul %332, %320, %cst_122 {dimension_numbers = #tpu.dot_dimension_numbers<[1], [1], [0], [0], [0, 0, 1, 0], [], []>} : vector<16x16xf32>, vector<8x16xf32>, vector<16x8xf32> -> vector<16x8xf32>
    %334 = vector.extract_strided_slice %312 {offsets = [0, 0], sizes = [8, 32], strides = [1, 1]} : vector<32x32xf32> to vector<8x32xf32>
    %cst_123 = arith.constant dense<0.000000e+00> : vector<16x32xf32>
    %335 = tpu.matmul %333, %334, %cst_123 {dimension_numbers = #tpu.dot_dimension_numbers<[1], [0], [0], [1], [0, 0, 1, 1], [], []>} : vector<16x8xf32>, vector<8x32xf32>, vector<16x32xf32> -> vector<16x32xf32>
    %c576 = arith.constant 576 : index
    %c0_124 = arith.constant 0 : index
    %336 = vector.load %arg1[%c576, %c0_124] : memref<896x128xbf16, #tpu.memory_space<vmem>>, vector<32x8xbf16>
    %337 = arith.extf %336 : vector<32x8xbf16> to vector<32x8xf32>
    %cst_125 = arith.constant dense<0.000000e+00> : vector<16x8xf32>
    %338 = tpu.matmul %304, %337, %cst_125 {dimension_numbers = #tpu.dot_dimension_numbers<[1], [0], [0], [1], [0, 0, 1, 1], [], []>} : vector<16x32xf32>, vector<32x8xf32>, vector<16x8xf32> -> vector<16x8xf32>
    %c312 = arith.constant 312 : index
    %c0_126 = arith.constant 0 : index
    %339 = vector.load %arg2[%c312, %c0_126] : memref<464x128xf32, #tpu.memory_space<vmem>>, vector<1x8xf32>
    %340 = vector.broadcast %339 : vector<1x8xf32> to vector<16x8xf32>
    %341 = arith.addf %338, %340 : vector<16x8xf32>
    %342 = vector.extract_strided_slice %310 {offsets = [16, 0], sizes = [8, 16], strides = [1, 1]} : vector<64x16xf32> to vector<8x16xf32>
    %343 = vector.extract_strided_slice %310 {offsets = [24, 0], sizes = [8, 16], strides = [1, 1]} : vector<64x16xf32> to vector<8x16xf32>
    %cst_127 = arith.constant dense<0.000000e+00> : vector<16x16xf32>
    %344 = tpu.matmul %341, %342, %cst_127 {dimension_numbers = #tpu.dot_dimension_numbers<[1], [0], [0], [1], [0, 0, 1, 1], [], []>} : vector<16x8xf32>, vector<8x16xf32>, vector<16x16xf32> -> vector<16x16xf32>
    %345 = arith.addf %344, %2 : vector<16x16xf32>
    %cst_128 = arith.constant dense<0xFF800000> : vector<16xf32>
    %346 = vector.multi_reduction <maximumf>, %345, %cst_128 [1] : vector<16x16xf32> to vector<16xf32>
    %347 = vector.shape_cast %346 : vector<16xf32> to vector<16x1xf32>
    %348 = vector.broadcast %347 : vector<16x1xf32> to vector<16x16xf32>
    %349 = arith.subf %345, %348 : vector<16x16xf32>
    %350 = math.exp %349 : vector<16x16xf32>
    %cst_129 = arith.constant dense<0.000000e+00> : vector<16xf32>
    %351 = vector.multi_reduction <add>, %350, %cst_129 [1] : vector<16x16xf32> to vector<16xf32>
    %352 = vector.shape_cast %351 : vector<16xf32> to vector<16x1xf32>
    %353 = tpu.reciprocal %352 {approx = true} : vector<16x1xf32> -> vector<16x1xf32>
    %354 = vector.broadcast %353 : vector<16x1xf32> to vector<16x16xf32>
    %355 = arith.mulf %350, %354 : vector<16x16xf32>
    %cst_130 = arith.constant dense<0.000000e+00> : vector<16x8xf32>
    %356 = tpu.matmul %355, %343, %cst_130 {dimension_numbers = #tpu.dot_dimension_numbers<[1], [1], [0], [0], [0, 0, 1, 0], [], []>} : vector<16x16xf32>, vector<8x16xf32>, vector<16x8xf32> -> vector<16x8xf32>
    %357 = vector.extract_strided_slice %312 {offsets = [8, 0], sizes = [8, 32], strides = [1, 1]} : vector<32x32xf32> to vector<8x32xf32>
    %cst_131 = arith.constant dense<0.000000e+00> : vector<16x32xf32>
    %358 = tpu.matmul %356, %357, %cst_131 {dimension_numbers = #tpu.dot_dimension_numbers<[1], [0], [0], [1], [0, 0, 1, 1], [], []>} : vector<16x8xf32>, vector<8x32xf32>, vector<16x32xf32> -> vector<16x32xf32>
    %359 = arith.addf %335, %358 : vector<16x32xf32>
    %c608 = arith.constant 608 : index
    %c0_132 = arith.constant 0 : index
    %360 = vector.load %arg1[%c608, %c0_132] : memref<896x128xbf16, #tpu.memory_space<vmem>>, vector<32x8xbf16>
    %361 = arith.extf %360 : vector<32x8xbf16> to vector<32x8xf32>
    %cst_133 = arith.constant dense<0.000000e+00> : vector<16x8xf32>
    %362 = tpu.matmul %304, %361, %cst_133 {dimension_numbers = #tpu.dot_dimension_numbers<[1], [0], [0], [1], [0, 0, 1, 1], [], []>} : vector<16x32xf32>, vector<32x8xf32>, vector<16x8xf32> -> vector<16x8xf32>
    %c320_134 = arith.constant 320 : index
    %c0_135 = arith.constant 0 : index
    %363 = vector.load %arg2[%c320_134, %c0_135] : memref<464x128xf32, #tpu.memory_space<vmem>>, vector<1x8xf32>
    %364 = vector.broadcast %363 : vector<1x8xf32> to vector<16x8xf32>
    %365 = arith.addf %362, %364 : vector<16x8xf32>
    %366 = vector.extract_strided_slice %310 {offsets = [32, 0], sizes = [8, 16], strides = [1, 1]} : vector<64x16xf32> to vector<8x16xf32>
    %367 = vector.extract_strided_slice %310 {offsets = [40, 0], sizes = [8, 16], strides = [1, 1]} : vector<64x16xf32> to vector<8x16xf32>
    %cst_136 = arith.constant dense<0.000000e+00> : vector<16x16xf32>
    %368 = tpu.matmul %365, %366, %cst_136 {dimension_numbers = #tpu.dot_dimension_numbers<[1], [0], [0], [1], [0, 0, 1, 1], [], []>} : vector<16x8xf32>, vector<8x16xf32>, vector<16x16xf32> -> vector<16x16xf32>
    %369 = arith.addf %368, %2 : vector<16x16xf32>
    %cst_137 = arith.constant dense<0xFF800000> : vector<16xf32>
    %370 = vector.multi_reduction <maximumf>, %369, %cst_137 [1] : vector<16x16xf32> to vector<16xf32>
    %371 = vector.shape_cast %370 : vector<16xf32> to vector<16x1xf32>
    %372 = vector.broadcast %371 : vector<16x1xf32> to vector<16x16xf32>
    %373 = arith.subf %369, %372 : vector<16x16xf32>
    %374 = math.exp %373 : vector<16x16xf32>
    %cst_138 = arith.constant dense<0.000000e+00> : vector<16xf32>
    %375 = vector.multi_reduction <add>, %374, %cst_138 [1] : vector<16x16xf32> to vector<16xf32>
    %376 = vector.shape_cast %375 : vector<16xf32> to vector<16x1xf32>
    %377 = tpu.reciprocal %376 {approx = true} : vector<16x1xf32> -> vector<16x1xf32>
    %378 = vector.broadcast %377 : vector<16x1xf32> to vector<16x16xf32>
    %379 = arith.mulf %374, %378 : vector<16x16xf32>
    %cst_139 = arith.constant dense<0.000000e+00> : vector<16x8xf32>
    %380 = tpu.matmul %379, %367, %cst_139 {dimension_numbers = #tpu.dot_dimension_numbers<[1], [1], [0], [0], [0, 0, 1, 0], [], []>} : vector<16x16xf32>, vector<8x16xf32>, vector<16x8xf32> -> vector<16x8xf32>
    %381 = vector.extract_strided_slice %312 {offsets = [16, 0], sizes = [8, 32], strides = [1, 1]} : vector<32x32xf32> to vector<8x32xf32>
    %cst_140 = arith.constant dense<0.000000e+00> : vector<16x32xf32>
    %382 = tpu.matmul %380, %381, %cst_140 {dimension_numbers = #tpu.dot_dimension_numbers<[1], [0], [0], [1], [0, 0, 1, 1], [], []>} : vector<16x8xf32>, vector<8x32xf32>, vector<16x32xf32> -> vector<16x32xf32>
    %383 = arith.addf %359, %382 : vector<16x32xf32>
    %c640 = arith.constant 640 : index
    %c0_141 = arith.constant 0 : index
    %384 = vector.load %arg1[%c640, %c0_141] : memref<896x128xbf16, #tpu.memory_space<vmem>>, vector<32x8xbf16>
    %385 = arith.extf %384 : vector<32x8xbf16> to vector<32x8xf32>
    %cst_142 = arith.constant dense<0.000000e+00> : vector<16x8xf32>
    %386 = tpu.matmul %304, %385, %cst_142 {dimension_numbers = #tpu.dot_dimension_numbers<[1], [0], [0], [1], [0, 0, 1, 1], [], []>} : vector<16x32xf32>, vector<32x8xf32>, vector<16x8xf32> -> vector<16x8xf32>
    %c328 = arith.constant 328 : index
    %c0_143 = arith.constant 0 : index
    %387 = vector.load %arg2[%c328, %c0_143] : memref<464x128xf32, #tpu.memory_space<vmem>>, vector<1x8xf32>
    %388 = vector.broadcast %387 : vector<1x8xf32> to vector<16x8xf32>
    %389 = arith.addf %386, %388 : vector<16x8xf32>
    %390 = vector.extract_strided_slice %310 {offsets = [48, 0], sizes = [8, 16], strides = [1, 1]} : vector<64x16xf32> to vector<8x16xf32>
    %391 = vector.extract_strided_slice %310 {offsets = [56, 0], sizes = [8, 16], strides = [1, 1]} : vector<64x16xf32> to vector<8x16xf32>
    %cst_144 = arith.constant dense<0.000000e+00> : vector<16x16xf32>
    %392 = tpu.matmul %389, %390, %cst_144 {dimension_numbers = #tpu.dot_dimension_numbers<[1], [0], [0], [1], [0, 0, 1, 1], [], []>} : vector<16x8xf32>, vector<8x16xf32>, vector<16x16xf32> -> vector<16x16xf32>
    %393 = arith.addf %392, %2 : vector<16x16xf32>
    %cst_145 = arith.constant dense<0xFF800000> : vector<16xf32>
    %394 = vector.multi_reduction <maximumf>, %393, %cst_145 [1] : vector<16x16xf32> to vector<16xf32>
    %395 = vector.shape_cast %394 : vector<16xf32> to vector<16x1xf32>
    %396 = vector.broadcast %395 : vector<16x1xf32> to vector<16x16xf32>
    %397 = arith.subf %393, %396 : vector<16x16xf32>
    %398 = math.exp %397 : vector<16x16xf32>
    %cst_146 = arith.constant dense<0.000000e+00> : vector<16xf32>
    %399 = vector.multi_reduction <add>, %398, %cst_146 [1] : vector<16x16xf32> to vector<16xf32>
    %400 = vector.shape_cast %399 : vector<16xf32> to vector<16x1xf32>
    %401 = tpu.reciprocal %400 {approx = true} : vector<16x1xf32> -> vector<16x1xf32>
    %402 = vector.broadcast %401 : vector<16x1xf32> to vector<16x16xf32>
    %403 = arith.mulf %398, %402 : vector<16x16xf32>
    %cst_147 = arith.constant dense<0.000000e+00> : vector<16x8xf32>
    %404 = tpu.matmul %403, %391, %cst_147 {dimension_numbers = #tpu.dot_dimension_numbers<[1], [1], [0], [0], [0, 0, 1, 0], [], []>} : vector<16x16xf32>, vector<8x16xf32>, vector<16x8xf32> -> vector<16x8xf32>
    %405 = vector.extract_strided_slice %312 {offsets = [24, 0], sizes = [8, 32], strides = [1, 1]} : vector<32x32xf32> to vector<8x32xf32>
    %cst_148 = arith.constant dense<0.000000e+00> : vector<16x32xf32>
    %406 = tpu.matmul %404, %405, %cst_148 {dimension_numbers = #tpu.dot_dimension_numbers<[1], [0], [0], [1], [0, 0, 1, 1], [], []>} : vector<16x8xf32>, vector<8x32xf32>, vector<16x32xf32> -> vector<16x32xf32>
    %407 = arith.addf %383, %406 : vector<16x32xf32>
    %c400 = arith.constant 400 : index
    %c0_149 = arith.constant 0 : index
    %408 = vector.load %arg2[%c400, %c0_149] : memref<464x128xf32, #tpu.memory_space<vmem>>, vector<1x32xf32>
    %409 = vector.broadcast %408 : vector<1x32xf32> to vector<16x32xf32>
    %410 = arith.addf %407, %409 : vector<16x32xf32>
    %411 = arith.addf %410, %304 : vector<16x32xf32>
    %cst_150 = arith.constant dense<0.000000e+00> : vector<16xf32>
    %412 = vector.multi_reduction <add>, %411, %cst_150 [1] : vector<16x32xf32> to vector<16xf32>
    %413 = vector.shape_cast %412 : vector<16xf32> to vector<16x1xf32>
    %cst_151 = arith.constant 3.200000e+01 : f32
    %414 = vector.broadcast %cst_151 : f32 to vector<16x1xf32>
    %415 = arith.divf %413, %414 : vector<16x1xf32>
    %416 = vector.broadcast %415 : vector<16x1xf32> to vector<16x32xf32>
    %417 = arith.subf %411, %416 : vector<16x32xf32>
    %418 = arith.mulf %417, %417 : vector<16x32xf32>
    %cst_152 = arith.constant dense<0.000000e+00> : vector<16xf32>
    %419 = vector.multi_reduction <add>, %418, %cst_152 [1] : vector<16x32xf32> to vector<16xf32>
    %420 = vector.shape_cast %419 : vector<16xf32> to vector<16x1xf32>
    %cst_153 = arith.constant 3.200000e+01 : f32
    %421 = vector.broadcast %cst_153 : f32 to vector<16x1xf32>
    %422 = arith.divf %420, %421 : vector<16x1xf32>
    %c408 = arith.constant 408 : index
    %c0_154 = arith.constant 0 : index
    %423 = vector.load %arg2[%c408, %c0_154] : memref<464x128xf32, #tpu.memory_space<vmem>>, vector<1x32xf32>
    %424 = vector.broadcast %415 : vector<16x1xf32> to vector<16x32xf32>
    %425 = arith.subf %411, %424 : vector<16x32xf32>
    %cst_155 = arith.constant 9.99999974E-6 : f32
    %426 = vector.broadcast %cst_155 : f32 to vector<16x1xf32>
    %427 = arith.addf %422, %426 : vector<16x1xf32>
    %428 = math.rsqrt %427 : vector<16x1xf32>
    %429 = vector.broadcast %428 : vector<16x1xf32> to vector<16x32xf32>
    %430 = arith.mulf %425, %429 : vector<16x32xf32>
    %431 = vector.broadcast %423 : vector<1x32xf32> to vector<16x32xf32>
    %432 = arith.mulf %431, %430 : vector<16x32xf32>
    %c416_156 = arith.constant 416 : index
    %c0_157 = arith.constant 0 : index
    %433 = vector.load %arg2[%c416_156, %c0_157] : memref<464x128xf32, #tpu.memory_space<vmem>>, vector<1x32xf32>
    %434 = vector.broadcast %433 : vector<1x32xf32> to vector<16x32xf32>
    %435 = arith.addf %432, %434 : vector<16x32xf32>
    %c768 = arith.constant 768 : index
    %c0_158 = arith.constant 0 : index
    %436 = vector.load %arg1[%c768, %c0_158] : memref<896x128xbf16, #tpu.memory_space<vmem>>, vector<32x64xbf16>
    %437 = arith.extf %436 : vector<32x64xbf16> to vector<32x64xf32>
    %cst_159 = arith.constant dense<0.000000e+00> : vector<16x64xf32>
    %438 = tpu.matmul %435, %437, %cst_159 {dimension_numbers = #tpu.dot_dimension_numbers<[1], [0], [0], [1], [0, 0, 1, 1], [], []>} : vector<16x32xf32>, vector<32x64xf32>, vector<16x64xf32> -> vector<16x64xf32>
    %c424 = arith.constant 424 : index
    %c0_160 = arith.constant 0 : index
    %439 = vector.load %arg2[%c424, %c0_160] : memref<464x128xf32, #tpu.memory_space<vmem>>, vector<1x64xf32>
    %440 = vector.broadcast %439 : vector<1x64xf32> to vector<16x64xf32>
    %441 = arith.addf %438, %440 : vector<16x64xf32>
    %cst_161 = arith.constant 0.000000e+00 : f32
    %442 = vector.broadcast %cst_161 : f32 to vector<16x64xf32>
    %443 = arith.maximumf %441, %442 : vector<16x64xf32>
    %c800 = arith.constant 800 : index
    %c0_162 = arith.constant 0 : index
    %444 = vector.load %arg1[%c800, %c0_162] : memref<896x128xbf16, #tpu.memory_space<vmem>>, vector<64x32xbf16>
    %445 = arith.extf %444 : vector<64x32xbf16> to vector<64x32xf32>
    %cst_163 = arith.constant dense<0.000000e+00> : vector<16x32xf32>
    %446 = tpu.matmul %443, %445, %cst_163 {dimension_numbers = #tpu.dot_dimension_numbers<[1], [0], [0], [1], [0, 0, 1, 1], [], []>} : vector<16x64xf32>, vector<64x32xf32>, vector<16x32xf32> -> vector<16x32xf32>
    %c432 = arith.constant 432 : index
    %c0_164 = arith.constant 0 : index
    %447 = vector.load %arg2[%c432, %c0_164] : memref<464x128xf32, #tpu.memory_space<vmem>>, vector<1x32xf32>
    %448 = vector.broadcast %447 : vector<1x32xf32> to vector<16x32xf32>
    %449 = arith.addf %446, %448 : vector<16x32xf32>
    %450 = arith.addf %449, %435 : vector<16x32xf32>
    %cst_165 = arith.constant dense<0.000000e+00> : vector<16xf32>
    %451 = vector.multi_reduction <add>, %450, %cst_165 [1] : vector<16x32xf32> to vector<16xf32>
    %452 = vector.shape_cast %451 : vector<16xf32> to vector<16x1xf32>
    %cst_166 = arith.constant 3.200000e+01 : f32
    %453 = vector.broadcast %cst_166 : f32 to vector<16x1xf32>
    %454 = arith.divf %452, %453 : vector<16x1xf32>
    %455 = vector.broadcast %454 : vector<16x1xf32> to vector<16x32xf32>
    %456 = arith.subf %450, %455 : vector<16x32xf32>
    %457 = arith.mulf %456, %456 : vector<16x32xf32>
    %cst_167 = arith.constant dense<0.000000e+00> : vector<16xf32>
    %458 = vector.multi_reduction <add>, %457, %cst_167 [1] : vector<16x32xf32> to vector<16xf32>
    %459 = vector.shape_cast %458 : vector<16xf32> to vector<16x1xf32>
    %cst_168 = arith.constant 3.200000e+01 : f32
    %460 = vector.broadcast %cst_168 : f32 to vector<16x1xf32>
    %461 = arith.divf %459, %460 : vector<16x1xf32>
    %c440 = arith.constant 440 : index
    %c0_169 = arith.constant 0 : index
    %462 = vector.load %arg2[%c440, %c0_169] : memref<464x128xf32, #tpu.memory_space<vmem>>, vector<1x32xf32>
    %463 = vector.broadcast %454 : vector<16x1xf32> to vector<16x32xf32>
    %464 = arith.subf %450, %463 : vector<16x32xf32>
    %cst_170 = arith.constant 9.99999974E-6 : f32
    %465 = vector.broadcast %cst_170 : f32 to vector<16x1xf32>
    %466 = arith.addf %461, %465 : vector<16x1xf32>
    %467 = math.rsqrt %466 : vector<16x1xf32>
    %468 = vector.broadcast %467 : vector<16x1xf32> to vector<16x32xf32>
    %469 = arith.mulf %464, %468 : vector<16x32xf32>
    %470 = vector.broadcast %462 : vector<1x32xf32> to vector<16x32xf32>
    %471 = arith.mulf %470, %469 : vector<16x32xf32>
    %c448_171 = arith.constant 448 : index
    %c0_172 = arith.constant 0 : index
    %472 = vector.load %arg2[%c448_171, %c0_172] : memref<464x128xf32, #tpu.memory_space<vmem>>, vector<1x32xf32>
    %473 = vector.broadcast %472 : vector<1x32xf32> to vector<16x32xf32>
    %474 = arith.addf %471, %473 : vector<16x32xf32>
    %c864 = arith.constant 864 : index
    %c0_173 = arith.constant 0 : index
    %475 = vector.load %arg1[%c864, %c0_173] : memref<896x128xbf16, #tpu.memory_space<vmem>>, vector<32x128xbf16>
    %476 = arith.extf %475 : vector<32x128xbf16> to vector<32x128xf32>
    %cst_174 = arith.constant dense<0.000000e+00> : vector<16x128xf32>
    %477 = tpu.matmul %474, %476, %cst_174 {dimension_numbers = #tpu.dot_dimension_numbers<[1], [0], [0], [1], [0, 0, 1, 1], [], []>} : vector<16x32xf32>, vector<32x128xf32>, vector<16x128xf32> -> vector<16x128xf32>
    %c456 = arith.constant 456 : index
    %c0_175 = arith.constant 0 : index
    %478 = vector.load %arg2[%c456, %c0_175] : memref<464x128xf32, #tpu.memory_space<vmem>>, vector<1x128xf32>
    %479 = vector.broadcast %478 : vector<1x128xf32> to vector<16x128xf32>
    %480 = arith.addf %477, %479 : vector<16x128xf32>
    %c0_176 = arith.constant 0 : index
    %c0_177 = arith.constant 0 : index
    %481 = vector.load %arg3[%c0_176, %c0_177] : memref<16x128xf32, #tpu.memory_space<vmem>>, vector<16x128xf32>
    tpu.vector_store %arg3[%c0_176, %c0_177], %480 {strides = array<i32>} : memref<16x128xf32, #tpu.memory_space<vmem>>, vector<16x128xf32>,
    return
  }
}

</mosaic_0001>

<llo_original>
// kernel: transformer_forward.1
$region0: #{transformer_forward.1}
  #allocation0 [shape = 'u32[]', space=smem, size = 0x4, offset = 0x4, fixed_abs, tag = 'smem constant byte address 0x4 - core index']
  #allocation1 [shape = 'u32[144,128]{1,0:T(1,128)}', space=vmem, size = 0x12000, scoped, tag = 'internal scratch']
  %s0 = inlined_call_operand.vmem [shape: f32[32,32], index: 0, kind: input, shape index: {}]
  %s1 = inlined_call_operand.vmem [shape: bf16[896,128], index: 1, kind: input, shape index: {}]
  %s2 = inlined_call_operand.vmem [shape: f32[464,128], index: 2, kind: input, shape index: {}]
  %s3 = inlined_call_operand.vmem [shape: f32[16,128], index: 3, kind: output, shape index: {}]
  %s4 = sld [smem:[#allocation0]]
  $region22: #{transformer_forward.1} parent=0
    _
  %s6 = ssub.s32 1, %s4
  %s7 = scalar_select 0, %s6, %s4
  // Predicated region
  $region2: #{transformer_forward.1} parent=0 // pred_check
    _
  $region3: #{transformer_forward.1} parent=0 // pred_check_branch
    %9 = sbr.rel (0) target = $region5
  $region4: #{transformer_forward.1} parent=0 // pred_region
    _
  $region5: #{transformer_forward.1} parent=0 // pred_fallthru
    _
  // Predicated region
  $region6: #{transformer_forward.1} parent=0 // pred_check
    _
  $region7: #{transformer_forward.1} parent=0 // pred_check_branch
    %11 = sbr.rel (0) target = $region9
  $region8: #{transformer_forward.1} parent=0 // pred_region
    _
  $region9: #{transformer_forward.1} parent=0 // pred_fallthru
    _
  // Predicated region
  $region10: #{transformer_forward.1} parent=0 // pred_check
    _
  $region11: #{transformer_forward.1} parent=0 // pred_check_branch
    %13 = sbr.rel (0) target = $region13
  $region12: #{transformer_forward.1} parent=0 // pred_region
    _
  $region13: #{transformer_forward.1} parent=0 // pred_fallthru
    _
  %v14 = vld [vmem:[%s0] sm:$0xff]
  %v15 = vld [vmem:[%s0 + $0x8] sm:$0xff]
  %v16 = vld [vmem:[%s0 + $0x10] sm:$0xff]
  %v17 = vld [vmem:[%s0 + $0x18] sm:$0xff]
  %v18 = vld [vmem:[%s2] sm:$0xff]
  %v19 = vld [vmem:[%s2 + $0x8] sm:$0xff]
  %v20 = vld [vmem:[%s2 + $0x10] sm:$0xff]
  %v21 = vld [vmem:[%s2 + $0x18] sm:$0xff]
  %v22 = vld [vmem:[%s1 + $0x40] sm:$0xf]
  %v23 = vld [vmem:[%s1 + $0x44] sm:$0xf]
  %v24 = vld [vmem:[%s1 + $0x48] sm:$0xf]
  %v25 = vld [vmem:[%s1 + $0x4c] sm:$0xf]
  %v26 = vld [vmem:[%s1 + $0x50] sm:$0xf]
  %v27 = vld [vmem:[%s1 + $0x54] sm:$0xf]
  %v28 = vld [vmem:[%s1 + $0x58] sm:$0xf]
  %v29 = vld [vmem:[%s1 + $0x5c] sm:$0xf]
  %v30 = vunpack.c.l.bf16 %v22
  %v31 = vunpack.c.l.bf16 %v23
  %v32 = vunpack.c.l.bf16 %v24
  %v33 = vunpack.c.l.bf16 %v25
  %v34 = vunpack.c.l.bf16 %v26
  %v35 = vunpack.c.l.bf16 %v27
  %v36 = vunpack.c.l.bf16 %v28
  %v37 = vunpack.c.l.bf16 %v29
  %v38 = vld [vmem:[%s2 + $0x40] sm:$0xff]
  %v39 = vld [vmem:[%s2 + $0x48] sm:$0xff]
  %v40 = vld [vmem:[%s2 + $0x50] sm:$0xff]
  %v41 = vld [vmem:[%s2 + $0x58] sm:$0xff]
  %v42 = vld [vmem:[%s2 + $0x60] sm:$0xff]
  %v43 = vld [vmem:[%s2 + $0x68] sm:$0xff]
  %v44 = vld [vmem:[%s2 + $0x70] sm:$0xff]
  %v45 = vld [vmem:[%s2 + $0x78] sm:$0xff]
  %47 = vset.pattern.permute.xlu0 0
  %48 = vperm.xlu0 %47, %v38
  %v49 = vpop.permute.xlu0 %48
  %52 = vset.pattern.permute.xlu0 0
  %53 = vperm.xlu0 %52, %v39
  %v54 = vpop.permute.xlu0 %53
  %57 = vset.pattern.permute.xlu0 0
  %58 = vperm.xlu0 %57, %v40
  %v59 = vpop.permute.xlu0 %58
  %62 = vset.pattern.permute.xlu0 0
  %63 = vperm.xlu0 %62, %v41
  %v64 = vpop.permute.xlu0 %63
  %67 = vset.pattern.permute.xlu0 0
  %68 = vperm.xlu0 %67, %v42
  %v69 = vpop.permute.xlu0 %68
  %72 = vset.pattern.permute.xlu0 0
  %73 = vperm.xlu0 %72, %v43
  %v74 = vpop.permute.xlu0 %73
  %77 = vset.pattern.permute.xlu0 0
  %78 = vperm.xlu0 %77, %v44
  %v79 = vpop.permute.xlu0 %78
  %82 = vset.pattern.permute.xlu0 0
  %83 = vperm.xlu0 %82, %v45
  %v84 = vpop.permute.xlu0 %83
  %vm86 = vcmask 261120
  %v88 = vsel %vm86, %v30, 0
  %v91 = vsel %vm86, %v31, 0
  %v94 = vsel %vm86, %v32, 0
  %v97 = vsel %vm86, %v33, 0
  %v100 = vsel %vm86, %v34, 0
  %v103 = vsel %vm86, %v35, 0
  %v106 = vsel %vm86, %v36, 0
  %v109 = vsel %vm86, %v37, 0
  %v112 = vsel %vm86, %v14, 0
  %v115 = vsel %vm86, %v15, 0
  %117 = vmatprep.subr.mxu0 0.0
  %118 = vmatpush1.xpose.msra.mxu0 %v112
  %119 = vmatprep.subr.mxu0 0.0
  %120 = vmatpush1.xpose.msra.mxu0 %v115
  %121 = vmatprep.subr.mxu0 0.0
  %122 = vmatpush1.xpose.msra.mxu0 0.0
  %123 = vmatprep.subr.mxu0 0.0
  %124 = vmatpush1.xpose.msra.mxu0 0.0
  %125 = vmatprep.subr.mxu0 0.0
  %126 = vmatpush1.xpose.msra.mxu0 0.0
  %127 = vmatprep.subr.mxu0 0.0
  %128 = vmatpush1.xpose.msra.mxu0 0.0
  %129 = vmatprep.subr.mxu0 0.0
  %130 = vmatpush1.xpose.msra.mxu0 0.0
  %131 = vmatprep.subr.mxu0 0.0
  %132 = vmatpush1.xpose.msra.mxu0 0.0
  %133 = vmatprep.subr.mxu0 0.0
  %134 = vmatpush1.xpose.msra.mxu0 0.0
  %135 = vmatprep.subr.mxu0 0.0
  %136 = vmatpush1.xpose.msra.mxu0 0.0
  %137 = vmatprep.subr.mxu0 0.0
  %138 = vmatpush1.xpose.msra.mxu0 0.0
  %139 = vmatprep.subr.mxu0 0.0
  %140 = vmatpush1.xpose.msra.mxu0 0.0
  %141 = vmatprep.subr.mxu0 0.0
  %142 = vmatpush1.xpose.msra.mxu0 0.0
  %143 = vmatprep.subr.mxu0 0.0
  %144 = vmatpush1.xpose.msra.mxu0 0.0
  %145 = vmatprep.subr.mxu0 0.0
  %146 = vmatpush1.xpose.msra.mxu0 0.0
  %147 = vmatprep.subr.mxu0 0.0
  %148 = vmatpush1.xpose.msra.mxu0 0.0
  %149 = vmatprep.subr.mxu0 0.0
  %150 = vmatpush1.xpose.msra.mxu0 0.0
  %151 = vmatprep.subr.mxu0 0.0
  %152 = vmatpush1.xpose.msra.mxu0 0.0
  %153 = vmatprep.subr.mxu0 0.0
  %154 = vmatpush1.xpose.msra.mxu0 0.0
  %155 = vmatprep.subr.mxu0 0.0
  %156 = vmatpush1.xpose.msra.mxu0 0.0
  %157 = vmatprep.subr.mxu0 0.0
  %158 = vmatpush1.xpose.msra.mxu0 0.0
  %159 = vmatprep.subr.mxu0 0.0
  %160 = vmatpush1.xpose.msra.mxu0 0.0
  %161 = vmatprep.subr.mxu0 0.0
  %162 = vmatpush1.xpose.msra.mxu0 0.0
  %163 = vmatprep.subr.mxu0 0.0
  %164 = vmatpush1.xpose.msra.mxu0 0.0
  %165 = vmatprep.subr.mxu0 0.0
  %166 = vmatpush1.xpose.msra.mxu0 0.0
  %167 = vmatprep.subr.mxu0 0.0
  %168 = vmatpush1.xpose.msra.mxu0 0.0
  %169 = vmatprep.subr.mxu0 0.0
  %170 = vmatpush1.xpose.msra.mxu0 0.0
  %171 = vmatprep.subr.mxu0 0.0
  %172 = vmatpush1.xpose.msra.mxu0 0.0
  %173 = vmatprep.subr.mxu0 0.0
  %174 = vmatpush1.xpose.msra.mxu0 0.0
  %175 = vmatprep.subr.mxu0 0.0
  %176 = vmatpush1.xpose.msra.mxu0 0.0
  %177 = vmatprep.subr.mxu0 0.0
  %178 = vmatpush1.xpose.msra.mxu0 0.0
  %179 = vmatprep.subr.mxu0 0.0
  %180 = vmatpush1.xpose.msra.mxu0 0.0
  %181 = vmatprep.mubr.f32.mxu0 0.0
  %182 = vmatmul.mubr.f32.gmra.mrb[0].mxu0 %v88
  %v183 = vpop.f32.mrb[0].mxu0
  %v184 = vadd.f32 %v49, %v183
  %v185 = vpop.f32.mrb[0].mxu0
  %186 = vmatprep.mubr.f32.mxu0 0.0
  %187 = vmatmul.mubr.f32.gmra.mrb[0].mxu0 %v91
  %v188 = vpop.f32.mrb[0].mxu0
  %v189 = vadd.f32 %v54, %v188
  %v190 = vpop.f32.mrb[0].mxu0
  %191 = vmatprep.mubr.f32.mxu0 0.0
  %192 = vmatmul.mubr.f32.gmra.mrb[0].mxu0 %v94
  %v193 = vpop.f32.mrb[0].mxu0
  %v194 = vadd.f32 %v59, %v193
  %v195 = vpop.f32.mrb[0].mxu0
  %196 = vmatprep.mubr.f32.mxu0 0.0
  %197 = vmatmul.mubr.f32.gmra.mrb[0].mxu0 %v97
  %v198 = vpop.f32.mrb[0].mxu0
  %v199 = vadd.f32 %v64, %v198
  %v200 = vpop.f32.mrb[0].mxu0
  %201 = vmatprep.mubr.f32.mxu0 0.0
  %202 = vmatmul.mubr.f32.gmra.mrb[0].mxu0 %v100
  %v203 = vpop.f32.mrb[0].mxu0
  %v204 = vadd.f32 %v69, %v203
  %v205 = vpop.f32.mrb[0].mxu0
  %206 = vmatprep.mubr.f32.mxu0 0.0
  %207 = vmatmul.mubr.f32.gmra.mrb[0].mxu0 %v103
  %v208 = vpop.f32.mrb[0].mxu0
  %v209 = vadd.f32 %v74, %v208
  %v210 = vpop.f32.mrb[0].mxu0
  %211 = vmatprep.mubr.f32.mxu0 0.0
  %212 = vmatmul.mubr.f32.gmra.mrb[0].mxu0 %v106
  %v213 = vpop.f32.mrb[0].mxu0
  %v214 = vadd.f32 %v79, %v213
  %v215 = vpop.f32.mrb[0].mxu0
  %216 = vmatprep.mubr.f32.mxu0 0.0
  %217 = vmatmul.mubr.f32.gmra.mrb[0].mxu0 %v109
  %v218 = vpop.f32.mrb[0].mxu0
  %v219 = vadd.f32 %v84, %v218
  %v220 = vpop.f32.mrb[0].mxu0
  %221 = vdwg.mxu0
  %v222 = vld [vmem:[%s1 + $0x60] sm:$0xf]
  %v223 = vld [vmem:[%s1 + $0x64] sm:$0xf]
  %v224 = vld [vmem:[%s1 + $0x68] sm:$0xf]
  %v225 = vld [vmem:[%s1 + $0x6c] sm:$0xf]
  %v226 = vunpack.c.l.bf16 %v222
  %v227 = vunpack.c.l.bf16 %v223
  %v228 = vunpack.c.l.bf16 %v224
  %v229 = vunpack.c.l.bf16 %v225
  %v230 = vld [vmem:[%s1] sm:$0xf]
  %v231 = vld [vmem:[%s1 + $0x4] sm:$0xf]
  %v232 = vld [vmem:[%s1 + $0x8] sm:$0xf]
  %v233 = vld [vmem:[%s1 + $0xc] sm:$0xf]
  %v234 = vunpack.c.l.bf16 %v230
  %v235 = vunpack.c.l.bf16 %v231
  %v236 = vunpack.c.l.bf16 %v232
  %v237 = vunpack.c.l.bf16 %v233
  %v238 = vld [vmem:[%s2 + $0x20] sm:$0x1]
  %v239 = vlaneseq
  %v240 = vshrl.u32 %v239, 7
  %v241 = vsub.s32 0, %v240
  %v242 = vrot.slane %v238, %v241
  %243 = vmatprep.subr.mxu0 0.0
  %244 = vmatpush1.msra.mxu0 %v234
  %245 = vmatprep.subr.mxu0 0.0
  %246 = vmatpush1.msra.mxu0 %v235
  %247 = vmatprep.subr.mxu0 0.0
  %248 = vmatpush1.msra.mxu0 %v236
  %249 = vmatprep.subr.mxu0 0.0
  %250 = vmatpush1.msra.mxu0 %v237
  %251 = vmatprep.subr.mxu0 0.0
  %252 = vmatpush1.msra.mxu0 0.0
  %253 = vmatprep.subr.mxu0 0.0
  %254 = vmatpush1.msra.mxu0 0.0
  %255 = vmatprep.subr.mxu0 0.0
  %256 = vmatpush1.msra.mxu0 0.0
  %257 = vmatprep.subr.mxu0 0.0
  %258 = vmatpush1.msra.mxu0 0.0
  %259 = vmatprep.subr.mxu0 0.0
  %260 = vmatpush1.msra.mxu0 0.0
  %261 = vmatprep.subr.mxu0 0.0
  %262 = vmatpush1.msra.mxu0 0.0
  %263 = vmatprep.subr.mxu0 0.0
  %264 = vmatpush1.msra.mxu0 0.0
  %265 = vmatprep.subr.mxu0 0.0
  %266 = vmatpush1.msra.mxu0 0.0
  %267 = vmatprep.subr.mxu0 0.0
  %268 = vmatpush1.msra.mxu0 0.0
  %269 = vmatprep.subr.mxu0 0.0
  %270 = vmatpush1.msra.mxu0 0.0
  %271 = vmatprep.subr.mxu0 0.0
  %272 = vmatpush1.msra.mxu0 0.0
  %273 = vmatprep.subr.mxu0 0.0
  %274 = vmatpush1.msra.mxu0 0.0
  %275 = vmatprep.subr.mxu0 0.0
  %276 = vmatpush1.msra.mxu0 0.0
  %277 = vmatprep.subr.mxu0 0.0
  %278 = vmatpush1.msra.mxu0 0.0
  %279 = vmatprep.subr.mxu0 0.0
  %280 = vmatpush1.msra.mxu0 0.0
  %281 = vmatprep.subr.mxu0 0.0
  %282 = vmatpush1.msra.mxu0 0.0
  %283 = vmatprep.subr.mxu0 0.0
  %284 = vmatpush1.msra.mxu0 0.0
  %285 = vmatprep.subr.mxu0 0.0
  %286 = vmatpush1.msra.mxu0 0.0
  %287 = vmatprep.subr.mxu0 0.0
  %288 = vmatpush1.msra.mxu0 0.0
  %289 = vmatprep.subr.mxu0 0.0
  %290 = vmatpush1.msra.mxu0 0.0
  %291 = vmatprep.subr.mxu0 0.0
  %292 = vmatpush1.msra.mxu0 0.0
  %293 = vmatprep.subr.mxu0 0.0
  %294 = vmatpush1.msra.mxu0 0.0
  %295 = vmatprep.subr.mxu0 0.0
  %296 = vmatpush1.msra.mxu0 0.0
  %297 = vmatprep.subr.mxu0 0.0
  %298 = vmatpush1.msra.mxu0 0.0
  %299 = vmatprep.subr.mxu0 0.0
  %300 = vmatpush1.msra.mxu0 0.0
  %301 = vmatprep.subr.mxu0 0.0
  %302 = vmatpush1.msra.mxu0 0.0
  %303 = vmatprep.subr.mxu0 0.0
  %304 = vmatpush1.msra.mxu0 0.0
  %305 = vmatprep.subr.mxu0 0.0
  %306 = vmatpush1.msra.mxu0 0.0
  %307 = vmatprep.mubr.f32.mxu0 0.0
  %308 = vmatmul.mubr.f32.gmra.mrb[0].mxu0 %v112
  %v309 = vpop.f32.mrb[0].mxu0
  %v310 = vadd.f32 %v242, %v309
  %v311 = vpop.f32.mrb[0].mxu0
  %312 = vmatprep.mubr.f32.mxu0 0.0
  %313 = vmatmul.mubr.f32.gmra.mrb[0].mxu0 %v115
  %v314 = vpop.f32.mrb[0].mxu0
  %v315 = vadd.f32 %v242, %v314
  %v316 = vpop.f32.mrb[0].mxu0
  %317 = vdwg.mxu0
  %vm318 = vcmask 64512
  %v320 = vsel %vm318, %v310, 0
  %v323 = vsel %vm318, %v315, 0
  %325 = vmatprep.subr.mxu0 0.0
  %326 = vmatpush1.msra.mxu0 %v184
  %327 = vmatprep.subr.mxu0 0.0
  %328 = vmatpush1.msra.mxu0 0.0
  %329 = vmatprep.subr.mxu0 0.0
  %330 = vmatpush1.msra.mxu0 0.0
  %331 = vmatprep.subr.mxu0 0.0
  %332 = vmatpush1.msra.mxu0 0.0
  %333 = vmatprep.subr.mxu0 0.0
  %334 = vmatpush1.msra.mxu0 0.0
  %335 = vmatprep.subr.mxu0 0.0
  %336 = vmatpush1.msra.mxu0 0.0
  %337 = vmatprep.subr.mxu0 0.0
  %338 = vmatpush1.msra.mxu0 0.0
  %339 = vmatprep.subr.mxu0 0.0
  %340 = vmatpush1.msra.mxu0 0.0
  %341 = vmatprep.subr.mxu0 0.0
  %342 = vmatpush1.msra.mxu0 0.0
  %343 = vmatprep.subr.mxu0 0.0
  %344 = vmatpush1.msra.mxu0 0.0
  %345 = vmatprep.subr.mxu0 0.0
  %346 = vmatpush1.msra.mxu0 0.0
  %347 = vmatprep.subr.mxu0 0.0
  %348 = vmatpush1.msra.mxu0 0.0
  %349 = vmatprep.subr.mxu0 0.0
  %350 = vmatpush1.msra.mxu0 0.0
  %351 = vmatprep.subr.mxu0 0.0
  %352 = vmatpush1.msra.mxu0 0.0
  %353 = vmatprep.subr.mxu0 0.0
  %354 = vmatpush1.msra.mxu0 0.0
  %355 = vmatprep.subr.mxu0 0.0
  %356 = vmatpush1.msra.mxu0 0.0
  %357 = vmatprep.subr.mxu0 0.0
  %358 = vmatpush1.msra.mxu0 0.0
  %359 = vmatprep.subr.mxu0 0.0
  %360 = vmatpush1.msra.mxu0 0.0
  %361 = vmatprep.subr.mxu0 0.0
  %362 = vmatpush1.msra.mxu0 0.0
  %363 = vmatprep.subr.mxu0 0.0
  %364 = vmatpush1.msra.mxu0 0.0
  %365 = vmatprep.subr.mxu0 0.0
  %366 = vmatpush1.msra.mxu0 0.0
  %367 = vmatprep.subr.mxu0 0.0
  %368 = vmatpush1.msra.mxu0 0.0
  %369 = vmatprep.subr.mxu0 0.0
  %370 = vmatpush1.msra.mxu0 0.0
  %371 = vmatprep.subr.mxu0 0.0
  %372 = vmatpush1.msra.mxu0 0.0
  %373 = vmatprep.subr.mxu0 0.0
  %374 = vmatpush1.msra.mxu0 0.0
  %375 = vmatprep.subr.mxu0 0.0
  %376 = vmatpush1.msra.mxu0 0.0
  %377 = vmatprep.subr.mxu0 0.0
  %378 = vmatpush1.msra.mxu0 0.0
  %379 = vmatprep.subr.mxu0 0.0
  %380 = vmatpush1.msra.mxu0 0.0
  %381 = vmatprep.subr.mxu0 0.0
  %382 = vmatpush1.msra.mxu0 0.0
  %383 = vmatprep.subr.mxu0 0.0
  %384 = vmatpush1.msra.mxu0 0.0
  %385 = vmatprep.subr.mxu0 0.0
  %386 = vmatpush1.msra.mxu0 0.0
  %387 = vmatprep.subr.mxu0 0.0
  %388 = vmatpush1.msra.mxu0 0.0
  %389 = vmatprep.mubr.f32.mxu0 0.0
  %390 = vmatmul.mubr.f32.gmra.mrb[0].mxu0 %v320
  %v391 = vpop.f32.mrb[0].mxu0
  %v392 = vadd.f32 %v18, %v391
  %v393 = vpop.f32.mrb[0].mxu0
  %394 = vmatprep.mubr.f32.mxu0 0.0
  %395 = vmatmul.mubr.f32.gmra.mrb[0].mxu0 %v323
  %v396 = vpop.f32.mrb[0].mxu0
  %v397 = vadd.f32 %v19, %v396
  %v398 = vpop.f32.mrb[0].mxu0
  %399 = vdwg.mxu0
  %vm400 = vcmask 130048
  %v401 = vsel %vm400, %v392, -inf
  %402 = vmax.xlane.f32.xlu0 %v401
  %v403 = vpop.xlane.xlu0 %402
  %v404 = vsel %vm400, %v397, -inf
  %405 = vmax.xlane.f32.xlu0 %v404
  %v406 = vpop.xlane.xlu0 %405
  %v407 = vsub.f32 %v392, %v403
  %v408 = vsub.f32 %v397, %v406
  %v409 = vmul.f32 %v407, 1.442695
  %v410 = vpow.pop %v409
  %v411 = vmul.f32 %v408, 1.442695
  %v412 = vpow.pop %v411
  %v413 = vsel %vm400, %v410, 0.0
  %414 = vadd.xlane.f32.xlu0 %v413
  %v415 = vpop.xlane.xlu0 %414
  %v416 = vsel %vm400, %v412, 0.0
  %417 = vadd.xlane.f32.xlu0 %v416
  %v418 = vpop.xlane.xlu0 %417
  %v419 = vrcp.pop %v415
  %v420 = vrcp.pop %v418
  %v421 = vmul.f32 %v410, %v419
  %v422 = vmul.f32 %v412, %v420
  %v424 = vsel %vm400, %v421, 0
  %v427 = vsel %vm400, %v422, 0
  %v430 = vsel %vm400, %v189, 0
  %432 = vmatprep.subr.mxu0 0.0
  %433 = vmatpush1.xpose.msra.mxu0 %v430
  %434 = vmatprep.subr.mxu0 0.0
  %435 = vmatpush1.xpose.msra.mxu0 0.0
  %436 = vmatprep.subr.mxu0 0.0
  %437 = vmatpush1.xpose.msra.mxu0 0.0
  %438 = vmatprep.subr.mxu0 0.0
  %439 = vmatpush1.xpose.msra.mxu0 0.0
  %440 = vmatprep.subr.mxu0 0.0
  %441 = vmatpush1.xpose.msra.mxu0 0.0
  %442 = vmatprep.subr.mxu0 0.0
  %443 = vmatpush1.xpose.msra.mxu0 0.0
  %444 = vmatprep.subr.mxu0 0.0
  %445 = vmatpush1.xpose.msra.mxu0 0.0
  %446 = vmatprep.subr.mxu0 0.0
  %447 = vmatpush1.xpose.msra.mxu0 0.0
  %448 = vmatprep.subr.mxu0 0.0
  %449 = vmatpush1.xpose.msra.mxu0 0.0
  %450 = vmatprep.subr.mxu0 0.0
  %451 = vmatpush1.xpose.msra.mxu0 0.0
  %452 = vmatprep.subr.mxu0 0.0
  %453 = vmatpush1.xpose.msra.mxu0 0.0
  %454 = vmatprep.subr.mxu0 0.0
  %455 = vmatpush1.xpose.msra.mxu0 0.0
  %456 = vmatprep.subr.mxu0 0.0
  %457 = vmatpush1.xpose.msra.mxu0 0.0
  %458 = vmatprep.subr.mxu0 0.0
  %459 = vmatpush1.xpose.msra.mxu0 0.0
  %460 = vmatprep.subr.mxu0 0.0
  %461 = vmatpush1.xpose.msra.mxu0 0.0
  %462 = vmatprep.subr.mxu0 0.0
  %463 = vmatpush1.xpose.msra.mxu0 0.0
  %464 = vmatprep.subr.mxu0 0.0
  %465 = vmatpush1.xpose.msra.mxu0 0.0
  %466 = vmatprep.subr.mxu0 0.0
  %467 = vmatpush1.xpose.msra.mxu0 0.0
  %468 = vmatprep.subr.mxu0 0.0
  %469 = vmatpush1.xpose.msra.mxu0 0.0
  %470 = vmatprep.subr.mxu0 0.0
  %471 = vmatpush1.xpose.msra.mxu0 0.0
  %472 = vmatprep.subr.mxu0 0.0
  %473 = vmatpush1.xpose.msra.mxu0 0.0
  %474 = vmatprep.subr.mxu0 0.0
  %475 = vmatpush1.xpose.msra.mxu0 0.0
  %476 = vmatprep.subr.mxu0 0.0
  %477 = vmatpush1.xpose.msra.mxu0 0.0
  %478 = vmatprep.subr.mxu0 0.0
  %479 = vmatpush1.xpose.msra.mxu0 0.0
  %480 = vmatprep.subr.mxu0 0.0
  %481 = vmatpush1.xpose.msra.mxu0 0.0
  %482 = vmatprep.subr.mxu0 0.0
  %483 = vmatpush1.xpose.msra.mxu0 0.0
  %484 = vmatprep.subr.mxu0 0.0
  %485 = vmatpush1.xpose.msra.mxu0 0.0
  %486 = vmatprep.subr.mxu0 0.0
  %487 = vmatpush1.xpose.msra.mxu0 0.0
  %488 = vmatprep.subr.mxu0 0.0
  %489 = vmatpush1.xpose.msra.mxu0 0.0
  %490 = vmatprep.subr.mxu0 0.0
  %491 = vmatpush1.xpose.msra.mxu0 0.0
  %492 = vmatprep.subr.mxu0 0.0
  %493 = vmatpush1.xpose.msra.mxu0 0.0
  %494 = vmatprep.subr.mxu0 0.0
  %495 = vmatpush1.xpose.msra.mxu0 0.0
  %496 = vmatprep.mubr.f32.mxu0 0.0
  %497 = vmatmul.mubr.f32.gmra.mrb[0].mxu0 %v424
  %v498 = vpop.f32.mrb[0].mxu0
  %v499 = vadd.f32 0.0, %v498
  %v500 = vpop.f32.mrb[0].mxu0
  %501 = vmatprep.mubr.f32.mxu0 0.0
  %502 = vmatmul.mubr.f32.gmra.mrb[0].mxu0 %v427
  %v503 = vpop.f32.mrb[0].mxu0
  %v504 = vadd.f32 0.0, %v503
  %v505 = vpop.f32.mrb[0].mxu0
  %506 = vdwg.mxu0
  %v507 = vld [vmem:[%s1 + $0x10] sm:$0xf]
  %v508 = vld [vmem:[%s1 + $0x14] sm:$0xf]
  %v509 = vld [vmem:[%s1 + $0x18] sm:$0xf]
  %v510 = vld [vmem:[%s1 + $0x1c] sm:$0xf]
  %v511 = vunpack.c.l.bf16 %v507
  %v512 = vunpack.c.l.bf16 %v508
  %v513 = vunpack.c.l.bf16 %v509
  %v514 = vunpack.c.l.bf16 %v510
  %v515 = vld [vmem:[%s2 + $0x28] sm:$0x1]
  %v516 = vlaneseq
  %v517 = vshrl.u32 %v516, 7
  %v518 = vsub.s32 0, %v517
  %v519 = vrot.slane %v515, %v518
  %520 = vmatprep.subr.mxu0 0.0
  %521 = vmatpush1.msra.mxu0 %v511
  %522 = vmatprep.subr.mxu0 0.0
  %523 = vmatpush1.msra.mxu0 %v512
  %524 = vmatprep.subr.mxu0 0.0
  %525 = vmatpush1.msra.mxu0 %v513
  %526 = vmatprep.subr.mxu0 0.0
  %527 = vmatpush1.msra.mxu0 %v514
  %528 = vmatprep.subr.mxu0 0.0
  %529 = vmatpush1.msra.mxu0 0.0
  %530 = vmatprep.subr.mxu0 0.0
  %531 = vmatpush1.msra.mxu0 0.0
  %532 = vmatprep.subr.mxu0 0.0
  %533 = vmatpush1.msra.mxu0 0.0
  %534 = vmatprep.subr.mxu0 0.0
  %535 = vmatpush1.msra.mxu0 0.0
  %536 = vmatprep.subr.mxu0 0.0
  %537 = vmatpush1.msra.mxu0 0.0
  %538 = vmatprep.subr.mxu0 0.0
  %539 = vmatpush1.msra.mxu0 0.0
  %540 = vmatprep.subr.mxu0 0.0
  %541 = vmatpush1.msra.mxu0 0.0
  %542 = vmatprep.subr.mxu0 0.0
  %543 = vmatpush1.msra.mxu0 0.0
  %544 = vmatprep.subr.mxu0 0.0
  %545 = vmatpush1.msra.mxu0 0.0
  %546 = vmatprep.subr.mxu0 0.0
  %547 = vmatpush1.msra.mxu0 0.0
  %548 = vmatprep.subr.mxu0 0.0
  %549 = vmatpush1.msra.mxu0 0.0
  %550 = vmatprep.subr.mxu0 0.0
  %551 = vmatpush1.msra.mxu0 0.0
  %552 = vmatprep.subr.mxu0 0.0
  %553 = vmatpush1.msra.mxu0 0.0
  %554 = vmatprep.subr.mxu0 0.0
  %555 = vmatpush1.msra.mxu0 0.0
  %556 = vmatprep.subr.mxu0 0.0
  %557 = vmatpush1.msra.mxu0 0.0
  %558 = vmatprep.subr.mxu0 0.0
  %559 = vmatpush1.msra.mxu0 0.0
  %560 = vmatprep.subr.mxu0 0.0
  %561 = vmatpush1.msra.mxu0 0.0
  %562 = vmatprep.subr.mxu0 0.0
  %563 = vmatpush1.msra.mxu0 0.0
  %564 = vmatprep.subr.mxu0 0.0
  %565 = vmatpush1.msra.mxu0 0.0
  %566 = vmatprep.subr.mxu0 0.0
  %567 = vmatpush1.msra.mxu0 0.0
  %568 = vmatprep.subr.mxu0 0.0
  %569 = vmatpush1.msra.mxu0 0.0
  %570 = vmatprep.subr.mxu0 0.0
  %571 = vmatpush1.msra.mxu0 0.0
  %572 = vmatprep.subr.mxu0 0.0
  %573 = vmatpush1.msra.mxu0 0.0
  %574 = vmatprep.subr.mxu0 0.0
  %575 = vmatpush1.msra.mxu0 0.0
  %576 = vmatprep.subr.mxu0 0.0
  %577 = vmatpush1.msra.mxu0 0.0
  %578 = vmatprep.subr.mxu0 0.0
  %579 = vmatpush1.msra.mxu0 0.0
  %580 = vmatprep.subr.mxu0 0.0
  %581 = vmatpush1.msra.mxu0 0.0
  %582 = vmatprep.subr.mxu0 0.0
  %583 = vmatpush1.msra.mxu0 0.0
  %584 = vmatprep.mubr.f32.mxu0 0.0
  %585 = vmatmul.mubr.f32.gmra.mrb[0].mxu0 %v112
  %v586 = vpop.f32.mrb[0].mxu0
  %v587 = vadd.f32 %v519, %v586
  %v588 = vpop.f32.mrb[0].mxu0
  %589 = vmatprep.mubr.f32.mxu0 0.0
  %590 = vmatmul.mubr.f32.gmra.mrb[0].mxu0 %v115
  %v591 = vpop.f32.mrb[0].mxu0
  %v592 = vadd.f32 %v519, %v591
  %v593 = vpop.f32.mrb[0].mxu0
  %594 = vdwg.mxu0
  %v596 = vsel %vm318, %v587, 0
  %v599 = vsel %vm318, %v592, 0
  %601 = vmatprep.subr.mxu0 0.0
  %602 = vmatpush1.msra.mxu0 %v194
  %603 = vmatprep.subr.mxu0 0.0
  %604 = vmatpush1.msra.mxu0 0.0
  %605 = vmatprep.subr.mxu0 0.0
  %606 = vmatpush1.msra.mxu0 0.0
  %607 = vmatprep.subr.mxu0 0.0
  %608 = vmatpush1.msra.mxu0 0.0
  %609 = vmatprep.subr.mxu0 0.0
  %610 = vmatpush1.msra.mxu0 0.0
  %611 = vmatprep.subr.mxu0 0.0
  %612 = vmatpush1.msra.mxu0 0.0
  %613 = vmatprep.subr.mxu0 0.0
  %614 = vmatpush1.msra.mxu0 0.0
  %615 = vmatprep.subr.mxu0 0.0
  %616 = vmatpush1.msra.mxu0 0.0
  %617 = vmatprep.subr.mxu0 0.0
  %618 = vmatpush1.msra.mxu0 0.0
  %619 = vmatprep.subr.mxu0 0.0
  %620 = vmatpush1.msra.mxu0 0.0
  %621 = vmatprep.subr.mxu0 0.0
  %622 = vmatpush1.msra.mxu0 0.0
  %623 = vmatprep.subr.mxu0 0.0
  %624 = vmatpush1.msra.mxu0 0.0
  %625 = vmatprep.subr.mxu0 0.0
  %626 = vmatpush1.msra.mxu0 0.0
  %627 = vmatprep.subr.mxu0 0.0
  %628 = vmatpush1.msra.mxu0 0.0
  %629 = vmatprep.subr.mxu0 0.0
  %630 = vmatpush1.msra.mxu0 0.0
  %631 = vmatprep.subr.mxu0 0.0
  %632 = vmatpush1.msra.mxu0 0.0
  %633 = vmatprep.subr.mxu0 0.0
  %634 = vmatpush1.msra.mxu0 0.0
  %635 = vmatprep.subr.mxu0 0.0
  %636 = vmatpush1.msra.mxu0 0.0
  %637 = vmatprep.subr.mxu0 0.0
  %638 = vmatpush1.msra.mxu0 0.0
  %639 = vmatprep.subr.mxu0 0.0
  %640 = vmatpush1.msra.mxu0 0.0
  %641 = vmatprep.subr.mxu0 0.0
  %642 = vmatpush1.msra.mxu0 0.0
  %643 = vmatprep.subr.mxu0 0.0
  %644 = vmatpush1.msra.mxu0 0.0
  %645 = vmatprep.subr.mxu0 0.0
  %646 = vmatpush1.msra.mxu0 0.0
  %647 = vmatprep.subr.mxu0 0.0
  %648 = vmatpush1.msra.mxu0 0.0
  %649 = vmatprep.subr.mxu0 0.0
  %650 = vmatpush1.msra.mxu0 0.0
  %651 = vmatprep.subr.mxu0 0.0
  %652 = vmatpush1.msra.mxu0 0.0
  %653 = vmatprep.subr.mxu0 0.0
  %654 = vmatpush1.msra.mxu0 0.0
  %655 = vmatprep.subr.mxu0 0.0
  %656 = vmatpush1.msra.mxu0 0.0
  %657 = vmatprep.subr.mxu0 0.0
  %658 = vmatpush1.msra.mxu0 0.0
  %659 = vmatprep.subr.mxu0 0.0
  %660 = vmatpush1.msra.mxu0 0.0
  %661 = vmatprep.subr.mxu0 0.0
  %662 = vmatpush1.msra.mxu0 0.0
  %663 = vmatprep.subr.mxu0 0.0
  %664 = vmatpush1.msra.mxu0 0.0
  %665 = vmatprep.mubr.f32.mxu0 0.0
  %666 = vmatmul.mubr.f32.gmra.mrb[0].mxu0 %v596
  %v667 = vpop.f32.mrb[0].mxu0
  %v668 = vadd.f32 %v18, %v667
  %v669 = vpop.f32.mrb[0].mxu0
  %670 = vmatprep.mubr.f32.mxu0 0.0
  %671 = vmatmul.mubr.f32.gmra.mrb[0].mxu0 %v599
  %v672 = vpop.f32.mrb[0].mxu0
  %v673 = vadd.f32 %v19, %v672
  %v674 = vpop.f32.mrb[0].mxu0
  %675 = vdwg.mxu0
  %v676 = vsel %vm400, %v668, -inf
  %677 = vmax.xlane.f32.xlu0 %v676
  %v678 = vpop.xlane.xlu0 %677
  %v679 = vsel %vm400, %v673, -inf
  %680 = vmax.xlane.f32.xlu0 %v679
  %v681 = vpop.xlane.xlu0 %680
  %v682 = vsub.f32 %v668, %v678
  %v683 = vsub.f32 %v673, %v681
  %v684 = vmul.f32 %v682, 1.442695
  %v685 = vpow.pop %v684
  %v686 = vmul.f32 %v683, 1.442695
  %v687 = vpow.pop %v686
  %v688 = vsel %vm400, %v685, 0.0
  %689 = vadd.xlane.f32.xlu0 %v688
  %v690 = vpop.xlane.xlu0 %689
  %v691 = vsel %vm400, %v687, 0.0
  %692 = vadd.xlane.f32.xlu0 %v691
  %v693 = vpop.xlane.xlu0 %692
  %v694 = vrcp.pop %v690
  %v695 = vrcp.pop %v693
  %v696 = vmul.f32 %v685, %v694
  %v697 = vmul.f32 %v687, %v695
  %v699 = vsel %vm400, %v696, 0
  %v702 = vsel %vm400, %v697, 0
  %v705 = vsel %vm400, %v199, 0
  %707 = vmatprep.subr.mxu0 0.0
  %708 = vmatpush1.xpose.msra.mxu0 %v705
  %709 = vmatprep.subr.mxu0 0.0
  %710 = vmatpush1.xpose.msra.mxu0 0.0
  %711 = vmatprep.subr.mxu0 0.0
  %712 = vmatpush1.xpose.msra.mxu0 0.0
  %713 = vmatprep.subr.mxu0 0.0
  %714 = vmatpush1.xpose.msra.mxu0 0.0
  %715 = vmatprep.subr.mxu0 0.0
  %716 = vmatpush1.xpose.msra.mxu0 0.0
  %717 = vmatprep.subr.mxu0 0.0
  %718 = vmatpush1.xpose.msra.mxu0 0.0
  %719 = vmatprep.subr.mxu0 0.0
  %720 = vmatpush1.xpose.msra.mxu0 0.0
  %721 = vmatprep.subr.mxu0 0.0
  %722 = vmatpush1.xpose.msra.mxu0 0.0
  %723 = vmatprep.subr.mxu0 0.0
  %724 = vmatpush1.xpose.msra.mxu0 0.0
  %725 = vmatprep.subr.mxu0 0.0
  %726 = vmatpush1.xpose.msra.mxu0 0.0
  %727 = vmatprep.subr.mxu0 0.0
  %728 = vmatpush1.xpose.msra.mxu0 0.0
  %729 = vmatprep.subr.mxu0 0.0
  %730 = vmatpush1.xpose.msra.mxu0 0.0
  %731 = vmatprep.subr.mxu0 0.0
  %732 = vmatpush1.xpose.msra.mxu0 0.0
  %733 = vmatprep.subr.mxu0 0.0
  %734 = vmatpush1.xpose.msra.mxu0 0.0
  %735 = vmatprep.subr.mxu0 0.0
  %736 = vmatpush1.xpose.msra.mxu0 0.0
  %737 = vmatprep.subr.mxu0 0.0
  %738 = vmatpush1.xpose.msra.mxu0 0.0
  %739 = vmatprep.subr.mxu0 0.0
  %740 = vmatpush1.xpose.msra.mxu0 0.0
  %741 = vmatprep.subr.mxu0 0.0
  %742 = vmatpush1.xpose.msra.mxu0 0.0
  %743 = vmatprep.subr.mxu0 0.0
  %744 = vmatpush1.xpose.msra.mxu0 0.0
  %745 = vmatprep.subr.mxu0 0.0
  %746 = vmatpush1.xpose.msra.mxu0 0.0
  %747 = vmatprep.subr.mxu0 0.0
  %748 = vmatpush1.xpose.msra.mxu0 0.0
  %749 = vmatprep.subr.mxu0 0.0
  %750 = vmatpush1.xpose.msra.mxu0 0.0
  %751 = vmatprep.subr.mxu0 0.0
  %752 = vmatpush1.xpose.msra.mxu0 0.0
  %753 = vmatprep.subr.mxu0 0.0
  %754 = vmatpush1.xpose.msra.mxu0 0.0
  %755 = vmatprep.subr.mxu0 0.0
  %756 = vmatpush1.xpose.msra.mxu0 0.0
  %757 = vmatprep.subr.mxu0 0.0
  %758 = vmatpush1.xpose.msra.mxu0 0.0
  %759 = vmatprep.subr.mxu0 0.0
  %760 = vmatpush1.xpose.msra.mxu0 0.0
  %761 = vmatprep.subr.mxu0 0.0
  %762 = vmatpush1.xpose.msra.mxu0 0.0
  %763 = vmatprep.subr.mxu0 0.0
  %764 = vmatpush1.xpose.msra.mxu0 0.0
  %765 = vmatprep.subr.mxu0 0.0
  %766 = vmatpush1.xpose.msra.mxu0 0.0
  %767 = vmatprep.subr.mxu0 0.0
  %768 = vmatpush1.xpose.msra.mxu0 0.0
  %769 = vmatprep.subr.mxu0 0.0
  %770 = vmatpush1.xpose.msra.mxu0 0.0
  %771 = vmatprep.mubr.f32.mxu0 0.0
  %772 = vmatmul.mubr.f32.gmra.mrb[0].mxu0 %v699
  %v773 = vpop.f32.mrb[0].mxu0
  %v774 = vadd.f32 0.0, %v773
  %v775 = vpop.f32.mrb[0].mxu0
  %776 = vmatprep.mubr.f32.mxu0 0.0
  %777 = vmatmul.mubr.f32.gmra.mrb[0].mxu0 %v702
  %v778 = vpop.f32.mrb[0].mxu0
  %v779 = vadd.f32 0.0, %v778
  %v780 = vpop.f32.mrb[0].mxu0
  %781 = vdwg.mxu0
  %v783 = vsel %vm318, %v774, 0
  %v786 = vsel %vm318, %v779, 0
  %788 = vmatprep.subr.mxu0 0.0
  %789 = vmatpush1.msra.mxu0 %v227
  %790 = vmatprep.subr.mxu0 0.0
  %791 = vmatpush1.msra.mxu0 0.0
  %792 = vmatprep.subr.mxu0 0.0
  %793 = vmatpush1.msra.mxu0 0.0
  %794 = vmatprep.subr.mxu0 0.0
  %795 = vmatpush1.msra.mxu0 0.0
  %796 = vmatprep.subr.mxu0 0.0
  %797 = vmatpush1.msra.mxu0 0.0
  %798 = vmatprep.subr.mxu0 0.0
  %799 = vmatpush1.msra.mxu0 0.0
  %800 = vmatprep.subr.mxu0 0.0
  %801 = vmatpush1.msra.mxu0 0.0
  %802 = vmatprep.subr.mxu0 0.0
  %803 = vmatpush1.msra.mxu0 0.0
  %804 = vmatprep.subr.mxu0 0.0
  %805 = vmatpush1.msra.mxu0 0.0
  %806 = vmatprep.subr.mxu0 0.0
  %807 = vmatpush1.msra.mxu0 0.0
  %808 = vmatprep.subr.mxu0 0.0
  %809 = vmatpush1.msra.mxu0 0.0
  %810 = vmatprep.subr.mxu0 0.0
  %811 = vmatpush1.msra.mxu0 0.0
  %812 = vmatprep.subr.mxu0 0.0
  %813 = vmatpush1.msra.mxu0 0.0
  %814 = vmatprep.subr.mxu0 0.0
  %815 = vmatpush1.msra.mxu0 0.0
  %816 = vmatprep.subr.mxu0 0.0
  %817 = vmatpush1.msra.mxu0 0.0
  %818 = vmatprep.subr.mxu0 0.0
  %819 = vmatpush1.msra.mxu0 0.0
  %820 = vmatprep.subr.mxu0 0.0
  %821 = vmatpush1.msra.mxu0 0.0
  %822 = vmatprep.subr.mxu0 0.0
  %823 = vmatpush1.msra.mxu0 0.0
  %824 = vmatprep.subr.mxu0 0.0
  %825 = vmatpush1.msra.mxu0 0.0
  %826 = vmatprep.subr.mxu0 0.0
  %827 = vmatpush1.msra.mxu0 0.0
  %828 = vmatprep.subr.mxu0 0.0
  %829 = vmatpush1.msra.mxu0 0.0
  %830 = vmatprep.subr.mxu0 0.0
  %831 = vmatpush1.msra.mxu0 0.0
  %832 = vmatprep.subr.mxu0 0.0
  %833 = vmatpush1.msra.mxu0 0.0
  %834 = vmatprep.subr.mxu0 0.0
  %835 = vmatpush1.msra.mxu0 0.0
  %836 = vmatprep.subr.mxu0 0.0
  %837 = vmatpush1.msra.mxu0 0.0
  %838 = vmatprep.subr.mxu0 0.0
  %839 = vmatpush1.msra.mxu0 0.0
  %840 = vmatprep.subr.mxu0 0.0
  %841 = vmatpush1.msra.mxu0 0.0
  %842 = vmatprep.subr.mxu0 0.0
  %843 = vmatpush1.msra.mxu0 0.0
  %844 = vmatprep.subr.mxu0 0.0
  %845 = vmatpush1.msra.mxu0 0.0
  %846 = vmatprep.subr.mxu0 0.0
  %847 = vmatpush1.msra.mxu0 0.0
  %848 = vmatprep.subr.mxu0 0.0
  %849 = vmatpush1.msra.mxu0 0.0
  %850 = vmatprep.subr.mxu0 0.0
  %851 = vmatpush1.msra.mxu0 0.0
  %852 = vmatprep.mubr.f32.mxu0 0.0
  %853 = vmatmul.mubr.f32.gmra.mrb[0].mxu0 %v783
  %v854 = vpop.f32.mrb[0].mxu0
  %v855 = vadd.f32 0.0, %v854
  %v856 = vpop.f32.mrb[0].mxu0
  %857 = vmatprep.mubr.f32.mxu0 0.0
  %858 = vmatmul.mubr.f32.gmra.mrb[0].mxu0 %v786
  %v859 = vpop.f32.mrb[0].mxu0
  %v860 = vadd.f32 0.0, %v859
  %v861 = vpop.f32.mrb[0].mxu0
  %862 = vdwg.mxu0
  %v864 = vsel %vm318, %v499, 0
  %v867 = vsel %vm318, %v504, 0
  %869 = vmatprep.subr.mxu0 0.0
  %870 = vmatpush1.msra.mxu0 %v226
  %871 = vmatprep.subr.mxu0 0.0
  %872 = vmatpush1.msra.mxu0 0.0
  %873 = vmatprep.subr.mxu0 0.0
  %874 = vmatpush1.msra.mxu0 0.0
  %875 = vmatprep.subr.mxu0 0.0
  %876 = vmatpush1.msra.mxu0 0.0
  %877 = vmatprep.subr.mxu0 0.0
  %878 = vmatpush1.msra.mxu0 0.0
  %879 = vmatprep.subr.mxu0 0.0
  %880 = vmatpush1.msra.mxu0 0.0
  %881 = vmatprep.subr.mxu0 0.0
  %882 = vmatpush1.msra.mxu0 0.0
  %883 = vmatprep.subr.mxu0 0.0
  %884 = vmatpush1.msra.mxu0 0.0
  %885 = vmatprep.subr.mxu0 0.0
  %886 = vmatpush1.msra.mxu0 0.0
  %887 = vmatprep.subr.mxu0 0.0
  %888 = vmatpush1.msra.mxu0 0.0
  %889 = vmatprep.subr.mxu0 0.0
  %890 = vmatpush1.msra.mxu0 0.0
  %891 = vmatprep.subr.mxu0 0.0
  %892 = vmatpush1.msra.mxu0 0.0
  %893 = vmatprep.subr.mxu0 0.0
  %894 = vmatpush1.msra.mxu0 0.0
  %895 = vmatprep.subr.mxu0 0.0
  %896 = vmatpush1.msra.mxu0 0.0
  %897 = vmatprep.subr.mxu0 0.0
  %898 = vmatpush1.msra.mxu0 0.0
  %899 = vmatprep.subr.mxu0 0.0
  %900 = vmatpush1.msra.mxu0 0.0
  %901 = vmatprep.subr.mxu0 0.0
  %902 = vmatpush1.msra.mxu0 0.0
  %903 = vmatprep.subr.mxu0 0.0
  %904 = vmatpush1.msra.mxu0 0.0
  %905 = vmatprep.subr.mxu0 0.0
  %906 = vmatpush1.msra.mxu0 0.0
  %907 = vmatprep.subr.mxu0 0.0
  %908 = vmatpush1.msra.mxu0 0.0
  %909 = vmatprep.subr.mxu0 0.0
  %910 = vmatpush1.msra.mxu0 0.0
  %911 = vmatprep.subr.mxu0 0.0
  %912 = vmatpush1.msra.mxu0 0.0
  %913 = vmatprep.subr.mxu0 0.0
  %914 = vmatpush1.msra.mxu0 0.0
  %915 = vmatprep.subr.mxu0 0.0
  %916 = vmatpush1.msra.mxu0 0.0
  %917 = vmatprep.subr.mxu0 0.0
  %918 = vmatpush1.msra.mxu0 0.0
  %919 = vmatprep.subr.mxu0 0.0
  %920 = vmatpush1.msra.mxu0 0.0
  %921 = vmatprep.subr.mxu0 0.0
  %922 = vmatpush1.msra.mxu0 0.0
  %923 = vmatprep.subr.mxu0 0.0
  %924 = vmatpush1.msra.mxu0 0.0
  %925 = vmatprep.subr.mxu0 0.0
  %926 = vmatpush1.msra.mxu0 0.0
  %927 = vmatprep.subr.mxu0 0.0
  %928 = vmatpush1.msra.mxu0 0.0
  %929 = vmatprep.subr.mxu0 0.0
  %930 = vmatpush1.msra.mxu0 0.0
  %931 = vmatprep.subr.mxu0 0.0
  %932 = vmatpush1.msra.mxu0 0.0
  %933 = vmatprep.mubr.f32.mxu0 0.0
  %934 = vmatmul.mubr.f32.gmra.mrb[0].mxu0 %v864
  %v935 = vpop.f32.mrb[0].mxu0
  %v936 = vadd.f32 %v855, %v935
  %v937 = vpop.f32.mrb[0].mxu0
  %938 = vmatprep.mubr.f32.mxu0 0.0
  %939 = vmatmul.mubr.f32.gmra.mrb[0].mxu0 %v867
  %v940 = vpop.f32.mrb[0].mxu0
  %v941 = vadd.f32 %v860, %v940
  %v942 = vpop.f32.mrb[0].mxu0
  %943 = vdwg.mxu0
  %v944 = vld [vmem:[%s1 + $0x20] sm:$0xf]
  %v945 = vld [vmem:[%s1 + $0x24] sm:$0xf]
  %v946 = vld [vmem:[%s1 + $0x28] sm:$0xf]
  %v947 = vld [vmem:[%s1 + $0x2c] sm:$0xf]
  %v948 = vunpack.c.l.bf16 %v944
  %v949 = vunpack.c.l.bf16 %v945
  %v950 = vunpack.c.l.bf16 %v946
  %v951 = vunpack.c.l.bf16 %v947
  %v952 = vld [vmem:[%s2 + $0x30] sm:$0x1]
  %v953 = vlaneseq
  %v954 = vshrl.u32 %v953, 7
  %v955 = vsub.s32 0, %v954
  %v956 = vrot.slane %v952, %v955
  %957 = vmatprep.subr.mxu0 0.0
  %958 = vmatpush1.msra.mxu0 %v948
  %959 = vmatprep.subr.mxu0 0.0
  %960 = vmatpush1.msra.mxu0 %v949
  %961 = vmatprep.subr.mxu0 0.0
  %962 = vmatpush1.msra.mxu0 %v950
  %963 = vmatprep.subr.mxu0 0.0
  %964 = vmatpush1.msra.mxu0 %v951
  %965 = vmatprep.subr.mxu0 0.0
  %966 = vmatpush1.msra.mxu0 0.0
  %967 = vmatprep.subr.mxu0 0.0
  %968 = vmatpush1.msra.mxu0 0.0
  %969 = vmatprep.subr.mxu0 0.0
  %970 = vmatpush1.msra.mxu0 0.0
  %971 = vmatprep.subr.mxu0 0.0
  %972 = vmatpush1.msra.mxu0 0.0
  %973 = vmatprep.subr.mxu0 0.0
  %974 = vmatpush1.msra.mxu0 0.0
  %975 = vmatprep.subr.mxu0 0.0
  %976 = vmatpush1.msra.mxu0 0.0
  %977 = vmatprep.subr.mxu0 0.0
  %978 = vmatpush1.msra.mxu0 0.0
  %979 = vmatprep.subr.mxu0 0.0
  %980 = vmatpush1.msra.mxu0 0.0
  %981 = vmatprep.subr.mxu0 0.0
  %982 = vmatpush1.msra.mxu0 0.0
  %983 = vmatprep.subr.mxu0 0.0
  %984 = vmatpush1.msra.mxu0 0.0
  %985 = vmatprep.subr.mxu0 0.0
  %986 = vmatpush1.msra.mxu0 0.0
  %987 = vmatprep.subr.mxu0 0.0
  %988 = vmatpush1.msra.mxu0 0.0
  %989 = vmatprep.subr.mxu0 0.0
  %990 = vmatpush1.msra.mxu0 0.0
  %991 = vmatprep.subr.mxu0 0.0
  %992 = vmatpush1.msra.mxu0 0.0
  %993 = vmatprep.subr.mxu0 0.0
  %994 = vmatpush1.msra.mxu0 0.0
  %995 = vmatprep.subr.mxu0 0.0
  %996 = vmatpush1.msra.mxu0 0.0
  %997 = vmatprep.subr.mxu0 0.0
  %998 = vmatpush1.msra.mxu0 0.0
  %999 = vmatprep.subr.mxu0 0.0
  %1000 = vmatpush1.msra.mxu0 0.0
  %1001 = vmatprep.subr.mxu0 0.0
  %1002 = vmatpush1.msra.mxu0 0.0
  %1003 = vmatprep.subr.mxu0 0.0
  %1004 = vmatpush1.msra.mxu0 0.0
  %1005 = vmatprep.subr.mxu0 0.0
  %1006 = vmatpush1.msra.mxu0 0.0
  %1007 = vmatprep.subr.mxu0 0.0
  %1008 = vmatpush1.msra.mxu0 0.0
  %1009 = vmatprep.subr.mxu0 0.0
  %1010 = vmatpush1.msra.mxu0 0.0
  %1011 = vmatprep.subr.mxu0 0.0
  %1012 = vmatpush1.msra.mxu0 0.0
  %1013 = vmatprep.subr.mxu0 0.0
  %1014 = vmatpush1.msra.mxu0 0.0
  %1015 = vmatprep.subr.mxu0 0.0
  %1016 = vmatpush1.msra.mxu0 0.0
  %1017 = vmatprep.subr.mxu0 0.0
  %1018 = vmatpush1.msra.mxu0 0.0
  %1019 = vmatprep.subr.mxu0 0.0
  %1020 = vmatpush1.msra.mxu0 0.0
  %1021 = vmatprep.mubr.f32.mxu0 0.0
  %1022 = vmatmul.mubr.f32.gmra.mrb[0].mxu0 %v112
  %v1023 = vpop.f32.mrb[0].mxu0
  %v1024 = vadd.f32 %v956, %v1023
  %v1025 = vpop.f32.mrb[0].mxu0
  %1026 = vmatprep.mubr.f32.mxu0 0.0
  %1027 = vmatmul.mubr.f32.gmra.mrb[0].mxu0 %v115
  %v1028 = vpop.f32.mrb[0].mxu0
  %v1029 = vadd.f32 %v956, %v1028
  %v1030 = vpop.f32.mrb[0].mxu0
  %1031 = vdwg.mxu0
  %v1033 = vsel %vm318, %v1024, 0
  %v1036 = vsel %vm318, %v1029, 0
  %1038 = vmatprep.subr.mxu0 0.0
  %1039 = vmatpush1.msra.mxu0 %v204
  %1040 = vmatprep.subr.mxu0 0.0
  %1041 = vmatpush1.msra.mxu0 0.0
  %1042 = vmatprep.subr.mxu0 0.0
  %1043 = vmatpush1.msra.mxu0 0.0
  %1044 = vmatprep.subr.mxu0 0.0
  %1045 = vmatpush1.msra.mxu0 0.0
  %1046 = vmatprep.subr.mxu0 0.0
  %1047 = vmatpush1.msra.mxu0 0.0
  %1048 = vmatprep.subr.mxu0 0.0
  %1049 = vmatpush1.msra.mxu0 0.0
  %1050 = vmatprep.subr.mxu0 0.0
  %1051 = vmatpush1.msra.mxu0 0.0
  %1052 = vmatprep.subr.mxu0 0.0
  %1053 = vmatpush1.msra.mxu0 0.0
  %1054 = vmatprep.subr.mxu0 0.0
  %1055 = vmatpush1.msra.mxu0 0.0
  %1056 = vmatprep.subr.mxu0 0.0
  %1057 = vmatpush1.msra.mxu0 0.0
  %1058 = vmatprep.subr.mxu0 0.0
  %1059 = vmatpush1.msra.mxu0 0.0
  %1060 = vmatprep.subr.mxu0 0.0
  %1061 = vmatpush1.msra.mxu0 0.0
  %1062 = vmatprep.subr.mxu0 0.0
  %1063 = vmatpush1.msra.mxu0 0.0
  %1064 = vmatprep.subr.mxu0 0.0
  %1065 = vmatpush1.msra.mxu0 0.0
  %1066 = vmatprep.subr.mxu0 0.0
  %1067 = vmatpush1.msra.mxu0 0.0
  %1068 = vmatprep.subr.mxu0 0.0
  %1069 = vmatpush1.msra.mxu0 0.0
  %1070 = vmatprep.subr.mxu0 0.0
  %1071 = vmatpush1.msra.mxu0 0.0
  %1072 = vmatprep.subr.mxu0 0.0
  %1073 = vmatpush1.msra.mxu0 0.0
  %1074 = vmatprep.subr.mxu0 0.0
  %1075 = vmatpush1.msra.mxu0 0.0
  %1076 = vmatprep.subr.mxu0 0.0
  %1077 = vmatpush1.msra.mxu0 0.0
  %1078 = vmatprep.subr.mxu0 0.0
  %1079 = vmatpush1.msra.mxu0 0.0
  %1080 = vmatprep.subr.mxu0 0.0
  %1081 = vmatpush1.msra.mxu0 0.0
  %1082 = vmatprep.subr.mxu0 0.0
  %1083 = vmatpush1.msra.mxu0 0.0
  %1084 = vmatprep.subr.mxu0 0.0
  %1085 = vmatpush1.msra.mxu0 0.0
  %1086 = vmatprep.subr.mxu0 0.0
  %1087 = vmatpush1.msra.mxu0 0.0
  %1088 = vmatprep.subr.mxu0 0.0
  %1089 = vmatpush1.msra.mxu0 0.0
  %1090 = vmatprep.subr.mxu0 0.0
  %1091 = vmatpush1.msra.mxu0 0.0
  %1092 = vmatprep.subr.mxu0 0.0
  %1093 = vmatpush1.msra.mxu0 0.0
  %1094 = vmatprep.subr.mxu0 0.0
  %1095 = vmatpush1.msra.mxu0 0.0
  %1096 = vmatprep.subr.mxu0 0.0
  %1097 = vmatpush1.msra.mxu0 0.0
  %1098 = vmatprep.subr.mxu0 0.0
  %1099 = vmatpush1.msra.mxu0 0.0
  %1100 = vmatprep.subr.mxu0 0.0
  %1101 = vmatpush1.msra.mxu0 0.0
  %1102 = vmatprep.mubr.f32.mxu0 0.0
  %1103 = vmatmul.mubr.f32.gmra.mrb[0].mxu0 %v1033
  %v1104 = vpop.f32.mrb[0].mxu0
  %v1105 = vadd.f32 %v18, %v1104
  %v1106 = vpop.f32.mrb[0].mxu0
  %1107 = vmatprep.mubr.f32.mxu0 0.0
  %1108 = vmatmul.mubr.f32.gmra.mrb[0].mxu0 %v1036
  %v1109 = vpop.f32.mrb[0].mxu0
  %v1110 = vadd.f32 %v19, %v1109
  %v1111 = vpop.f32.mrb[0].mxu0
  %1112 = vdwg.mxu0
  %v1113 = vsel %vm400, %v1105, -inf
  %1114 = vmax.xlane.f32.xlu0 %v1113
  %v1115 = vpop.xlane.xlu0 %1114
  %v1116 = vsel %vm400, %v1110, -inf
  %1117 = vmax.xlane.f32.xlu0 %v1116
  %v1118 = vpop.xlane.xlu0 %1117
  %v1119 = vsub.f32 %v1105, %v1115
  %v1120 = vsub.f32 %v1110, %v1118
  %v1121 = vmul.f32 %v1119, 1.442695
  %v1122 = vpow.pop %v1121
  %v1123 = vmul.f32 %v1120, 1.442695
  %v1124 = vpow.pop %v1123
  %v1125 = vsel %vm400, %v1122, 0.0
  %1126 = vadd.xlane.f32.xlu0 %v1125
  %v1127 = vpop.xlane.xlu0 %1126
  %v1128 = vsel %vm400, %v1124, 0.0
  %1129 = vadd.xlane.f32.xlu0 %v1128
  %v1130 = vpop.xlane.xlu0 %1129
  %v1131 = vrcp.pop %v1127
  %v1132 = vrcp.pop %v1130
  %v1133 = vmul.f32 %v1122, %v1131
  %v1134 = vmul.f32 %v1124, %v1132
  %v1136 = vsel %vm400, %v1133, 0
  %v1139 = vsel %vm400, %v1134, 0
  %v1142 = vsel %vm400, %v209, 0
  %1144 = vmatprep.subr.mxu0 0.0
  %1145 = vmatpush1.xpose.msra.mxu0 %v1142
  %1146 = vmatprep.subr.mxu0 0.0
  %1147 = vmatpush1.xpose.msra.mxu0 0.0
  %1148 = vmatprep.subr.mxu0 0.0
  %1149 = vmatpush1.xpose.msra.mxu0 0.0
  %1150 = vmatprep.subr.mxu0 0.0
  %1151 = vmatpush1.xpose.msra.mxu0 0.0
  %1152 = vmatprep.subr.mxu0 0.0
  %1153 = vmatpush1.xpose.msra.mxu0 0.0
  %1154 = vmatprep.subr.mxu0 0.0
  %1155 = vmatpush1.xpose.msra.mxu0 0.0
  %1156 = vmatprep.subr.mxu0 0.0
  %1157 = vmatpush1.xpose.msra.mxu0 0.0
  %1158 = vmatprep.subr.mxu0 0.0
  %1159 = vmatpush1.xpose.msra.mxu0 0.0
  %1160 = vmatprep.subr.mxu0 0.0
  %1161 = vmatpush1.xpose.msra.mxu0 0.0
  %1162 = vmatprep.subr.mxu0 0.0
  %1163 = vmatpush1.xpose.msra.mxu0 0.0
  %1164 = vmatprep.subr.mxu0 0.0
  %1165 = vmatpush1.xpose.msra.mxu0 0.0
  %1166 = vmatprep.subr.mxu0 0.0
  %1167 = vmatpush1.xpose.msra.mxu0 0.0
  %1168 = vmatprep.subr.mxu0 0.0
  %1169 = vmatpush1.xpose.msra.mxu0 0.0
  %1170 = vmatprep.subr.mxu0 0.0
  %1171 = vmatpush1.xpose.msra.mxu0 0.0
  %1172 = vmatprep.subr.mxu0 0.0
  %1173 = vmatpush1.xpose.msra.mxu0 0.0
  %1174 = vmatprep.subr.mxu0 0.0
  %1175 = vmatpush1.xpose.msra.mxu0 0.0
  %1176 = vmatprep.subr.mxu0 0.0
  %1177 = vmatpush1.xpose.msra.mxu0 0.0
  %1178 = vmatprep.subr.mxu0 0.0
  %1179 = vmatpush1.xpose.msra.mxu0 0.0
  %1180 = vmatprep.subr.mxu0 0.0
  %1181 = vmatpush1.xpose.msra.mxu0 0.0
  %1182 = vmatprep.subr.mxu0 0.0
  %1183 = vmatpush1.xpose.msra.mxu0 0.0
  %1184 = vmatprep.subr.mxu0 0.0
  %1185 = vmatpush1.xpose.msra.mxu0 0.0
  %1186 = vmatprep.subr.mxu0 0.0
  %1187 = vmatpush1.xpose.msra.mxu0 0.0
  %1188 = vmatprep.subr.mxu0 0.0
  %1189 = vmatpush1.xpose.msra.mxu0 0.0
  %1190 = vmatprep.subr.mxu0 0.0
  %1191 = vmatpush1.xpose.msra.mxu0 0.0
  %1192 = vmatprep.subr.mxu0 0.0
  %1193 = vmatpush1.xpose.msra.mxu0 0.0
  %1194 = vmatprep.subr.mxu0 0.0
  %1195 = vmatpush1.xpose.msra.mxu0 0.0
  %1196 = vmatprep.subr.mxu0 0.0
  %1197 = vmatpush1.xpose.msra.mxu0 0.0
  %1198 = vmatprep.subr.mxu0 0.0
  %1199 = vmatpush1.xpose.msra.mxu0 0.0
  %1200 = vmatprep.subr.mxu0 0.0
  %1201 = vmatpush1.xpose.msra.mxu0 0.0
  %1202 = vmatprep.subr.mxu0 0.0
  %1203 = vmatpush1.xpose.msra.mxu0 0.0
  %1204 = vmatprep.subr.mxu0 0.0
  %1205 = vmatpush1.xpose.msra.mxu0 0.0
  %1206 = vmatprep.subr.mxu0 0.0
  %1207 = vmatpush1.xpose.msra.mxu0 0.0
  %1208 = vmatprep.mubr.f32.mxu0 0.0
  %1209 = vmatmul.mubr.f32.gmra.mrb[0].mxu0 %v1136
  %v1210 = vpop.f32.mrb[0].mxu0
  %v1211 = vadd.f32 0.0, %v1210
  %v1212 = vpop.f32.mrb[0].mxu0
  %1213 = vmatprep.mubr.f32.mxu0 0.0
  %1214 = vmatmul.mubr.f32.gmra.mrb[0].mxu0 %v1139
  %v1215 = vpop.f32.mrb[0].mxu0
  %v1216 = vadd.f32 0.0, %v1215
  %v1217 = vpop.f32.mrb[0].mxu0
  %1218 = vdwg.mxu0
  %v1220 = vsel %vm318, %v1211, 0
  %v1223 = vsel %vm318, %v1216, 0
  %1225 = vmatprep.subr.mxu0 0.0
  %1226 = vmatpush1.msra.mxu0 %v228
  %1227 = vmatprep.subr.mxu0 0.0
  %1228 = vmatpush1.msra.mxu0 0.0
  %1229 = vmatprep.subr.mxu0 0.0
  %1230 = vmatpush1.msra.mxu0 0.0
  %1231 = vmatprep.subr.mxu0 0.0
  %1232 = vmatpush1.msra.mxu0 0.0
  %1233 = vmatprep.subr.mxu0 0.0
  %1234 = vmatpush1.msra.mxu0 0.0
  %1235 = vmatprep.subr.mxu0 0.0
  %1236 = vmatpush1.msra.mxu0 0.0
  %1237 = vmatprep.subr.mxu0 0.0
  %1238 = vmatpush1.msra.mxu0 0.0
  %1239 = vmatprep.subr.mxu0 0.0
  %1240 = vmatpush1.msra.mxu0 0.0
  %1241 = vmatprep.subr.mxu0 0.0
  %1242 = vmatpush1.msra.mxu0 0.0
  %1243 = vmatprep.subr.mxu0 0.0
  %1244 = vmatpush1.msra.mxu0 0.0
  %1245 = vmatprep.subr.mxu0 0.0
  %1246 = vmatpush1.msra.mxu0 0.0
  %1247 = vmatprep.subr.mxu0 0.0
  %1248 = vmatpush1.msra.mxu0 0.0
  %1249 = vmatprep.subr.mxu0 0.0
  %1250 = vmatpush1.msra.mxu0 0.0
  %1251 = vmatprep.subr.mxu0 0.0
  %1252 = vmatpush1.msra.mxu0 0.0
  %1253 = vmatprep.subr.mxu0 0.0
  %1254 = vmatpush1.msra.mxu0 0.0
  %1255 = vmatprep.subr.mxu0 0.0
  %1256 = vmatpush1.msra.mxu0 0.0
  %1257 = vmatprep.subr.mxu0 0.0
  %1258 = vmatpush1.msra.mxu0 0.0
  %1259 = vmatprep.subr.mxu0 0.0
  %1260 = vmatpush1.msra.mxu0 0.0
  %1261 = vmatprep.subr.mxu0 0.0
  %1262 = vmatpush1.msra.mxu0 0.0
  %1263 = vmatprep.subr.mxu0 0.0
  %1264 = vmatpush1.msra.mxu0 0.0
  %1265 = vmatprep.subr.mxu0 0.0
  %1266 = vmatpush1.msra.mxu0 0.0
  %1267 = vmatprep.subr.mxu0 0.0
  %1268 = vmatpush1.msra.mxu0 0.0
  %1269 = vmatprep.subr.mxu0 0.0
  %1270 = vmatpush1.msra.mxu0 0.0
  %1271 = vmatprep.subr.mxu0 0.0
  %1272 = vmatpush1.msra.mxu0 0.0
  %1273 = vmatprep.subr.mxu0 0.0
  %1274 = vmatpush1.msra.mxu0 0.0
  %1275 = vmatprep.subr.mxu0 0.0
  %1276 = vmatpush1.msra.mxu0 0.0
  %1277 = vmatprep.subr.mxu0 0.0
  %1278 = vmatpush1.msra.mxu0 0.0
  %1279 = vmatprep.subr.mxu0 0.0
  %1280 = vmatpush1.msra.mxu0 0.0
  %1281 = vmatprep.subr.mxu0 0.0
  %1282 = vmatpush1.msra.mxu0 0.0
  %1283 = vmatprep.subr.mxu0 0.0
  %1284 = vmatpush1.msra.mxu0 0.0
  %1285 = vmatprep.subr.mxu0 0.0
  %1286 = vmatpush1.msra.mxu0 0.0
  %1287 = vmatprep.subr.mxu0 0.0
  %1288 = vmatpush1.msra.mxu0 0.0
  %1289 = vmatprep.mubr.f32.mxu0 0.0
  %1290 = vmatmul.mubr.f32.gmra.mrb[0].mxu0 %v1220
  %v1291 = vpop.f32.mrb[0].mxu0
  %v1292 = vadd.f32 0.0, %v1291
  %v1293 = vpop.f32.mrb[0].mxu0
  %1294 = vmatprep.mubr.f32.mxu0 0.0
  %1295 = vmatmul.mubr.f32.gmra.mrb[0].mxu0 %v1223
  %v1296 = vpop.f32.mrb[0].mxu0
  %v1297 = vadd.f32 0.0, %v1296
  %v1298 = vpop.f32.mrb[0].mxu0
  %1299 = vdwg.mxu0
  %v1300 = vadd.f32 %v936, %v1292
  %v1301 = vadd.f32 %v941, %v1297
  %v1302 = vld [vmem:[%s1 + $0x30] sm:$0xf]
  %v1303 = vld [vmem:[%s1 + $0x34] sm:$0xf]
  %v1304 = vld [vmem:[%s1 + $0x38] sm:$0xf]
  %v1305 = vld [vmem:[%s1 + $0x3c] sm:$0xf]
  %v1306 = vunpack.c.l.bf16 %v1302
  %v1307 = vunpack.c.l.bf16 %v1303
  %v1308 = vunpack.c.l.bf16 %v1304
  %v1309 = vunpack.c.l.bf16 %v1305
  %v1310 = vld [vmem:[%s2 + $0x38] sm:$0x1]
  %v1311 = vlaneseq
  %v1312 = vshrl.u32 %v1311, 7
  %v1313 = vsub.s32 0, %v1312
  %v1314 = vrot.slane %v1310, %v1313
  %1315 = vmatprep.subr.mxu0 0.0
  %1316 = vmatpush1.msra.mxu0 %v1306
  %1317 = vmatprep.subr.mxu0 0.0
  %1318 = vmatpush1.msra.mxu0 %v1307
  %1319 = vmatprep.subr.mxu0 0.0
  %1320 = vmatpush1.msra.mxu0 %v1308
  %1321 = vmatprep.subr.mxu0 0.0
  %1322 = vmatpush1.msra.mxu0 %v1309
  %1323 = vmatprep.subr.mxu0 0.0
  %1324 = vmatpush1.msra.mxu0 0.0
  %1325 = vmatprep.subr.mxu0 0.0
  %1326 = vmatpush1.msra.mxu0 0.0
  %1327 = vmatprep.subr.mxu0 0.0
  %1328 = vmatpush1.msra.mxu0 0.0
  %1329 = vmatprep.subr.mxu0 0.0
  %1330 = vmatpush1.msra.mxu0 0.0
  %1331 = vmatprep.subr.mxu0 0.0
  %1332 = vmatpush1.msra.mxu0 0.0
  %1333 = vmatprep.subr.mxu0 0.0
  %1334 = vmatpush1.msra.mxu0 0.0
  %1335 = vmatprep.subr.mxu0 0.0
  %1336 = vmatpush1.msra.mxu0 0.0
  %1337 = vmatprep.subr.mxu0 0.0
  %1338 = vmatpush1.msra.mxu0 0.0
  %1339 = vmatprep.subr.mxu0 0.0
  %1340 = vmatpush1.msra.mxu0 0.0
  %1341 = vmatprep.subr.mxu0 0.0
  %1342 = vmatpush1.msra.mxu0 0.0
  %1343 = vmatprep.subr.mxu0 0.0
  %1344 = vmatpush1.msra.mxu0 0.0
  %1345 = vmatprep.subr.mxu0 0.0
  %1346 = vmatpush1.msra.mxu0 0.0
  %1347 = vmatprep.subr.mxu0 0.0
  %1348 = vmatpush1.msra.mxu0 0.0
  %1349 = vmatprep.subr.mxu0 0.0
  %1350 = vmatpush1.msra.mxu0 0.0
  %1351 = vmatprep.subr.mxu0 0.0
  %1352 = vmatpush1.msra.mxu0 0.0
  %1353 = vmatprep.subr.mxu0 0.0
  %1354 = vmatpush1.msra.mxu0 0.0
  %1355 = vmatprep.subr.mxu0 0.0
  %1356 = vmatpush1.msra.mxu0 0.0
  %1357 = vmatprep.subr.mxu0 0.0
  %1358 = vmatpush1.msra.mxu0 0.0
  %1359 = vmatprep.subr.mxu0 0.0
  %1360 = vmatpush1.msra.mxu0 0.0
  %1361 = vmatprep.subr.mxu0 0.0
  %1362 = vmatpush1.msra.mxu0 0.0
  %1363 = vmatprep.subr.mxu0 0.0
  %1364 = vmatpush1.msra.mxu0 0.0
  %1365 = vmatprep.subr.mxu0 0.0
  %1366 = vmatpush1.msra.mxu0 0.0
  %1367 = vmatprep.subr.mxu0 0.0
  %1368 = vmatpush1.msra.mxu0 0.0
  %1369 = vmatprep.subr.mxu0 0.0
  %1370 = vmatpush1.msra.mxu0 0.0
  %1371 = vmatprep.subr.mxu0 0.0
  %1372 = vmatpush1.msra.mxu0 0.0
  %1373 = vmatprep.subr.mxu0 0.0
  %1374 = vmatpush1.msra.mxu0 0.0
  %1375 = vmatprep.subr.mxu0 0.0
  %1376 = vmatpush1.msra.mxu0 0.0
  %1377 = vmatprep.subr.mxu0 0.0
  %1378 = vmatpush1.msra.mxu0 0.0
  %1379 = vmatprep.mubr.f32.mxu0 0.0
  %1380 = vmatmul.mubr.f32.gmra.mrb[0].mxu0 %v112
  %v1381 = vpop.f32.mrb[0].mxu0
  %v1382 = vadd.f32 %v1314, %v1381
  %v1383 = vpop.f32.mrb[0].mxu0
  %1384 = vmatprep.mubr.f32.mxu0 0.0
  %1385 = vmatmul.mubr.f32.gmra.mrb[0].mxu0 %v115
  %v1386 = vpop.f32.mrb[0].mxu0
  %v1387 = vadd.f32 %v1314, %v1386
  %v1388 = vpop.f32.mrb[0].mxu0
  %1389 = vdwg.mxu0
  %v1391 = vsel %vm318, %v1382, 0
  %v1394 = vsel %vm318, %v1387, 0
  %1396 = vmatprep.subr.mxu0 0.0
  %1397 = vmatpush1.msra.mxu0 %v214
  %1398 = vmatprep.subr.mxu0 0.0
  %1399 = vmatpush1.msra.mxu0 0.0
  %1400 = vmatprep.subr.mxu0 0.0
  %1401 = vmatpush1.msra.mxu0 0.0
  %1402 = vmatprep.subr.mxu0 0.0
  %1403 = vmatpush1.msra.mxu0 0.0
  %1404 = vmatprep.subr.mxu0 0.0
  %1405 = vmatpush1.msra.mxu0 0.0
  %1406 = vmatprep.subr.mxu0 0.0
  %1407 = vmatpush1.msra.mxu0 0.0
  %1408 = vmatprep.subr.mxu0 0.0
  %1409 = vmatpush1.msra.mxu0 0.0
  %1410 = vmatprep.subr.mxu0 0.0
  %1411 = vmatpush1.msra.mxu0 0.0
  %1412 = vmatprep.subr.mxu0 0.0
  %1413 = vmatpush1.msra.mxu0 0.0
  %1414 = vmatprep.subr.mxu0 0.0
  %1415 = vmatpush1.msra.mxu0 0.0
  %1416 = vmatprep.subr.mxu0 0.0
  %1417 = vmatpush1.msra.mxu0 0.0
  %1418 = vmatprep.subr.mxu0 0.0
  %1419 = vmatpush1.msra.mxu0 0.0
  %1420 = vmatprep.subr.mxu0 0.0
  %1421 = vmatpush1.msra.mxu0 0.0
  %1422 = vmatprep.subr.mxu0 0.0
  %1423 = vmatpush1.msra.mxu0 0.0
  %1424 = vmatprep.subr.mxu0 0.0
  %1425 = vmatpush1.msra.mxu0 0.0
  %1426 = vmatprep.subr.mxu0 0.0
  %1427 = vmatpush1.msra.mxu0 0.0
  %1428 = vmatprep.subr.mxu0 0.0
  %1429 = vmatpush1.msra.mxu0 0.0
  %1430 = vmatprep.subr.mxu0 0.0
  %1431 = vmatpush1.msra.mxu0 0.0
  %1432 = vmatprep.subr.mxu0 0.0
  %1433 = vmatpush1.msra.mxu0 0.0
  %1434 = vmatprep.subr.mxu0 0.0
  %1435 = vmatpush1.msra.mxu0 0.0
  %1436 = vmatprep.subr.mxu0 0.0
  %1437 = vmatpush1.msra.mxu0 0.0
  %1438 = vmatprep.subr.mxu0 0.0
  %1439 = vmatpush1.msra.mxu0 0.0
  %1440 = vmatprep.subr.mxu0 0.0
  %1441 = vmatpush1.msra.mxu0 0.0
  %1442 = vmatprep.subr.mxu0 0.0
  %1443 = vmatpush1.msra.mxu0 0.0
  %1444 = vmatprep.subr.mxu0 0.0
  %1445 = vmatpush1.msra.mxu0 0.0
  %1446 = vmatprep.subr.mxu0 0.0
  %1447 = vmatpush1.msra.mxu0 0.0
  %1448 = vmatprep.subr.mxu0 0.0
  %1449 = vmatpush1.msra.mxu0 0.0
  %1450 = vmatprep.subr.mxu0 0.0
  %1451 = vmatpush1.msra.mxu0 0.0
  %1452 = vmatprep.subr.mxu0 0.0
  %1453 = vmatpush1.msra.mxu0 0.0
  %1454 = vmatprep.subr.mxu0 0.0
  %1455 = vmatpush1.msra.mxu0 0.0
  %1456 = vmatprep.subr.mxu0 0.0
  %1457 = vmatpush1.msra.mxu0 0.0
  %1458 = vmatprep.subr.mxu0 0.0
  %1459 = vmatpush1.msra.mxu0 0.0
  %1460 = vmatprep.mubr.f32.mxu0 0.0
  %1461 = vmatmul.mubr.f32.gmra.mrb[0].mxu0 %v1391
  %v1462 = vpop.f32.mrb[0].mxu0
  %v1463 = vadd.f32 %v18, %v1462
  %v1464 = vpop.f32.mrb[0].mxu0
  %1465 = vmatprep.mubr.f32.mxu0 0.0
  %1466 = vmatmul.mubr.f32.gmra.mrb[0].mxu0 %v1394
  %v1467 = vpop.f32.mrb[0].mxu0
  %v1468 = vadd.f32 %v19, %v1467
  %v1469 = vpop.f32.mrb[0].mxu0
  %1470 = vdwg.mxu0
  %v1471 = vsel %vm400, %v1463, -inf
  %1472 = vmax.xlane.f32.xlu0 %v1471
  %v1473 = vpop.xlane.xlu0 %1472
  %v1474 = vsel %vm400, %v1468, -inf
  %1475 = vmax.xlane.f32.xlu0 %v1474
  %v1476 = vpop.xlane.xlu0 %1475
  %v1477 = vsub.f32 %v1463, %v1473
  %v1478 = vsub.f32 %v1468, %v1476
  %v1479 = vmul.f32 %v1477, 1.442695
  %v1480 = vpow.pop %v1479
  %v1481 = vmul.f32 %v1478, 1.442695
  %v1482 = vpow.pop %v1481
  %v1483 = vsel %vm400, %v1480, 0.0
  %1484 = vadd.xlane.f32.xlu0 %v1483
  %v1485 = vpop.xlane.xlu0 %1484
  %v1486 = vsel %vm400, %v1482, 0.0
  %1487 = vadd.xlane.f32.xlu0 %v1486
  %v1488 = vpop.xlane.xlu0 %1487
  %v1489 = vrcp.pop %v1485
  %v1490 = vrcp.pop %v1488
  %v1491 = vmul.f32 %v1480, %v1489
  %v1492 = vmul.f32 %v1482, %v1490
  %v1494 = vsel %vm400, %v1491, 0
  %v1497 = vsel %vm400, %v1492, 0
  %v1500 = vsel %vm400, %v219, 0
  %1502 = vmatprep.subr.mxu0 0.0
  %1503 = vmatpush1.xpose.msra.mxu0 %v1500
  %1504 = vmatprep.subr.mxu0 0.0
  %1505 = vmatpush1.xpose.msra.mxu0 0.0
  %1506 = vmatprep.subr.mxu0 0.0
  %1507 = vmatpush1.xpose.msra.mxu0 0.0
  %1508 = vmatprep.subr.mxu0 0.0
  %1509 = vmatpush1.xpose.msra.mxu0 0.0
  %1510 = vmatprep.subr.mxu0 0.0
  %1511 = vmatpush1.xpose.msra.mxu0 0.0
  %1512 = vmatprep.subr.mxu0 0.0
  %1513 = vmatpush1.xpose.msra.mxu0 0.0
  %1514 = vmatprep.subr.mxu0 0.0
  %1515 = vmatpush1.xpose.msra.mxu0 0.0
  %1516 = vmatprep.subr.mxu0 0.0
  %1517 = vmatpush1.xpose.msra.mxu0 0.0
  %1518 = vmatprep.subr.mxu0 0.0
  %1519 = vmatpush1.xpose.msra.mxu0 0.0
  %1520 = vmatprep.subr.mxu0 0.0
  %1521 = vmatpush1.xpose.msra.mxu0 0.0
  %1522 = vmatprep.subr.mxu0 0.0
  %1523 = vmatpush1.xpose.msra.mxu0 0.0
  %1524 = vmatprep.subr.mxu0 0.0
  %1525 = vmatpush1.xpose.msra.mxu0 0.0
  %1526 = vmatprep.subr.mxu0 0.0
  %1527 = vmatpush1.xpose.msra.mxu0 0.0
  %1528 = vmatprep.subr.mxu0 0.0
  %1529 = vmatpush1.xpose.msra.mxu0 0.0
  %1530 = vmatprep.subr.mxu0 0.0
  %1531 = vmatpush1.xpose.msra.mxu0 0.0
  %1532 = vmatprep.subr.mxu0 0.0
  %1533 = vmatpush1.xpose.msra.mxu0 0.0
  %1534 = vmatprep.subr.mxu0 0.0
  %1535 = vmatpush1.xpose.msra.mxu0 0.0
  %1536 = vmatprep.subr.mxu0 0.0
  %1537 = vmatpush1.xpose.msra.mxu0 0.0
  %1538 = vmatprep.subr.mxu0 0.0
  %1539 = vmatpush1.xpose.msra.mxu0 0.0
  %1540 = vmatprep.subr.mxu0 0.0
  %1541 = vmatpush1.xpose.msra.mxu0 0.0
  %1542 = vmatprep.subr.mxu0 0.0
  %1543 = vmatpush1.xpose.msra.mxu0 0.0
  %1544 = vmatprep.subr.mxu0 0.0
  %1545 = vmatpush1.xpose.msra.mxu0 0.0
  %1546 = vmatprep.subr.mxu0 0.0
  %1547 = vmatpush1.xpose.msra.mxu0 0.0
  %1548 = vmatprep.subr.mxu0 0.0
  %1549 = vmatpush1.xpose.msra.mxu0 0.0
  %1550 = vmatprep.subr.mxu0 0.0
  %1551 = vmatpush1.xpose.msra.mxu0 0.0
  %1552 = vmatprep.subr.mxu0 0.0
  %1553 = vmatpush1.xpose.msra.mxu0 0.0
  %1554 = vmatprep.subr.mxu0 0.0
  %1555 = vmatpush1.xpose.msra.mxu0 0.0
  %1556 = vmatprep.subr.mxu0 0.0
  %1557 = vmatpush1.xpose.msra.mxu0 0.0
  %1558 = vmatprep.subr.mxu0 0.0
  %1559 = vmatpush1.xpose.msra.mxu0 0.0
  %1560 = vmatprep.subr.mxu0 0.0
  %1561 = vmatpush1.xpose.msra.mxu0 0.0
  %1562 = vmatprep.subr.mxu0 0.0
  %1563 = vmatpush1.xpose.msra.mxu0 0.0
  %1564 = vmatprep.subr.mxu0 0.0
  %1565 = vmatpush1.xpose.msra.mxu0 0.0
  %1566 = vmatprep.mubr.f32.mxu0 0.0
  %1567 = vmatmul.mubr.f32.gmra.mrb[0].mxu0 %v1494
  %v1568 = vpop.f32.mrb[0].mxu0
  %v1569 = vadd.f32 0.0, %v1568
  %v1570 = vpop.f32.mrb[0].mxu0
  %1571 = vmatprep.mubr.f32.mxu0 0.0
  %1572 = vmatmul.mubr.f32.gmra.mrb[0].mxu0 %v1497
  %v1573 = vpop.f32.mrb[0].mxu0
  %v1574 = vadd.f32 0.0, %v1573
  %v1575 = vpop.f32.mrb[0].mxu0
  %1576 = vdwg.mxu0
  %v1578 = vsel %vm318, %v1569, 0
  %v1581 = vsel %vm318, %v1574, 0
  %1583 = vmatprep.subr.mxu0 0.0
  %1584 = vmatpush1.msra.mxu0 %v229
  %1585 = vmatprep.subr.mxu0 0.0
  %1586 = vmatpush1.msra.mxu0 0.0
  %1587 = vmatprep.subr.mxu0 0.0
  %1588 = vmatpush1.msra.mxu0 0.0
  %1589 = vmatprep.subr.mxu0 0.0
  %1590 = vmatpush1.msra.mxu0 0.0
  %1591 = vmatprep.subr.mxu0 0.0
  %1592 = vmatpush1.msra.mxu0 0.0
  %1593 = vmatprep.subr.mxu0 0.0
  %1594 = vmatpush1.msra.mxu0 0.0
  %1595 = vmatprep.subr.mxu0 0.0
  %1596 = vmatpush1.msra.mxu0 0.0
  %1597 = vmatprep.subr.mxu0 0.0
  %1598 = vmatpush1.msra.mxu0 0.0
  %1599 = vmatprep.subr.mxu0 0.0
  %1600 = vmatpush1.msra.mxu0 0.0
  %1601 = vmatprep.subr.mxu0 0.0
  %1602 = vmatpush1.msra.mxu0 0.0
  %1603 = vmatprep.subr.mxu0 0.0
  %1604 = vmatpush1.msra.mxu0 0.0
  %1605 = vmatprep.subr.mxu0 0.0
  %1606 = vmatpush1.msra.mxu0 0.0
  %1607 = vmatprep.subr.mxu0 0.0
  %1608 = vmatpush1.msra.mxu0 0.0
  %1609 = vmatprep.subr.mxu0 0.0
  %1610 = vmatpush1.msra.mxu0 0.0
  %1611 = vmatprep.subr.mxu0 0.0
  %1612 = vmatpush1.msra.mxu0 0.0
  %1613 = vmatprep.subr.mxu0 0.0
  %1614 = vmatpush1.msra.mxu0 0.0
  %1615 = vmatprep.subr.mxu0 0.0
  %1616 = vmatpush1.msra.mxu0 0.0
  %1617 = vmatprep.subr.mxu0 0.0
  %1618 = vmatpush1.msra.mxu0 0.0
  %1619 = vmatprep.subr.mxu0 0.0
  %1620 = vmatpush1.msra.mxu0 0.0
  %1621 = vmatprep.subr.mxu0 0.0
  %1622 = vmatpush1.msra.mxu0 0.0
  %1623 = vmatprep.subr.mxu0 0.0
  %1624 = vmatpush1.msra.mxu0 0.0
  %1625 = vmatprep.subr.mxu0 0.0
  %1626 = vmatpush1.msra.mxu0 0.0
  %1627 = vmatprep.subr.mxu0 0.0
  %1628 = vmatpush1.msra.mxu0 0.0
  %1629 = vmatprep.subr.mxu0 0.0
  %1630 = vmatpush1.msra.mxu0 0.0
  %1631 = vmatprep.subr.mxu0 0.0
  %1632 = vmatpush1.msra.mxu0 0.0
  %1633 = vmatprep.subr.mxu0 0.0
  %1634 = vmatpush1.msra.mxu0 0.0
  %1635 = vmatprep.subr.mxu0 0.0
  %1636 = vmatpush1.msra.mxu0 0.0
  %1637 = vmatprep.subr.mxu0 0.0
  %1638 = vmatpush1.msra.mxu0 0.0
  %1639 = vmatprep.subr.mxu0 0.0
  %1640 = vmatpush1.msra.mxu0 0.0
  %1641 = vmatprep.subr.mxu0 0.0
  %1642 = vmatpush1.msra.mxu0 0.0
  %1643 = vmatprep.subr.mxu0 0.0
  %1644 = vmatpush1.msra.mxu0 0.0
  %1645 = vmatprep.subr.mxu0 0.0
  %1646 = vmatpush1.msra.mxu0 0.0
  %1647 = vmatprep.mubr.f32.mxu0 0.0
  %1648 = vmatmul.mubr.f32.gmra.mrb[0].mxu0 %v1578
  %v1649 = vpop.f32.mrb[0].mxu0
  %v1650 = vadd.f32 0.0, %v1649
  %v1651 = vpop.f32.mrb[0].mxu0
  %1652 = vmatprep.mubr.f32.mxu0 0.0
  %1653 = vmatmul.mubr.f32.gmra.mrb[0].mxu0 %v1581
  %v1654 = vpop.f32.mrb[0].mxu0
  %v1655 = vadd.f32 0.0, %v1654
  %v1656 = vpop.f32.mrb[0].mxu0
  %1657 = vdwg.mxu0
  %v1658 = vadd.f32 %v1300, %v1650
  %v1659 = vadd.f32 %v1301, %v1655
  %v1660 = vld [vmem:[%s2 + $0x80] sm:$0x1]
  %v1661 = vlaneseq
  %v1662 = vshrl.u32 %v1661, 7
  %v1663 = vsub.s32 0, %v1662
  %v1664 = vrot.slane %v1660, %v1663
  %v1665 = vadd.f32 %v1658, %v1664
  %v1666 = vadd.f32 %v1659, %v1664
  %v1667 = vadd.f32 %v1665, %v14
  %v1668 = vadd.f32 %v1666, %v15
  %v1669 = vsel %vm86, %v1667, 0.0
  %1670 = vadd.xlane.f32.xlu0 %v1669
  %v1671 = vpop.xlane.xlu0 %1670
  %v1672 = vsel %vm86, %v1668, 0.0
  %1673 = vadd.xlane.f32.xlu0 %v1672
  %v1674 = vpop.xlane.xlu0 %1673
  %v1675 = vrcp.pop 32.0
  %v1676 = vmul.f32 %v1671, %v1675
  %v1677 = vmul.f32 %v1674, %v1675
  %v1678 = vsub.f32 %v1667, %v1676
  %v1679 = vsub.f32 %v1668, %v1677
  %v1680 = vmul.f32 %v1678, %v1678
  %v1681 = vmul.f32 %v1679, %v1679
  %v1682 = vsel %vm86, %v1680, 0.0
  %1683 = vadd.xlane.f32.xlu0 %v1682
  %v1684 = vpop.xlane.xlu0 %1683
  %v1685 = vsel %vm86, %v1681, 0.0
  %1686 = vadd.xlane.f32.xlu0 %v1685
  %v1687 = vpop.xlane.xlu0 %1686
  %v1688 = vmul.f32 %v1684, %v1675
  %v1689 = vmul.f32 %v1687, %v1675
  %v1690 = vld [vmem:[%s2 + $0x88] sm:$0x1]
  %v1691 = vadd.f32 %v1688, 1e-05
  %v1692 = vadd.f32 %v1689, 1e-05
  %v1693 = vrsqrt.pop %v1691
  %v1694 = vrsqrt.pop %v1692
  %v1695 = vmul.f32 %v1678, %v1693
  %v1696 = vmul.f32 %v1679, %v1694
  %v1697 = vlaneseq
  %v1698 = vshrl.u32 %v1697, 7
  %v1699 = vsub.s32 0, %v1698
  %v1700 = vrot.slane %v1690, %v1699
  %v1701 = vmul.f32 %v1700, %v1695
  %v1702 = vmul.f32 %v1700, %v1696
  %v1703 = vld [vmem:[%s2 + $0x90] sm:$0x1]
  %v1704 = vlaneseq
  %v1705 = vshrl.u32 %v1704, 7
  %v1706 = vsub.s32 0, %v1705
  %v1707 = vrot.slane %v1703, %v1706
  %v1708 = vadd.f32 %v1701, %v1707
  %v1709 = vadd.f32 %v1702, %v1707
  %v1710 = vld [vmem:[%s1 + $0x70] sm:$0xf]
  %v1711 = vld [vmem:[%s1 + $0x74] sm:$0xf]
  %v1712 = vld [vmem:[%s1 + $0x78] sm:$0xf]
  %v1713 = vld [vmem:[%s1 + $0x7c] sm:$0xf]
  %v1714 = vunpack.c.l.bf16 %v1710
  %v1715 = vunpack.c.l.bf16 %v1711
  %v1716 = vunpack.c.l.bf16 %v1712
  %v1717 = vunpack.c.l.bf16 %v1713
  %v1718 = vld [vmem:[%s2 + $0x98] sm:$0x1]
  %v1719 = vlaneseq
  %v1720 = vshrl.u32 %v1719, 7
  %v1721 = vsub.s32 0, %v1720
  %v1722 = vrot.slane %v1718, %v1721
  %v1724 = vsel %vm86, %v1708, 0
  %v1727 = vsel %vm86, %v1709, 0
  %1729 = vmatprep.subr.mxu0 0.0
  %1730 = vmatpush1.msra.mxu0 %v1714
  %1731 = vmatprep.subr.mxu0 0.0
  %1732 = vmatpush1.msra.mxu0 %v1715
  %1733 = vmatprep.subr.mxu0 0.0
  %1734 = vmatpush1.msra.mxu0 %v1716
  %1735 = vmatprep.subr.mxu0 0.0
  %1736 = vmatpush1.msra.mxu0 %v1717
  %1737 = vmatprep.subr.mxu0 0.0
  %1738 = vmatpush1.msra.mxu0 0.0
  %1739 = vmatprep.subr.mxu0 0.0
  %1740 = vmatpush1.msra.mxu0 0.0
  %1741 = vmatprep.subr.mxu0 0.0
  %1742 = vmatpush1.msra.mxu0 0.0
  %1743 = vmatprep.subr.mxu0 0.0
  %1744 = vmatpush1.msra.mxu0 0.0
  %1745 = vmatprep.subr.mxu0 0.0
  %1746 = vmatpush1.msra.mxu0 0.0
  %1747 = vmatprep.subr.mxu0 0.0
  %1748 = vmatpush1.msra.mxu0 0.0
  %1749 = vmatprep.subr.mxu0 0.0
  %1750 = vmatpush1.msra.mxu0 0.0
  %1751 = vmatprep.subr.mxu0 0.0
  %1752 = vmatpush1.msra.mxu0 0.0
  %1753 = vmatprep.subr.mxu0 0.0
  %1754 = vmatpush1.msra.mxu0 0.0
  %1755 = vmatprep.subr.mxu0 0.0
  %1756 = vmatpush1.msra.mxu0 0.0
  %1757 = vmatprep.subr.mxu0 0.0
  %1758 = vmatpush1.msra.mxu0 0.0
  %1759 = vmatprep.subr.mxu0 0.0
  %1760 = vmatpush1.msra.mxu0 0.0
  %1761 = vmatprep.subr.mxu0 0.0
  %1762 = vmatpush1.msra.mxu0 0.0
  %1763 = vmatprep.subr.mxu0 0.0
  %1764 = vmatpush1.msra.mxu0 0.0
  %1765 = vmatprep.subr.mxu0 0.0
  %1766 = vmatpush1.msra.mxu0 0.0
  %1767 = vmatprep.subr.mxu0 0.0
  %1768 = vmatpush1.msra.mxu0 0.0
  %1769 = vmatprep.subr.mxu0 0.0
  %1770 = vmatpush1.msra.mxu0 0.0
  %1771 = vmatprep.subr.mxu0 0.0
  %1772 = vmatpush1.msra.mxu0 0.0
  %1773 = vmatprep.subr.mxu0 0.0
  %1774 = vmatpush1.msra.mxu0 0.0
  %1775 = vmatprep.subr.mxu0 0.0
  %1776 = vmatpush1.msra.mxu0 0.0
  %1777 = vmatprep.subr.mxu0 0.0
  %1778 = vmatpush1.msra.mxu0 0.0
  %1779 = vmatprep.subr.mxu0 0.0
  %1780 = vmatpush1.msra.mxu0 0.0
  %1781 = vmatprep.subr.mxu0 0.0
  %1782 = vmatpush1.msra.mxu0 0.0
  %1783 = vmatprep.subr.mxu0 0.0
  %1784 = vmatpush1.msra.mxu0 0.0
  %1785 = vmatprep.subr.mxu0 0.0
  %1786 = vmatpush1.msra.mxu0 0.0
  %1787 = vmatprep.subr.mxu0 0.0
  %1788 = vmatpush1.msra.mxu0 0.0
  %1789 = vmatprep.subr.mxu0 0.0
  %1790 = vmatpush1.msra.mxu0 0.0
  %1791 = vmatprep.subr.mxu0 0.0
  %1792 = vmatpush1.msra.mxu0 0.0
  %1793 = vmatprep.mubr.f32.mxu0 0.0
  %1794 = vmatmul.mubr.f32.gmra.mrb[0].mxu0 %v1724
  %v1795 = vpop.f32.mrb[0].mxu0
  %v1796 = vadd.f32 %v1722, %v1795
  %v1797 = vpop.f32.mrb[0].mxu0
  %1798 = vmatprep.mubr.f32.mxu0 0.0
  %1799 = vmatmul.mubr.f32.gmra.mrb[0].mxu0 %v1727
  %v1800 = vpop.f32.mrb[0].mxu0
  %v1801 = vadd.f32 %v1722, %v1800
  %v1802 = vpop.f32.mrb[0].mxu0
  %1803 = vdwg.mxu0
  %v1804 = vmax.f32 %v1796, 0.0
  %v1805 = vmax.f32 %v1801, 0.0
  %v1806 = vld [vmem:[%s1 + $0x80] sm:$0xf]
  %v1807 = vld [vmem:[%s1 + $0x84] sm:$0xf]
  %v1808 = vld [vmem:[%s1 + $0x88] sm:$0xf]
  %v1809 = vld [vmem:[%s1 + $0x8c] sm:$0xf]
  %v1810 = vld [vmem:[%s1 + $0x90] sm:$0xf]
  %v1811 = vld [vmem:[%s1 + $0x94] sm:$0xf]
  %v1812 = vld [vmem:[%s1 + $0x98] sm:$0xf]
  %v1813 = vld [vmem:[%s1 + $0x9c] sm:$0xf]
  %v1814 = vunpack.c.l.bf16 %v1806
  %v1815 = vunpack.c.l.bf16 %v1807
  %v1816 = vunpack.c.l.bf16 %v1808
  %v1817 = vunpack.c.l.bf16 %v1809
  %v1818 = vunpack.c.l.bf16 %v1810
  %v1819 = vunpack.c.l.bf16 %v1811
  %v1820 = vunpack.c.l.bf16 %v1812
  %v1821 = vunpack.c.l.bf16 %v1813
  %v1822 = vld [vmem:[%s2 + $0xa0] sm:$0x1]
  %v1823 = vlaneseq
  %v1824 = vshrl.u32 %v1823, 7
  %v1825 = vsub.s32 0, %v1824
  %v1826 = vrot.slane %v1822, %v1825
  %vm1827 = vcmask 523264
  %v1829 = vsel %vm1827, %v1804, 0
  %v1832 = vsel %vm1827, %v1805, 0
  %1834 = vmatprep.subr.mxu0 0.0
  %1835 = vmatpush1.msra.mxu0 %v1814
  %1836 = vmatprep.subr.mxu0 0.0
  %1837 = vmatpush1.msra.mxu0 %v1815
  %1838 = vmatprep.subr.mxu0 0.0
  %1839 = vmatpush1.msra.mxu0 %v1816
  %1840 = vmatprep.subr.mxu0 0.0
  %1841 = vmatpush1.msra.mxu0 %v1817
  %1842 = vmatprep.subr.mxu0 0.0
  %1843 = vmatpush1.msra.mxu0 %v1818
  %1844 = vmatprep.subr.mxu0 0.0
  %1845 = vmatpush1.msra.mxu0 %v1819
  %1846 = vmatprep.subr.mxu0 0.0
  %1847 = vmatpush1.msra.mxu0 %v1820
  %1848 = vmatprep.subr.mxu0 0.0
  %1849 = vmatpush1.msra.mxu0 %v1821
  %1850 = vmatprep.subr.mxu0 0.0
  %1851 = vmatpush1.msra.mxu0 0.0
  %1852 = vmatprep.subr.mxu0 0.0
  %1853 = vmatpush1.msra.mxu0 0.0
  %1854 = vmatprep.subr.mxu0 0.0
  %1855 = vmatpush1.msra.mxu0 0.0
  %1856 = vmatprep.subr.mxu0 0.0
  %1857 = vmatpush1.msra.mxu0 0.0
  %1858 = vmatprep.subr.mxu0 0.0
  %1859 = vmatpush1.msra.mxu0 0.0
  %1860 = vmatprep.subr.mxu0 0.0
  %1861 = vmatpush1.msra.mxu0 0.0
  %1862 = vmatprep.subr.mxu0 0.0
  %1863 = vmatpush1.msra.mxu0 0.0
  %1864 = vmatprep.subr.mxu0 0.0
  %1865 = vmatpush1.msra.mxu0 0.0
  %1866 = vmatprep.subr.mxu0 0.0
  %1867 = vmatpush1.msra.mxu0 0.0
  %1868 = vmatprep.subr.mxu0 0.0
  %1869 = vmatpush1.msra.mxu0 0.0
  %1870 = vmatprep.subr.mxu0 0.0
  %1871 = vmatpush1.msra.mxu0 0.0
  %1872 = vmatprep.subr.mxu0 0.0
  %1873 = vmatpush1.msra.mxu0 0.0
  %1874 = vmatprep.subr.mxu0 0.0
  %1875 = vmatpush1.msra.mxu0 0.0
  %1876 = vmatprep.subr.mxu0 0.0
  %1877 = vmatpush1.msra.mxu0 0.0
  %1878 = vmatprep.subr.mxu0 0.0
  %1879 = vmatpush1.msra.mxu0 0.0
  %1880 = vmatprep.subr.mxu0 0.0
  %1881 = vmatpush1.msra.mxu0 0.0
  %1882 = vmatprep.subr.mxu0 0.0
  %1883 = vmatpush1.msra.mxu0 0.0
  %1884 = vmatprep.subr.mxu0 0.0
  %1885 = vmatpush1.msra.mxu0 0.0
  %1886 = vmatprep.subr.mxu0 0.0
  %1887 = vmatpush1.msra.mxu0 0.0
  %1888 = vmatprep.subr.mxu0 0.0
  %1889 = vmatpush1.msra.mxu0 0.0
  %1890 = vmatprep.subr.mxu0 0.0
  %1891 = vmatpush1.msra.mxu0 0.0
  %1892 = vmatprep.subr.mxu0 0.0
  %1893 = vmatpush1.msra.mxu0 0.0
  %1894 = vmatprep.subr.mxu0 0.0
  %1895 = vmatpush1.msra.mxu0 0.0
  %1896 = vmatprep.subr.mxu0 0.0
  %1897 = vmatpush1.msra.mxu0 0.0
  %1898 = vmatprep.mubr.f32.mxu0 0.0
  %1899 = vmatmul.mubr.f32.gmra.mrb[0].mxu0 %v1829
  %v1900 = vpop.f32.mrb[0].mxu0
  %v1901 = vadd.f32 %v1826, %v1900
  %v1902 = vpop.f32.mrb[0].mxu0
  %1903 = vmatprep.mubr.f32.mxu0 0.0
  %1904 = vmatmul.mubr.f32.gmra.mrb[0].mxu0 %v1832
  %v1905 = vpop.f32.mrb[0].mxu0
  %v1906 = vadd.f32 %v1826, %v1905
  %v1907 = vpop.f32.mrb[0].mxu0
  %1908 = vdwg.mxu0
  %v1909 = vadd.f32 %v1901, %v1708
  %v1910 = vadd.f32 %v1906, %v1709
  %v1911 = vsel %vm86, %v1909, 0.0
  %1912 = vadd.xlane.f32.xlu0 %v1911
  %v1913 = vpop.xlane.xlu0 %1912
  %v1914 = vsel %vm86, %v1910, 0.0
  %1915 = vadd.xlane.f32.xlu0 %v1914
  %v1916 = vpop.xlane.xlu0 %1915
  %v1917 = vmul.f32 %v1913, %v1675
  %v1918 = vmul.f32 %v1916, %v1675
  %v1919 = vsub.f32 %v1909, %v1917
  %v1920 = vsub.f32 %v1910, %v1918
  %v1921 = vmul.f32 %v1919, %v1919
  %v1922 = vmul.f32 %v1920, %v1920
  %v1923 = vsel %vm86, %v1921, 0.0
  %1924 = vadd.xlane.f32.xlu0 %v1923
  %v1925 = vpop.xlane.xlu0 %1924
  %v1926 = vsel %vm86, %v1922, 0.0
  %1927 = vadd.xlane.f32.xlu0 %v1926
  %v1928 = vpop.xlane.xlu0 %1927
  %v1929 = vmul.f32 %v1925, %v1675
  %v1930 = vmul.f32 %v1928, %v1675
  %v1931 = vld [vmem:[%s2 + $0xa8] sm:$0x1]
  %v1932 = vadd.f32 %v1929, 1e-05
  %v1933 = vadd.f32 %v1930, 1e-05
  %v1934 = vrsqrt.pop %v1932
  %v1935 = vrsqrt.pop %v1933
  %v1936 = vmul.f32 %v1919, %v1934
  %v1937 = vmul.f32 %v1920, %v1935
  %v1938 = vlaneseq
  %v1939 = vshrl.u32 %v1938, 7
  %v1940 = vsub.s32 0, %v1939
  %v1941 = vrot.slane %v1931, %v1940
  %v1942 = vmul.f32 %v1941, %v1936
  %v1943 = vmul.f32 %v1941, %v1937
  %v1944 = vld [vmem:[%s2 + $0xb0] sm:$0x1]
  %v1945 = vlaneseq
  %v1946 = vshrl.u32 %v1945, 7
  %v1947 = vsub.s32 0, %v1946
  %v1948 = vrot.slane %v1944, %v1947
  %v1949 = vadd.f32 %v1942, %v1948
  %v1950 = vadd.f32 %v1943, %v1948
  %v1951 = vld [vmem:[%s1 + $0xe0] sm:$0xf]
  %v1952 = vld [vmem:[%s1 + $0xe4] sm:$0xf]
  %v1953 = vld [vmem:[%s1 + $0xe8] sm:$0xf]
  %v1954 = vld [vmem:[%s1 + $0xec] sm:$0xf]
  %v1955 = vld [vmem:[%s1 + $0xf0] sm:$0xf]
  %v1956 = vld [vmem:[%s1 + $0xf4] sm:$0xf]
  %v1957 = vld [vmem:[%s1 + $0xf8] sm:$0xf]
  %v1958 = vld [vmem:[%s1 + $0xfc] sm:$0xf]
  %v1959 = vunpack.c.l.bf16 %v1951
  %v1960 = vunpack.c.l.bf16 %v1952
  %v1961 = vunpack.c.l.bf16 %v1953
  %v1962 = vunpack.c.l.bf16 %v1954
  %v1963 = vunpack.c.l.bf16 %v1955
  %v1964 = vunpack.c.l.bf16 %v1956
  %v1965 = vunpack.c.l.bf16 %v1957
  %v1966 = vunpack.c.l.bf16 %v1958
  %v1967 = vld [vmem:[%s2 + $0xd8] sm:$0xff]
  %v1968 = vld [vmem:[%s2 + $0xe0] sm:$0xff]
  %v1969 = vld [vmem:[%s2 + $0xe8] sm:$0xff]
  %v1970 = vld [vmem:[%s2 + $0xf0] sm:$0xff]
  %v1971 = vld [vmem:[%s2 + $0xf8] sm:$0xff]
  %v1972 = vld [vmem:[%s2 + $0x100] sm:$0xff]
  %v1973 = vld [vmem:[%s2 + $0x108] sm:$0xff]
  %v1974 = vld [vmem:[%s2 + $0x110] sm:$0xff]
  %1976 = vset.pattern.permute.xlu0 0
  %1977 = vperm.xlu0 %1976, %v1967
  %v1978 = vpop.permute.xlu0 %1977
  %1981 = vset.pattern.permute.xlu0 0
  %1982 = vperm.xlu0 %1981, %v1968
  %v1983 = vpop.permute.xlu0 %1982
  %1986 = vset.pattern.permute.xlu0 0
  %1987 = vperm.xlu0 %1986, %v1969
  %v1988 = vpop.permute.xlu0 %1987
  %1991 = vset.pattern.permute.xlu0 0
  %1992 = vperm.xlu0 %1991, %v1970
  %v1993 = vpop.permute.xlu0 %1992
  %1996 = vset.pattern.permute.xlu0 0
  %1997 = vperm.xlu0 %1996, %v1971
  %v1998 = vpop.permute.xlu0 %1997
  %2001 = vset.pattern.permute.xlu0 0
  %2002 = vperm.xlu0 %2001, %v1972
  %v2003 = vpop.permute.xlu0 %2002
  %2006 = vset.pattern.permute.xlu0 0
  %2007 = vperm.xlu0 %2006, %v1973
  %v2008 = vpop.permute.xlu0 %2007
  %2011 = vset.pattern.permute.xlu0 0
  %2012 = vperm.xlu0 %2011, %v1974
  %v2013 = vpop.permute.xlu0 %2012
  %v2016 = vsel %vm86, %v1959, 0
  %v2019 = vsel %vm86, %v1960, 0
  %v2022 = vsel %vm86, %v1961, 0
  %v2025 = vsel %vm86, %v1962, 0
  %v2028 = vsel %vm86, %v1963, 0
  %v2031 = vsel %vm86, %v1964, 0
  %v2034 = vsel %vm86, %v1965, 0
  %v2037 = vsel %vm86, %v1966, 0
  %v2040 = vsel %vm86, %v16, 0
  %v2043 = vsel %vm86, %v17, 0
  %2045 = vmatprep.subr.mxu0 0.0
  %2046 = vmatpush1.xpose.msra.mxu0 %v2040
  %2047 = vmatprep.subr.mxu0 0.0
  %2048 = vmatpush1.xpose.msra.mxu0 %v2043
  %2049 = vmatprep.subr.mxu0 0.0
  %2050 = vmatpush1.xpose.msra.mxu0 0.0
  %2051 = vmatprep.subr.mxu0 0.0
  %2052 = vmatpush1.xpose.msra.mxu0 0.0
  %2053 = vmatprep.subr.mxu0 0.0
  %2054 = vmatpush1.xpose.msra.mxu0 0.0
  %2055 = vmatprep.subr.mxu0 0.0
  %2056 = vmatpush1.xpose.msra.mxu0 0.0
  %2057 = vmatprep.subr.mxu0 0.0
  %2058 = vmatpush1.xpose.msra.mxu0 0.0
  %2059 = vmatprep.subr.mxu0 0.0
  %2060 = vmatpush1.xpose.msra.mxu0 0.0
  %2061 = vmatprep.subr.mxu0 0.0
  %2062 = vmatpush1.xpose.msra.mxu0 0.0
  %2063 = vmatprep.subr.mxu0 0.0
  %2064 = vmatpush1.xpose.msra.mxu0 0.0
  %2065 = vmatprep.subr.mxu0 0.0
  %2066 = vmatpush1.xpose.msra.mxu0 0.0
  %2067 = vmatprep.subr.mxu0 0.0
  %2068 = vmatpush1.xpose.msra.mxu0 0.0
  %2069 = vmatprep.subr.mxu0 0.0
  %2070 = vmatpush1.xpose.msra.mxu0 0.0
  %2071 = vmatprep.subr.mxu0 0.0
  %2072 = vmatpush1.xpose.msra.mxu0 0.0
  %2073 = vmatprep.subr.mxu0 0.0
  %2074 = vmatpush1.xpose.msra.mxu0 0.0
  %2075 = vmatprep.subr.mxu0 0.0
  %2076 = vmatpush1.xpose.msra.mxu0 0.0
  %2077 = vmatprep.subr.mxu0 0.0
  %2078 = vmatpush1.xpose.msra.mxu0 0.0
  %2079 = vmatprep.subr.mxu0 0.0
  %2080 = vmatpush1.xpose.msra.mxu0 0.0
  %2081 = vmatprep.subr.mxu0 0.0
  %2082 = vmatpush1.xpose.msra.mxu0 0.0
  %2083 = vmatprep.subr.mxu0 0.0
  %2084 = vmatpush1.xpose.msra.mxu0 0.0
  %2085 = vmatprep.subr.mxu0 0.0
  %2086 = vmatpush1.xpose.msra.mxu0 0.0
  %2087 = vmatprep.subr.mxu0 0.0
  %2088 = vmatpush1.xpose.msra.mxu0 0.0
  %2089 = vmatprep.subr.mxu0 0.0
  %2090 = vmatpush1.xpose.msra.mxu0 0.0
  %2091 = vmatprep.subr.mxu0 0.0
  %2092 = vmatpush1.xpose.msra.mxu0 0.0
  %2093 = vmatprep.subr.mxu0 0.0
  %2094 = vmatpush1.xpose.msra.mxu0 0.0
  %2095 = vmatprep.subr.mxu0 0.0
  %2096 = vmatpush1.xpose.msra.mxu0 0.0
  %2097 = vmatprep.subr.mxu0 0.0
  %2098 = vmatpush1.xpose.msra.mxu0 0.0
  %2099 = vmatprep.subr.mxu0 0.0
  %2100 = vmatpush1.xpose.msra.mxu0 0.0
  %2101 = vmatprep.subr.mxu0 0.0
  %2102 = vmatpush1.xpose.msra.mxu0 0.0
  %2103 = vmatprep.subr.mxu0 0.0
  %2104 = vmatpush1.xpose.msra.mxu0 0.0
  %2105 = vmatprep.subr.mxu0 0.0
  %2106 = vmatpush1.xpose.msra.mxu0 0.0
  %2107 = vmatprep.subr.mxu0 0.0
  %2108 = vmatpush1.xpose.msra.mxu0 0.0
  %2109 = vmatprep.mubr.f32.mxu0 0.0
  %2110 = vmatmul.mubr.f32.gmra.mrb[0].mxu0 %v2016
  %v2111 = vpop.f32.mrb[0].mxu0
  %v2112 = vadd.f32 %v1978, %v2111
  %v2113 = vpop.f32.mrb[0].mxu0
  %2114 = vmatprep.mubr.f32.mxu0 0.0
  %2115 = vmatmul.mubr.f32.gmra.mrb[0].mxu0 %v2019
  %v2116 = vpop.f32.mrb[0].mxu0
  %v2117 = vadd.f32 %v1983, %v2116
  %v2118 = vpop.f32.mrb[0].mxu0
  %2119 = vmatprep.mubr.f32.mxu0 0.0
  %2120 = vmatmul.mubr.f32.gmra.mrb[0].mxu0 %v2022
  %v2121 = vpop.f32.mrb[0].mxu0
  %v2122 = vadd.f32 %v1988, %v2121
  %v2123 = vpop.f32.mrb[0].mxu0
  %2124 = vmatprep.mubr.f32.mxu0 0.0
  %2125 = vmatmul.mubr.f32.gmra.mrb[0].mxu0 %v2025
  %v2126 = vpop.f32.mrb[0].mxu0
  %v2127 = vadd.f32 %v1993, %v2126
  %v2128 = vpop.f32.mrb[0].mxu0
  %2129 = vmatprep.mubr.f32.mxu0 0.0
  %2130 = vmatmul.mubr.f32.gmra.mrb[0].mxu0 %v2028
  %v2131 = vpop.f32.mrb[0].mxu0
  %v2132 = vadd.f32 %v1998, %v2131
  %v2133 = vpop.f32.mrb[0].mxu0
  %2134 = vmatprep.mubr.f32.mxu0 0.0
  %2135 = vmatmul.mubr.f32.gmra.mrb[0].mxu0 %v2031
  %v2136 = vpop.f32.mrb[0].mxu0
  %v2137 = vadd.f32 %v2003, %v2136
  %v2138 = vpop.f32.mrb[0].mxu0
  %2139 = vmatprep.mubr.f32.mxu0 0.0
  %2140 = vmatmul.mubr.f32.gmra.mrb[0].mxu0 %v2034
  %v2141 = vpop.f32.mrb[0].mxu0
  %v2142 = vadd.f32 %v2008, %v2141
  %v2143 = vpop.f32.mrb[0].mxu0
  %2144 = vmatprep.mubr.f32.mxu0 0.0
  %2145 = vmatmul.mubr.f32.gmra.mrb[0].mxu0 %v2037
  %v2146 = vpop.f32.mrb[0].mxu0
  %v2147 = vadd.f32 %v2013, %v2146
  %v2148 = vpop.f32.mrb[0].mxu0
  %2149 = vdwg.mxu0
  %v2150 = vld [vmem:[%s1 + $0x100] sm:$0xf]
  %v2151 = vld [vmem:[%s1 + $0x104] sm:$0xf]
  %v2152 = vld [vmem:[%s1 + $0x108] sm:$0xf]
  %v2153 = vld [vmem:[%s1 + $0x10c] sm:$0xf]
  %v2154 = vunpack.c.l.bf16 %v2150
  %v2155 = vunpack.c.l.bf16 %v2151
  %v2156 = vunpack.c.l.bf16 %v2152
  %v2157 = vunpack.c.l.bf16 %v2153
  %v2158 = vld [vmem:[%s1 + $0xa0] sm:$0xf]
  %v2159 = vld [vmem:[%s1 + $0xa4] sm:$0xf]
  %v2160 = vld [vmem:[%s1 + $0xa8] sm:$0xf]
  %v2161 = vld [vmem:[%s1 + $0xac] sm:$0xf]
  %v2162 = vunpack.c.l.bf16 %v2158
  %v2163 = vunpack.c.l.bf16 %v2159
  %v2164 = vunpack.c.l.bf16 %v2160
  %v2165 = vunpack.c.l.bf16 %v2161
  %v2166 = vld [vmem:[%s2 + $0xb8] sm:$0x1]
  %v2167 = vlaneseq
  %v2168 = vshrl.u32 %v2167, 7
  %v2169 = vsub.s32 0, %v2168
  %v2170 = vrot.slane %v2166, %v2169
  %2171 = vmatprep.subr.mxu0 0.0
  %2172 = vmatpush1.msra.mxu0 %v2162
  %2173 = vmatprep.subr.mxu0 0.0
  %2174 = vmatpush1.msra.mxu0 %v2163
  %2175 = vmatprep.subr.mxu0 0.0
  %2176 = vmatpush1.msra.mxu0 %v2164
  %2177 = vmatprep.subr.mxu0 0.0
  %2178 = vmatpush1.msra.mxu0 %v2165
  %2179 = vmatprep.subr.mxu0 0.0
  %2180 = vmatpush1.msra.mxu0 0.0
  %2181 = vmatprep.subr.mxu0 0.0
  %2182 = vmatpush1.msra.mxu0 0.0
  %2183 = vmatprep.subr.mxu0 0.0
  %2184 = vmatpush1.msra.mxu0 0.0
  %2185 = vmatprep.subr.mxu0 0.0
  %2186 = vmatpush1.msra.mxu0 0.0
  %2187 = vmatprep.subr.mxu0 0.0
  %2188 = vmatpush1.msra.mxu0 0.0
  %2189 = vmatprep.subr.mxu0 0.0
  %2190 = vmatpush1.msra.mxu0 0.0
  %2191 = vmatprep.subr.mxu0 0.0
  %2192 = vmatpush1.msra.mxu0 0.0
  %2193 = vmatprep.subr.mxu0 0.0
  %2194 = vmatpush1.msra.mxu0 0.0
  %2195 = vmatprep.subr.mxu0 0.0
  %2196 = vmatpush1.msra.mxu0 0.0
  %2197 = vmatprep.subr.mxu0 0.0
  %2198 = vmatpush1.msra.mxu0 0.0
  %2199 = vmatprep.subr.mxu0 0.0
  %2200 = vmatpush1.msra.mxu0 0.0
  %2201 = vmatprep.subr.mxu0 0.0
  %2202 = vmatpush1.msra.mxu0 0.0
  %2203 = vmatprep.subr.mxu0 0.0
  %2204 = vmatpush1.msra.mxu0 0.0
  %2205 = vmatprep.subr.mxu0 0.0
  %2206 = vmatpush1.msra.mxu0 0.0
  %2207 = vmatprep.subr.mxu0 0.0
  %2208 = vmatpush1.msra.mxu0 0.0
  %2209 = vmatprep.subr.mxu0 0.0
  %2210 = vmatpush1.msra.mxu0 0.0
  %2211 = vmatprep.subr.mxu0 0.0
  %2212 = vmatpush1.msra.mxu0 0.0
  %2213 = vmatprep.subr.mxu0 0.0
  %2214 = vmatpush1.msra.mxu0 0.0
  %2215 = vmatprep.subr.mxu0 0.0
  %2216 = vmatpush1.msra.mxu0 0.0
  %2217 = vmatprep.subr.mxu0 0.0
  %2218 = vmatpush1.msra.mxu0 0.0
  %2219 = vmatprep.subr.mxu0 0.0
  %2220 = vmatpush1.msra.mxu0 0.0
  %2221 = vmatprep.subr.mxu0 0.0
  %2222 = vmatpush1.msra.mxu0 0.0
  %2223 = vmatprep.subr.mxu0 0.0
  %2224 = vmatpush1.msra.mxu0 0.0
  %2225 = vmatprep.subr.mxu0 0.0
  %2226 = vmatpush1.msra.mxu0 0.0
  %2227 = vmatprep.subr.mxu0 0.0
  %2228 = vmatpush1.msra.mxu0 0.0
  %2229 = vmatprep.subr.mxu0 0.0
  %2230 = vmatpush1.msra.mxu0 0.0
  %2231 = vmatprep.subr.mxu0 0.0
  %2232 = vmatpush1.msra.mxu0 0.0
  %2233 = vmatprep.subr.mxu0 0.0
  %2234 = vmatpush1.msra.mxu0 0.0
  %2235 = vmatprep.mubr.f32.mxu0 0.0
  %2236 = vmatmul.mubr.f32.gmra.mrb[0].mxu0 %v2040
  %v2237 = vpop.f32.mrb[0].mxu0
  %v2238 = vadd.f32 %v2170, %v2237
  %v2239 = vpop.f32.mrb[0].mxu0
  %2240 = vmatprep.mubr.f32.mxu0 0.0
  %2241 = vmatmul.mubr.f32.gmra.mrb[0].mxu0 %v2043
  %v2242 = vpop.f32.mrb[0].mxu0
  %v2243 = vadd.f32 %v2170, %v2242
  %v2244 = vpop.f32.mrb[0].mxu0
  %2245 = vdwg.mxu0
  %v2247 = vsel %vm318, %v2238, 0
  %v2250 = vsel %vm318, %v2243, 0
  %2252 = vmatprep.subr.mxu0 0.0
  %2253 = vmatpush1.msra.mxu0 %v2112
  %2254 = vmatprep.subr.mxu0 0.0
  %2255 = vmatpush1.msra.mxu0 0.0
  %2256 = vmatprep.subr.mxu0 0.0
  %2257 = vmatpush1.msra.mxu0 0.0
  %2258 = vmatprep.subr.mxu0 0.0
  %2259 = vmatpush1.msra.mxu0 0.0
  %2260 = vmatprep.subr.mxu0 0.0
  %2261 = vmatpush1.msra.mxu0 0.0
  %2262 = vmatprep.subr.mxu0 0.0
  %2263 = vmatpush1.msra.mxu0 0.0
  %2264 = vmatprep.subr.mxu0 0.0
  %2265 = vmatpush1.msra.mxu0 0.0
  %2266 = vmatprep.subr.mxu0 0.0
  %2267 = vmatpush1.msra.mxu0 0.0
  %2268 = vmatprep.subr.mxu0 0.0
  %2269 = vmatpush1.msra.mxu0 0.0
  %2270 = vmatprep.subr.mxu0 0.0
  %2271 = vmatpush1.msra.mxu0 0.0
  %2272 = vmatprep.subr.mxu0 0.0
  %2273 = vmatpush1.msra.mxu0 0.0
  %2274 = vmatprep.subr.mxu0 0.0
  %2275 = vmatpush1.msra.mxu0 0.0
  %2276 = vmatprep.subr.mxu0 0.0
  %2277 = vmatpush1.msra.mxu0 0.0
  %2278 = vmatprep.subr.mxu0 0.0
  %2279 = vmatpush1.msra.mxu0 0.0
  %2280 = vmatprep.subr.mxu0 0.0
  %2281 = vmatpush1.msra.mxu0 0.0
  %2282 = vmatprep.subr.mxu0 0.0
  %2283 = vmatpush1.msra.mxu0 0.0
  %2284 = vmatprep.subr.mxu0 0.0
  %2285 = vmatpush1.msra.mxu0 0.0
  %2286 = vmatprep.subr.mxu0 0.0
  %2287 = vmatpush1.msra.mxu0 0.0
  %2288 = vmatprep.subr.mxu0 0.0
  %2289 = vmatpush1.msra.mxu0 0.0
  %2290 = vmatprep.subr.mxu0 0.0
  %2291 = vmatpush1.msra.mxu0 0.0
  %2292 = vmatprep.subr.mxu0 0.0
  %2293 = vmatpush1.msra.mxu0 0.0
  %2294 = vmatprep.subr.mxu0 0.0
  %2295 = vmatpush1.msra.mxu0 0.0
  %2296 = vmatprep.subr.mxu0 0.0
  %2297 = vmatpush1.msra.mxu0 0.0
  %2298 = vmatprep.subr.mxu0 0.0
  %2299 = vmatpush1.msra.mxu0 0.0
  %2300 = vmatprep.subr.mxu0 0.0
  %2301 = vmatpush1.msra.mxu0 0.0
  %2302 = vmatprep.subr.mxu0 0.0
  %2303 = vmatpush1.msra.mxu0 0.0
  %2304 = vmatprep.subr.mxu0 0.0
  %2305 = vmatpush1.msra.mxu0 0.0
  %2306 = vmatprep.subr.mxu0 0.0
  %2307 = vmatpush1.msra.mxu0 0.0
  %2308 = vmatprep.subr.mxu0 0.0
  %2309 = vmatpush1.msra.mxu0 0.0
  %2310 = vmatprep.subr.mxu0 0.0
  %2311 = vmatpush1.msra.mxu0 0.0
  %2312 = vmatprep.subr.mxu0 0.0
  %2313 = vmatpush1.msra.mxu0 0.0
  %2314 = vmatprep.subr.mxu0 0.0
  %2315 = vmatpush1.msra.mxu0 0.0
  %2316 = vmatprep.mubr.f32.mxu0 0.0
  %2317 = vmatmul.mubr.f32.gmra.mrb[0].mxu0 %v2247
  %v2318 = vpop.f32.mrb[0].mxu0
  %v2319 = vadd.f32 %v20, %v2318
  %v2320 = vpop.f32.mrb[0].mxu0
  %2321 = vmatprep.mubr.f32.mxu0 0.0
  %2322 = vmatmul.mubr.f32.gmra.mrb[0].mxu0 %v2250
  %v2323 = vpop.f32.mrb[0].mxu0
  %v2324 = vadd.f32 %v21, %v2323
  %v2325 = vpop.f32.mrb[0].mxu0
  %2326 = vdwg.mxu0
  %v2327 = vsel %vm400, %v2319, -inf
  %2328 = vmax.xlane.f32.xlu0 %v2327
  %v2329 = vpop.xlane.xlu0 %2328
  %v2330 = vsel %vm400, %v2324, -inf
  %2331 = vmax.xlane.f32.xlu0 %v2330
  %v2332 = vpop.xlane.xlu0 %2331
  %v2333 = vsub.f32 %v2319, %v2329
  %v2334 = vsub.f32 %v2324, %v2332
  %v2335 = vmul.f32 %v2333, 1.442695
  %v2336 = vpow.pop %v2335
  %v2337 = vmul.f32 %v2334, 1.442695
  %v2338 = vpow.pop %v2337
  %v2339 = vsel %vm400, %v2336, 0.0
  %2340 = vadd.xlane.f32.xlu0 %v2339
  %v2341 = vpop.xlane.xlu0 %2340
  %v2342 = vsel %vm400, %v2338, 0.0
  %2343 = vadd.xlane.f32.xlu0 %v2342
  %v2344 = vpop.xlane.xlu0 %2343
  %v2345 = vrcp.pop %v2341
  %v2346 = vrcp.pop %v2344
  %v2347 = vmul.f32 %v2336, %v2345
  %v2348 = vmul.f32 %v2338, %v2346
  %v2350 = vsel %vm400, %v2347, 0
  %v2353 = vsel %vm400, %v2348, 0
  %v2356 = vsel %vm400, %v2117, 0
  %2358 = vmatprep.subr.mxu0 0.0
  %2359 = vmatpush1.xpose.msra.mxu0 %v2356
  %2360 = vmatprep.subr.mxu0 0.0
  %2361 = vmatpush1.xpose.msra.mxu0 0.0
  %2362 = vmatprep.subr.mxu0 0.0
  %2363 = vmatpush1.xpose.msra.mxu0 0.0
  %2364 = vmatprep.subr.mxu0 0.0
  %2365 = vmatpush1.xpose.msra.mxu0 0.0
  %2366 = vmatprep.subr.mxu0 0.0
  %2367 = vmatpush1.xpose.msra.mxu0 0.0
  %2368 = vmatprep.subr.mxu0 0.0
  %2369 = vmatpush1.xpose.msra.mxu0 0.0
  %2370 = vmatprep.subr.mxu0 0.0
  %2371 = vmatpush1.xpose.msra.mxu0 0.0
  %2372 = vmatprep.subr.mxu0 0.0
  %2373 = vmatpush1.xpose.msra.mxu0 0.0
  %2374 = vmatprep.subr.mxu0 0.0
  %2375 = vmatpush1.xpose.msra.mxu0 0.0
  %2376 = vmatprep.subr.mxu0 0.0
  %2377 = vmatpush1.xpose.msra.mxu0 0.0
  %2378 = vmatprep.subr.mxu0 0.0
  %2379 = vmatpush1.xpose.msra.mxu0 0.0
  %2380 = vmatprep.subr.mxu0 0.0
  %2381 = vmatpush1.xpose.msra.mxu0 0.0
  %2382 = vmatprep.subr.mxu0 0.0
  %2383 = vmatpush1.xpose.msra.mxu0 0.0
  %2384 = vmatprep.subr.mxu0 0.0
  %2385 = vmatpush1.xpose.msra.mxu0 0.0
  %2386 = vmatprep.subr.mxu0 0.0
  %2387 = vmatpush1.xpose.msra.mxu0 0.0
  %2388 = vmatprep.subr.mxu0 0.0
  %2389 = vmatpush1.xpose.msra.mxu0 0.0
  %2390 = vmatprep.subr.mxu0 0.0
  %2391 = vmatpush1.xpose.msra.mxu0 0.0
  %2392 = vmatprep.subr.mxu0 0.0
  %2393 = vmatpush1.xpose.msra.mxu0 0.0
  %2394 = vmatprep.subr.mxu0 0.0
  %2395 = vmatpush1.xpose.msra.mxu0 0.0
  %2396 = vmatprep.subr.mxu0 0.0
  %2397 = vmatpush1.xpose.msra.mxu0 0.0
  %2398 = vmatprep.subr.mxu0 0.0
  %2399 = vmatpush1.xpose.msra.mxu0 0.0
  %2400 = vmatprep.subr.mxu0 0.0
  %2401 = vmatpush1.xpose.msra.mxu0 0.0
  %2402 = vmatprep.subr.mxu0 0.0
  %2403 = vmatpush1.xpose.msra.mxu0 0.0
  %2404 = vmatprep.subr.mxu0 0.0
  %2405 = vmatpush1.xpose.msra.mxu0 0.0
  %2406 = vmatprep.subr.mxu0 0.0
  %2407 = vmatpush1.xpose.msra.mxu0 0.0
  %2408 = vmatprep.subr.mxu0 0.0
  %2409 = vmatpush1.xpose.msra.mxu0 0.0
  %2410 = vmatprep.subr.mxu0 0.0
  %2411 = vmatpush1.xpose.msra.mxu0 0.0
  %2412 = vmatprep.subr.mxu0 0.0
  %2413 = vmatpush1.xpose.msra.mxu0 0.0
  %2414 = vmatprep.subr.mxu0 0.0
  %2415 = vmatpush1.xpose.msra.mxu0 0.0
  %2416 = vmatprep.subr.mxu0 0.0
  %2417 = vmatpush1.xpose.msra.mxu0 0.0
  %2418 = vmatprep.subr.mxu0 0.0
  %2419 = vmatpush1.xpose.msra.mxu0 0.0
  %2420 = vmatprep.subr.mxu0 0.0
  %2421 = vmatpush1.xpose.msra.mxu0 0.0
  %2422 = vmatprep.mubr.f32.mxu0 0.0
  %2423 = vmatmul.mubr.f32.gmra.mrb[0].mxu0 %v2350
  %v2424 = vpop.f32.mrb[0].mxu0
  %v2425 = vadd.f32 0.0, %v2424
  %v2426 = vpop.f32.mrb[0].mxu0
  %2427 = vmatprep.mubr.f32.mxu0 0.0
  %2428 = vmatmul.mubr.f32.gmra.mrb[0].mxu0 %v2353
  %v2429 = vpop.f32.mrb[0].mxu0
  %v2430 = vadd.f32 0.0, %v2429
  %v2431 = vpop.f32.mrb[0].mxu0
  %2432 = vdwg.mxu0
  %v2433 = vld [vmem:[%s1 + $0xb0] sm:$0xf]
  %v2434 = vld [vmem:[%s1 + $0xb4] sm:$0xf]
  %v2435 = vld [vmem:[%s1 + $0xb8] sm:$0xf]
  %v2436 = vld [vmem:[%s1 + $0xbc] sm:$0xf]
  %v2437 = vunpack.c.l.bf16 %v2433
  %v2438 = vunpack.c.l.bf16 %v2434
  %v2439 = vunpack.c.l.bf16 %v2435
  %v2440 = vunpack.c.l.bf16 %v2436
  %v2441 = vld [vmem:[%s2 + $0xc0] sm:$0x1]
  %v2442 = vlaneseq
  %v2443 = vshrl.u32 %v2442, 7
  %v2444 = vsub.s32 0, %v2443
  %v2445 = vrot.slane %v2441, %v2444
  %2446 = vmatprep.subr.mxu0 0.0
  %2447 = vmatpush1.msra.mxu0 %v2437
  %2448 = vmatprep.subr.mxu0 0.0
  %2449 = vmatpush1.msra.mxu0 %v2438
  %2450 = vmatprep.subr.mxu0 0.0
  %2451 = vmatpush1.msra.mxu0 %v2439
  %2452 = vmatprep.subr.mxu0 0.0
  %2453 = vmatpush1.msra.mxu0 %v2440
  %2454 = vmatprep.subr.mxu0 0.0
  %2455 = vmatpush1.msra.mxu0 0.0
  %2456 = vmatprep.subr.mxu0 0.0
  %2457 = vmatpush1.msra.mxu0 0.0
  %2458 = vmatprep.subr.mxu0 0.0
  %2459 = vmatpush1.msra.mxu0 0.0
  %2460 = vmatprep.subr.mxu0 0.0
  %2461 = vmatpush1.msra.mxu0 0.0
  %2462 = vmatprep.subr.mxu0 0.0
  %2463 = vmatpush1.msra.mxu0 0.0
  %2464 = vmatprep.subr.mxu0 0.0
  %2465 = vmatpush1.msra.mxu0 0.0
  %2466 = vmatprep.subr.mxu0 0.0
  %2467 = vmatpush1.msra.mxu0 0.0
  %2468 = vmatprep.subr.mxu0 0.0
  %2469 = vmatpush1.msra.mxu0 0.0
  %2470 = vmatprep.subr.mxu0 0.0
  %2471 = vmatpush1.msra.mxu0 0.0
  %2472 = vmatprep.subr.mxu0 0.0
  %2473 = vmatpush1.msra.mxu0 0.0
  %2474 = vmatprep.subr.mxu0 0.0
  %2475 = vmatpush1.msra.mxu0 0.0
  %2476 = vmatprep.subr.mxu0 0.0
  %2477 = vmatpush1.msra.mxu0 0.0
  %2478 = vmatprep.subr.mxu0 0.0
  %2479 = vmatpush1.msra.mxu0 0.0
  %2480 = vmatprep.subr.mxu0 0.0
  %2481 = vmatpush1.msra.mxu0 0.0
  %2482 = vmatprep.subr.mxu0 0.0
  %2483 = vmatpush1.msra.mxu0 0.0
  %2484 = vmatprep.subr.mxu0 0.0
  %2485 = vmatpush1.msra.mxu0 0.0
  %2486 = vmatprep.subr.mxu0 0.0
  %2487 = vmatpush1.msra.mxu0 0.0
  %2488 = vmatprep.subr.mxu0 0.0
  %2489 = vmatpush1.msra.mxu0 0.0
  %2490 = vmatprep.subr.mxu0 0.0
  %2491 = vmatpush1.msra.mxu0 0.0
  %2492 = vmatprep.subr.mxu0 0.0
  %2493 = vmatpush1.msra.mxu0 0.0
  %2494 = vmatprep.subr.mxu0 0.0
  %2495 = vmatpush1.msra.mxu0 0.0
  %2496 = vmatprep.subr.mxu0 0.0
  %2497 = vmatpush1.msra.mxu0 0.0
  %2498 = vmatprep.subr.mxu0 0.0
  %2499 = vmatpush1.msra.mxu0 0.0
  %2500 = vmatprep.subr.mxu0 0.0
  %2501 = vmatpush1.msra.mxu0 0.0
  %2502 = vmatprep.subr.mxu0 0.0
  %2503 = vmatpush1.msra.mxu0 0.0
  %2504 = vmatprep.subr.mxu0 0.0
  %2505 = vmatpush1.msra.mxu0 0.0
  %2506 = vmatprep.subr.mxu0 0.0
  %2507 = vmatpush1.msra.mxu0 0.0
  %2508 = vmatprep.subr.mxu0 0.0
  %2509 = vmatpush1.msra.mxu0 0.0
  %2510 = vmatprep.mubr.f32.mxu0 0.0
  %2511 = vmatmul.mubr.f32.gmra.mrb[0].mxu0 %v2040
  %v2512 = vpop.f32.mrb[0].mxu0
  %v2513 = vadd.f32 %v2445, %v2512
  %v2514 = vpop.f32.mrb[0].mxu0
  %2515 = vmatprep.mubr.f32.mxu0 0.0
  %2516 = vmatmul.mubr.f32.gmra.mrb[0].mxu0 %v2043
  %v2517 = vpop.f32.mrb[0].mxu0
  %v2518 = vadd.f32 %v2445, %v2517
  %v2519 = vpop.f32.mrb[0].mxu0
  %2520 = vdwg.mxu0
  %v2522 = vsel %vm318, %v2513, 0
  %v2525 = vsel %vm318, %v2518, 0
  %2527 = vmatprep.subr.mxu0 0.0
  %2528 = vmatpush1.msra.mxu0 %v2122
  %2529 = vmatprep.subr.mxu0 0.0
  %2530 = vmatpush1.msra.mxu0 0.0
  %2531 = vmatprep.subr.mxu0 0.0
  %2532 = vmatpush1.msra.mxu0 0.0
  %2533 = vmatprep.subr.mxu0 0.0
  %2534 = vmatpush1.msra.mxu0 0.0
  %2535 = vmatprep.subr.mxu0 0.0
  %2536 = vmatpush1.msra.mxu0 0.0
  %2537 = vmatprep.subr.mxu0 0.0
  %2538 = vmatpush1.msra.mxu0 0.0
  %2539 = vmatprep.subr.mxu0 0.0
  %2540 = vmatpush1.msra.mxu0 0.0
  %2541 = vmatprep.subr.mxu0 0.0
  %2542 = vmatpush1.msra.mxu0 0.0
  %2543 = vmatprep.subr.mxu0 0.0
  %2544 = vmatpush1.msra.mxu0 0.0
  %2545 = vmatprep.subr.mxu0 0.0
  %2546 = vmatpush1.msra.mxu0 0.0
  %2547 = vmatprep.subr.mxu0 0.0
  %2548 = vmatpush1.msra.mxu0 0.0
  %2549 = vmatprep.subr.mxu0 0.0
  %2550 = vmatpush1.msra.mxu0 0.0
  %2551 = vmatprep.subr.mxu0 0.0
  %2552 = vmatpush1.msra.mxu0 0.0
  %2553 = vmatprep.subr.mxu0 0.0
  %2554 = vmatpush1.msra.mxu0 0.0
  %2555 = vmatprep.subr.mxu0 0.0
  %2556 = vmatpush1.msra.mxu0 0.0
  %2557 = vmatprep.subr.mxu0 0.0
  %2558 = vmatpush1.msra.mxu0 0.0
  %2559 = vmatprep.subr.mxu0 0.0
  %2560 = vmatpush1.msra.mxu0 0.0
  %2561 = vmatprep.subr.mxu0 0.0
  %2562 = vmatpush1.msra.mxu0 0.0
  %2563 = vmatprep.subr.mxu0 0.0
  %2564 = vmatpush1.msra.mxu0 0.0
  %2565 = vmatprep.subr.mxu0 0.0
  %2566 = vmatpush1.msra.mxu0 0.0
  %2567 = vmatprep.subr.mxu0 0.0
  %2568 = vmatpush1.msra.mxu0 0.0
  %2569 = vmatprep.subr.mxu0 0.0
  %2570 = vmatpush1.msra.mxu0 0.0
  %2571 = vmatprep.subr.mxu0 0.0
  %2572 = vmatpush1.msra.mxu0 0.0
  %2573 = vmatprep.subr.mxu0 0.0
  %2574 = vmatpush1.msra.mxu0 0.0
  %2575 = vmatprep.subr.mxu0 0.0
  %2576 = vmatpush1.msra.mxu0 0.0
  %2577 = vmatprep.subr.mxu0 0.0
  %2578 = vmatpush1.msra.mxu0 0.0
  %2579 = vmatprep.subr.mxu0 0.0
  %2580 = vmatpush1.msra.mxu0 0.0
  %2581 = vmatprep.subr.mxu0 0.0
  %2582 = vmatpush1.msra.mxu0 0.0
  %2583 = vmatprep.subr.mxu0 0.0
  %2584 = vmatpush1.msra.mxu0 0.0
  %2585 = vmatprep.subr.mxu0 0.0
  %2586 = vmatpush1.msra.mxu0 0.0
  %2587 = vmatprep.subr.mxu0 0.0
  %2588 = vmatpush1.msra.mxu0 0.0
  %2589 = vmatprep.subr.mxu0 0.0
  %2590 = vmatpush1.msra.mxu0 0.0
  %2591 = vmatprep.mubr.f32.mxu0 0.0
  %2592 = vmatmul.mubr.f32.gmra.mrb[0].mxu0 %v2522
  %v2593 = vpop.f32.mrb[0].mxu0
  %v2594 = vadd.f32 %v20, %v2593
  %v2595 = vpop.f32.mrb[0].mxu0
  %2596 = vmatprep.mubr.f32.mxu0 0.0
  %2597 = vmatmul.mubr.f32.gmra.mrb[0].mxu0 %v2525
  %v2598 = vpop.f32.mrb[0].mxu0
  %v2599 = vadd.f32 %v21, %v2598
  %v2600 = vpop.f32.mrb[0].mxu0
  %2601 = vdwg.mxu0
  %v2602 = vsel %vm400, %v2594, -inf
  %2603 = vmax.xlane.f32.xlu0 %v2602
  %v2604 = vpop.xlane.xlu0 %2603
  %v2605 = vsel %vm400, %v2599, -inf
  %2606 = vmax.xlane.f32.xlu0 %v2605
  %v2607 = vpop.xlane.xlu0 %2606
  %v2608 = vsub.f32 %v2594, %v2604
  %v2609 = vsub.f32 %v2599, %v2607
  %v2610 = vmul.f32 %v2608, 1.442695
  %v2611 = vpow.pop %v2610
  %v2612 = vmul.f32 %v2609, 1.442695
  %v2613 = vpow.pop %v2612
  %v2614 = vsel %vm400, %v2611, 0.0
  %2615 = vadd.xlane.f32.xlu0 %v2614
  %v2616 = vpop.xlane.xlu0 %2615
  %v2617 = vsel %vm400, %v2613, 0.0
  %2618 = vadd.xlane.f32.xlu0 %v2617
  %v2619 = vpop.xlane.xlu0 %2618
  %v2620 = vrcp.pop %v2616
  %v2621 = vrcp.pop %v2619
  %v2622 = vmul.f32 %v2611, %v2620
  %v2623 = vmul.f32 %v2613, %v2621
  %v2625 = vsel %vm400, %v2622, 0
  %v2628 = vsel %vm400, %v2623, 0
  %v2631 = vsel %vm400, %v2127, 0
  %2633 = vmatprep.subr.mxu0 0.0
  %2634 = vmatpush1.xpose.msra.mxu0 %v2631
  %2635 = vmatprep.subr.mxu0 0.0
  %2636 = vmatpush1.xpose.msra.mxu0 0.0
  %2637 = vmatprep.subr.mxu0 0.0
  %2638 = vmatpush1.xpose.msra.mxu0 0.0
  %2639 = vmatprep.subr.mxu0 0.0
  %2640 = vmatpush1.xpose.msra.mxu0 0.0
  %2641 = vmatprep.subr.mxu0 0.0
  %2642 = vmatpush1.xpose.msra.mxu0 0.0
  %2643 = vmatprep.subr.mxu0 0.0
  %2644 = vmatpush1.xpose.msra.mxu0 0.0
  %2645 = vmatprep.subr.mxu0 0.0
  %2646 = vmatpush1.xpose.msra.mxu0 0.0
  %2647 = vmatprep.subr.mxu0 0.0
  %2648 = vmatpush1.xpose.msra.mxu0 0.0
  %2649 = vmatprep.subr.mxu0 0.0
  %2650 = vmatpush1.xpose.msra.mxu0 0.0
  %2651 = vmatprep.subr.mxu0 0.0
  %2652 = vmatpush1.xpose.msra.mxu0 0.0
  %2653 = vmatprep.subr.mxu0 0.0
  %2654 = vmatpush1.xpose.msra.mxu0 0.0
  %2655 = vmatprep.subr.mxu0 0.0
  %2656 = vmatpush1.xpose.msra.mxu0 0.0
  %2657 = vmatprep.subr.mxu0 0.0
  %2658 = vmatpush1.xpose.msra.mxu0 0.0
  %2659 = vmatprep.subr.mxu0 0.0
  %2660 = vmatpush1.xpose.msra.mxu0 0.0
  %2661 = vmatprep.subr.mxu0 0.0
  %2662 = vmatpush1.xpose.msra.mxu0 0.0
  %2663 = vmatprep.subr.mxu0 0.0
  %2664 = vmatpush1.xpose.msra.mxu0 0.0
  %2665 = vmatprep.subr.mxu0 0.0
  %2666 = vmatpush1.xpose.msra.mxu0 0.0
  %2667 = vmatprep.subr.mxu0 0.0
  %2668 = vmatpush1.xpose.msra.mxu0 0.0
  %2669 = vmatprep.subr.mxu0 0.0
  %2670 = vmatpush1.xpose.msra.mxu0 0.0
  %2671 = vmatprep.subr.mxu0 0.0
  %2672 = vmatpush1.xpose.msra.mxu0 0.0
  %2673 = vmatprep.subr.mxu0 0.0
  %2674 = vmatpush1.xpose.msra.mxu0 0.0
  %2675 = vmatprep.subr.mxu0 0.0
  %2676 = vmatpush1.xpose.msra.mxu0 0.0
  %2677 = vmatprep.subr.mxu0 0.0
  %2678 = vmatpush1.xpose.msra.mxu0 0.0
  %2679 = vmatprep.subr.mxu0 0.0
  %2680 = vmatpush1.xpose.msra.mxu0 0.0
  %2681 = vmatprep.subr.mxu0 0.0
  %2682 = vmatpush1.xpose.msra.mxu0 0.0
  %2683 = vmatprep.subr.mxu0 0.0
  %2684 = vmatpush1.xpose.msra.mxu0 0.0
  %2685 = vmatprep.subr.mxu0 0.0
  %2686 = vmatpush1.xpose.msra.mxu0 0.0
  %2687 = vmatprep.subr.mxu0 0.0
  %2688 = vmatpush1.xpose.msra.mxu0 0.0
  %2689 = vmatprep.subr.mxu0 0.0
  %2690 = vmatpush1.xpose.msra.mxu0 0.0
  %2691 = vmatprep.subr.mxu0 0.0
  %2692 = vmatpush1.xpose.msra.mxu0 0.0
  %2693 = vmatprep.subr.mxu0 0.0
  %2694 = vmatpush1.xpose.msra.mxu0 0.0
  %2695 = vmatprep.subr.mxu0 0.0
  %2696 = vmatpush1.xpose.msra.mxu0 0.0
  %2697 = vmatprep.mubr.f32.mxu0 0.0
  %2698 = vmatmul.mubr.f32.gmra.mrb[0].mxu0 %v2625
  %v2699 = vpop.f32.mrb[0].mxu0
  %v2700 = vadd.f32 0.0, %v2699
  %v2701 = vpop.f32.mrb[0].mxu0
  %2702 = vmatprep.mubr.f32.mxu0 0.0
  %2703 = vmatmul.mubr.f32.gmra.mrb[0].mxu0 %v2628
  %v2704 = vpop.f32.mrb[0].mxu0
  %v2705 = vadd.f32 0.0, %v2704
  %v2706 = vpop.f32.mrb[0].mxu0
  %2707 = vdwg.mxu0
  %v2709 = vsel %vm318, %v2700, 0
  %v2712 = vsel %vm318, %v2705, 0
  %2714 = vmatprep.subr.mxu0 0.0
  %2715 = vmatpush1.msra.mxu0 %v2155
  %2716 = vmatprep.subr.mxu0 0.0
  %2717 = vmatpush1.msra.mxu0 0.0
  %2718 = vmatprep.subr.mxu0 0.0
  %2719 = vmatpush1.msra.mxu0 0.0
  %2720 = vmatprep.subr.mxu0 0.0
  %2721 = vmatpush1.msra.mxu0 0.0
  %2722 = vmatprep.subr.mxu0 0.0
  %2723 = vmatpush1.msra.mxu0 0.0
  %2724 = vmatprep.subr.mxu0 0.0
  %2725 = vmatpush1.msra.mxu0 0.0
  %2726 = vmatprep.subr.mxu0 0.0
  %2727 = vmatpush1.msra.mxu0 0.0
  %2728 = vmatprep.subr.mxu0 0.0
  %2729 = vmatpush1.msra.mxu0 0.0
  %2730 = vmatprep.subr.mxu0 0.0
  %2731 = vmatpush1.msra.mxu0 0.0
  %2732 = vmatprep.subr.mxu0 0.0
  %2733 = vmatpush1.msra.mxu0 0.0
  %2734 = vmatprep.subr.mxu0 0.0
  %2735 = vmatpush1.msra.mxu0 0.0
  %2736 = vmatprep.subr.mxu0 0.0
  %2737 = vmatpush1.msra.mxu0 0.0
  %2738 = vmatprep.subr.mxu0 0.0
  %2739 = vmatpush1.msra.mxu0 0.0
  %2740 = vmatprep.subr.mxu0 0.0
  %2741 = vmatpush1.msra.mxu0 0.0
  %2742 = vmatprep.subr.mxu0 0.0
  %2743 = vmatpush1.msra.mxu0 0.0
  %2744 = vmatprep.subr.mxu0 0.0
  %2745 = vmatpush1.msra.mxu0 0.0
  %2746 = vmatprep.subr.mxu0 0.0
  %2747 = vmatpush1.msra.mxu0 0.0
  %2748 = vmatprep.subr.mxu0 0.0
  %2749 = vmatpush1.msra.mxu0 0.0
  %2750 = vmatprep.subr.mxu0 0.0
  %2751 = vmatpush1.msra.mxu0 0.0
  %2752 = vmatprep.subr.mxu0 0.0
  %2753 = vmatpush1.msra.mxu0 0.0
  %2754 = vmatprep.subr.mxu0 0.0
  %2755 = vmatpush1.msra.mxu0 0.0
  %2756 = vmatprep.subr.mxu0 0.0
  %2757 = vmatpush1.msra.mxu0 0.0
  %2758 = vmatprep.subr.mxu0 0.0
  %2759 = vmatpush1.msra.mxu0 0.0
  %2760 = vmatprep.subr.mxu0 0.0
  %2761 = vmatpush1.msra.mxu0 0.0
  %2762 = vmatprep.subr.mxu0 0.0
  %2763 = vmatpush1.msra.mxu0 0.0
  %2764 = vmatprep.subr.mxu0 0.0
  %2765 = vmatpush1.msra.mxu0 0.0
  %2766 = vmatprep.subr.mxu0 0.0
  %2767 = vmatpush1.msra.mxu0 0.0
  %2768 = vmatprep.subr.mxu0 0.0
  %2769 = vmatpush1.msra.mxu0 0.0
  %2770 = vmatprep.subr.mxu0 0.0
  %2771 = vmatpush1.msra.mxu0 0.0
  %2772 = vmatprep.subr.mxu0 0.0
  %2773 = vmatpush1.msra.mxu0 0.0
  %2774 = vmatprep.subr.mxu0 0.0
  %2775 = vmatpush1.msra.mxu0 0.0
  %2776 = vmatprep.subr.mxu0 0.0
  %2777 = vmatpush1.msra.mxu0 0.0
  %2778 = vmatprep.mubr.f32.mxu0 0.0
  %2779 = vmatmul.mubr.f32.gmra.mrb[0].mxu0 %v2709
  %v2780 = vpop.f32.mrb[0].mxu0
  %v2781 = vadd.f32 0.0, %v2780
  %v2782 = vpop.f32.mrb[0].mxu0
  %2783 = vmatprep.mubr.f32.mxu0 0.0
  %2784 = vmatmul.mubr.f32.gmra.mrb[0].mxu0 %v2712
  %v2785 = vpop.f32.mrb[0].mxu0
  %v2786 = vadd.f32 0.0, %v2785
  %v2787 = vpop.f32.mrb[0].mxu0
  %2788 = vdwg.mxu0
  %v2790 = vsel %vm318, %v2425, 0
  %v2793 = vsel %vm318, %v2430, 0
  %2795 = vmatprep.subr.mxu0 0.0
  %2796 = vmatpush1.msra.mxu0 %v2154
  %2797 = vmatprep.subr.mxu0 0.0
  %2798 = vmatpush1.msra.mxu0 0.0
  %2799 = vmatprep.subr.mxu0 0.0
  %2800 = vmatpush1.msra.mxu0 0.0
  %2801 = vmatprep.subr.mxu0 0.0
  %2802 = vmatpush1.msra.mxu0 0.0
  %2803 = vmatprep.subr.mxu0 0.0
  %2804 = vmatpush1.msra.mxu0 0.0
  %2805 = vmatprep.subr.mxu0 0.0
  %2806 = vmatpush1.msra.mxu0 0.0
  %2807 = vmatprep.subr.mxu0 0.0
  %2808 = vmatpush1.msra.mxu0 0.0
  %2809 = vmatprep.subr.mxu0 0.0
  %2810 = vmatpush1.msra.mxu0 0.0
  %2811 = vmatprep.subr.mxu0 0.0
  %2812 = vmatpush1.msra.mxu0 0.0
  %2813 = vmatprep.subr.mxu0 0.0
  %2814 = vmatpush1.msra.mxu0 0.0
  %2815 = vmatprep.subr.mxu0 0.0
  %2816 = vmatpush1.msra.mxu0 0.0
  %2817 = vmatprep.subr.mxu0 0.0
  %2818 = vmatpush1.msra.mxu0 0.0
  %2819 = vmatprep.subr.mxu0 0.0
  %2820 = vmatpush1.msra.mxu0 0.0
  %2821 = vmatprep.subr.mxu0 0.0
  %2822 = vmatpush1.msra.mxu0 0.0
  %2823 = vmatprep.subr.mxu0 0.0
  %2824 = vmatpush1.msra.mxu0 0.0
  %2825 = vmatprep.subr.mxu0 0.0
  %2826 = vmatpush1.msra.mxu0 0.0
  %2827 = vmatprep.subr.mxu0 0.0
  %2828 = vmatpush1.msra.mxu0 0.0
  %2829 = vmatprep.subr.mxu0 0.0
  %2830 = vmatpush1.msra.mxu0 0.0
  %2831 = vmatprep.subr.mxu0 0.0
  %2832 = vmatpush1.msra.mxu0 0.0
  %2833 = vmatprep.subr.mxu0 0.0
  %2834 = vmatpush1.msra.mxu0 0.0
  %2835 = vmatprep.subr.mxu0 0.0
  %2836 = vmatpush1.msra.mxu0 0.0
  %2837 = vmatprep.subr.mxu0 0.0
  %2838 = vmatpush1.msra.mxu0 0.0
  %2839 = vmatprep.subr.mxu0 0.0
  %2840 = vmatpush1.msra.mxu0 0.0
  %2841 = vmatprep.subr.mxu0 0.0
  %2842 = vmatpush1.msra.mxu0 0.0
  %2843 = vmatprep.subr.mxu0 0.0
  %2844 = vmatpush1.msra.mxu0 0.0
  %2845 = vmatprep.subr.mxu0 0.0
  %2846 = vmatpush1.msra.mxu0 0.0
  %2847 = vmatprep.subr.mxu0 0.0
  %2848 = vmatpush1.msra.mxu0 0.0
  %2849 = vmatprep.subr.mxu0 0.0
  %2850 = vmatpush1.msra.mxu0 0.0
  %2851 = vmatprep.subr.mxu0 0.0
  %2852 = vmatpush1.msra.mxu0 0.0
  %2853 = vmatprep.subr.mxu0 0.0
  %2854 = vmatpush1.msra.mxu0 0.0
  %2855 = vmatprep.subr.mxu0 0.0
  %2856 = vmatpush1.msra.mxu0 0.0
  %2857 = vmatprep.subr.mxu0 0.0
  %2858 = vmatpush1.msra.mxu0 0.0
  %2859 = vmatprep.mubr.f32.mxu0 0.0
  %2860 = vmatmul.mubr.f32.gmra.mrb[0].mxu0 %v2790
  %v2861 = vpop.f32.mrb[0].mxu0
  %v2862 = vadd.f32 %v2781, %v2861
  %v2863 = vpop.f32.mrb[0].mxu0
  %2864 = vmatprep.mubr.f32.mxu0 0.0
  %2865 = vmatmul.mubr.f32.gmra.mrb[0].mxu0 %v2793
  %v2866 = vpop.f32.mrb[0].mxu0
  %v2867 = vadd.f32 %v2786, %v2866
  %v2868 = vpop.f32.mrb[0].mxu0
  %2869 = vdwg.mxu0
  %v2870 = vld [vmem:[%s1 + $0xc0] sm:$0xf]
  %v2871 = vld [vmem:[%s1 + $0xc4] sm:$0xf]
  %v2872 = vld [vmem:[%s1 + $0xc8] sm:$0xf]
  %v2873 = vld [vmem:[%s1 + $0xcc] sm:$0xf]
  %v2874 = vunpack.c.l.bf16 %v2870
  %v2875 = vunpack.c.l.bf16 %v2871
  %v2876 = vunpack.c.l.bf16 %v2872
  %v2877 = vunpack.c.l.bf16 %v2873
  %v2878 = vld [vmem:[%s2 + $0xc8] sm:$0x1]
  %v2879 = vlaneseq
  %v2880 = vshrl.u32 %v2879, 7
  %v2881 = vsub.s32 0, %v2880
  %v2882 = vrot.slane %v2878, %v2881
  %2883 = vmatprep.subr.mxu0 0.0
  %2884 = vmatpush1.msra.mxu0 %v2874
  %2885 = vmatprep.subr.mxu0 0.0
  %2886 = vmatpush1.msra.mxu0 %v2875
  %2887 = vmatprep.subr.mxu0 0.0
  %2888 = vmatpush1.msra.mxu0 %v2876
  %2889 = vmatprep.subr.mxu0 0.0
  %2890 = vmatpush1.msra.mxu0 %v2877
  %2891 = vmatprep.subr.mxu0 0.0
  %2892 = vmatpush1.msra.mxu0 0.0
  %2893 = vmatprep.subr.mxu0 0.0
  %2894 = vmatpush1.msra.mxu0 0.0
  %2895 = vmatprep.subr.mxu0 0.0
  %2896 = vmatpush1.msra.mxu0 0.0
  %2897 = vmatprep.subr.mxu0 0.0
  %2898 = vmatpush1.msra.mxu0 0.0
  %2899 = vmatprep.subr.mxu0 0.0
  %2900 = vmatpush1.msra.mxu0 0.0
  %2901 = vmatprep.subr.mxu0 0.0
  %2902 = vmatpush1.msra.mxu0 0.0
  %2903 = vmatprep.subr.mxu0 0.0
  %2904 = vmatpush1.msra.mxu0 0.0
  %2905 = vmatprep.subr.mxu0 0.0
  %2906 = vmatpush1.msra.mxu0 0.0
  %2907 = vmatprep.subr.mxu0 0.0
  %2908 = vmatpush1.msra.mxu0 0.0
  %2909 = vmatprep.subr.mxu0 0.0
  %2910 = vmatpush1.msra.mxu0 0.0
  %2911 = vmatprep.subr.mxu0 0.0
  %2912 = vmatpush1.msra.mxu0 0.0
  %2913 = vmatprep.subr.mxu0 0.0
  %2914 = vmatpush1.msra.mxu0 0.0
  %2915 = vmatprep.subr.mxu0 0.0
  %2916 = vmatpush1.msra.mxu0 0.0
  %2917 = vmatprep.subr.mxu0 0.0
  %2918 = vmatpush1.msra.mxu0 0.0
  %2919 = vmatprep.subr.mxu0 0.0
  %2920 = vmatpush1.msra.mxu0 0.0
  %2921 = vmatprep.subr.mxu0 0.0
  %2922 = vmatpush1.msra.mxu0 0.0
  %2923 = vmatprep.subr.mxu0 0.0
  %2924 = vmatpush1.msra.mxu0 0.0
  %2925 = vmatprep.subr.mxu0 0.0
  %2926 = vmatpush1.msra.mxu0 0.0
  %2927 = vmatprep.subr.mxu0 0.0
  %2928 = vmatpush1.msra.mxu0 0.0
  %2929 = vmatprep.subr.mxu0 0.0
  %2930 = vmatpush1.msra.mxu0 0.0
  %2931 = vmatprep.subr.mxu0 0.0
  %2932 = vmatpush1.msra.mxu0 0.0
  %2933 = vmatprep.subr.mxu0 0.0
  %2934 = vmatpush1.msra.mxu0 0.0
  %2935 = vmatprep.subr.mxu0 0.0
  %2936 = vmatpush1.msra.mxu0 0.0
  %2937 = vmatprep.subr.mxu0 0.0
  %2938 = vmatpush1.msra.mxu0 0.0
  %2939 = vmatprep.subr.mxu0 0.0
  %2940 = vmatpush1.msra.mxu0 0.0
  %2941 = vmatprep.subr.mxu0 0.0
  %2942 = vmatpush1.msra.mxu0 0.0
  %2943 = vmatprep.subr.mxu0 0.0
  %2944 = vmatpush1.msra.mxu0 0.0
  %2945 = vmatprep.subr.mxu0 0.0
  %2946 = vmatpush1.msra.mxu0 0.0
  %2947 = vmatprep.mubr.f32.mxu0 0.0
  %2948 = vmatmul.mubr.f32.gmra.mrb[0].mxu0 %v2040
  %v2949 = vpop.f32.mrb[0].mxu0
  %v2950 = vadd.f32 %v2882, %v2949
  %v2951 = vpop.f32.mrb[0].mxu0
  %2952 = vmatprep.mubr.f32.mxu0 0.0
  %2953 = vmatmul.mubr.f32.gmra.mrb[0].mxu0 %v2043
  %v2954 = vpop.f32.mrb[0].mxu0
  %v2955 = vadd.f32 %v2882, %v2954
  %v2956 = vpop.f32.mrb[0].mxu0
  %2957 = vdwg.mxu0
  %v2959 = vsel %vm318, %v2950, 0
  %v2962 = vsel %vm318, %v2955, 0
  %2964 = vmatprep.subr.mxu0 0.0
  %2965 = vmatpush1.msra.mxu0 %v2132
  %2966 = vmatprep.subr.mxu0 0.0
  %2967 = vmatpush1.msra.mxu0 0.0
  %2968 = vmatprep.subr.mxu0 0.0
  %2969 = vmatpush1.msra.mxu0 0.0
  %2970 = vmatprep.subr.mxu0 0.0
  %2971 = vmatpush1.msra.mxu0 0.0
  %2972 = vmatprep.subr.mxu0 0.0
  %2973 = vmatpush1.msra.mxu0 0.0
  %2974 = vmatprep.subr.mxu0 0.0
  %2975 = vmatpush1.msra.mxu0 0.0
  %2976 = vmatprep.subr.mxu0 0.0
  %2977 = vmatpush1.msra.mxu0 0.0
  %2978 = vmatprep.subr.mxu0 0.0
  %2979 = vmatpush1.msra.mxu0 0.0
  %2980 = vmatprep.subr.mxu0 0.0
  %2981 = vmatpush1.msra.mxu0 0.0
  %2982 = vmatprep.subr.mxu0 0.0
  %2983 = vmatpush1.msra.mxu0 0.0
  %2984 = vmatprep.subr.mxu0 0.0
  %2985 = vmatpush1.msra.mxu0 0.0
  %2986 = vmatprep.subr.mxu0 0.0
  %2987 = vmatpush1.msra.mxu0 0.0
  %2988 = vmatprep.subr.mxu0 0.0
  %2989 = vmatpush1.msra.mxu0 0.0
  %2990 = vmatprep.subr.mxu0 0.0
  %2991 = vmatpush1.msra.mxu0 0.0
  %2992 = vmatprep.subr.mxu0 0.0
  %2993 = vmatpush1.msra.mxu0 0.0
  %2994 = vmatprep.subr.mxu0 0.0
  %2995 = vmatpush1.msra.mxu0 0.0
  %2996 = vmatprep.subr.mxu0 0.0
  %2997 = vmatpush1.msra.mxu0 0.0
  %2998 = vmatprep.subr.mxu0 0.0
  %2999 = vmatpush1.msra.mxu0 0.0
  %3000 = vmatprep.subr.mxu0 0.0
  %3001 = vmatpush1.msra.mxu0 0.0
  %3002 = vmatprep.subr.mxu0 0.0
  %3003 = vmatpush1.msra.mxu0 0.0
  %3004 = vmatprep.subr.mxu0 0.0
  %3005 = vmatpush1.msra.mxu0 0.0
  %3006 = vmatprep.subr.mxu0 0.0
  %3007 = vmatpush1.msra.mxu0 0.0
  %3008 = vmatprep.subr.mxu0 0.0
  %3009 = vmatpush1.msra.mxu0 0.0
  %3010 = vmatprep.subr.mxu0 0.0
  %3011 = vmatpush1.msra.mxu0 0.0
  %3012 = vmatprep.subr.mxu0 0.0
  %3013 = vmatpush1.msra.mxu0 0.0
  %3014 = vmatprep.subr.mxu0 0.0
  %3015 = vmatpush1.msra.mxu0 0.0
  %3016 = vmatprep.subr.mxu0 0.0
  %3017 = vmatpush1.msra.mxu0 0.0
  %3018 = vmatprep.subr.mxu0 0.0
  %3019 = vmatpush1.msra.mxu0 0.0
  %3020 = vmatprep.subr.mxu0 0.0
  %3021 = vmatpush1.msra.mxu0 0.0
  %3022 = vmatprep.subr.mxu0 0.0
  %3023 = vmatpush1.msra.mxu0 0.0
  %3024 = vmatprep.subr.mxu0 0.0
  %3025 = vmatpush1.msra.mxu0 0.0
  %3026 = vmatprep.subr.mxu0 0.0
  %3027 = vmatpush1.msra.mxu0 0.0
  %3028 = vmatprep.mubr.f32.mxu0 0.0
  %3029 = vmatmul.mubr.f32.gmra.mrb[0].mxu0 %v2959
  %v3030 = vpop.f32.mrb[0].mxu0
  %v3031 = vadd.f32 %v20, %v3030
  %v3032 = vpop.f32.mrb[0].mxu0
  %3033 = vmatprep.mubr.f32.mxu0 0.0
  %3034 = vmatmul.mubr.f32.gmra.mrb[0].mxu0 %v2962
  %v3035 = vpop.f32.mrb[0].mxu0
  %v3036 = vadd.f32 %v21, %v3035
  %v3037 = vpop.f32.mrb[0].mxu0
  %3038 = vdwg.mxu0
  %v3039 = vsel %vm400, %v3031, -inf
  %3040 = vmax.xlane.f32.xlu0 %v3039
  %v3041 = vpop.xlane.xlu0 %3040
  %v3042 = vsel %vm400, %v3036, -inf
  %3043 = vmax.xlane.f32.xlu0 %v3042
  %v3044 = vpop.xlane.xlu0 %3043
  %v3045 = vsub.f32 %v3031, %v3041
  %v3046 = vsub.f32 %v3036, %v3044
  %v3047 = vmul.f32 %v3045, 1.442695
  %v3048 = vpow.pop %v3047
  %v3049 = vmul.f32 %v3046, 1.442695
  %v3050 = vpow.pop %v3049
  %v3051 = vsel %vm400, %v3048, 0.0
  %3052 = vadd.xlane.f32.xlu0 %v3051
  %v3053 = vpop.xlane.xlu0 %3052
  %v3054 = vsel %vm400, %v3050, 0.0
  %3055 = vadd.xlane.f32.xlu0 %v3054
  %v3056 = vpop.xlane.xlu0 %3055
  %v3057 = vrcp.pop %v3053
  %v3058 = vrcp.pop %v3056
  %v3059 = vmul.f32 %v3048, %v3057
  %v3060 = vmul.f32 %v3050, %v3058
  %v3062 = vsel %vm400, %v3059, 0
  %v3065 = vsel %vm400, %v3060, 0
  %v3068 = vsel %vm400, %v2137, 0
  %3070 = vmatprep.subr.mxu0 0.0
  %3071 = vmatpush1.xpose.msra.mxu0 %v3068
  %3072 = vmatprep.subr.mxu0 0.0
  %3073 = vmatpush1.xpose.msra.mxu0 0.0
  %3074 = vmatprep.subr.mxu0 0.0
  %3075 = vmatpush1.xpose.msra.mxu0 0.0
  %3076 = vmatprep.subr.mxu0 0.0
  %3077 = vmatpush1.xpose.msra.mxu0 0.0
  %3078 = vmatprep.subr.mxu0 0.0
  %3079 = vmatpush1.xpose.msra.mxu0 0.0
  %3080 = vmatprep.subr.mxu0 0.0
  %3081 = vmatpush1.xpose.msra.mxu0 0.0
  %3082 = vmatprep.subr.mxu0 0.0
  %3083 = vmatpush1.xpose.msra.mxu0 0.0
  %3084 = vmatprep.subr.mxu0 0.0
  %3085 = vmatpush1.xpose.msra.mxu0 0.0
  %3086 = vmatprep.subr.mxu0 0.0
  %3087 = vmatpush1.xpose.msra.mxu0 0.0
  %3088 = vmatprep.subr.mxu0 0.0
  %3089 = vmatpush1.xpose.msra.mxu0 0.0
  %3090 = vmatprep.subr.mxu0 0.0
  %3091 = vmatpush1.xpose.msra.mxu0 0.0
  %3092 = vmatprep.subr.mxu0 0.0
  %3093 = vmatpush1.xpose.msra.mxu0 0.0
  %3094 = vmatprep.subr.mxu0 0.0
  %3095 = vmatpush1.xpose.msra.mxu0 0.0
  %3096 = vmatprep.subr.mxu0 0.0
  %3097 = vmatpush1.xpose.msra.mxu0 0.0
  %3098 = vmatprep.subr.mxu0 0.0
  %3099 = vmatpush1.xpose.msra.mxu0 0.0
  %3100 = vmatprep.subr.mxu0 0.0
  %3101 = vmatpush1.xpose.msra.mxu0 0.0
  %3102 = vmatprep.subr.mxu0 0.0
  %3103 = vmatpush1.xpose.msra.mxu0 0.0
  %3104 = vmatprep.subr.mxu0 0.0
  %3105 = vmatpush1.xpose.msra.mxu0 0.0
  %3106 = vmatprep.subr.mxu0 0.0
  %3107 = vmatpush1.xpose.msra.mxu0 0.0
  %3108 = vmatprep.subr.mxu0 0.0
  %3109 = vmatpush1.xpose.msra.mxu0 0.0
  %3110 = vmatprep.subr.mxu0 0.0
  %3111 = vmatpush1.xpose.msra.mxu0 0.0
  %3112 = vmatprep.subr.mxu0 0.0
  %3113 = vmatpush1.xpose.msra.mxu0 0.0
  %3114 = vmatprep.subr.mxu0 0.0
  %3115 = vmatpush1.xpose.msra.mxu0 0.0
  %3116 = vmatprep.subr.mxu0 0.0
  %3117 = vmatpush1.xpose.msra.mxu0 0.0
  %3118 = vmatprep.subr.mxu0 0.0
  %3119 = vmatpush1.xpose.msra.mxu0 0.0
  %3120 = vmatprep.subr.mxu0 0.0
  %3121 = vmatpush1.xpose.msra.mxu0 0.0
  %3122 = vmatprep.subr.mxu0 0.0
  %3123 = vmatpush1.xpose.msra.mxu0 0.0
  %3124 = vmatprep.subr.mxu0 0.0
  %3125 = vmatpush1.xpose.msra.mxu0 0.0
  %3126 = vmatprep.subr.mxu0 0.0
  %3127 = vmatpush1.xpose.msra.mxu0 0.0
  %3128 = vmatprep.subr.mxu0 0.0
  %3129 = vmatpush1.xpose.msra.mxu0 0.0
  %3130 = vmatprep.subr.mxu0 0.0
  %3131 = vmatpush1.xpose.msra.mxu0 0.0
  %3132 = vmatprep.subr.mxu0 0.0
  %3133 = vmatpush1.xpose.msra.mxu0 0.0
  %3134 = vmatprep.mubr.f32.mxu0 0.0
  %3135 = vmatmul.mubr.f32.gmra.mrb[0].mxu0 %v3062
  %v3136 = vpop.f32.mrb[0].mxu0
  %v3137 = vadd.f32 0.0, %v3136
  %v3138 = vpop.f32.mrb[0].mxu0
  %3139 = vmatprep.mubr.f32.mxu0 0.0
  %3140 = vmatmul.mubr.f32.gmra.mrb[0].mxu0 %v3065
  %v3141 = vpop.f32.mrb[0].mxu0
  %v3142 = vadd.f32 0.0, %v3141
  %v3143 = vpop.f32.mrb[0].mxu0
  %3144 = vdwg.mxu0
  %v3146 = vsel %vm318, %v3137, 0
  %v3149 = vsel %vm318, %v3142, 0
  %3151 = vmatprep.subr.mxu0 0.0
  %3152 = vmatpush1.msra.mxu0 %v2156
  %3153 = vmatprep.subr.mxu0 0.0
  %3154 = vmatpush1.msra.mxu0 0.0
  %3155 = vmatprep.subr.mxu0 0.0
  %3156 = vmatpush1.msra.mxu0 0.0
  %3157 = vmatprep.subr.mxu0 0.0
  %3158 = vmatpush1.msra.mxu0 0.0
  %3159 = vmatprep.subr.mxu0 0.0
  %3160 = vmatpush1.msra.mxu0 0.0
  %3161 = vmatprep.subr.mxu0 0.0
  %3162 = vmatpush1.msra.mxu0 0.0
  %3163 = vmatprep.subr.mxu0 0.0
  %3164 = vmatpush1.msra.mxu0 0.0
  %3165 = vmatprep.subr.mxu0 0.0
  %3166 = vmatpush1.msra.mxu0 0.0
  %3167 = vmatprep.subr.mxu0 0.0
  %3168 = vmatpush1.msra.mxu0 0.0
  %3169 = vmatprep.subr.mxu0 0.0
  %3170 = vmatpush1.msra.mxu0 0.0
  %3171 = vmatprep.subr.mxu0 0.0
  %3172 = vmatpush1.msra.mxu0 0.0
  %3173 = vmatprep.subr.mxu0 0.0
  %3174 = vmatpush1.msra.mxu0 0.0
  %3175 = vmatprep.subr.mxu0 0.0
  %3176 = vmatpush1.msra.mxu0 0.0
  %3177 = vmatprep.subr.mxu0 0.0
  %3178 = vmatpush1.msra.mxu0 0.0
  %3179 = vmatprep.subr.mxu0 0.0
  %3180 = vmatpush1.msra.mxu0 0.0
  %3181 = vmatprep.subr.mxu0 0.0
  %3182 = vmatpush1.msra.mxu0 0.0
  %3183 = vmatprep.subr.mxu0 0.0
  %3184 = vmatpush1.msra.mxu0 0.0
  %3185 = vmatprep.subr.mxu0 0.0
  %3186 = vmatpush1.msra.mxu0 0.0
  %3187 = vmatprep.subr.mxu0 0.0
  %3188 = vmatpush1.msra.mxu0 0.0
  %3189 = vmatprep.subr.mxu0 0.0
  %3190 = vmatpush1.msra.mxu0 0.0
  %3191 = vmatprep.subr.mxu0 0.0
  %3192 = vmatpush1.msra.mxu0 0.0
  %3193 = vmatprep.subr.mxu0 0.0
  %3194 = vmatpush1.msra.mxu0 0.0
  %3195 = vmatprep.subr.mxu0 0.0
  %3196 = vmatpush1.msra.mxu0 0.0
  %3197 = vmatprep.subr.mxu0 0.0
  %3198 = vmatpush1.msra.mxu0 0.0
  %3199 = vmatprep.subr.mxu0 0.0
  %3200 = vmatpush1.msra.mxu0 0.0
  %3201 = vmatprep.subr.mxu0 0.0
  %3202 = vmatpush1.msra.mxu0 0.0
  %3203 = vmatprep.subr.mxu0 0.0
  %3204 = vmatpush1.msra.mxu0 0.0
  %3205 = vmatprep.subr.mxu0 0.0
  %3206 = vmatpush1.msra.mxu0 0.0
  %3207 = vmatprep.subr.mxu0 0.0
  %3208 = vmatpush1.msra.mxu0 0.0
  %3209 = vmatprep.subr.mxu0 0.0
  %3210 = vmatpush1.msra.mxu0 0.0
  %3211 = vmatprep.subr.mxu0 0.0
  %3212 = vmatpush1.msra.mxu0 0.0
  %3213 = vmatprep.subr.mxu0 0.0
  %3214 = vmatpush1.msra.mxu0 0.0
  %3215 = vmatprep.mubr.f32.mxu0 0.0
  %3216 = vmatmul.mubr.f32.gmra.mrb[0].mxu0 %v3146
  %v3217 = vpop.f32.mrb[0].mxu0
  %v3218 = vadd.f32 0.0, %v3217
  %v3219 = vpop.f32.mrb[0].mxu0
  %3220 = vmatprep.mubr.f32.mxu0 0.0
  %3221 = vmatmul.mubr.f32.gmra.mrb[0].mxu0 %v3149
  %v3222 = vpop.f32.mrb[0].mxu0
  %v3223 = vadd.f32 0.0, %v3222
  %v3224 = vpop.f32.mrb[0].mxu0
  %3225 = vdwg.mxu0
  %v3226 = vadd.f32 %v2862, %v3218
  %v3227 = vadd.f32 %v2867, %v3223
  %v3228 = vld [vmem:[%s1 + $0xd0] sm:$0xf]
  %v3229 = vld [vmem:[%s1 + $0xd4] sm:$0xf]
  %v3230 = vld [vmem:[%s1 + $0xd8] sm:$0xf]
  %v3231 = vld [vmem:[%s1 + $0xdc] sm:$0xf]
  %v3232 = vunpack.c.l.bf16 %v3228
  %v3233 = vunpack.c.l.bf16 %v3229
  %v3234 = vunpack.c.l.bf16 %v3230
  %v3235 = vunpack.c.l.bf16 %v3231
  %v3236 = vld [vmem:[%s2 + $0xd0] sm:$0x1]
  %v3237 = vlaneseq
  %v3238 = vshrl.u32 %v3237, 7
  %v3239 = vsub.s32 0, %v3238
  %v3240 = vrot.slane %v3236, %v3239
  %3241 = vmatprep.subr.mxu0 0.0
  %3242 = vmatpush1.msra.mxu0 %v3232
  %3243 = vmatprep.subr.mxu0 0.0
  %3244 = vmatpush1.msra.mxu0 %v3233
  %3245 = vmatprep.subr.mxu0 0.0
  %3246 = vmatpush1.msra.mxu0 %v3234
  %3247 = vmatprep.subr.mxu0 0.0
  %3248 = vmatpush1.msra.mxu0 %v3235
  %3249 = vmatprep.subr.mxu0 0.0
  %3250 = vmatpush1.msra.mxu0 0.0
  %3251 = vmatprep.subr.mxu0 0.0
  %3252 = vmatpush1.msra.mxu0 0.0
  %3253 = vmatprep.subr.mxu0 0.0
  %3254 = vmatpush1.msra.mxu0 0.0
  %3255 = vmatprep.subr.mxu0 0.0
  %3256 = vmatpush1.msra.mxu0 0.0
  %3257 = vmatprep.subr.mxu0 0.0
  %3258 = vmatpush1.msra.mxu0 0.0
  %3259 = vmatprep.subr.mxu0 0.0
  %3260 = vmatpush1.msra.mxu0 0.0
  %3261 = vmatprep.subr.mxu0 0.0
  %3262 = vmatpush1.msra.mxu0 0.0
  %3263 = vmatprep.subr.mxu0 0.0
  %3264 = vmatpush1.msra.mxu0 0.0
  %3265 = vmatprep.subr.mxu0 0.0
  %3266 = vmatpush1.msra.mxu0 0.0
  %3267 = vmatprep.subr.mxu0 0.0
  %3268 = vmatpush1.msra.mxu0 0.0
  %3269 = vmatprep.subr.mxu0 0.0
  %3270 = vmatpush1.msra.mxu0 0.0
  %3271 = vmatprep.subr.mxu0 0.0
  %3272 = vmatpush1.msra.mxu0 0.0
  %3273 = vmatprep.subr.mxu0 0.0
  %3274 = vmatpush1.msra.mxu0 0.0
  %3275 = vmatprep.subr.mxu0 0.0
  %3276 = vmatpush1.msra.mxu0 0.0
  %3277 = vmatprep.subr.mxu0 0.0
  %3278 = vmatpush1.msra.mxu0 0.0
  %3279 = vmatprep.subr.mxu0 0.0
  %3280 = vmatpush1.msra.mxu0 0.0
  %3281 = vmatprep.subr.mxu0 0.0
  %3282 = vmatpush1.msra.mxu0 0.0
  %3283 = vmatprep.subr.mxu0 0.0
  %3284 = vmatpush1.msra.mxu0 0.0
  %3285 = vmatprep.subr.mxu0 0.0
  %3286 = vmatpush1.msra.mxu0 0.0
  %3287 = vmatprep.subr.mxu0 0.0
  %3288 = vmatpush1.msra.mxu0 0.0
  %3289 = vmatprep.subr.mxu0 0.0
  %3290 = vmatpush1.msra.mxu0 0.0
  %3291 = vmatprep.subr.mxu0 0.0
  %3292 = vmatpush1.msra.mxu0 0.0
  %3293 = vmatprep.subr.mxu0 0.0
  %3294 = vmatpush1.msra.mxu0 0.0
  %3295 = vmatprep.subr.mxu0 0.0
  %3296 = vmatpush1.msra.mxu0 0.0
  %3297 = vmatprep.subr.mxu0 0.0
  %3298 = vmatpush1.msra.mxu0 0.0
  %3299 = vmatprep.subr.mxu0 0.0
  %3300 = vmatpush1.msra.mxu0 0.0
  %3301 = vmatprep.subr.mxu0 0.0
  %3302 = vmatpush1.msra.mxu0 0.0
  %3303 = vmatprep.subr.mxu0 0.0
  %3304 = vmatpush1.msra.mxu0 0.0
  %3305 = vmatprep.mubr.f32.mxu0 0.0
  %3306 = vmatmul.mubr.f32.gmra.mrb[0].mxu0 %v2040
  %v3307 = vpop.f32.mrb[0].mxu0
  %v3308 = vadd.f32 %v3240, %v3307
  %v3309 = vpop.f32.mrb[0].mxu0
  %3310 = vmatprep.mubr.f32.mxu0 0.0
  %3311 = vmatmul.mubr.f32.gmra.mrb[0].mxu0 %v2043
  %v3312 = vpop.f32.mrb[0].mxu0
  %v3313 = vadd.f32 %v3240, %v3312
  %v3314 = vpop.f32.mrb[0].mxu0
  %3315 = vdwg.mxu0
  %v3317 = vsel %vm318, %v3308, 0
  %v3320 = vsel %vm318, %v3313, 0
  %3322 = vmatprep.subr.mxu0 0.0
  %3323 = vmatpush1.msra.mxu0 %v2142
  %3324 = vmatprep.subr.mxu0 0.0
  %3325 = vmatpush1.msra.mxu0 0.0
  %3326 = vmatprep.subr.mxu0 0.0
  %3327 = vmatpush1.msra.mxu0 0.0
  %3328 = vmatprep.subr.mxu0 0.0
  %3329 = vmatpush1.msra.mxu0 0.0
  %3330 = vmatprep.subr.mxu0 0.0
  %3331 = vmatpush1.msra.mxu0 0.0
  %3332 = vmatprep.subr.mxu0 0.0
  %3333 = vmatpush1.msra.mxu0 0.0
  %3334 = vmatprep.subr.mxu0 0.0
  %3335 = vmatpush1.msra.mxu0 0.0
  %3336 = vmatprep.subr.mxu0 0.0
  %3337 = vmatpush1.msra.mxu0 0.0
  %3338 = vmatprep.subr.mxu0 0.0
  %3339 = vmatpush1.msra.mxu0 0.0
  %3340 = vmatprep.subr.mxu0 0.0
  %3341 = vmatpush1.msra.mxu0 0.0
  %3342 = vmatprep.subr.mxu0 0.0
  %3343 = vmatpush1.msra.mxu0 0.0
  %3344 = vmatprep.subr.mxu0 0.0
  %3345 = vmatpush1.msra.mxu0 0.0
  %3346 = vmatprep.subr.mxu0 0.0
  %3347 = vmatpush1.msra.mxu0 0.0
  %3348 = vmatprep.subr.mxu0 0.0
  %3349 = vmatpush1.msra.mxu0 0.0
  %3350 = vmatprep.subr.mxu0 0.0
  %3351 = vmatpush1.msra.mxu0 0.0
  %3352 = vmatprep.subr.mxu0 0.0
  %3353 = vmatpush1.msra.mxu0 0.0
  %3354 = vmatprep.subr.mxu0 0.0
  %3355 = vmatpush1.msra.mxu0 0.0
  %3356 = vmatprep.subr.mxu0 0.0
  %3357 = vmatpush1.msra.mxu0 0.0
  %3358 = vmatprep.subr.mxu0 0.0
  %3359 = vmatpush1.msra.mxu0 0.0
  %3360 = vmatprep.subr.mxu0 0.0
  %3361 = vmatpush1.msra.mxu0 0.0
  %3362 = vmatprep.subr.mxu0 0.0
  %3363 = vmatpush1.msra.mxu0 0.0
  %3364 = vmatprep.subr.mxu0 0.0
  %3365 = vmatpush1.msra.mxu0 0.0
  %3366 = vmatprep.subr.mxu0 0.0
  %3367 = vmatpush1.msra.mxu0 0.0
  %3368 = vmatprep.subr.mxu0 0.0
  %3369 = vmatpush1.msra.mxu0 0.0
  %3370 = vmatprep.subr.mxu0 0.0
  %3371 = vmatpush1.msra.mxu0 0.0
  %3372 = vmatprep.subr.mxu0 0.0
  %3373 = vmatpush1.msra.mxu0 0.0
  %3374 = vmatprep.subr.mxu0 0.0
  %3375 = vmatpush1.msra.mxu0 0.0
  %3376 = vmatprep.subr.mxu0 0.0
  %3377 = vmatpush1.msra.mxu0 0.0
  %3378 = vmatprep.subr.mxu0 0.0
  %3379 = vmatpush1.msra.mxu0 0.0
  %3380 = vmatprep.subr.mxu0 0.0
  %3381 = vmatpush1.msra.mxu0 0.0
  %3382 = vmatprep.subr.mxu0 0.0
  %3383 = vmatpush1.msra.mxu0 0.0
  %3384 = vmatprep.subr.mxu0 0.0
  %3385 = vmatpush1.msra.mxu0 0.0
  %3386 = vmatprep.mubr.f32.mxu0 0.0
  %3387 = vmatmul.mubr.f32.gmra.mrb[0].mxu0 %v3317
  %v3388 = vpop.f32.mrb[0].mxu0
  %v3389 = vadd.f32 %v20, %v3388
  %v3390 = vpop.f32.mrb[0].mxu0
  %3391 = vmatprep.mubr.f32.mxu0 0.0
  %3392 = vmatmul.mubr.f32.gmra.mrb[0].mxu0 %v3320
  %v3393 = vpop.f32.mrb[0].mxu0
  %v3394 = vadd.f32 %v21, %v3393
  %v3395 = vpop.f32.mrb[0].mxu0
  %3396 = vdwg.mxu0
  %v3397 = vsel %vm400, %v3389, -inf
  %3398 = vmax.xlane.f32.xlu0 %v3397
  %v3399 = vpop.xlane.xlu0 %3398
  %v3400 = vsel %vm400, %v3394, -inf
  %3401 = vmax.xlane.f32.xlu0 %v3400
  %v3402 = vpop.xlane.xlu0 %3401
  %v3403 = vsub.f32 %v3389, %v3399
  %v3404 = vsub.f32 %v3394, %v3402
  %v3405 = vmul.f32 %v3403, 1.442695
  %v3406 = vpow.pop %v3405
  %v3407 = vmul.f32 %v3404, 1.442695
  %v3408 = vpow.pop %v3407
  %v3409 = vsel %vm400, %v3406, 0.0
  %3410 = vadd.xlane.f32.xlu0 %v3409
  %v3411 = vpop.xlane.xlu0 %3410
  %v3412 = vsel %vm400, %v3408, 0.0
  %3413 = vadd.xlane.f32.xlu0 %v3412
  %v3414 = vpop.xlane.xlu0 %3413
  %v3415 = vrcp.pop %v3411
  %v3416 = vrcp.pop %v3414
  %v3417 = vmul.f32 %v3406, %v3415
  %v3418 = vmul.f32 %v3408, %v3416
  %v3420 = vsel %vm400, %v3417, 0
  %v3423 = vsel %vm400, %v3418, 0
  %v3426 = vsel %vm400, %v2147, 0
  %3428 = vmatprep.subr.mxu0 0.0
  %3429 = vmatpush1.xpose.msra.mxu0 %v3426
  %3430 = vmatprep.subr.mxu0 0.0
  %3431 = vmatpush1.xpose.msra.mxu0 0.0
  %3432 = vmatprep.subr.mxu0 0.0
  %3433 = vmatpush1.xpose.msra.mxu0 0.0
  %3434 = vmatprep.subr.mxu0 0.0
  %3435 = vmatpush1.xpose.msra.mxu0 0.0
  %3436 = vmatprep.subr.mxu0 0.0
  %3437 = vmatpush1.xpose.msra.mxu0 0.0
  %3438 = vmatprep.subr.mxu0 0.0
  %3439 = vmatpush1.xpose.msra.mxu0 0.0
  %3440 = vmatprep.subr.mxu0 0.0
  %3441 = vmatpush1.xpose.msra.mxu0 0.0
  %3442 = vmatprep.subr.mxu0 0.0
  %3443 = vmatpush1.xpose.msra.mxu0 0.0
  %3444 = vmatprep.subr.mxu0 0.0
  %3445 = vmatpush1.xpose.msra.mxu0 0.0
  %3446 = vmatprep.subr.mxu0 0.0
  %3447 = vmatpush1.xpose.msra.mxu0 0.0
  %3448 = vmatprep.subr.mxu0 0.0
  %3449 = vmatpush1.xpose.msra.mxu0 0.0
  %3450 = vmatprep.subr.mxu0 0.0
  %3451 = vmatpush1.xpose.msra.mxu0 0.0
  %3452 = vmatprep.subr.mxu0 0.0
  %3453 = vmatpush1.xpose.msra.mxu0 0.0
  %3454 = vmatprep.subr.mxu0 0.0
  %3455 = vmatpush1.xpose.msra.mxu0 0.0
  %3456 = vmatprep.subr.mxu0 0.0
  %3457 = vmatpush1.xpose.msra.mxu0 0.0
  %3458 = vmatprep.subr.mxu0 0.0
  %3459 = vmatpush1.xpose.msra.mxu0 0.0
  %3460 = vmatprep.subr.mxu0 0.0
  %3461 = vmatpush1.xpose.msra.mxu0 0.0
  %3462 = vmatprep.subr.mxu0 0.0
  %3463 = vmatpush1.xpose.msra.mxu0 0.0
  %3464 = vmatprep.subr.mxu0 0.0
  %3465 = vmatpush1.xpose.msra.mxu0 0.0
  %3466 = vmatprep.subr.mxu0 0.0
  %3467 = vmatpush1.xpose.msra.mxu0 0.0
  %3468 = vmatprep.subr.mxu0 0.0
  %3469 = vmatpush1.xpose.msra.mxu0 0.0
  %3470 = vmatprep.subr.mxu0 0.0
  %3471 = vmatpush1.xpose.msra.mxu0 0.0
  %3472 = vmatprep.subr.mxu0 0.0
  %3473 = vmatpush1.xpose.msra.mxu0 0.0
  %3474 = vmatprep.subr.mxu0 0.0
  %3475 = vmatpush1.xpose.msra.mxu0 0.0
  %3476 = vmatprep.subr.mxu0 0.0
  %3477 = vmatpush1.xpose.msra.mxu0 0.0
  %3478 = vmatprep.subr.mxu0 0.0
  %3479 = vmatpush1.xpose.msra.mxu0 0.0
  %3480 = vmatprep.subr.mxu0 0.0
  %3481 = vmatpush1.xpose.msra.mxu0 0.0
  %3482 = vmatprep.subr.mxu0 0.0
  %3483 = vmatpush1.xpose.msra.mxu0 0.0
  %3484 = vmatprep.subr.mxu0 0.0
  %3485 = vmatpush1.xpose.msra.mxu0 0.0
  %3486 = vmatprep.subr.mxu0 0.0
  %3487 = vmatpush1.xpose.msra.mxu0 0.0
  %3488 = vmatprep.subr.mxu0 0.0
  %3489 = vmatpush1.xpose.msra.mxu0 0.0
  %3490 = vmatprep.subr.mxu0 0.0
  %3491 = vmatpush1.xpose.msra.mxu0 0.0
  %3492 = vmatprep.mubr.f32.mxu0 0.0
  %3493 = vmatmul.mubr.f32.gmra.mrb[0].mxu0 %v3420
  %v3494 = vpop.f32.mrb[0].mxu0
  %v3495 = vadd.f32 0.0, %v3494
  %v3496 = vpop.f32.mrb[0].mxu0
  %3497 = vmatprep.mubr.f32.mxu0 0.0
  %3498 = vmatmul.mubr.f32.gmra.mrb[0].mxu0 %v3423
  %v3499 = vpop.f32.mrb[0].mxu0
  %v3500 = vadd.f32 0.0, %v3499
  %v3501 = vpop.f32.mrb[0].mxu0
  %3502 = vdwg.mxu0
  %v3504 = vsel %vm318, %v3495, 0
  %v3507 = vsel %vm318, %v3500, 0
  %3509 = vmatprep.subr.mxu0 0.0
  %3510 = vmatpush1.msra.mxu0 %v2157
  %3511 = vmatprep.subr.mxu0 0.0
  %3512 = vmatpush1.msra.mxu0 0.0
  %3513 = vmatprep.subr.mxu0 0.0
  %3514 = vmatpush1.msra.mxu0 0.0
  %3515 = vmatprep.subr.mxu0 0.0
  %3516 = vmatpush1.msra.mxu0 0.0
  %3517 = vmatprep.subr.mxu0 0.0
  %3518 = vmatpush1.msra.mxu0 0.0
  %3519 = vmatprep.subr.mxu0 0.0
  %3520 = vmatpush1.msra.mxu0 0.0
  %3521 = vmatprep.subr.mxu0 0.0
  %3522 = vmatpush1.msra.mxu0 0.0
  %3523 = vmatprep.subr.mxu0 0.0
  %3524 = vmatpush1.msra.mxu0 0.0
  %3525 = vmatprep.subr.mxu0 0.0
  %3526 = vmatpush1.msra.mxu0 0.0
  %3527 = vmatprep.subr.mxu0 0.0
  %3528 = vmatpush1.msra.mxu0 0.0
  %3529 = vmatprep.subr.mxu0 0.0
  %3530 = vmatpush1.msra.mxu0 0.0
  %3531 = vmatprep.subr.mxu0 0.0
  %3532 = vmatpush1.msra.mxu0 0.0
  %3533 = vmatprep.subr.mxu0 0.0
  %3534 = vmatpush1.msra.mxu0 0.0
  %3535 = vmatprep.subr.mxu0 0.0
  %3536 = vmatpush1.msra.mxu0 0.0
  %3537 = vmatprep.subr.mxu0 0.0
  %3538 = vmatpush1.msra.mxu0 0.0
  %3539 = vmatprep.subr.mxu0 0.0
  %3540 = vmatpush1.msra.mxu0 0.0
  %3541 = vmatprep.subr.mxu0 0.0
  %3542 = vmatpush1.msra.mxu0 0.0
  %3543 = vmatprep.subr.mxu0 0.0
  %3544 = vmatpush1.msra.mxu0 0.0
  %3545 = vmatprep.subr.mxu0 0.0
  %3546 = vmatpush1.msra.mxu0 0.0
  %3547 = vmatprep.subr.mxu0 0.0
  %3548 = vmatpush1.msra.mxu0 0.0
  %3549 = vmatprep.subr.mxu0 0.0
  %3550 = vmatpush1.msra.mxu0 0.0
  %3551 = vmatprep.subr.mxu0 0.0
  %3552 = vmatpush1.msra.mxu0 0.0
  %3553 = vmatprep.subr.mxu0 0.0
  %3554 = vmatpush1.msra.mxu0 0.0
  %3555 = vmatprep.subr.mxu0 0.0
  %3556 = vmatpush1.msra.mxu0 0.0
  %3557 = vmatprep.subr.mxu0 0.0
  %3558 = vmatpush1.msra.mxu0 0.0
  %3559 = vmatprep.subr.mxu0 0.0
  %3560 = vmatpush1.msra.mxu0 0.0
  %3561 = vmatprep.subr.mxu0 0.0
  %3562 = vmatpush1.msra.mxu0 0.0
  %3563 = vmatprep.subr.mxu0 0.0
  %3564 = vmatpush1.msra.mxu0 0.0
  %3565 = vmatprep.subr.mxu0 0.0
  %3566 = vmatpush1.msra.mxu0 0.0
  %3567 = vmatprep.subr.mxu0 0.0
  %3568 = vmatpush1.msra.mxu0 0.0
  %3569 = vmatprep.subr.mxu0 0.0
  %3570 = vmatpush1.msra.mxu0 0.0
  %3571 = vmatprep.subr.mxu0 0.0
  %3572 = vmatpush1.msra.mxu0 0.0
  %3573 = vmatprep.mubr.f32.mxu0 0.0
  %3574 = vmatmul.mubr.f32.gmra.mrb[0].mxu0 %v3504
  %v3575 = vpop.f32.mrb[0].mxu0
  %v3576 = vadd.f32 0.0, %v3575
  %v3577 = vpop.f32.mrb[0].mxu0
  %3578 = vmatprep.mubr.f32.mxu0 0.0
  %3579 = vmatmul.mubr.f32.gmra.mrb[0].mxu0 %v3507
  %v3580 = vpop.f32.mrb[0].mxu0
  %v3581 = vadd.f32 0.0, %v3580
  %v3582 = vpop.f32.mrb[0].mxu0
  %3583 = vdwg.mxu0
  %v3584 = vadd.f32 %v3226, %v3576
  %v3585 = vadd.f32 %v3227, %v3581
  %v3586 = vld [vmem:[%s2 + $0x118] sm:$0x1]
  %v3587 = vlaneseq
  %v3588 = vshrl.u32 %v3587, 7
  %v3589 = vsub.s32 0, %v3588
  %v3590 = vrot.slane %v3586, %v3589
  %v3591 = vadd.f32 %v3584, %v3590
  %v3592 = vadd.f32 %v3585, %v3590
  %v3593 = vadd.f32 %v3591, %v16
  %v3594 = vadd.f32 %v3592, %v17
  %v3595 = vsel %vm86, %v3593, 0.0
  %3596 = vadd.xlane.f32.xlu0 %v3595
  %v3597 = vpop.xlane.xlu0 %3596
  %v3598 = vsel %vm86, %v3594, 0.0
  %3599 = vadd.xlane.f32.xlu0 %v3598
  %v3600 = vpop.xlane.xlu0 %3599
  %v3601 = vmul.f32 %v3597, %v1675
  %v3602 = vmul.f32 %v3600, %v1675
  %v3603 = vsub.f32 %v3593, %v3601
  %v3604 = vsub.f32 %v3594, %v3602
  %v3605 = vmul.f32 %v3603, %v3603
  %v3606 = vmul.f32 %v3604, %v3604
  %v3607 = vsel %vm86, %v3605, 0.0
  %3608 = vadd.xlane.f32.xlu0 %v3607
  %v3609 = vpop.xlane.xlu0 %3608
  %v3610 = vsel %vm86, %v3606, 0.0
  %3611 = vadd.xlane.f32.xlu0 %v3610
  %v3612 = vpop.xlane.xlu0 %3611
  %v3613 = vmul.f32 %v3609, %v1675
  %v3614 = vmul.f32 %v3612, %v1675
  %v3615 = vld [vmem:[%s2 + $0x120] sm:$0x1]
  %v3616 = vadd.f32 %v3613, 1e-05
  %v3617 = vadd.f32 %v3614, 1e-05
  %v3618 = vrsqrt.pop %v3616
  %v3619 = vrsqrt.pop %v3617
  %v3620 = vmul.f32 %v3603, %v3618
  %v3621 = vmul.f32 %v3604, %v3619
  %v3622 = vlaneseq
  %v3623 = vshrl.u32 %v3622, 7
  %v3624 = vsub.s32 0, %v3623
  %v3625 = vrot.slane %v3615, %v3624
  %v3626 = vmul.f32 %v3625, %v3620
  %v3627 = vmul.f32 %v3625, %v3621
  %v3628 = vld [vmem:[%s2 + $0x128] sm:$0x1]
  %v3629 = vlaneseq
  %v3630 = vshrl.u32 %v3629, 7
  %v3631 = vsub.s32 0, %v3630
  %v3632 = vrot.slane %v3628, %v3631
  %v3633 = vadd.f32 %v3626, %v3632
  %v3634 = vadd.f32 %v3627, %v3632
  %v3635 = vld [vmem:[%s1 + $0x150] sm:$0xf]
  %v3636 = vld [vmem:[%s1 + $0x154] sm:$0xf]
  %v3637 = vld [vmem:[%s1 + $0x158] sm:$0xf]
  %v3638 = vld [vmem:[%s1 + $0x15c] sm:$0xf]
  %v3639 = vld [vmem:[%s1 + $0x160] sm:$0xf]
  %v3640 = vld [vmem:[%s1 + $0x164] sm:$0xf]
  %v3641 = vld [vmem:[%s1 + $0x168] sm:$0xf]
  %v3642 = vld [vmem:[%s1 + $0x16c] sm:$0xf]
  %v3643 = vunpack.c.l.bf16 %v3635
  %v3644 = vunpack.c.l.bf16 %v3636
  %v3645 = vunpack.c.l.bf16 %v3637
  %v3646 = vunpack.c.l.bf16 %v3638
  %v3647 = vunpack.c.l.bf16 %v3639
  %v3648 = vunpack.c.l.bf16 %v3640
  %v3649 = vunpack.c.l.bf16 %v3641
  %v3650 = vunpack.c.l.bf16 %v3642
  %v3651 = vld [vmem:[%s2 + $0x150] sm:$0xff]
  %v3652 = vld [vmem:[%s2 + $0x158] sm:$0xff]
  %v3653 = vld [vmem:[%s2 + $0x160] sm:$0xff]
  %v3654 = vld [vmem:[%s2 + $0x168] sm:$0xff]
  %v3655 = vld [vmem:[%s2 + $0x170] sm:$0xff]
  %v3656 = vld [vmem:[%s2 + $0x178] sm:$0xff]
  %v3657 = vld [vmem:[%s2 + $0x180] sm:$0xff]
  %v3658 = vld [vmem:[%s2 + $0x188] sm:$0xff]
  %3660 = vset.pattern.permute.xlu0 0
  %3661 = vperm.xlu0 %3660, %v3651
  %v3662 = vpop.permute.xlu0 %3661
  %3665 = vset.pattern.permute.xlu0 0
  %3666 = vperm.xlu0 %3665, %v3652
  %v3667 = vpop.permute.xlu0 %3666
  %3670 = vset.pattern.permute.xlu0 0
  %3671 = vperm.xlu0 %3670, %v3653
  %v3672 = vpop.permute.xlu0 %3671
  %3675 = vset.pattern.permute.xlu0 0
  %3676 = vperm.xlu0 %3675, %v3654
  %v3677 = vpop.permute.xlu0 %3676
  %3680 = vset.pattern.permute.xlu0 0
  %3681 = vperm.xlu0 %3680, %v3655
  %v3682 = vpop.permute.xlu0 %3681
  %3685 = vset.pattern.permute.xlu0 0
  %3686 = vperm.xlu0 %3685, %v3656
  %v3687 = vpop.permute.xlu0 %3686
  %3690 = vset.pattern.permute.xlu0 0
  %3691 = vperm.xlu0 %3690, %v3657
  %v3692 = vpop.permute.xlu0 %3691
  %3695 = vset.pattern.permute.xlu0 0
  %3696 = vperm.xlu0 %3695, %v3658
  %v3697 = vpop.permute.xlu0 %3696
  %v3700 = vsel %vm86, %v3643, 0
  %v3703 = vsel %vm86, %v3644, 0
  %v3706 = vsel %vm86, %v3645, 0
  %v3709 = vsel %vm86, %v3646, 0
  %v3712 = vsel %vm86, %v3647, 0
  %v3715 = vsel %vm86, %v3648, 0
  %v3718 = vsel %vm86, %v3649, 0
  %v3721 = vsel %vm86, %v3650, 0
  %v3724 = vsel %vm86, %v1949, 0
  %v3727 = vsel %vm86, %v1950, 0
  %3729 = vmatprep.subr.mxu0 0.0
  %3730 = vmatpush1.xpose.msra.mxu0 %v3724
  %3731 = vmatprep.subr.mxu0 0.0
  %3732 = vmatpush1.xpose.msra.mxu0 %v3727
  %3733 = vmatprep.subr.mxu0 0.0
  %3734 = vmatpush1.xpose.msra.mxu0 0.0
  %3735 = vmatprep.subr.mxu0 0.0
  %3736 = vmatpush1.xpose.msra.mxu0 0.0
  %3737 = vmatprep.subr.mxu0 0.0
  %3738 = vmatpush1.xpose.msra.mxu0 0.0
  %3739 = vmatprep.subr.mxu0 0.0
  %3740 = vmatpush1.xpose.msra.mxu0 0.0
  %3741 = vmatprep.subr.mxu0 0.0
  %3742 = vmatpush1.xpose.msra.mxu0 0.0
  %3743 = vmatprep.subr.mxu0 0.0
  %3744 = vmatpush1.xpose.msra.mxu0 0.0
  %3745 = vmatprep.subr.mxu0 0.0
  %3746 = vmatpush1.xpose.msra.mxu0 0.0
  %3747 = vmatprep.subr.mxu0 0.0
  %3748 = vmatpush1.xpose.msra.mxu0 0.0
  %3749 = vmatprep.subr.mxu0 0.0
  %3750 = vmatpush1.xpose.msra.mxu0 0.0
  %3751 = vmatprep.subr.mxu0 0.0
  %3752 = vmatpush1.xpose.msra.mxu0 0.0
  %3753 = vmatprep.subr.mxu0 0.0
  %3754 = vmatpush1.xpose.msra.mxu0 0.0
  %3755 = vmatprep.subr.mxu0 0.0
  %3756 = vmatpush1.xpose.msra.mxu0 0.0
  %3757 = vmatprep.subr.mxu0 0.0
  %3758 = vmatpush1.xpose.msra.mxu0 0.0
  %3759 = vmatprep.subr.mxu0 0.0
  %3760 = vmatpush1.xpose.msra.mxu0 0.0
  %3761 = vmatprep.subr.mxu0 0.0
  %3762 = vmatpush1.xpose.msra.mxu0 0.0
  %3763 = vmatprep.subr.mxu0 0.0
  %3764 = vmatpush1.xpose.msra.mxu0 0.0
  %3765 = vmatprep.subr.mxu0 0.0
  %3766 = vmatpush1.xpose.msra.mxu0 0.0
  %3767 = vmatprep.subr.mxu0 0.0
  %3768 = vmatpush1.xpose.msra.mxu0 0.0
  %3769 = vmatprep.subr.mxu0 0.0
  %3770 = vmatpush1.xpose.msra.mxu0 0.0
  %3771 = vmatprep.subr.mxu0 0.0
  %3772 = vmatpush1.xpose.msra.mxu0 0.0
  %3773 = vmatprep.subr.mxu0 0.0
  %3774 = vmatpush1.xpose.msra.mxu0 0.0
  %3775 = vmatprep.subr.mxu0 0.0
  %3776 = vmatpush1.xpose.msra.mxu0 0.0
  %3777 = vmatprep.subr.mxu0 0.0
  %3778 = vmatpush1.xpose.msra.mxu0 0.0
  %3779 = vmatprep.subr.mxu0 0.0
  %3780 = vmatpush1.xpose.msra.mxu0 0.0
  %3781 = vmatprep.subr.mxu0 0.0
  %3782 = vmatpush1.xpose.msra.mxu0 0.0
  %3783 = vmatprep.subr.mxu0 0.0
  %3784 = vmatpush1.xpose.msra.mxu0 0.0
  %3785 = vmatprep.subr.mxu0 0.0
  %3786 = vmatpush1.xpose.msra.mxu0 0.0
  %3787 = vmatprep.subr.mxu0 0.0
  %3788 = vmatpush1.xpose.msra.mxu0 0.0
  %3789 = vmatprep.subr.mxu0 0.0
  %3790 = vmatpush1.xpose.msra.mxu0 0.0
  %3791 = vmatprep.subr.mxu0 0.0
  %3792 = vmatpush1.xpose.msra.mxu0 0.0
  %3793 = vmatprep.mubr.f32.mxu0 0.0
  %3794 = vmatmul.mubr.f32.gmra.mrb[0].mxu0 %v3700
  %v3795 = vpop.f32.mrb[0].mxu0
  %v3796 = vadd.f32 %v3662, %v3795
  %v3797 = vpop.f32.mrb[0].mxu0
  %3798 = vmatprep.mubr.f32.mxu0 0.0
  %3799 = vmatmul.mubr.f32.gmra.mrb[0].mxu0 %v3703
  %v3800 = vpop.f32.mrb[0].mxu0
  %v3801 = vadd.f32 %v3667, %v3800
  %v3802 = vpop.f32.mrb[0].mxu0
  %3803 = vmatprep.mubr.f32.mxu0 0.0
  %3804 = vmatmul.mubr.f32.gmra.mrb[0].mxu0 %v3706
  %v3805 = vpop.f32.mrb[0].mxu0
  %v3806 = vadd.f32 %v3672, %v3805
  %v3807 = vpop.f32.mrb[0].mxu0
  %3808 = vmatprep.mubr.f32.mxu0 0.0
  %3809 = vmatmul.mubr.f32.gmra.mrb[0].mxu0 %v3709
  %v3810 = vpop.f32.mrb[0].mxu0
  %v3811 = vadd.f32 %v3677, %v3810
  %v3812 = vpop.f32.mrb[0].mxu0
  %3813 = vmatprep.mubr.f32.mxu0 0.0
  %3814 = vmatmul.mubr.f32.gmra.mrb[0].mxu0 %v3712
  %v3815 = vpop.f32.mrb[0].mxu0
  %v3816 = vadd.f32 %v3682, %v3815
  %v3817 = vpop.f32.mrb[0].mxu0
  %3818 = vmatprep.mubr.f32.mxu0 0.0
  %3819 = vmatmul.mubr.f32.gmra.mrb[0].mxu0 %v3715
  %v3820 = vpop.f32.mrb[0].mxu0
  %v3821 = vadd.f32 %v3687, %v3820
  %v3822 = vpop.f32.mrb[0].mxu0
  %3823 = vmatprep.mubr.f32.mxu0 0.0
  %3824 = vmatmul.mubr.f32.gmra.mrb[0].mxu0 %v3718
  %v3825 = vpop.f32.mrb[0].mxu0
  %v3826 = vadd.f32 %v3692, %v3825
  %v3827 = vpop.f32.mrb[0].mxu0
  %3828 = vmatprep.mubr.f32.mxu0 0.0
  %3829 = vmatmul.mubr.f32.gmra.mrb[0].mxu0 %v3721
  %v3830 = vpop.f32.mrb[0].mxu0
  %v3831 = vadd.f32 %v3697, %v3830
  %v3832 = vpop.f32.mrb[0].mxu0
  %3833 = vdwg.mxu0
  %v3834 = vld [vmem:[%s1 + $0x170] sm:$0xf]
  %v3835 = vld [vmem:[%s1 + $0x174] sm:$0xf]
  %v3836 = vld [vmem:[%s1 + $0x178] sm:$0xf]
  %v3837 = vld [vmem:[%s1 + $0x17c] sm:$0xf]
  %v3838 = vunpack.c.l.bf16 %v3834
  %v3839 = vunpack.c.l.bf16 %v3835
  %v3840 = vunpack.c.l.bf16 %v3836
  %v3841 = vunpack.c.l.bf16 %v3837
  %v3842 = vld [vmem:[%s1 + $0x110] sm:$0xf]
  %v3843 = vld [vmem:[%s1 + $0x114] sm:$0xf]
  %v3844 = vld [vmem:[%s1 + $0x118] sm:$0xf]
  %v3845 = vld [vmem:[%s1 + $0x11c] sm:$0xf]
  %v3846 = vunpack.c.l.bf16 %v3842
  %v3847 = vunpack.c.l.bf16 %v3843
  %v3848 = vunpack.c.l.bf16 %v3844
  %v3849 = vunpack.c.l.bf16 %v3845
  %v3850 = vld [vmem:[%s2 + $0x130] sm:$0x1]
  %v3851 = vlaneseq
  %v3852 = vshrl.u32 %v3851, 7
  %v3853 = vsub.s32 0, %v3852
  %v3854 = vrot.slane %v3850, %v3853
  %v3856 = vsel %vm86, %v3633, 0
  %v3859 = vsel %vm86, %v3634, 0
  %3861 = vmatprep.subr.mxu0 0.0
  %3862 = vmatpush1.msra.mxu0 %v3846
  %3863 = vmatprep.subr.mxu0 0.0
  %3864 = vmatpush1.msra.mxu0 %v3847
  %3865 = vmatprep.subr.mxu0 0.0
  %3866 = vmatpush1.msra.mxu0 %v3848
  %3867 = vmatprep.subr.mxu0 0.0
  %3868 = vmatpush1.msra.mxu0 %v3849
  %3869 = vmatprep.subr.mxu0 0.0
  %3870 = vmatpush1.msra.mxu0 0.0
  %3871 = vmatprep.subr.mxu0 0.0
  %3872 = vmatpush1.msra.mxu0 0.0
  %3873 = vmatprep.subr.mxu0 0.0
  %3874 = vmatpush1.msra.mxu0 0.0
  %3875 = vmatprep.subr.mxu0 0.0
  %3876 = vmatpush1.msra.mxu0 0.0
  %3877 = vmatprep.subr.mxu0 0.0
  %3878 = vmatpush1.msra.mxu0 0.0
  %3879 = vmatprep.subr.mxu0 0.0
  %3880 = vmatpush1.msra.mxu0 0.0
  %3881 = vmatprep.subr.mxu0 0.0
  %3882 = vmatpush1.msra.mxu0 0.0
  %3883 = vmatprep.subr.mxu0 0.0
  %3884 = vmatpush1.msra.mxu0 0.0
  %3885 = vmatprep.subr.mxu0 0.0
  %3886 = vmatpush1.msra.mxu0 0.0
  %3887 = vmatprep.subr.mxu0 0.0
  %3888 = vmatpush1.msra.mxu0 0.0
  %3889 = vmatprep.subr.mxu0 0.0
  %3890 = vmatpush1.msra.mxu0 0.0
  %3891 = vmatprep.subr.mxu0 0.0
  %3892 = vmatpush1.msra.mxu0 0.0
  %3893 = vmatprep.subr.mxu0 0.0
  %3894 = vmatpush1.msra.mxu0 0.0
  %3895 = vmatprep.subr.mxu0 0.0
  %3896 = vmatpush1.msra.mxu0 0.0
  %3897 = vmatprep.subr.mxu0 0.0
  %3898 = vmatpush1.msra.mxu0 0.0
  %3899 = vmatprep.subr.mxu0 0.0
  %3900 = vmatpush1.msra.mxu0 0.0
  %3901 = vmatprep.subr.mxu0 0.0
  %3902 = vmatpush1.msra.mxu0 0.0
  %3903 = vmatprep.subr.mxu0 0.0
  %3904 = vmatpush1.msra.mxu0 0.0
  %3905 = vmatprep.subr.mxu0 0.0
  %3906 = vmatpush1.msra.mxu0 0.0
  %3907 = vmatprep.subr.mxu0 0.0
  %3908 = vmatpush1.msra.mxu0 0.0
  %3909 = vmatprep.subr.mxu0 0.0
  %3910 = vmatpush1.msra.mxu0 0.0
  %3911 = vmatprep.subr.mxu0 0.0
  %3912 = vmatpush1.msra.mxu0 0.0
  %3913 = vmatprep.subr.mxu0 0.0
  %3914 = vmatpush1.msra.mxu0 0.0
  %3915 = vmatprep.subr.mxu0 0.0
  %3916 = vmatpush1.msra.mxu0 0.0
  %3917 = vmatprep.subr.mxu0 0.0
  %3918 = vmatpush1.msra.mxu0 0.0
  %3919 = vmatprep.subr.mxu0 0.0
  %3920 = vmatpush1.msra.mxu0 0.0
  %3921 = vmatprep.subr.mxu0 0.0
  %3922 = vmatpush1.msra.mxu0 0.0
  %3923 = vmatprep.subr.mxu0 0.0
  %3924 = vmatpush1.msra.mxu0 0.0
  %3925 = vmatprep.mubr.f32.mxu0 0.0
  %3926 = vmatmul.mubr.f32.gmra.mrb[0].mxu0 %v3856
  %v3927 = vpop.f32.mrb[0].mxu0
  %v3928 = vadd.f32 %v3854, %v3927
  %v3929 = vpop.f32.mrb[0].mxu0
  %3930 = vmatprep.mubr.f32.mxu0 0.0
  %3931 = vmatmul.mubr.f32.gmra.mrb[0].mxu0 %v3859
  %v3932 = vpop.f32.mrb[0].mxu0
  %v3933 = vadd.f32 %v3854, %v3932
  %v3934 = vpop.f32.mrb[0].mxu0
  %3935 = vdwg.mxu0
  %v3937 = vsel %vm318, %v3928, 0
  %v3940 = vsel %vm318, %v3933, 0
  %3942 = vmatprep.subr.mxu0 0.0
  %3943 = vmatpush1.msra.mxu0 %v3796
  %3944 = vmatprep.subr.mxu0 0.0
  %3945 = vmatpush1.msra.mxu0 0.0
  %3946 = vmatprep.subr.mxu0 0.0
  %3947 = vmatpush1.msra.mxu0 0.0
  %3948 = vmatprep.subr.mxu0 0.0
  %3949 = vmatpush1.msra.mxu0 0.0
  %3950 = vmatprep.subr.mxu0 0.0
  %3951 = vmatpush1.msra.mxu0 0.0
  %3952 = vmatprep.subr.mxu0 0.0
  %3953 = vmatpush1.msra.mxu0 0.0
  %3954 = vmatprep.subr.mxu0 0.0
  %3955 = vmatpush1.msra.mxu0 0.0
  %3956 = vmatprep.subr.mxu0 0.0
  %3957 = vmatpush1.msra.mxu0 0.0
  %3958 = vmatprep.subr.mxu0 0.0
  %3959 = vmatpush1.msra.mxu0 0.0
  %3960 = vmatprep.subr.mxu0 0.0
  %3961 = vmatpush1.msra.mxu0 0.0
  %3962 = vmatprep.subr.mxu0 0.0
  %3963 = vmatpush1.msra.mxu0 0.0
  %3964 = vmatprep.subr.mxu0 0.0
  %3965 = vmatpush1.msra.mxu0 0.0
  %3966 = vmatprep.subr.mxu0 0.0
  %3967 = vmatpush1.msra.mxu0 0.0
  %3968 = vmatprep.subr.mxu0 0.0
  %3969 = vmatpush1.msra.mxu0 0.0
  %3970 = vmatprep.subr.mxu0 0.0
  %3971 = vmatpush1.msra.mxu0 0.0
  %3972 = vmatprep.subr.mxu0 0.0
  %3973 = vmatpush1.msra.mxu0 0.0
  %3974 = vmatprep.subr.mxu0 0.0
  %3975 = vmatpush1.msra.mxu0 0.0
  %3976 = vmatprep.subr.mxu0 0.0
  %3977 = vmatpush1.msra.mxu0 0.0
  %3978 = vmatprep.subr.mxu0 0.0
  %3979 = vmatpush1.msra.mxu0 0.0
  %3980 = vmatprep.subr.mxu0 0.0
  %3981 = vmatpush1.msra.mxu0 0.0
  %3982 = vmatprep.subr.mxu0 0.0
  %3983 = vmatpush1.msra.mxu0 0.0
  %3984 = vmatprep.subr.mxu0 0.0
  %3985 = vmatpush1.msra.mxu0 0.0
  %3986 = vmatprep.subr.mxu0 0.0
  %3987 = vmatpush1.msra.mxu0 0.0
  %3988 = vmatprep.subr.mxu0 0.0
  %3989 = vmatpush1.msra.mxu0 0.0
  %3990 = vmatprep.subr.mxu0 0.0
  %3991 = vmatpush1.msra.mxu0 0.0
  %3992 = vmatprep.subr.mxu0 0.0
  %3993 = vmatpush1.msra.mxu0 0.0
  %3994 = vmatprep.subr.mxu0 0.0
  %3995 = vmatpush1.msra.mxu0 0.0
  %3996 = vmatprep.subr.mxu0 0.0
  %3997 = vmatpush1.msra.mxu0 0.0
  %3998 = vmatprep.subr.mxu0 0.0
  %3999 = vmatpush1.msra.mxu0 0.0
  %4000 = vmatprep.subr.mxu0 0.0
  %4001 = vmatpush1.msra.mxu0 0.0
  %4002 = vmatprep.subr.mxu0 0.0
  %4003 = vmatpush1.msra.mxu0 0.0
  %4004 = vmatprep.subr.mxu0 0.0
  %4005 = vmatpush1.msra.mxu0 0.0
  %4006 = vmatprep.mubr.f32.mxu0 0.0
  %4007 = vmatmul.mubr.f32.gmra.mrb[0].mxu0 %v3937
  %v4008 = vpop.f32.mrb[0].mxu0
  %v4009 = vadd.f32 %v18, %v4008
  %v4010 = vpop.f32.mrb[0].mxu0
  %4011 = vmatprep.mubr.f32.mxu0 0.0
  %4012 = vmatmul.mubr.f32.gmra.mrb[0].mxu0 %v3940
  %v4013 = vpop.f32.mrb[0].mxu0
  %v4014 = vadd.f32 %v19, %v4013
  %v4015 = vpop.f32.mrb[0].mxu0
  %4016 = vdwg.mxu0
  %v4017 = vsel %vm400, %v4009, -inf
  %4018 = vmax.xlane.f32.xlu0 %v4017
  %v4019 = vpop.xlane.xlu0 %4018
  %v4020 = vsel %vm400, %v4014, -inf
  %4021 = vmax.xlane.f32.xlu0 %v4020
  %v4022 = vpop.xlane.xlu0 %4021
  %v4023 = vsub.f32 %v4009, %v4019
  %v4024 = vsub.f32 %v4014, %v4022
  %v4025 = vmul.f32 %v4023, 1.442695
  %v4026 = vpow.pop %v4025
  %v4027 = vmul.f32 %v4024, 1.442695
  %v4028 = vpow.pop %v4027
  %v4029 = vsel %vm400, %v4026, 0.0
  %4030 = vadd.xlane.f32.xlu0 %v4029
  %v4031 = vpop.xlane.xlu0 %4030
  %v4032 = vsel %vm400, %v4028, 0.0
  %4033 = vadd.xlane.f32.xlu0 %v4032
  %v4034 = vpop.xlane.xlu0 %4033
  %v4035 = vrcp.pop %v4031
  %v4036 = vrcp.pop %v4034
  %v4037 = vmul.f32 %v4026, %v4035
  %v4038 = vmul.f32 %v4028, %v4036
  %v4040 = vsel %vm400, %v4037, 0
  %v4043 = vsel %vm400, %v4038, 0
  %v4046 = vsel %vm400, %v3801, 0
  %4048 = vmatprep.subr.mxu0 0.0
  %4049 = vmatpush1.xpose.msra.mxu0 %v4046
  %4050 = vmatprep.subr.mxu0 0.0
  %4051 = vmatpush1.xpose.msra.mxu0 0.0
  %4052 = vmatprep.subr.mxu0 0.0
  %4053 = vmatpush1.xpose.msra.mxu0 0.0
  %4054 = vmatprep.subr.mxu0 0.0
  %4055 = vmatpush1.xpose.msra.mxu0 0.0
  %4056 = vmatprep.subr.mxu0 0.0
  %4057 = vmatpush1.xpose.msra.mxu0 0.0
  %4058 = vmatprep.subr.mxu0 0.0
  %4059 = vmatpush1.xpose.msra.mxu0 0.0
  %4060 = vmatprep.subr.mxu0 0.0
  %4061 = vmatpush1.xpose.msra.mxu0 0.0
  %4062 = vmatprep.subr.mxu0 0.0
  %4063 = vmatpush1.xpose.msra.mxu0 0.0
  %4064 = vmatprep.subr.mxu0 0.0
  %4065 = vmatpush1.xpose.msra.mxu0 0.0
  %4066 = vmatprep.subr.mxu0 0.0
  %4067 = vmatpush1.xpose.msra.mxu0 0.0
  %4068 = vmatprep.subr.mxu0 0.0
  %4069 = vmatpush1.xpose.msra.mxu0 0.0
  %4070 = vmatprep.subr.mxu0 0.0
  %4071 = vmatpush1.xpose.msra.mxu0 0.0
  %4072 = vmatprep.subr.mxu0 0.0
  %4073 = vmatpush1.xpose.msra.mxu0 0.0
  %4074 = vmatprep.subr.mxu0 0.0
  %4075 = vmatpush1.xpose.msra.mxu0 0.0
  %4076 = vmatprep.subr.mxu0 0.0
  %4077 = vmatpush1.xpose.msra.mxu0 0.0
  %4078 = vmatprep.subr.mxu0 0.0
  %4079 = vmatpush1.xpose.msra.mxu0 0.0
  %4080 = vmatprep.subr.mxu0 0.0
  %4081 = vmatpush1.xpose.msra.mxu0 0.0
  %4082 = vmatprep.subr.mxu0 0.0
  %4083 = vmatpush1.xpose.msra.mxu0 0.0
  %4084 = vmatprep.subr.mxu0 0.0
  %4085 = vmatpush1.xpose.msra.mxu0 0.0
  %4086 = vmatprep.subr.mxu0 0.0
  %4087 = vmatpush1.xpose.msra.mxu0 0.0
  %4088 = vmatprep.subr.mxu0 0.0
  %4089 = vmatpush1.xpose.msra.mxu0 0.0
  %4090 = vmatprep.subr.mxu0 0.0
  %4091 = vmatpush1.xpose.msra.mxu0 0.0
  %4092 = vmatprep.subr.mxu0 0.0
  %4093 = vmatpush1.xpose.msra.mxu0 0.0
  %4094 = vmatprep.subr.mxu0 0.0
  %4095 = vmatpush1.xpose.msra.mxu0 0.0
  %4096 = vmatprep.subr.mxu0 0.0
  %4097 = vmatpush1.xpose.msra.mxu0 0.0
  %4098 = vmatprep.subr.mxu0 0.0
  %4099 = vmatpush1.xpose.msra.mxu0 0.0
  %4100 = vmatprep.subr.mxu0 0.0
  %4101 = vmatpush1.xpose.msra.mxu0 0.0
  %4102 = vmatprep.subr.mxu0 0.0
  %4103 = vmatpush1.xpose.msra.mxu0 0.0
  %4104 = vmatprep.subr.mxu0 0.0
  %4105 = vmatpush1.xpose.msra.mxu0 0.0
  %4106 = vmatprep.subr.mxu0 0.0
  %4107 = vmatpush1.xpose.msra.mxu0 0.0
  %4108 = vmatprep.subr.mxu0 0.0
  %4109 = vmatpush1.xpose.msra.mxu0 0.0
  %4110 = vmatprep.subr.mxu0 0.0
  %4111 = vmatpush1.xpose.msra.mxu0 0.0
  %4112 = vmatprep.mubr.f32.mxu0 0.0
  %4113 = vmatmul.mubr.f32.gmra.mrb[0].mxu0 %v4040
  %v4114 = vpop.f32.mrb[0].mxu0
  %v4115 = vadd.f32 0.0, %v4114
  %v4116 = vpop.f32.mrb[0].mxu0
  %4117 = vmatprep.mubr.f32.mxu0 0.0
  %4118 = vmatmul.mubr.f32.gmra.mrb[0].mxu0 %v4043
  %v4119 = vpop.f32.mrb[0].mxu0
  %v4120 = vadd.f32 0.0, %v4119
  %v4121 = vpop.f32.mrb[0].mxu0
  %4122 = vdwg.mxu0
  %v4123 = vld [vmem:[%s1 + $0x120] sm:$0xf]
  %v4124 = vld [vmem:[%s1 + $0x124] sm:$0xf]
  %v4125 = vld [vmem:[%s1 + $0x128] sm:$0xf]
  %v4126 = vld [vmem:[%s1 + $0x12c] sm:$0xf]
  %v4127 = vunpack.c.l.bf16 %v4123
  %v4128 = vunpack.c.l.bf16 %v4124
  %v4129 = vunpack.c.l.bf16 %v4125
  %v4130 = vunpack.c.l.bf16 %v4126
  %v4131 = vld [vmem:[%s2 + $0x138] sm:$0x1]
  %v4132 = vlaneseq
  %v4133 = vshrl.u32 %v4132, 7
  %v4134 = vsub.s32 0, %v4133
  %v4135 = vrot.slane %v4131, %v4134
  %4136 = vmatprep.subr.mxu0 0.0
  %4137 = vmatpush1.msra.mxu0 %v4127
  %4138 = vmatprep.subr.mxu0 0.0
  %4139 = vmatpush1.msra.mxu0 %v4128
  %4140 = vmatprep.subr.mxu0 0.0
  %4141 = vmatpush1.msra.mxu0 %v4129
  %4142 = vmatprep.subr.mxu0 0.0
  %4143 = vmatpush1.msra.mxu0 %v4130
  %4144 = vmatprep.subr.mxu0 0.0
  %4145 = vmatpush1.msra.mxu0 0.0
  %4146 = vmatprep.subr.mxu0 0.0
  %4147 = vmatpush1.msra.mxu0 0.0
  %4148 = vmatprep.subr.mxu0 0.0
  %4149 = vmatpush1.msra.mxu0 0.0
  %4150 = vmatprep.subr.mxu0 0.0
  %4151 = vmatpush1.msra.mxu0 0.0
  %4152 = vmatprep.subr.mxu0 0.0
  %4153 = vmatpush1.msra.mxu0 0.0
  %4154 = vmatprep.subr.mxu0 0.0
  %4155 = vmatpush1.msra.mxu0 0.0
  %4156 = vmatprep.subr.mxu0 0.0
  %4157 = vmatpush1.msra.mxu0 0.0
  %4158 = vmatprep.subr.mxu0 0.0
  %4159 = vmatpush1.msra.mxu0 0.0
  %4160 = vmatprep.subr.mxu0 0.0
  %4161 = vmatpush1.msra.mxu0 0.0
  %4162 = vmatprep.subr.mxu0 0.0
  %4163 = vmatpush1.msra.mxu0 0.0
  %4164 = vmatprep.subr.mxu0 0.0
  %4165 = vmatpush1.msra.mxu0 0.0
  %4166 = vmatprep.subr.mxu0 0.0
  %4167 = vmatpush1.msra.mxu0 0.0
  %4168 = vmatprep.subr.mxu0 0.0
  %4169 = vmatpush1.msra.mxu0 0.0
  %4170 = vmatprep.subr.mxu0 0.0
  %4171 = vmatpush1.msra.mxu0 0.0
  %4172 = vmatprep.subr.mxu0 0.0
  %4173 = vmatpush1.msra.mxu0 0.0
  %4174 = vmatprep.subr.mxu0 0.0
  %4175 = vmatpush1.msra.mxu0 0.0
  %4176 = vmatprep.subr.mxu0 0.0
  %4177 = vmatpush1.msra.mxu0 0.0
  %4178 = vmatprep.subr.mxu0 0.0
  %4179 = vmatpush1.msra.mxu0 0.0
  %4180 = vmatprep.subr.mxu0 0.0
  %4181 = vmatpush1.msra.mxu0 0.0
  %4182 = vmatprep.subr.mxu0 0.0
  %4183 = vmatpush1.msra.mxu0 0.0
  %4184 = vmatprep.subr.mxu0 0.0
  %4185 = vmatpush1.msra.mxu0 0.0
  %4186 = vmatprep.subr.mxu0 0.0
  %4187 = vmatpush1.msra.mxu0 0.0
  %4188 = vmatprep.subr.mxu0 0.0
  %4189 = vmatpush1.msra.mxu0 0.0
  %4190 = vmatprep.subr.mxu0 0.0
  %4191 = vmatpush1.msra.mxu0 0.0
  %4192 = vmatprep.subr.mxu0 0.0
  %4193 = vmatpush1.msra.mxu0 0.0
  %4194 = vmatprep.subr.mxu0 0.0
  %4195 = vmatpush1.msra.mxu0 0.0
  %4196 = vmatprep.subr.mxu0 0.0
  %4197 = vmatpush1.msra.mxu0 0.0
  %4198 = vmatprep.subr.mxu0 0.0
  %4199 = vmatpush1.msra.mxu0 0.0
  %4200 = vmatprep.mubr.f32.mxu0 0.0
  %4201 = vmatmul.mubr.f32.gmra.mrb[0].mxu0 %v3856
  %v4202 = vpop.f32.mrb[0].mxu0
  %v4203 = vadd.f32 %v4135, %v4202
  %v4204 = vpop.f32.mrb[0].mxu0
  %4205 = vmatprep.mubr.f32.mxu0 0.0
  %4206 = vmatmul.mubr.f32.gmra.mrb[0].mxu0 %v3859
  %v4207 = vpop.f32.mrb[0].mxu0
  %v4208 = vadd.f32 %v4135, %v4207
  %v4209 = vpop.f32.mrb[0].mxu0
  %4210 = vdwg.mxu0
  %v4212 = vsel %vm318, %v4203, 0
  %v4215 = vsel %vm318, %v4208, 0
  %4217 = vmatprep.subr.mxu0 0.0
  %4218 = vmatpush1.msra.mxu0 %v3806
  %4219 = vmatprep.subr.mxu0 0.0
  %4220 = vmatpush1.msra.mxu0 0.0
  %4221 = vmatprep.subr.mxu0 0.0
  %4222 = vmatpush1.msra.mxu0 0.0
  %4223 = vmatprep.subr.mxu0 0.0
  %4224 = vmatpush1.msra.mxu0 0.0
  %4225 = vmatprep.subr.mxu0 0.0
  %4226 = vmatpush1.msra.mxu0 0.0
  %4227 = vmatprep.subr.mxu0 0.0
  %4228 = vmatpush1.msra.mxu0 0.0
  %4229 = vmatprep.subr.mxu0 0.0
  %4230 = vmatpush1.msra.mxu0 0.0
  %4231 = vmatprep.subr.mxu0 0.0
  %4232 = vmatpush1.msra.mxu0 0.0
  %4233 = vmatprep.subr.mxu0 0.0
  %4234 = vmatpush1.msra.mxu0 0.0
  %4235 = vmatprep.subr.mxu0 0.0
  %4236 = vmatpush1.msra.mxu0 0.0
  %4237 = vmatprep.subr.mxu0 0.0
  %4238 = vmatpush1.msra.mxu0 0.0
  %4239 = vmatprep.subr.mxu0 0.0
  %4240 = vmatpush1.msra.mxu0 0.0
  %4241 = vmatprep.subr.mxu0 0.0
  %4242 = vmatpush1.msra.mxu0 0.0
  %4243 = vmatprep.subr.mxu0 0.0
  %4244 = vmatpush1.msra.mxu0 0.0
  %4245 = vmatprep.subr.mxu0 0.0
  %4246 = vmatpush1.msra.mxu0 0.0
  %4247 = vmatprep.subr.mxu0 0.0
  %4248 = vmatpush1.msra.mxu0 0.0
  %4249 = vmatprep.subr.mxu0 0.0
  %4250 = vmatpush1.msra.mxu0 0.0
  %4251 = vmatprep.subr.mxu0 0.0
  %4252 = vmatpush1.msra.mxu0 0.0
  %4253 = vmatprep.subr.mxu0 0.0
  %4254 = vmatpush1.msra.mxu0 0.0
  %4255 = vmatprep.subr.mxu0 0.0
  %4256 = vmatpush1.msra.mxu0 0.0
  %4257 = vmatprep.subr.mxu0 0.0
  %4258 = vmatpush1.msra.mxu0 0.0
  %4259 = vmatprep.subr.mxu0 0.0
  %4260 = vmatpush1.msra.mxu0 0.0
  %4261 = vmatprep.subr.mxu0 0.0
  %4262 = vmatpush1.msra.mxu0 0.0
  %4263 = vmatprep.subr.mxu0 0.0
  %4264 = vmatpush1.msra.mxu0 0.0
  %4265 = vmatprep.subr.mxu0 0.0
  %4266 = vmatpush1.msra.mxu0 0.0
  %4267 = vmatprep.subr.mxu0 0.0
  %4268 = vmatpush1.msra.mxu0 0.0
  %4269 = vmatprep.subr.mxu0 0.0
  %4270 = vmatpush1.msra.mxu0 0.0
  %4271 = vmatprep.subr.mxu0 0.0
  %4272 = vmatpush1.msra.mxu0 0.0
  %4273 = vmatprep.subr.mxu0 0.0
  %4274 = vmatpush1.msra.mxu0 0.0
  %4275 = vmatprep.subr.mxu0 0.0
  %4276 = vmatpush1.msra.mxu0 0.0
  %4277 = vmatprep.subr.mxu0 0.0
  %4278 = vmatpush1.msra.mxu0 0.0
  %4279 = vmatprep.subr.mxu0 0.0
  %4280 = vmatpush1.msra.mxu0 0.0
  %4281 = vmatprep.mubr.f32.mxu0 0.0
  %4282 = vmatmul.mubr.f32.gmra.mrb[0].mxu0 %v4212
  %v4283 = vpop.f32.mrb[0].mxu0
  %v4284 = vadd.f32 %v18, %v4283
  %v4285 = vpop.f32.mrb[0].mxu0
  %4286 = vmatprep.mubr.f32.mxu0 0.0
  %4287 = vmatmul.mubr.f32.gmra.mrb[0].mxu0 %v4215
  %v4288 = vpop.f32.mrb[0].mxu0
  %v4289 = vadd.f32 %v19, %v4288
  %v4290 = vpop.f32.mrb[0].mxu0
  %4291 = vdwg.mxu0
  %v4292 = vsel %vm400, %v4284, -inf
  %4293 = vmax.xlane.f32.xlu0 %v4292
  %v4294 = vpop.xlane.xlu0 %4293
  %v4295 = vsel %vm400, %v4289, -inf
  %4296 = vmax.xlane.f32.xlu0 %v4295
  %v4297 = vpop.xlane.xlu0 %4296
  %v4298 = vsub.f32 %v4284, %v4294
  %v4299 = vsub.f32 %v4289, %v4297
  %v4300 = vmul.f32 %v4298, 1.442695
  %v4301 = vpow.pop %v4300
  %v4302 = vmul.f32 %v4299, 1.442695
  %v4303 = vpow.pop %v4302
  %v4304 = vsel %vm400, %v4301, 0.0
  %4305 = vadd.xlane.f32.xlu0 %v4304
  %v4306 = vpop.xlane.xlu0 %4305
  %v4307 = vsel %vm400, %v4303, 0.0
  %4308 = vadd.xlane.f32.xlu0 %v4307
  %v4309 = vpop.xlane.xlu0 %4308
  %v4310 = vrcp.pop %v4306
  %v4311 = vrcp.pop %v4309
  %v4312 = vmul.f32 %v4301, %v4310
  %v4313 = vmul.f32 %v4303, %v4311
  %v4315 = vsel %vm400, %v4312, 0
  %v4318 = vsel %vm400, %v4313, 0
  %v4321 = vsel %vm400, %v3811, 0
  %4323 = vmatprep.subr.mxu0 0.0
  %4324 = vmatpush1.xpose.msra.mxu0 %v4321
  %4325 = vmatprep.subr.mxu0 0.0
  %4326 = vmatpush1.xpose.msra.mxu0 0.0
  %4327 = vmatprep.subr.mxu0 0.0
  %4328 = vmatpush1.xpose.msra.mxu0 0.0
  %4329 = vmatprep.subr.mxu0 0.0
  %4330 = vmatpush1.xpose.msra.mxu0 0.0
  %4331 = vmatprep.subr.mxu0 0.0
  %4332 = vmatpush1.xpose.msra.mxu0 0.0
  %4333 = vmatprep.subr.mxu0 0.0
  %4334 = vmatpush1.xpose.msra.mxu0 0.0
  %4335 = vmatprep.subr.mxu0 0.0
  %4336 = vmatpush1.xpose.msra.mxu0 0.0
  %4337 = vmatprep.subr.mxu0 0.0
  %4338 = vmatpush1.xpose.msra.mxu0 0.0
  %4339 = vmatprep.subr.mxu0 0.0
  %4340 = vmatpush1.xpose.msra.mxu0 0.0
  %4341 = vmatprep.subr.mxu0 0.0
  %4342 = vmatpush1.xpose.msra.mxu0 0.0
  %4343 = vmatprep.subr.mxu0 0.0
  %4344 = vmatpush1.xpose.msra.mxu0 0.0
  %4345 = vmatprep.subr.mxu0 0.0
  %4346 = vmatpush1.xpose.msra.mxu0 0.0
  %4347 = vmatprep.subr.mxu0 0.0
  %4348 = vmatpush1.xpose.msra.mxu0 0.0
  %4349 = vmatprep.subr.mxu0 0.0
  %4350 = vmatpush1.xpose.msra.mxu0 0.0
  %4351 = vmatprep.subr.mxu0 0.0
  %4352 = vmatpush1.xpose.msra.mxu0 0.0
  %4353 = vmatprep.subr.mxu0 0.0
  %4354 = vmatpush1.xpose.msra.mxu0 0.0
  %4355 = vmatprep.subr.mxu0 0.0
  %4356 = vmatpush1.xpose.msra.mxu0 0.0
  %4357 = vmatprep.subr.mxu0 0.0
  %4358 = vmatpush1.xpose.msra.mxu0 0.0
  %4359 = vmatprep.subr.mxu0 0.0
  %4360 = vmatpush1.xpose.msra.mxu0 0.0
  %4361 = vmatprep.subr.mxu0 0.0
  %4362 = vmatpush1.xpose.msra.mxu0 0.0
  %4363 = vmatprep.subr.mxu0 0.0
  %4364 = vmatpush1.xpose.msra.mxu0 0.0
  %4365 = vmatprep.subr.mxu0 0.0
  %4366 = vmatpush1.xpose.msra.mxu0 0.0
  %4367 = vmatprep.subr.mxu0 0.0
  %4368 = vmatpush1.xpose.msra.mxu0 0.0
  %4369 = vmatprep.subr.mxu0 0.0
  %4370 = vmatpush1.xpose.msra.mxu0 0.0
  %4371 = vmatprep.subr.mxu0 0.0
  %4372 = vmatpush1.xpose.msra.mxu0 0.0
  %4373 = vmatprep.subr.mxu0 0.0
  %4374 = vmatpush1.xpose.msra.mxu0 0.0
  %4375 = vmatprep.subr.mxu0 0.0
  %4376 = vmatpush1.xpose.msra.mxu0 0.0
  %4377 = vmatprep.subr.mxu0 0.0
  %4378 = vmatpush1.xpose.msra.mxu0 0.0
  %4379 = vmatprep.subr.mxu0 0.0
  %4380 = vmatpush1.xpose.msra.mxu0 0.0
  %4381 = vmatprep.subr.mxu0 0.0
  %4382 = vmatpush1.xpose.msra.mxu0 0.0
  %4383 = vmatprep.subr.mxu0 0.0
  %4384 = vmatpush1.xpose.msra.mxu0 0.0
  %4385 = vmatprep.subr.mxu0 0.0
  %4386 = vmatpush1.xpose.msra.mxu0 0.0
  %4387 = vmatprep.mubr.f32.mxu0 0.0
  %4388 = vmatmul.mubr.f32.gmra.mrb[0].mxu0 %v4315
  %v4389 = vpop.f32.mrb[0].mxu0
  %v4390 = vadd.f32 0.0, %v4389
  %v4391 = vpop.f32.mrb[0].mxu0
  %4392 = vmatprep.mubr.f32.mxu0 0.0
  %4393 = vmatmul.mubr.f32.gmra.mrb[0].mxu0 %v4318
  %v4394 = vpop.f32.mrb[0].mxu0
  %v4395 = vadd.f32 0.0, %v4394
  %v4396 = vpop.f32.mrb[0].mxu0
  %4397 = vdwg.mxu0
  %v4399 = vsel %vm318, %v4390, 0
  %v4402 = vsel %vm318, %v4395, 0
  %4404 = vmatprep.subr.mxu0 0.0
  %4405 = vmatpush1.msra.mxu0 %v3839
  %4406 = vmatprep.subr.mxu0 0.0
  %4407 = vmatpush1.msra.mxu0 0.0
  %4408 = vmatprep.subr.mxu0 0.0
  %4409 = vmatpush1.msra.mxu0 0.0
  %4410 = vmatprep.subr.mxu0 0.0
  %4411 = vmatpush1.msra.mxu0 0.0
  %4412 = vmatprep.subr.mxu0 0.0
  %4413 = vmatpush1.msra.mxu0 0.0
  %4414 = vmatprep.subr.mxu0 0.0
  %4415 = vmatpush1.msra.mxu0 0.0
  %4416 = vmatprep.subr.mxu0 0.0
  %4417 = vmatpush1.msra.mxu0 0.0
  %4418 = vmatprep.subr.mxu0 0.0
  %4419 = vmatpush1.msra.mxu0 0.0
  %4420 = vmatprep.subr.mxu0 0.0
  %4421 = vmatpush1.msra.mxu0 0.0
  %4422 = vmatprep.subr.mxu0 0.0
  %4423 = vmatpush1.msra.mxu0 0.0
  %4424 = vmatprep.subr.mxu0 0.0
  %4425 = vmatpush1.msra.mxu0 0.0
  %4426 = vmatprep.subr.mxu0 0.0
  %4427 = vmatpush1.msra.mxu0 0.0
  %4428 = vmatprep.subr.mxu0 0.0
  %4429 = vmatpush1.msra.mxu0 0.0
  %4430 = vmatprep.subr.mxu0 0.0
  %4431 = vmatpush1.msra.mxu0 0.0
  %4432 = vmatprep.subr.mxu0 0.0
  %4433 = vmatpush1.msra.mxu0 0.0
  %4434 = vmatprep.subr.mxu0 0.0
  %4435 = vmatpush1.msra.mxu0 0.0
  %4436 = vmatprep.subr.mxu0 0.0
  %4437 = vmatpush1.msra.mxu0 0.0
  %4438 = vmatprep.subr.mxu0 0.0
  %4439 = vmatpush1.msra.mxu0 0.0
  %4440 = vmatprep.subr.mxu0 0.0
  %4441 = vmatpush1.msra.mxu0 0.0
  %4442 = vmatprep.subr.mxu0 0.0
  %4443 = vmatpush1.msra.mxu0 0.0
  %4444 = vmatprep.subr.mxu0 0.0
  %4445 = vmatpush1.msra.mxu0 0.0
  %4446 = vmatprep.subr.mxu0 0.0
  %4447 = vmatpush1.msra.mxu0 0.0
  %4448 = vmatprep.subr.mxu0 0.0
  %4449 = vmatpush1.msra.mxu0 0.0
  %4450 = vmatprep.subr.mxu0 0.0
  %4451 = vmatpush1.msra.mxu0 0.0
  %4452 = vmatprep.subr.mxu0 0.0
  %4453 = vmatpush1.msra.mxu0 0.0
  %4454 = vmatprep.subr.mxu0 0.0
  %4455 = vmatpush1.msra.mxu0 0.0
  %4456 = vmatprep.subr.mxu0 0.0
  %4457 = vmatpush1.msra.mxu0 0.0
  %4458 = vmatprep.subr.mxu0 0.0
  %4459 = vmatpush1.msra.mxu0 0.0
  %4460 = vmatprep.subr.mxu0 0.0
  %4461 = vmatpush1.msra.mxu0 0.0
  %4462 = vmatprep.subr.mxu0 0.0
  %4463 = vmatpush1.msra.mxu0 0.0
  %4464 = vmatprep.subr.mxu0 0.0
  %4465 = vmatpush1.msra.mxu0 0.0
  %4466 = vmatprep.subr.mxu0 0.0
  %4467 = vmatpush1.msra.mxu0 0.0
  %4468 = vmatprep.mubr.f32.mxu0 0.0
  %4469 = vmatmul.mubr.f32.gmra.mrb[0].mxu0 %v4399
  %v4470 = vpop.f32.mrb[0].mxu0
  %v4471 = vadd.f32 0.0, %v4470
  %v4472 = vpop.f32.mrb[0].mxu0
  %4473 = vmatprep.mubr.f32.mxu0 0.0
  %4474 = vmatmul.mubr.f32.gmra.mrb[0].mxu0 %v4402
  %v4475 = vpop.f32.mrb[0].mxu0
  %v4476 = vadd.f32 0.0, %v4475
  %v4477 = vpop.f32.mrb[0].mxu0
  %4478 = vdwg.mxu0
  %v4480 = vsel %vm318, %v4115, 0
  %v4483 = vsel %vm318, %v4120, 0
  %4485 = vmatprep.subr.mxu0 0.0
  %4486 = vmatpush1.msra.mxu0 %v3838
  %4487 = vmatprep.subr.mxu0 0.0
  %4488 = vmatpush1.msra.mxu0 0.0
  %4489 = vmatprep.subr.mxu0 0.0
  %4490 = vmatpush1.msra.mxu0 0.0
  %4491 = vmatprep.subr.mxu0 0.0
  %4492 = vmatpush1.msra.mxu0 0.0
  %4493 = vmatprep.subr.mxu0 0.0
  %4494 = vmatpush1.msra.mxu0 0.0
  %4495 = vmatprep.subr.mxu0 0.0
  %4496 = vmatpush1.msra.mxu0 0.0
  %4497 = vmatprep.subr.mxu0 0.0
  %4498 = vmatpush1.msra.mxu0 0.0
  %4499 = vmatprep.subr.mxu0 0.0
  %4500 = vmatpush1.msra.mxu0 0.0
  %4501 = vmatprep.subr.mxu0 0.0
  %4502 = vmatpush1.msra.mxu0 0.0
  %4503 = vmatprep.subr.mxu0 0.0
  %4504 = vmatpush1.msra.mxu0 0.0
  %4505 = vmatprep.subr.mxu0 0.0
  %4506 = vmatpush1.msra.mxu0 0.0
  %4507 = vmatprep.subr.mxu0 0.0
  %4508 = vmatpush1.msra.mxu0 0.0
  %4509 = vmatprep.subr.mxu0 0.0
  %4510 = vmatpush1.msra.mxu0 0.0
  %4511 = vmatprep.subr.mxu0 0.0
  %4512 = vmatpush1.msra.mxu0 0.0
  %4513 = vmatprep.subr.mxu0 0.0
  %4514 = vmatpush1.msra.mxu0 0.0
  %4515 = vmatprep.subr.mxu0 0.0
  %4516 = vmatpush1.msra.mxu0 0.0
  %4517 = vmatprep.subr.mxu0 0.0
  %4518 = vmatpush1.msra.mxu0 0.0
  %4519 = vmatprep.subr.mxu0 0.0
  %4520 = vmatpush1.msra.mxu0 0.0
  %4521 = vmatprep.subr.mxu0 0.0
  %4522 = vmatpush1.msra.mxu0 0.0
  %4523 = vmatprep.subr.mxu0 0.0
  %4524 = vmatpush1.msra.mxu0 0.0
  %4525 = vmatprep.subr.mxu0 0.0
  %4526 = vmatpush1.msra.mxu0 0.0
  %4527 = vmatprep.subr.mxu0 0.0
  %4528 = vmatpush1.msra.mxu0 0.0
  %4529 = vmatprep.subr.mxu0 0.0
  %4530 = vmatpush1.msra.mxu0 0.0
  %4531 = vmatprep.subr.mxu0 0.0
  %4532 = vmatpush1.msra.mxu0 0.0
  %4533 = vmatprep.subr.mxu0 0.0
  %4534 = vmatpush1.msra.mxu0 0.0
  %4535 = vmatprep.subr.mxu0 0.0
  %4536 = vmatpush1.msra.mxu0 0.0
  %4537 = vmatprep.subr.mxu0 0.0
  %4538 = vmatpush1.msra.mxu0 0.0
  %4539 = vmatprep.subr.mxu0 0.0
  %4540 = vmatpush1.msra.mxu0 0.0
  %4541 = vmatprep.subr.mxu0 0.0
  %4542 = vmatpush1.msra.mxu0 0.0
  %4543 = vmatprep.subr.mxu0 0.0
  %4544 = vmatpush1.msra.mxu0 0.0
  %4545 = vmatprep.subr.mxu0 0.0
  %4546 = vmatpush1.msra.mxu0 0.0
  %4547 = vmatprep.subr.mxu0 0.0
  %4548 = vmatpush1.msra.mxu0 0.0
  %4549 = vmatprep.mubr.f32.mxu0 0.0
  %4550 = vmatmul.mubr.f32.gmra.mrb[0].mxu0 %v4480
  %v4551 = vpop.f32.mrb[0].mxu0
  %v4552 = vadd.f32 %v4471, %v4551
  %v4553 = vpop.f32.mrb[0].mxu0
  %4554 = vmatprep.mubr.f32.mxu0 0.0
  %4555 = vmatmul.mubr.f32.gmra.mrb[0].mxu0 %v4483
  %v4556 = vpop.f32.mrb[0].mxu0
  %v4557 = vadd.f32 %v4476, %v4556
  %v4558 = vpop.f32.mrb[0].mxu0
  %4559 = vdwg.mxu0
  %v4560 = vld [vmem:[%s1 + $0x130] sm:$0xf]
  %v4561 = vld [vmem:[%s1 + $0x134] sm:$0xf]
  %v4562 = vld [vmem:[%s1 + $0x138] sm:$0xf]
  %v4563 = vld [vmem:[%s1 + $0x13c] sm:$0xf]
  %v4564 = vunpack.c.l.bf16 %v4560
  %v4565 = vunpack.c.l.bf16 %v4561
  %v4566 = vunpack.c.l.bf16 %v4562
  %v4567 = vunpack.c.l.bf16 %v4563
  %v4568 = vld [vmem:[%s2 + $0x140] sm:$0x1]
  %v4569 = vlaneseq
  %v4570 = vshrl.u32 %v4569, 7
  %v4571 = vsub.s32 0, %v4570
  %v4572 = vrot.slane %v4568, %v4571
  %4573 = vmatprep.subr.mxu0 0.0
  %4574 = vmatpush1.msra.mxu0 %v4564
  %4575 = vmatprep.subr.mxu0 0.0
  %4576 = vmatpush1.msra.mxu0 %v4565
  %4577 = vmatprep.subr.mxu0 0.0
  %4578 = vmatpush1.msra.mxu0 %v4566
  %4579 = vmatprep.subr.mxu0 0.0
  %4580 = vmatpush1.msra.mxu0 %v4567
  %4581 = vmatprep.subr.mxu0 0.0
  %4582 = vmatpush1.msra.mxu0 0.0
  %4583 = vmatprep.subr.mxu0 0.0
  %4584 = vmatpush1.msra.mxu0 0.0
  %4585 = vmatprep.subr.mxu0 0.0
  %4586 = vmatpush1.msra.mxu0 0.0
  %4587 = vmatprep.subr.mxu0 0.0
  %4588 = vmatpush1.msra.mxu0 0.0
  %4589 = vmatprep.subr.mxu0 0.0
  %4590 = vmatpush1.msra.mxu0 0.0
  %4591 = vmatprep.subr.mxu0 0.0
  %4592 = vmatpush1.msra.mxu0 0.0
  %4593 = vmatprep.subr.mxu0 0.0
  %4594 = vmatpush1.msra.mxu0 0.0
  %4595 = vmatprep.subr.mxu0 0.0
  %4596 = vmatpush1.msra.mxu0 0.0
  %4597 = vmatprep.subr.mxu0 0.0
  %4598 = vmatpush1.msra.mxu0 0.0
  %4599 = vmatprep.subr.mxu0 0.0
  %4600 = vmatpush1.msra.mxu0 0.0
  %4601 = vmatprep.subr.mxu0 0.0
  %4602 = vmatpush1.msra.mxu0 0.0
  %4603 = vmatprep.subr.mxu0 0.0
  %4604 = vmatpush1.msra.mxu0 0.0
  %4605 = vmatprep.subr.mxu0 0.0
  %4606 = vmatpush1.msra.mxu0 0.0
  %4607 = vmatprep.subr.mxu0 0.0
  %4608 = vmatpush1.msra.mxu0 0.0
  %4609 = vmatprep.subr.mxu0 0.0
  %4610 = vmatpush1.msra.mxu0 0.0
  %4611 = vmatprep.subr.mxu0 0.0
  %4612 = vmatpush1.msra.mxu0 0.0
  %4613 = vmatprep.subr.mxu0 0.0
  %4614 = vmatpush1.msra.mxu0 0.0
  %4615 = vmatprep.subr.mxu0 0.0
  %4616 = vmatpush1.msra.mxu0 0.0
  %4617 = vmatprep.subr.mxu0 0.0
  %4618 = vmatpush1.msra.mxu0 0.0
  %4619 = vmatprep.subr.mxu0 0.0
  %4620 = vmatpush1.msra.mxu0 0.0
  %4621 = vmatprep.subr.mxu0 0.0
  %4622 = vmatpush1.msra.mxu0 0.0
  %4623 = vmatprep.subr.mxu0 0.0
  %4624 = vmatpush1.msra.mxu0 0.0
  %4625 = vmatprep.subr.mxu0 0.0
  %4626 = vmatpush1.msra.mxu0 0.0
  %4627 = vmatprep.subr.mxu0 0.0
  %4628 = vmatpush1.msra.mxu0 0.0
  %4629 = vmatprep.subr.mxu0 0.0
  %4630 = vmatpush1.msra.mxu0 0.0
  %4631 = vmatprep.subr.mxu0 0.0
  %4632 = vmatpush1.msra.mxu0 0.0
  %4633 = vmatprep.subr.mxu0 0.0
  %4634 = vmatpush1.msra.mxu0 0.0
  %4635 = vmatprep.subr.mxu0 0.0
  %4636 = vmatpush1.msra.mxu0 0.0
  %4637 = vmatprep.mubr.f32.mxu0 0.0
  %4638 = vmatmul.mubr.f32.gmra.mrb[0].mxu0 %v3856
  %v4639 = vpop.f32.mrb[0].mxu0
  %v4640 = vadd.f32 %v4572, %v4639
  %v4641 = vpop.f32.mrb[0].mxu0
  %4642 = vmatprep.mubr.f32.mxu0 0.0
  %4643 = vmatmul.mubr.f32.gmra.mrb[0].mxu0 %v3859
  %v4644 = vpop.f32.mrb[0].mxu0
  %v4645 = vadd.f32 %v4572, %v4644
  %v4646 = vpop.f32.mrb[0].mxu0
  %4647 = vdwg.mxu0
  %v4649 = vsel %vm318, %v4640, 0
  %v4652 = vsel %vm318, %v4645, 0
  %4654 = vmatprep.subr.mxu0 0.0
  %4655 = vmatpush1.msra.mxu0 %v3816
  %4656 = vmatprep.subr.mxu0 0.0
  %4657 = vmatpush1.msra.mxu0 0.0
  %4658 = vmatprep.subr.mxu0 0.0
  %4659 = vmatpush1.msra.mxu0 0.0
  %4660 = vmatprep.subr.mxu0 0.0
  %4661 = vmatpush1.msra.mxu0 0.0
  %4662 = vmatprep.subr.mxu0 0.0
  %4663 = vmatpush1.msra.mxu0 0.0
  %4664 = vmatprep.subr.mxu0 0.0
  %4665 = vmatpush1.msra.mxu0 0.0
  %4666 = vmatprep.subr.mxu0 0.0
  %4667 = vmatpush1.msra.mxu0 0.0
  %4668 = vmatprep.subr.mxu0 0.0
  %4669 = vmatpush1.msra.mxu0 0.0
  %4670 = vmatprep.subr.mxu0 0.0
  %4671 = vmatpush1.msra.mxu0 0.0
  %4672 = vmatprep.subr.mxu0 0.0
  %4673 = vmatpush1.msra.mxu0 0.0
  %4674 = vmatprep.subr.mxu0 0.0
  %4675 = vmatpush1.msra.mxu0 0.0
  %4676 = vmatprep.subr.mxu0 0.0
  %4677 = vmatpush1.msra.mxu0 0.0
  %4678 = vmatprep.subr.mxu0 0.0
  %4679 = vmatpush1.msra.mxu0 0.0
  %4680 = vmatprep.subr.mxu0 0.0
  %4681 = vmatpush1.msra.mxu0 0.0
  %4682 = vmatprep.subr.mxu0 0.0
  %4683 = vmatpush1.msra.mxu0 0.0
  %4684 = vmatprep.subr.mxu0 0.0
  %4685 = vmatpush1.msra.mxu0 0.0
  %4686 = vmatprep.subr.mxu0 0.0
  %4687 = vmatpush1.msra.mxu0 0.0
  %4688 = vmatprep.subr.mxu0 0.0
  %4689 = vmatpush1.msra.mxu0 0.0
  %4690 = vmatprep.subr.mxu0 0.0
  %4691 = vmatpush1.msra.mxu0 0.0
  %4692 = vmatprep.subr.mxu0 0.0
  %4693 = vmatpush1.msra.mxu0 0.0
  %4694 = vmatprep.subr.mxu0 0.0
  %4695 = vmatpush1.msra.mxu0 0.0
  %4696 = vmatprep.subr.mxu0 0.0
  %4697 = vmatpush1.msra.mxu0 0.0
  %4698 = vmatprep.subr.mxu0 0.0
  %4699 = vmatpush1.msra.mxu0 0.0
  %4700 = vmatprep.subr.mxu0 0.0
  %4701 = vmatpush1.msra.mxu0 0.0
  %4702 = vmatprep.subr.mxu0 0.0
  %4703 = vmatpush1.msra.mxu0 0.0
  %4704 = vmatprep.subr.mxu0 0.0
  %4705 = vmatpush1.msra.mxu0 0.0
  %4706 = vmatprep.subr.mxu0 0.0
  %4707 = vmatpush1.msra.mxu0 0.0
  %4708 = vmatprep.subr.mxu0 0.0
  %4709 = vmatpush1.msra.mxu0 0.0
  %4710 = vmatprep.subr.mxu0 0.0
  %4711 = vmatpush1.msra.mxu0 0.0
  %4712 = vmatprep.subr.mxu0 0.0
  %4713 = vmatpush1.msra.mxu0 0.0
  %4714 = vmatprep.subr.mxu0 0.0
  %4715 = vmatpush1.msra.mxu0 0.0
  %4716 = vmatprep.subr.mxu0 0.0
  %4717 = vmatpush1.msra.mxu0 0.0
  %4718 = vmatprep.mubr.f32.mxu0 0.0
  %4719 = vmatmul.mubr.f32.gmra.mrb[0].mxu0 %v4649
  %v4720 = vpop.f32.mrb[0].mxu0
  %v4721 = vadd.f32 %v18, %v4720
  %v4722 = vpop.f32.mrb[0].mxu0
  %4723 = vmatprep.mubr.f32.mxu0 0.0
  %4724 = vmatmul.mubr.f32.gmra.mrb[0].mxu0 %v4652
  %v4725 = vpop.f32.mrb[0].mxu0
  %v4726 = vadd.f32 %v19, %v4725
  %v4727 = vpop.f32.mrb[0].mxu0
  %4728 = vdwg.mxu0
  %v4729 = vsel %vm400, %v4721, -inf
  %4730 = vmax.xlane.f32.xlu0 %v4729
  %v4731 = vpop.xlane.xlu0 %4730
  %v4732 = vsel %vm400, %v4726, -inf
  %4733 = vmax.xlane.f32.xlu0 %v4732
  %v4734 = vpop.xlane.xlu0 %4733
  %v4735 = vsub.f32 %v4721, %v4731
  %v4736 = vsub.f32 %v4726, %v4734
  %v4737 = vmul.f32 %v4735, 1.442695
  %v4738 = vpow.pop %v4737
  %v4739 = vmul.f32 %v4736, 1.442695
  %v4740 = vpow.pop %v4739
  %v4741 = vsel %vm400, %v4738, 0.0
  %4742 = vadd.xlane.f32.xlu0 %v4741
  %v4743 = vpop.xlane.xlu0 %4742
  %v4744 = vsel %vm400, %v4740, 0.0
  %4745 = vadd.xlane.f32.xlu0 %v4744
  %v4746 = vpop.xlane.xlu0 %4745
  %v4747 = vrcp.pop %v4743
  %v4748 = vrcp.pop %v4746
  %v4749 = vmul.f32 %v4738, %v4747
  %v4750 = vmul.f32 %v4740, %v4748
  %v4752 = vsel %vm400, %v4749, 0
  %v4755 = vsel %vm400, %v4750, 0
  %v4758 = vsel %vm400, %v3821, 0
  %4760 = vmatprep.subr.mxu0 0.0
  %4761 = vmatpush1.xpose.msra.mxu0 %v4758
  %4762 = vmatprep.subr.mxu0 0.0
  %4763 = vmatpush1.xpose.msra.mxu0 0.0
  %4764 = vmatprep.subr.mxu0 0.0
  %4765 = vmatpush1.xpose.msra.mxu0 0.0
  %4766 = vmatprep.subr.mxu0 0.0
  %4767 = vmatpush1.xpose.msra.mxu0 0.0
  %4768 = vmatprep.subr.mxu0 0.0
  %4769 = vmatpush1.xpose.msra.mxu0 0.0
  %4770 = vmatprep.subr.mxu0 0.0
  %4771 = vmatpush1.xpose.msra.mxu0 0.0
  %4772 = vmatprep.subr.mxu0 0.0
  %4773 = vmatpush1.xpose.msra.mxu0 0.0
  %4774 = vmatprep.subr.mxu0 0.0
  %4775 = vmatpush1.xpose.msra.mxu0 0.0
  %4776 = vmatprep.subr.mxu0 0.0
  %4777 = vmatpush1.xpose.msra.mxu0 0.0
  %4778 = vmatprep.subr.mxu0 0.0
  %4779 = vmatpush1.xpose.msra.mxu0 0.0
  %4780 = vmatprep.subr.mxu0 0.0
  %4781 = vmatpush1.xpose.msra.mxu0 0.0
  %4782 = vmatprep.subr.mxu0 0.0
  %4783 = vmatpush1.xpose.msra.mxu0 0.0
  %4784 = vmatprep.subr.mxu0 0.0
  %4785 = vmatpush1.xpose.msra.mxu0 0.0
  %4786 = vmatprep.subr.mxu0 0.0
  %4787 = vmatpush1.xpose.msra.mxu0 0.0
  %4788 = vmatprep.subr.mxu0 0.0
  %4789 = vmatpush1.xpose.msra.mxu0 0.0
  %4790 = vmatprep.subr.mxu0 0.0
  %4791 = vmatpush1.xpose.msra.mxu0 0.0
  %4792 = vmatprep.subr.mxu0 0.0
  %4793 = vmatpush1.xpose.msra.mxu0 0.0
  %4794 = vmatprep.subr.mxu0 0.0
  %4795 = vmatpush1.xpose.msra.mxu0 0.0
  %4796 = vmatprep.subr.mxu0 0.0
  %4797 = vmatpush1.xpose.msra.mxu0 0.0
  %4798 = vmatprep.subr.mxu0 0.0
  %4799 = vmatpush1.xpose.msra.mxu0 0.0
  %4800 = vmatprep.subr.mxu0 0.0
  %4801 = vmatpush1.xpose.msra.mxu0 0.0
  %4802 = vmatprep.subr.mxu0 0.0
  %4803 = vmatpush1.xpose.msra.mxu0 0.0
  %4804 = vmatprep.subr.mxu0 0.0
  %4805 = vmatpush1.xpose.msra.mxu0 0.0
  %4806 = vmatprep.subr.mxu0 0.0
  %4807 = vmatpush1.xpose.msra.mxu0 0.0
  %4808 = vmatprep.subr.mxu0 0.0
  %4809 = vmatpush1.xpose.msra.mxu0 0.0
  %4810 = vmatprep.subr.mxu0 0.0
  %4811 = vmatpush1.xpose.msra.mxu0 0.0
  %4812 = vmatprep.subr.mxu0 0.0
  %4813 = vmatpush1.xpose.msra.mxu0 0.0
  %4814 = vmatprep.subr.mxu0 0.0
  %4815 = vmatpush1.xpose.msra.mxu0 0.0
  %4816 = vmatprep.subr.mxu0 0.0
  %4817 = vmatpush1.xpose.msra.mxu0 0.0
  %4818 = vmatprep.subr.mxu0 0.0
  %4819 = vmatpush1.xpose.msra.mxu0 0.0
  %4820 = vmatprep.subr.mxu0 0.0
  %4821 = vmatpush1.xpose.msra.mxu0 0.0
  %4822 = vmatprep.subr.mxu0 0.0
  %4823 = vmatpush1.xpose.msra.mxu0 0.0
  %4824 = vmatprep.mubr.f32.mxu0 0.0
  %4825 = vmatmul.mubr.f32.gmra.mrb[0].mxu0 %v4752
  %v4826 = vpop.f32.mrb[0].mxu0
  %v4827 = vadd.f32 0.0, %v4826
  %v4828 = vpop.f32.mrb[0].mxu0
  %4829 = vmatprep.mubr.f32.mxu0 0.0
  %4830 = vmatmul.mubr.f32.gmra.mrb[0].mxu0 %v4755
  %v4831 = vpop.f32.mrb[0].mxu0
  %v4832 = vadd.f32 0.0, %v4831
  %v4833 = vpop.f32.mrb[0].mxu0
  %4834 = vdwg.mxu0
  %v4836 = vsel %vm318, %v4827, 0
  %v4839 = vsel %vm318, %v4832, 0
  %4841 = vmatprep.subr.mxu0 0.0
  %4842 = vmatpush1.msra.mxu0 %v3840
  %4843 = vmatprep.subr.mxu0 0.0
  %4844 = vmatpush1.msra.mxu0 0.0
  %4845 = vmatprep.subr.mxu0 0.0
  %4846 = vmatpush1.msra.mxu0 0.0
  %4847 = vmatprep.subr.mxu0 0.0
  %4848 = vmatpush1.msra.mxu0 0.0
  %4849 = vmatprep.subr.mxu0 0.0
  %4850 = vmatpush1.msra.mxu0 0.0
  %4851 = vmatprep.subr.mxu0 0.0
  %4852 = vmatpush1.msra.mxu0 0.0
  %4853 = vmatprep.subr.mxu0 0.0
  %4854 = vmatpush1.msra.mxu0 0.0
  %4855 = vmatprep.subr.mxu0 0.0
  %4856 = vmatpush1.msra.mxu0 0.0
  %4857 = vmatprep.subr.mxu0 0.0
  %4858 = vmatpush1.msra.mxu0 0.0
  %4859 = vmatprep.subr.mxu0 0.0
  %4860 = vmatpush1.msra.mxu0 0.0
  %4861 = vmatprep.subr.mxu0 0.0
  %4862 = vmatpush1.msra.mxu0 0.0
  %4863 = vmatprep.subr.mxu0 0.0
  %4864 = vmatpush1.msra.mxu0 0.0
  %4865 = vmatprep.subr.mxu0 0.0
  %4866 = vmatpush1.msra.mxu0 0.0
  %4867 = vmatprep.subr.mxu0 0.0
  %4868 = vmatpush1.msra.mxu0 0.0
  %4869 = vmatprep.subr.mxu0 0.0
  %4870 = vmatpush1.msra.mxu0 0.0
  %4871 = vmatprep.subr.mxu0 0.0
  %4872 = vmatpush1.msra.mxu0 0.0
  %4873 = vmatprep.subr.mxu0 0.0
  %4874 = vmatpush1.msra.mxu0 0.0
  %4875 = vmatprep.subr.mxu0 0.0
  %4876 = vmatpush1.msra.mxu0 0.0
  %4877 = vmatprep.subr.mxu0 0.0
  %4878 = vmatpush1.msra.mxu0 0.0
  %4879 = vmatprep.subr.mxu0 0.0
  %4880 = vmatpush1.msra.mxu0 0.0
  %4881 = vmatprep.subr.mxu0 0.0
  %4882 = vmatpush1.msra.mxu0 0.0
  %4883 = vmatprep.subr.mxu0 0.0
  %4884 = vmatpush1.msra.mxu0 0.0
  %4885 = vmatprep.subr.mxu0 0.0
  %4886 = vmatpush1.msra.mxu0 0.0
  %4887 = vmatprep.subr.mxu0 0.0
  %4888 = vmatpush1.msra.mxu0 0.0
  %4889 = vmatprep.subr.mxu0 0.0
  %4890 = vmatpush1.msra.mxu0 0.0
  %4891 = vmatprep.subr.mxu0 0.0
  %4892 = vmatpush1.msra.mxu0 0.0
  %4893 = vmatprep.subr.mxu0 0.0
  %4894 = vmatpush1.msra.mxu0 0.0
  %4895 = vmatprep.subr.mxu0 0.0
  %4896 = vmatpush1.msra.mxu0 0.0
  %4897 = vmatprep.subr.mxu0 0.0
  %4898 = vmatpush1.msra.mxu0 0.0
  %4899 = vmatprep.subr.mxu0 0.0
  %4900 = vmatpush1.msra.mxu0 0.0
  %4901 = vmatprep.subr.mxu0 0.0
  %4902 = vmatpush1.msra.mxu0 0.0
  %4903 = vmatprep.subr.mxu0 0.0
  %4904 = vmatpush1.msra.mxu0 0.0
  %4905 = vmatprep.mubr.f32.mxu0 0.0
  %4906 = vmatmul.mubr.f32.gmra.mrb[0].mxu0 %v4836
  %v4907 = vpop.f32.mrb[0].mxu0
  %v4908 = vadd.f32 0.0, %v4907
  %v4909 = vpop.f32.mrb[0].mxu0
  %4910 = vmatprep.mubr.f32.mxu0 0.0
  %4911 = vmatmul.mubr.f32.gmra.mrb[0].mxu0 %v4839
  %v4912 = vpop.f32.mrb[0].mxu0
  %v4913 = vadd.f32 0.0, %v4912
  %v4914 = vpop.f32.mrb[0].mxu0
  %4915 = vdwg.mxu0
  %v4916 = vadd.f32 %v4552, %v4908
  %v4917 = vadd.f32 %v4557, %v4913
  %v4918 = vld [vmem:[%s1 + $0x140] sm:$0xf]
  %v4919 = vld [vmem:[%s1 + $0x144] sm:$0xf]
  %v4920 = vld [vmem:[%s1 + $0x148] sm:$0xf]
  %v4921 = vld [vmem:[%s1 + $0x14c] sm:$0xf]
  %v4922 = vunpack.c.l.bf16 %v4918
  %v4923 = vunpack.c.l.bf16 %v4919
  %v4924 = vunpack.c.l.bf16 %v4920
  %v4925 = vunpack.c.l.bf16 %v4921
  %v4926 = vld [vmem:[%s2 + $0x148] sm:$0x1]
  %v4927 = vlaneseq
  %v4928 = vshrl.u32 %v4927, 7
  %v4929 = vsub.s32 0, %v4928
  %v4930 = vrot.slane %v4926, %v4929
  %4931 = vmatprep.subr.mxu0 0.0
  %4932 = vmatpush1.msra.mxu0 %v4922
  %4933 = vmatprep.subr.mxu0 0.0
  %4934 = vmatpush1.msra.mxu0 %v4923
  %4935 = vmatprep.subr.mxu0 0.0
  %4936 = vmatpush1.msra.mxu0 %v4924
  %4937 = vmatprep.subr.mxu0 0.0
  %4938 = vmatpush1.msra.mxu0 %v4925
  %4939 = vmatprep.subr.mxu0 0.0
  %4940 = vmatpush1.msra.mxu0 0.0
  %4941 = vmatprep.subr.mxu0 0.0
  %4942 = vmatpush1.msra.mxu0 0.0
  %4943 = vmatprep.subr.mxu0 0.0
  %4944 = vmatpush1.msra.mxu0 0.0
  %4945 = vmatprep.subr.mxu0 0.0
  %4946 = vmatpush1.msra.mxu0 0.0
  %4947 = vmatprep.subr.mxu0 0.0
  %4948 = vmatpush1.msra.mxu0 0.0
  %4949 = vmatprep.subr.mxu0 0.0
  %4950 = vmatpush1.msra.mxu0 0.0
  %4951 = vmatprep.subr.mxu0 0.0
  %4952 = vmatpush1.msra.mxu0 0.0
  %4953 = vmatprep.subr.mxu0 0.0
  %4954 = vmatpush1.msra.mxu0 0.0
  %4955 = vmatprep.subr.mxu0 0.0
  %4956 = vmatpush1.msra.mxu0 0.0
  %4957 = vmatprep.subr.mxu0 0.0
  %4958 = vmatpush1.msra.mxu0 0.0
  %4959 = vmatprep.subr.mxu0 0.0
  %4960 = vmatpush1.msra.mxu0 0.0
  %4961 = vmatprep.subr.mxu0 0.0
  %4962 = vmatpush1.msra.mxu0 0.0
  %4963 = vmatprep.subr.mxu0 0.0
  %4964 = vmatpush1.msra.mxu0 0.0
  %4965 = vmatprep.subr.mxu0 0.0
  %4966 = vmatpush1.msra.mxu0 0.0
  %4967 = vmatprep.subr.mxu0 0.0
  %4968 = vmatpush1.msra.mxu0 0.0
  %4969 = vmatprep.subr.mxu0 0.0
  %4970 = vmatpush1.msra.mxu0 0.0
  %4971 = vmatprep.subr.mxu0 0.0
  %4972 = vmatpush1.msra.mxu0 0.0
  %4973 = vmatprep.subr.mxu0 0.0
  %4974 = vmatpush1.msra.mxu0 0.0
  %4975 = vmatprep.subr.mxu0 0.0
  %4976 = vmatpush1.msra.mxu0 0.0
  %4977 = vmatprep.subr.mxu0 0.0
  %4978 = vmatpush1.msra.mxu0 0.0
  %4979 = vmatprep.subr.mxu0 0.0
  %4980 = vmatpush1.msra.mxu0 0.0
  %4981 = vmatprep.subr.mxu0 0.0
  %4982 = vmatpush1.msra.mxu0 0.0
  %4983 = vmatprep.subr.mxu0 0.0
  %4984 = vmatpush1.msra.mxu0 0.0
  %4985 = vmatprep.subr.mxu0 0.0
  %4986 = vmatpush1.msra.mxu0 0.0
  %4987 = vmatprep.subr.mxu0 0.0
  %4988 = vmatpush1.msra.mxu0 0.0
  %4989 = vmatprep.subr.mxu0 0.0
  %4990 = vmatpush1.msra.mxu0 0.0
  %4991 = vmatprep.subr.mxu0 0.0
  %4992 = vmatpush1.msra.mxu0 0.0
  %4993 = vmatprep.subr.mxu0 0.0
  %4994 = vmatpush1.msra.mxu0 0.0
  %4995 = vmatprep.mubr.f32.mxu0 0.0
  %4996 = vmatmul.mubr.f32.gmra.mrb[0].mxu0 %v3856
  %v4997 = vpop.f32.mrb[0].mxu0
  %v4998 = vadd.f32 %v4930, %v4997
  %v4999 = vpop.f32.mrb[0].mxu0
  %5000 = vmatprep.mubr.f32.mxu0 0.0
  %5001 = vmatmul.mubr.f32.gmra.mrb[0].mxu0 %v3859
  %v5002 = vpop.f32.mrb[0].mxu0
  %v5003 = vadd.f32 %v4930, %v5002
  %v5004 = vpop.f32.mrb[0].mxu0
  %5005 = vdwg.mxu0
  %v5007 = vsel %vm318, %v4998, 0
  %v5010 = vsel %vm318, %v5003, 0
  %5012 = vmatprep.subr.mxu0 0.0
  %5013 = vmatpush1.msra.mxu0 %v3826
  %5014 = vmatprep.subr.mxu0 0.0
  %5015 = vmatpush1.msra.mxu0 0.0
  %5016 = vmatprep.subr.mxu0 0.0
  %5017 = vmatpush1.msra.mxu0 0.0
  %5018 = vmatprep.subr.mxu0 0.0
  %5019 = vmatpush1.msra.mxu0 0.0
  %5020 = vmatprep.subr.mxu0 0.0
  %5021 = vmatpush1.msra.mxu0 0.0
  %5022 = vmatprep.subr.mxu0 0.0
  %5023 = vmatpush1.msra.mxu0 0.0
  %5024 = vmatprep.subr.mxu0 0.0
  %5025 = vmatpush1.msra.mxu0 0.0
  %5026 = vmatprep.subr.mxu0 0.0
  %5027 = vmatpush1.msra.mxu0 0.0
  %5028 = vmatprep.subr.mxu0 0.0
  %5029 = vmatpush1.msra.mxu0 0.0
  %5030 = vmatprep.subr.mxu0 0.0
  %5031 = vmatpush1.msra.mxu0 0.0
  %5032 = vmatprep.subr.mxu0 0.0
  %5033 = vmatpush1.msra.mxu0 0.0
  %5034 = vmatprep.subr.mxu0 0.0
  %5035 = vmatpush1.msra.mxu0 0.0
  %5036 = vmatprep.subr.mxu0 0.0
  %5037 = vmatpush1.msra.mxu0 0.0
  %5038 = vmatprep.subr.mxu0 0.0
  %5039 = vmatpush1.msra.mxu0 0.0
  %5040 = vmatprep.subr.mxu0 0.0
  %5041 = vmatpush1.msra.mxu0 0.0
  %5042 = vmatprep.subr.mxu0 0.0
  %5043 = vmatpush1.msra.mxu0 0.0
  %5044 = vmatprep.subr.mxu0 0.0
  %5045 = vmatpush1.msra.mxu0 0.0
  %5046 = vmatprep.subr.mxu0 0.0
  %5047 = vmatpush1.msra.mxu0 0.0
  %5048 = vmatprep.subr.mxu0 0.0
  %5049 = vmatpush1.msra.mxu0 0.0
  %5050 = vmatprep.subr.mxu0 0.0
  %5051 = vmatpush1.msra.mxu0 0.0
  %5052 = vmatprep.subr.mxu0 0.0
  %5053 = vmatpush1.msra.mxu0 0.0
  %5054 = vmatprep.subr.mxu0 0.0
  %5055 = vmatpush1.msra.mxu0 0.0
  %5056 = vmatprep.subr.mxu0 0.0
  %5057 = vmatpush1.msra.mxu0 0.0
  %5058 = vmatprep.subr.mxu0 0.0
  %5059 = vmatpush1.msra.mxu0 0.0
  %5060 = vmatprep.subr.mxu0 0.0
  %5061 = vmatpush1.msra.mxu0 0.0
  %5062 = vmatprep.subr.mxu0 0.0
  %5063 = vmatpush1.msra.mxu0 0.0
  %5064 = vmatprep.subr.mxu0 0.0
  %5065 = vmatpush1.msra.mxu0 0.0
  %5066 = vmatprep.subr.mxu0 0.0
  %5067 = vmatpush1.msra.mxu0 0.0
  %5068 = vmatprep.subr.mxu0 0.0
  %5069 = vmatpush1.msra.mxu0 0.0
  %5070 = vmatprep.subr.mxu0 0.0
  %5071 = vmatpush1.msra.mxu0 0.0
  %5072 = vmatprep.subr.mxu0 0.0
  %5073 = vmatpush1.msra.mxu0 0.0
  %5074 = vmatprep.subr.mxu0 0.0
  %5075 = vmatpush1.msra.mxu0 0.0
  %5076 = vmatprep.mubr.f32.mxu0 0.0
  %5077 = vmatmul.mubr.f32.gmra.mrb[0].mxu0 %v5007
  %v5078 = vpop.f32.mrb[0].mxu0
  %v5079 = vadd.f32 %v18, %v5078
  %v5080 = vpop.f32.mrb[0].mxu0
  %5081 = vmatprep.mubr.f32.mxu0 0.0
  %5082 = vmatmul.mubr.f32.gmra.mrb[0].mxu0 %v5010
  %v5083 = vpop.f32.mrb[0].mxu0
  %v5084 = vadd.f32 %v19, %v5083
  %v5085 = vpop.f32.mrb[0].mxu0
  %5086 = vdwg.mxu0
  %v5087 = vsel %vm400, %v5079, -inf
  %5088 = vmax.xlane.f32.xlu0 %v5087
  %v5089 = vpop.xlane.xlu0 %5088
  %v5090 = vsel %vm400, %v5084, -inf
  %5091 = vmax.xlane.f32.xlu0 %v5090
  %v5092 = vpop.xlane.xlu0 %5091
  %v5093 = vsub.f32 %v5079, %v5089
  %v5094 = vsub.f32 %v5084, %v5092
  %v5095 = vmul.f32 %v5093, 1.442695
  %v5096 = vpow.pop %v5095
  %v5097 = vmul.f32 %v5094, 1.442695
  %v5098 = vpow.pop %v5097
  %v5099 = vsel %vm400, %v5096, 0.0
  %5100 = vadd.xlane.f32.xlu0 %v5099
  %v5101 = vpop.xlane.xlu0 %5100
  %v5102 = vsel %vm400, %v5098, 0.0
  %5103 = vadd.xlane.f32.xlu0 %v5102
  %v5104 = vpop.xlane.xlu0 %5103
  %v5105 = vrcp.pop %v5101
  %v5106 = vrcp.pop %v5104
  %v5107 = vmul.f32 %v5096, %v5105
  %v5108 = vmul.f32 %v5098, %v5106
  %v5110 = vsel %vm400, %v5107, 0
  %v5113 = vsel %vm400, %v5108, 0
  %v5116 = vsel %vm400, %v3831, 0
  %5118 = vmatprep.subr.mxu0 0.0
  %5119 = vmatpush1.xpose.msra.mxu0 %v5116
  %5120 = vmatprep.subr.mxu0 0.0
  %5121 = vmatpush1.xpose.msra.mxu0 0.0
  %5122 = vmatprep.subr.mxu0 0.0
  %5123 = vmatpush1.xpose.msra.mxu0 0.0
  %5124 = vmatprep.subr.mxu0 0.0
  %5125 = vmatpush1.xpose.msra.mxu0 0.0
  %5126 = vmatprep.subr.mxu0 0.0
  %5127 = vmatpush1.xpose.msra.mxu0 0.0
  %5128 = vmatprep.subr.mxu0 0.0
  %5129 = vmatpush1.xpose.msra.mxu0 0.0
  %5130 = vmatprep.subr.mxu0 0.0
  %5131 = vmatpush1.xpose.msra.mxu0 0.0
  %5132 = vmatprep.subr.mxu0 0.0
  %5133 = vmatpush1.xpose.msra.mxu0 0.0
  %5134 = vmatprep.subr.mxu0 0.0
  %5135 = vmatpush1.xpose.msra.mxu0 0.0
  %5136 = vmatprep.subr.mxu0 0.0
  %5137 = vmatpush1.xpose.msra.mxu0 0.0
  %5138 = vmatprep.subr.mxu0 0.0
  %5139 = vmatpush1.xpose.msra.mxu0 0.0
  %5140 = vmatprep.subr.mxu0 0.0
  %5141 = vmatpush1.xpose.msra.mxu0 0.0
  %5142 = vmatprep.subr.mxu0 0.0
  %5143 = vmatpush1.xpose.msra.mxu0 0.0
  %5144 = vmatprep.subr.mxu0 0.0
  %5145 = vmatpush1.xpose.msra.mxu0 0.0
  %5146 = vmatprep.subr.mxu0 0.0
  %5147 = vmatpush1.xpose.msra.mxu0 0.0
  %5148 = vmatprep.subr.mxu0 0.0
  %5149 = vmatpush1.xpose.msra.mxu0 0.0
  %5150 = vmatprep.subr.mxu0 0.0
  %5151 = vmatpush1.xpose.msra.mxu0 0.0
  %5152 = vmatprep.subr.mxu0 0.0
  %5153 = vmatpush1.xpose.msra.mxu0 0.0
  %5154 = vmatprep.subr.mxu0 0.0
  %5155 = vmatpush1.xpose.msra.mxu0 0.0
  %5156 = vmatprep.subr.mxu0 0.0
  %5157 = vmatpush1.xpose.msra.mxu0 0.0
  %5158 = vmatprep.subr.mxu0 0.0
  %5159 = vmatpush1.xpose.msra.mxu0 0.0
  %5160 = vmatprep.subr.mxu0 0.0
  %5161 = vmatpush1.xpose.msra.mxu0 0.0
  %5162 = vmatprep.subr.mxu0 0.0
  %5163 = vmatpush1.xpose.msra.mxu0 0.0
  %5164 = vmatprep.subr.mxu0 0.0
  %5165 = vmatpush1.xpose.msra.mxu0 0.0
  %5166 = vmatprep.subr.mxu0 0.0
  %5167 = vmatpush1.xpose.msra.mxu0 0.0
  %5168 = vmatprep.subr.mxu0 0.0
  %5169 = vmatpush1.xpose.msra.mxu0 0.0
  %5170 = vmatprep.subr.mxu0 0.0
  %5171 = vmatpush1.xpose.msra.mxu0 0.0
  %5172 = vmatprep.subr.mxu0 0.0
  %5173 = vmatpush1.xpose.msra.mxu0 0.0
  %5174 = vmatprep.subr.mxu0 0.0
  %5175 = vmatpush1.xpose.msra.mxu0 0.0
  %5176 = vmatprep.subr.mxu0 0.0
  %5177 = vmatpush1.xpose.msra.mxu0 0.0
  %5178 = vmatprep.subr.mxu0 0.0
  %5179 = vmatpush1.xpose.msra.mxu0 0.0
  %5180 = vmatprep.subr.mxu0 0.0
  %5181 = vmatpush1.xpose.msra.mxu0 0.0
  %5182 = vmatprep.mubr.f32.mxu0 0.0
  %5183 = vmatmul.mubr.f32.gmra.mrb[0].mxu0 %v5110
  %v5184 = vpop.f32.mrb[0].mxu0
  %v5185 = vadd.f32 0.0, %v5184
  %v5186 = vpop.f32.mrb[0].mxu0
  %5187 = vmatprep.mubr.f32.mxu0 0.0
  %5188 = vmatmul.mubr.f32.gmra.mrb[0].mxu0 %v5113
  %v5189 = vpop.f32.mrb[0].mxu0
  %v5190 = vadd.f32 0.0, %v5189
  %v5191 = vpop.f32.mrb[0].mxu0
  %5192 = vdwg.mxu0
  %v5194 = vsel %vm318, %v5185, 0
  %v5197 = vsel %vm318, %v5190, 0
  %5199 = vmatprep.subr.mxu0 0.0
  %5200 = vmatpush1.msra.mxu0 %v3841
  %5201 = vmatprep.subr.mxu0 0.0
  %5202 = vmatpush1.msra.mxu0 0.0
  %5203 = vmatprep.subr.mxu0 0.0
  %5204 = vmatpush1.msra.mxu0 0.0
  %5205 = vmatprep.subr.mxu0 0.0
  %5206 = vmatpush1.msra.mxu0 0.0
  %5207 = vmatprep.subr.mxu0 0.0
  %5208 = vmatpush1.msra.mxu0 0.0
  %5209 = vmatprep.subr.mxu0 0.0
  %5210 = vmatpush1.msra.mxu0 0.0
  %5211 = vmatprep.subr.mxu0 0.0
  %5212 = vmatpush1.msra.mxu0 0.0
  %5213 = vmatprep.subr.mxu0 0.0
  %5214 = vmatpush1.msra.mxu0 0.0
  %5215 = vmatprep.subr.mxu0 0.0
  %5216 = vmatpush1.msra.mxu0 0.0
  %5217 = vmatprep.subr.mxu0 0.0
  %5218 = vmatpush1.msra.mxu0 0.0
  %5219 = vmatprep.subr.mxu0 0.0
  %5220 = vmatpush1.msra.mxu0 0.0
  %5221 = vmatprep.subr.mxu0 0.0
  %5222 = vmatpush1.msra.mxu0 0.0
  %5223 = vmatprep.subr.mxu0 0.0
  %5224 = vmatpush1.msra.mxu0 0.0
  %5225 = vmatprep.subr.mxu0 0.0
  %5226 = vmatpush1.msra.mxu0 0.0
  %5227 = vmatprep.subr.mxu0 0.0
  %5228 = vmatpush1.msra.mxu0 0.0
  %5229 = vmatprep.subr.mxu0 0.0
  %5230 = vmatpush1.msra.mxu0 0.0
  %5231 = vmatprep.subr.mxu0 0.0
  %5232 = vmatpush1.msra.mxu0 0.0
  %5233 = vmatprep.subr.mxu0 0.0
  %5234 = vmatpush1.msra.mxu0 0.0
  %5235 = vmatprep.subr.mxu0 0.0
  %5236 = vmatpush1.msra.mxu0 0.0
  %5237 = vmatprep.subr.mxu0 0.0
  %5238 = vmatpush1.msra.mxu0 0.0
  %5239 = vmatprep.subr.mxu0 0.0
  %5240 = vmatpush1.msra.mxu0 0.0
  %5241 = vmatprep.subr.mxu0 0.0
  %5242 = vmatpush1.msra.mxu0 0.0
  %5243 = vmatprep.subr.mxu0 0.0
  %5244 = vmatpush1.msra.mxu0 0.0
  %5245 = vmatprep.subr.mxu0 0.0
  %5246 = vmatpush1.msra.mxu0 0.0
  %5247 = vmatprep.subr.mxu0 0.0
  %5248 = vmatpush1.msra.mxu0 0.0
  %5249 = vmatprep.subr.mxu0 0.0
  %5250 = vmatpush1.msra.mxu0 0.0
  %5251 = vmatprep.subr.mxu0 0.0
  %5252 = vmatpush1.msra.mxu0 0.0
  %5253 = vmatprep.subr.mxu0 0.0
  %5254 = vmatpush1.msra.mxu0 0.0
  %5255 = vmatprep.subr.mxu0 0.0
  %5256 = vmatpush1.msra.mxu0 0.0
  %5257 = vmatprep.subr.mxu0 0.0
  %5258 = vmatpush1.msra.mxu0 0.0
  %5259 = vmatprep.subr.mxu0 0.0
  %5260 = vmatpush1.msra.mxu0 0.0
  %5261 = vmatprep.subr.mxu0 0.0
  %5262 = vmatpush1.msra.mxu0 0.0
  %5263 = vmatprep.mubr.f32.mxu0 0.0
  %5264 = vmatmul.mubr.f32.gmra.mrb[0].mxu0 %v5194
  %v5265 = vpop.f32.mrb[0].mxu0
  %v5266 = vadd.f32 0.0, %v5265
  %v5267 = vpop.f32.mrb[0].mxu0
  %5268 = vmatprep.mubr.f32.mxu0 0.0
  %5269 = vmatmul.mubr.f32.gmra.mrb[0].mxu0 %v5197
  %v5270 = vpop.f32.mrb[0].mxu0
  %v5271 = vadd.f32 0.0, %v5270
  %v5272 = vpop.f32.mrb[0].mxu0
  %5273 = vdwg.mxu0
  %v5274 = vadd.f32 %v4916, %v5266
  %v5275 = vadd.f32 %v4917, %v5271
  %v5276 = vld [vmem:[%s2 + $0x190] sm:$0x1]
  %v5277 = vlaneseq
  %v5278 = vshrl.u32 %v5277, 7
  %v5279 = vsub.s32 0, %v5278
  %v5280 = vrot.slane %v5276, %v5279
  %v5281 = vadd.f32 %v5274, %v5280
  %v5282 = vadd.f32 %v5275, %v5280
  %v5283 = vadd.f32 %v5281, %v3633
  %v5284 = vadd.f32 %v5282, %v3634
  %v5285 = vsel %vm86, %v5283, 0.0
  %5286 = vadd.xlane.f32.xlu0 %v5285
  %v5287 = vpop.xlane.xlu0 %5286
  %v5288 = vsel %vm86, %v5284, 0.0
  %5289 = vadd.xlane.f32.xlu0 %v5288
  %v5290 = vpop.xlane.xlu0 %5289
  %v5291 = vmul.f32 %v5287, %v1675
  %v5292 = vmul.f32 %v5290, %v1675
  %v5293 = vsub.f32 %v5283, %v5291
  %v5294 = vsub.f32 %v5284, %v5292
  %v5295 = vmul.f32 %v5293, %v5293
  %v5296 = vmul.f32 %v5294, %v5294
  %v5297 = vsel %vm86, %v5295, 0.0
  %5298 = vadd.xlane.f32.xlu0 %v5297
  %v5299 = vpop.xlane.xlu0 %5298
  %v5300 = vsel %vm86, %v5296, 0.0
  %5301 = vadd.xlane.f32.xlu0 %v5300
  %v5302 = vpop.xlane.xlu0 %5301
  %v5303 = vmul.f32 %v5299, %v1675
  %v5304 = vmul.f32 %v5302, %v1675
  %v5305 = vld [vmem:[%s2 + $0x198] sm:$0x1]
  %v5306 = vadd.f32 %v5303, 1e-05
  %v5307 = vadd.f32 %v5304, 1e-05
  %v5308 = vrsqrt.pop %v5306
  %v5309 = vrsqrt.pop %v5307
  %v5310 = vmul.f32 %v5293, %v5308
  %v5311 = vmul.f32 %v5294, %v5309
  %v5312 = vlaneseq
  %v5313 = vshrl.u32 %v5312, 7
  %v5314 = vsub.s32 0, %v5313
  %v5315 = vrot.slane %v5305, %v5314
  %v5316 = vmul.f32 %v5315, %v5310
  %v5317 = vmul.f32 %v5315, %v5311
  %v5318 = vld [vmem:[%s2 + $0x1a0] sm:$0x1]
  %v5319 = vlaneseq
  %v5320 = vshrl.u32 %v5319, 7
  %v5321 = vsub.s32 0, %v5320
  %v5322 = vrot.slane %v5318, %v5321
  %v5323 = vadd.f32 %v5316, %v5322
  %v5324 = vadd.f32 %v5317, %v5322
  %v5325 = vld [vmem:[%s1 + $0x180] sm:$0xf]
  %v5326 = vld [vmem:[%s1 + $0x184] sm:$0xf]
  %v5327 = vld [vmem:[%s1 + $0x188] sm:$0xf]
  %v5328 = vld [vmem:[%s1 + $0x18c] sm:$0xf]
  %v5329 = vunpack.c.l.bf16 %v5325
  %v5330 = vunpack.c.l.bf16 %v5326
  %v5331 = vunpack.c.l.bf16 %v5327
  %v5332 = vunpack.c.l.bf16 %v5328
  %v5333 = vld [vmem:[%s2 + $0x1a8] sm:$0x1]
  %v5334 = vlaneseq
  %v5335 = vshrl.u32 %v5334, 7
  %v5336 = vsub.s32 0, %v5335
  %v5337 = vrot.slane %v5333, %v5336
  %v5339 = vsel %vm86, %v5323, 0
  %v5342 = vsel %vm86, %v5324, 0
  %5344 = vmatprep.subr.mxu0 0.0
  %5345 = vmatpush1.msra.mxu0 %v5329
  %5346 = vmatprep.subr.mxu0 0.0
  %5347 = vmatpush1.msra.mxu0 %v5330
  %5348 = vmatprep.subr.mxu0 0.0
  %5349 = vmatpush1.msra.mxu0 %v5331
  %5350 = vmatprep.subr.mxu0 0.0
  %5351 = vmatpush1.msra.mxu0 %v5332
  %5352 = vmatprep.subr.mxu0 0.0
  %5353 = vmatpush1.msra.mxu0 0.0
  %5354 = vmatprep.subr.mxu0 0.0
  %5355 = vmatpush1.msra.mxu0 0.0
  %5356 = vmatprep.subr.mxu0 0.0
  %5357 = vmatpush1.msra.mxu0 0.0
  %5358 = vmatprep.subr.mxu0 0.0
  %5359 = vmatpush1.msra.mxu0 0.0
  %5360 = vmatprep.subr.mxu0 0.0
  %5361 = vmatpush1.msra.mxu0 0.0
  %5362 = vmatprep.subr.mxu0 0.0
  %5363 = vmatpush1.msra.mxu0 0.0
  %5364 = vmatprep.subr.mxu0 0.0
  %5365 = vmatpush1.msra.mxu0 0.0
  %5366 = vmatprep.subr.mxu0 0.0
  %5367 = vmatpush1.msra.mxu0 0.0
  %5368 = vmatprep.subr.mxu0 0.0
  %5369 = vmatpush1.msra.mxu0 0.0
  %5370 = vmatprep.subr.mxu0 0.0
  %5371 = vmatpush1.msra.mxu0 0.0
  %5372 = vmatprep.subr.mxu0 0.0
  %5373 = vmatpush1.msra.mxu0 0.0
  %5374 = vmatprep.subr.mxu0 0.0
  %5375 = vmatpush1.msra.mxu0 0.0
  %5376 = vmatprep.subr.mxu0 0.0
  %5377 = vmatpush1.msra.mxu0 0.0
  %5378 = vmatprep.subr.mxu0 0.0
  %5379 = vmatpush1.msra.mxu0 0.0
  %5380 = vmatprep.subr.mxu0 0.0
  %5381 = vmatpush1.msra.mxu0 0.0
  %5382 = vmatprep.subr.mxu0 0.0
  %5383 = vmatpush1.msra.mxu0 0.0
  %5384 = vmatprep.subr.mxu0 0.0
  %5385 = vmatpush1.msra.mxu0 0.0
  %5386 = vmatprep.subr.mxu0 0.0
  %5387 = vmatpush1.msra.mxu0 0.0
  %5388 = vmatprep.subr.mxu0 0.0
  %5389 = vmatpush1.msra.mxu0 0.0
  %5390 = vmatprep.subr.mxu0 0.0
  %5391 = vmatpush1.msra.mxu0 0.0
  %5392 = vmatprep.subr.mxu0 0.0
  %5393 = vmatpush1.msra.mxu0 0.0
  %5394 = vmatprep.subr.mxu0 0.0
  %5395 = vmatpush1.msra.mxu0 0.0
  %5396 = vmatprep.subr.mxu0 0.0
  %5397 = vmatpush1.msra.mxu0 0.0
  %5398 = vmatprep.subr.mxu0 0.0
  %5399 = vmatpush1.msra.mxu0 0.0
  %5400 = vmatprep.subr.mxu0 0.0
  %5401 = vmatpush1.msra.mxu0 0.0
  %5402 = vmatprep.subr.mxu0 0.0
  %5403 = vmatpush1.msra.mxu0 0.0
  %5404 = vmatprep.subr.mxu0 0.0
  %5405 = vmatpush1.msra.mxu0 0.0
  %5406 = vmatprep.subr.mxu0 0.0
  %5407 = vmatpush1.msra.mxu0 0.0
  %5408 = vmatprep.mubr.f32.mxu0 0.0
  %5409 = vmatmul.mubr.f32.gmra.mrb[0].mxu0 %v5339
  %v5410 = vpop.f32.mrb[0].mxu0
  %v5411 = vadd.f32 %v5337, %v5410
  %v5412 = vpop.f32.mrb[0].mxu0
  %5413 = vmatprep.mubr.f32.mxu0 0.0
  %5414 = vmatmul.mubr.f32.gmra.mrb[0].mxu0 %v5342
  %v5415 = vpop.f32.mrb[0].mxu0
  %v5416 = vadd.f32 %v5337, %v5415
  %v5417 = vpop.f32.mrb[0].mxu0
  %5418 = vdwg.mxu0
  %v5419 = vmax.f32 %v5411, 0.0
  %v5420 = vmax.f32 %v5416, 0.0
  %v5421 = vld [vmem:[%s1 + $0x190] sm:$0xf]
  %v5422 = vld [vmem:[%s1 + $0x194] sm:$0xf]
  %v5423 = vld [vmem:[%s1 + $0x198] sm:$0xf]
  %v5424 = vld [vmem:[%s1 + $0x19c] sm:$0xf]
  %v5425 = vld [vmem:[%s1 + $0x1a0] sm:$0xf]
  %v5426 = vld [vmem:[%s1 + $0x1a4] sm:$0xf]
  %v5427 = vld [vmem:[%s1 + $0x1a8] sm:$0xf]
  %v5428 = vld [vmem:[%s1 + $0x1ac] sm:$0xf]
  %v5429 = vunpack.c.l.bf16 %v5421
  %v5430 = vunpack.c.l.bf16 %v5422
  %v5431 = vunpack.c.l.bf16 %v5423
  %v5432 = vunpack.c.l.bf16 %v5424
  %v5433 = vunpack.c.l.bf16 %v5425
  %v5434 = vunpack.c.l.bf16 %v5426
  %v5435 = vunpack.c.l.bf16 %v5427
  %v5436 = vunpack.c.l.bf16 %v5428
  %v5437 = vld [vmem:[%s2 + $0x1b0] sm:$0x1]
  %v5438 = vlaneseq
  %v5439 = vshrl.u32 %v5438, 7
  %v5440 = vsub.s32 0, %v5439
  %v5441 = vrot.slane %v5437, %v5440
  %v5443 = vsel %vm1827, %v5419, 0
  %v5446 = vsel %vm1827, %v5420, 0
  %5448 = vmatprep.subr.mxu0 0.0
  %5449 = vmatpush1.msra.mxu0 %v5429
  %5450 = vmatprep.subr.mxu0 0.0
  %5451 = vmatpush1.msra.mxu0 %v5430
  %5452 = vmatprep.subr.mxu0 0.0
  %5453 = vmatpush1.msra.mxu0 %v5431
  %5454 = vmatprep.subr.mxu0 0.0
  %5455 = vmatpush1.msra.mxu0 %v5432
  %5456 = vmatprep.subr.mxu0 0.0
  %5457 = vmatpush1.msra.mxu0 %v5433
  %5458 = vmatprep.subr.mxu0 0.0
  %5459 = vmatpush1.msra.mxu0 %v5434
  %5460 = vmatprep.subr.mxu0 0.0
  %5461 = vmatpush1.msra.mxu0 %v5435
  %5462 = vmatprep.subr.mxu0 0.0
  %5463 = vmatpush1.msra.mxu0 %v5436
  %5464 = vmatprep.subr.mxu0 0.0
  %5465 = vmatpush1.msra.mxu0 0.0
  %5466 = vmatprep.subr.mxu0 0.0
  %5467 = vmatpush1.msra.mxu0 0.0
  %5468 = vmatprep.subr.mxu0 0.0
  %5469 = vmatpush1.msra.mxu0 0.0
  %5470 = vmatprep.subr.mxu0 0.0
  %5471 = vmatpush1.msra.mxu0 0.0
  %5472 = vmatprep.subr.mxu0 0.0
  %5473 = vmatpush1.msra.mxu0 0.0
  %5474 = vmatprep.subr.mxu0 0.0
  %5475 = vmatpush1.msra.mxu0 0.0
  %5476 = vmatprep.subr.mxu0 0.0
  %5477 = vmatpush1.msra.mxu0 0.0
  %5478 = vmatprep.subr.mxu0 0.0
  %5479 = vmatpush1.msra.mxu0 0.0
  %5480 = vmatprep.subr.mxu0 0.0
  %5481 = vmatpush1.msra.mxu0 0.0
  %5482 = vmatprep.subr.mxu0 0.0
  %5483 = vmatpush1.msra.mxu0 0.0
  %5484 = vmatprep.subr.mxu0 0.0
  %5485 = vmatpush1.msra.mxu0 0.0
  %5486 = vmatprep.subr.mxu0 0.0
  %5487 = vmatpush1.msra.mxu0 0.0
  %5488 = vmatprep.subr.mxu0 0.0
  %5489 = vmatpush1.msra.mxu0 0.0
  %5490 = vmatprep.subr.mxu0 0.0
  %5491 = vmatpush1.msra.mxu0 0.0
  %5492 = vmatprep.subr.mxu0 0.0
  %5493 = vmatpush1.msra.mxu0 0.0
  %5494 = vmatprep.subr.mxu0 0.0
  %5495 = vmatpush1.msra.mxu0 0.0
  %5496 = vmatprep.subr.mxu0 0.0
  %5497 = vmatpush1.msra.mxu0 0.0
  %5498 = vmatprep.subr.mxu0 0.0
  %5499 = vmatpush1.msra.mxu0 0.0
  %5500 = vmatprep.subr.mxu0 0.0
  %5501 = vmatpush1.msra.mxu0 0.0
  %5502 = vmatprep.subr.mxu0 0.0
  %5503 = vmatpush1.msra.mxu0 0.0
  %5504 = vmatprep.subr.mxu0 0.0
  %5505 = vmatpush1.msra.mxu0 0.0
  %5506 = vmatprep.subr.mxu0 0.0
  %5507 = vmatpush1.msra.mxu0 0.0
  %5508 = vmatprep.subr.mxu0 0.0
  %5509 = vmatpush1.msra.mxu0 0.0
  %5510 = vmatprep.subr.mxu0 0.0
  %5511 = vmatpush1.msra.mxu0 0.0
  %5512 = vmatprep.mubr.f32.mxu0 0.0
  %5513 = vmatmul.mubr.f32.gmra.mrb[0].mxu0 %v5443
  %v5514 = vpop.f32.mrb[0].mxu0
  %v5515 = vadd.f32 %v5441, %v5514
  %v5516 = vpop.f32.mrb[0].mxu0
  %5517 = vmatprep.mubr.f32.mxu0 0.0
  %5518 = vmatmul.mubr.f32.gmra.mrb[0].mxu0 %v5446
  %v5519 = vpop.f32.mrb[0].mxu0
  %v5520 = vadd.f32 %v5441, %v5519
  %v5521 = vpop.f32.mrb[0].mxu0
  %5522 = vdwg.mxu0
  %v5523 = vadd.f32 %v5515, %v5323
  %v5524 = vadd.f32 %v5520, %v5324
  %v5525 = vsel %vm86, %v5523, 0.0
  %5526 = vadd.xlane.f32.xlu0 %v5525
  %v5527 = vpop.xlane.xlu0 %5526
  %v5528 = vsel %vm86, %v5524, 0.0
  %5529 = vadd.xlane.f32.xlu0 %v5528
  %v5530 = vpop.xlane.xlu0 %5529
  %v5531 = vmul.f32 %v5527, %v1675
  %v5532 = vmul.f32 %v5530, %v1675
  %v5533 = vsub.f32 %v5523, %v5531
  %v5534 = vsub.f32 %v5524, %v5532
  %v5535 = vmul.f32 %v5533, %v5533
  %v5536 = vmul.f32 %v5534, %v5534
  %v5537 = vsel %vm86, %v5535, 0.0
  %5538 = vadd.xlane.f32.xlu0 %v5537
  %v5539 = vpop.xlane.xlu0 %5538
  %v5540 = vsel %vm86, %v5536, 0.0
  %5541 = vadd.xlane.f32.xlu0 %v5540
  %v5542 = vpop.xlane.xlu0 %5541
  %v5543 = vmul.f32 %v5539, %v1675
  %v5544 = vmul.f32 %v5542, %v1675
  %v5545 = vld [vmem:[%s2 + $0x1b8] sm:$0x1]
  %v5546 = vadd.f32 %v5543, 1e-05
  %v5547 = vadd.f32 %v5544, 1e-05
  %v5548 = vrsqrt.pop %v5546
  %v5549 = vrsqrt.pop %v5547
  %v5550 = vmul.f32 %v5533, %v5548
  %v5551 = vmul.f32 %v5534, %v5549
  %v5552 = vlaneseq
  %v5553 = vshrl.u32 %v5552, 7
  %v5554 = vsub.s32 0, %v5553
  %v5555 = vrot.slane %v5545, %v5554
  %v5556 = vmul.f32 %v5555, %v5550
  %v5557 = vmul.f32 %v5555, %v5551
  %v5558 = vld [vmem:[%s2 + $0x1c0] sm:$0x1]
  %v5559 = vlaneseq
  %v5560 = vshrl.u32 %v5559, 7
  %v5561 = vsub.s32 0, %v5560
  %v5562 = vrot.slane %v5558, %v5561
  %v5563 = vadd.f32 %v5556, %v5562
  %v5564 = vadd.f32 %v5557, %v5562
  %v5565 = vld [vmem:[%s1 + $0x1b0] sm:$0xf]
  %v5566 = vld [vmem:[%s1 + $0x1b4] sm:$0xf]
  %v5567 = vld [vmem:[%s1 + $0x1b8] sm:$0xf]
  %v5568 = vld [vmem:[%s1 + $0x1bc] sm:$0xf]
  %v5569 = vunpack.c.l.bf16 %v5565
  %v5570 = vunpack.c.l.bf16 %v5566
  %v5571 = vunpack.c.l.bf16 %v5567
  %v5572 = vunpack.c.l.bf16 %v5568
  %v5573 = vld [vmem:[%s2 + $0x1c8] sm:$0x1]
  %v5574 = vlaneseq
  %v5575 = vshrl.u32 %v5574, 7
  %v5576 = vsub.s32 0, %v5575
  %v5577 = vrot.slane %v5573, %v5576
  %v5579 = vsel %vm86, %v5563, 0
  %v5582 = vsel %vm86, %v5564, 0
  %5584 = vmatprep.subr.mxu0 0.0
  %5585 = vmatpush1.msra.mxu0 %v5569
  %5586 = vmatprep.subr.mxu0 0.0
  %5587 = vmatpush1.msra.mxu0 %v5570
  %5588 = vmatprep.subr.mxu0 0.0
  %5589 = vmatpush1.msra.mxu0 %v5571
  %5590 = vmatprep.subr.mxu0 0.0
  %5591 = vmatpush1.msra.mxu0 %v5572
  %5592 = vmatprep.subr.mxu0 0.0
  %5593 = vmatpush1.msra.mxu0 0.0
  %5594 = vmatprep.subr.mxu0 0.0
  %5595 = vmatpush1.msra.mxu0 0.0
  %5596 = vmatprep.subr.mxu0 0.0
  %5597 = vmatpush1.msra.mxu0 0.0
  %5598 = vmatprep.subr.mxu0 0.0
  %5599 = vmatpush1.msra.mxu0 0.0
  %5600 = vmatprep.subr.mxu0 0.0
  %5601 = vmatpush1.msra.mxu0 0.0
  %5602 = vmatprep.subr.mxu0 0.0
  %5603 = vmatpush1.msra.mxu0 0.0
  %5604 = vmatprep.subr.mxu0 0.0
  %5605 = vmatpush1.msra.mxu0 0.0
  %5606 = vmatprep.subr.mxu0 0.0
  %5607 = vmatpush1.msra.mxu0 0.0
  %5608 = vmatprep.subr.mxu0 0.0
  %5609 = vmatpush1.msra.mxu0 0.0
  %5610 = vmatprep.subr.mxu0 0.0
  %5611 = vmatpush1.msra.mxu0 0.0
  %5612 = vmatprep.subr.mxu0 0.0
  %5613 = vmatpush1.msra.mxu0 0.0
  %5614 = vmatprep.subr.mxu0 0.0
  %5615 = vmatpush1.msra.mxu0 0.0
  %5616 = vmatprep.subr.mxu0 0.0
  %5617 = vmatpush1.msra.mxu0 0.0
  %5618 = vmatprep.subr.mxu0 0.0
  %5619 = vmatpush1.msra.mxu0 0.0
  %5620 = vmatprep.subr.mxu0 0.0
  %5621 = vmatpush1.msra.mxu0 0.0
  %5622 = vmatprep.subr.mxu0 0.0
  %5623 = vmatpush1.msra.mxu0 0.0
  %5624 = vmatprep.subr.mxu0 0.0
  %5625 = vmatpush1.msra.mxu0 0.0
  %5626 = vmatprep.subr.mxu0 0.0
  %5627 = vmatpush1.msra.mxu0 0.0
  %5628 = vmatprep.subr.mxu0 0.0
  %5629 = vmatpush1.msra.mxu0 0.0
  %5630 = vmatprep.subr.mxu0 0.0
  %5631 = vmatpush1.msra.mxu0 0.0
  %5632 = vmatprep.subr.mxu0 0.0
  %5633 = vmatpush1.msra.mxu0 0.0
  %5634 = vmatprep.subr.mxu0 0.0
  %5635 = vmatpush1.msra.mxu0 0.0
  %5636 = vmatprep.subr.mxu0 0.0
  %5637 = vmatpush1.msra.mxu0 0.0
  %5638 = vmatprep.subr.mxu0 0.0
  %5639 = vmatpush1.msra.mxu0 0.0
  %5640 = vmatprep.subr.mxu0 0.0
  %5641 = vmatpush1.msra.mxu0 0.0
  %5642 = vmatprep.subr.mxu0 0.0
  %5643 = vmatpush1.msra.mxu0 0.0
  %5644 = vmatprep.subr.mxu0 0.0
  %5645 = vmatpush1.msra.mxu0 0.0
  %5646 = vmatprep.subr.mxu0 0.0
  %5647 = vmatpush1.msra.mxu0 0.0
  %5648 = vmatprep.mubr.f32.mxu0 0.0
  %5649 = vmatmul.mubr.f32.gmra.mrb[0].mxu0 %v5579
  %v5650 = vpop.f32.mrb[0].mxu0
  %v5651 = vadd.f32 %v5577, %v5650
  %v5652 = vpop.f32.mrb[0].mxu0
  %5653 = vmatprep.mubr.f32.mxu0 0.0
  %5654 = vmatmul.mubr.f32.gmra.mrb[0].mxu0 %v5582
  %v5655 = vpop.f32.mrb[0].mxu0
  %v5656 = vadd.f32 %v5577, %v5655
  %v5657 = vpop.f32.mrb[0].mxu0
  %5658 = vdwg.mxu0
  %5659 = vst [vmem:[%s3] sm:$0xff] %v5651
  %5660 = vst [vmem:[%s3 + $0x8] sm:$0xff] %v5656
  // Predicated region
  $region14: #{transformer_forward.1} parent=0 // pred_check
    _
  $region15: #{transformer_forward.1} parent=0 // pred_check_branch
    %5662 = sbr.rel (0) target = $region17
  $region16: #{transformer_forward.1} parent=0 // pred_region
    _
  $region17: #{transformer_forward.1} parent=0 // pred_fallthru
    _
  // Predicated region
  $region18: #{transformer_forward.1} parent=0 // pred_check
    _
  $region19: #{transformer_forward.1} parent=0 // pred_check_branch
    %5664 = sbr.rel (0) target = $region21
  $region20: #{transformer_forward.1} parent=0 // pred_region
    _
  $region21: #{transformer_forward.1} parent=0 // pred_fallthru
    _

</llo_original>
